<compile_context>
chip_gen: v6e
topology: v6e:2x2x1
jax: 0.10.0
libtpu: 0.0.40
codegen_flags: <defaults>
</compile_context>

<pallas_src>
import functools

import jax
import jax.numpy as jnp
from jax.experimental import pallas as pl
from jax.experimental.pallas import tpu as pltpu

_VMEM_BUDGET = 16 * 1024 * 1024   # conservative: fits v5e's 16 MiB default too
_VMEM_LIMIT = 32 * 1024 * 1024    # raised scoped limit (safe on 64 MiB v7x)
_MAX_MM_ROWS = 256                # max row tile for the fused conv matmul
_MAX_EW_ROWS = 1024               # max row tile for the elementwise kernel


def _pick_rows(m, bytes_per_row, fixed_bytes, max_rows):
    """Pick a row tile TM (preferring a divisor of m, multiple of 8) + padded M."""
    avail = max(_VMEM_BUDGET - fixed_bytes, 8 * bytes_per_row)
    cap = int(min(max_rows, max(8, avail // max(bytes_per_row, 1))))
    if m <= cap:
        return m, m                      # one full-size block, no padding
    tm = (cap // 8) * 8
    while tm >= 8:                       # prefer a tile that divides m exactly
        if m % tm == 0:
            return tm, m
        tm -= 8
    tm = max(8, min(256, (cap // 8) * 8))   # rare fallback: pad rows with zeros
    return tm, ((m + tm - 1) // tm) * tm


# ----------------------------- Pallas kernels -----------------------------

def _fused_conv_kernel(*refs, has_affine, has_bias, has_residual, act,
                       emit_stats):
    """patches-tile @ resident-weights with fused epilogue and optional stats.

    Ref order: a, b, [scale, shift | shift], [residual], out, [stats]."""
    refs = list(refs)
    a_ref = refs.pop(0)
    b_ref = refs.pop(0)
    scale_ref = shift_ref = res_ref = None
    if has_affine:
        scale_ref = refs.pop(0)
        shift_ref = refs.pop(0)
    elif has_bias:
        shift_ref = refs.pop(0)
    if has_residual:
        res_ref = refs.pop(0)
    out_ref = refs.pop(0)
    stats_ref = refs.pop(0) if emit_stats else None

    y = jnp.dot(a_ref[...], b_ref[...], preferred_element_type=jnp.float32)

    if emit_stats:
        # Per-channel sum / sum-of-squares of the RAW conv output (for BN).
        s = jnp.sum(y, axis=0, keepdims=True)
        s2 = jnp.sum(y * y, axis=0, keepdims=True)
        row = jax.lax.broadcasted_iota(jnp.int32, stats_ref.shape, 0)
        stats_ref[...] = jnp.where(row == 0, s, jnp.where(row == 1, s2, 0.0))

    if has_affine:
        y = y * scale_ref[...] + shift_ref[...]
    elif has_bias:
        y = y + shift_ref[...]
    if has_residual:
        y = y + res_ref[...]
    if act == "relu":
        y = jnp.maximum(y, 0.0)
    elif act == "tanh":
        y = jnp.tanh(y)
    out_ref[...] = y.astype(out_ref.dtype)


def fused_conv_matmul(patches, wmat, *, scale=None, shift=None, residual=None,
                      act="none", emit_stats=False,
                      compute_dtype=jnp.float32):
    """(M, K) @ (K, C) with fused per-channel affine / bias / residual / act."""
    m, k = patches.shape
    k2, c = wmat.shape
    assert k == k2
    has_affine = scale is not None
    has_bias = (shift is not None) and not has_affine
    in_bytes = jnp.dtype(compute_dtype).itemsize

    # VMEM estimate: double-buffered A rows + out (+ residual) rows; weights,
    # scale/shift and stats blocks are (nearly) fixed cost.
    bytes_per_row = 2 * k * in_bytes + 2 * c * 4
    if residual is not None:
        bytes_per_row += 2 * c * 4
    fixed = 2 * k * c * in_bytes + 4 * 8 * c * 4 + 4 * 2 * c * 4
    tm, mp = _pick_rows(m, bytes_per_row, fixed, _MAX_MM_ROWS)

    patches = patches.astype(compute_dtype)
    wmat = wmat.astype(compute_dtype)
    if mp != m:
        patches = jnp.pad(patches, ((0, mp - m), (0, 0)))
        if residual is not None:
            residual = jnp.pad(residual, ((0, mp - m), (0, 0)))

    grid = (mp // tm,)
    args = [patches, wmat]
    in_specs = [pl.BlockSpec((tm, k), lambda i: (i, 0)),
                pl.BlockSpec((k, c), lambda i: (0, 0))]   # weights VMEM-resident
    if has_affine:
        args += [scale.reshape(1, c).astype(jnp.float32),
                 shift.reshape(1, c).astype(jnp.float32)]
        in_specs += [pl.BlockSpec((1, c), lambda i: (0, 0)),
                     pl.BlockSpec((1, c), lambda i: (0, 0))]
    elif has_bias:
        args += [shift.reshape(1, c).astype(jnp.float32)]
        in_specs += [pl.BlockSpec((1, c), lambda i: (0, 0))]
    if residual is not None:
        args += [residual.astype(jnp.float32)]
        in_specs += [pl.BlockSpec((tm, c), lambda i: (i, 0))]

    out_shape = [jax.ShapeDtypeStruct((mp, c), jnp.float32)]
    out_specs = [pl.BlockSpec((tm, c), lambda i: (i, 0))]
    if emit_stats:
        out_shape.append(jax.ShapeDtypeStruct((grid[0] * 8, c), jnp.float32))
        out_specs.append(pl.BlockSpec((8, c), lambda i: (i, 0)))

    kernel = functools.partial(
        _fused_conv_kernel, has_affine=has_affine, has_bias=has_bias,
        has_residual=residual is not None, act=act, emit_stats=emit_stats)
    res = pl.pallas_call(
        kernel,
        out_shape=tuple(out_shape),
        grid_spec=pltpu.PrefetchScalarGridSpec(
            num_scalar_prefetch=0, grid=grid,
            in_specs=in_specs, out_specs=tuple(out_specs)),
        compiler_params=pltpu.CompilerParams(
            dimension_semantics=("parallel",),
            vmem_limit_bytes=_VMEM_LIMIT),
    )(*args)
    out = res[0][:m] if mp != m else res[0]
    if emit_stats:
        return out, res[1]
    return out


def _affine_act_kernel(x_ref, s_ref, t_ref, o_ref, *, act):
    y = x_ref[...] * s_ref[...] + t_ref[...]
    if act == "relu":
        y = jnp.maximum(y, 0.0)
    elif act == "tanh":
        y = jnp.tanh(y)
    o_ref[...] = y


def pallas_affine_act(x, scale, shift, act="none"):
    """y = act(x * scale + shift), per-channel scale/shift; x: (M, C) f32."""
    m, c = x.shape
    tm, mp = _pick_rows(m, 4 * 4 * c, 4 * 4 * c, _MAX_EW_ROWS)
    if mp != m:
        x = jnp.pad(x, ((0, mp - m), (0, 0)))
    out = pl.pallas_call(
        functools.partial(_affine_act_kernel, act=act),
        out_shape=jax.ShapeDtypeStruct((mp, c), jnp.float32),
        grid_spec=pltpu.PrefetchScalarGridSpec(
            num_scalar_prefetch=0, grid=(mp // tm,),
            in_specs=[pl.BlockSpec((tm, c), lambda i: (i, 0)),
                      pl.BlockSpec((1, c), lambda i: (0, 0)),
                      pl.BlockSpec((1, c), lambda i: (0, 0))],
            out_specs=pl.BlockSpec((tm, c), lambda i: (i, 0))),
        compiler_params=pltpu.CompilerParams(
            dimension_semantics=("parallel",),
            vmem_limit_bytes=_VMEM_LIMIT),
    )(x, scale.reshape(1, c).astype(jnp.float32),
      shift.reshape(1, c).astype(jnp.float32))
    return out[:m] if mp != m else out


# ------------------------------- glue (JAX) -------------------------------

def _reflect_pad(x, p):
    return jnp.pad(x, ((0, 0), (p, p), (p, p), (0, 0)), mode="reflect")


def _zero_pad(x, p):
    return jnp.pad(x, ((0, 0), (p, p), (p, p), (0, 0)))


def _im2col(x, kh, kw, stride):
    n, h, w, c = x.shape
    ho = (h - kh) // stride + 1
    wo = (w - kw) // stride + 1
    cols = []
    for i in range(kh):
        for j in range(kw):
            cols.append(x[:, i:i + stride * ho:stride,
                          j:j + stride * wo:stride, :])
    patches = jnp.concatenate(cols, axis=-1)          # (n, ho, wo, kh*kw*c)
    return patches.reshape(n * ho * wo, kh * kw * c), (n, ho, wo)


def _weight_matrix(w):
    """PyTorch conv weight (Cout, Cin, kh, kw) -> (kh*kw*Cin, Cout)."""
    cout, cin, kh, kw = w.shape
    return jnp.transpose(w, (2, 3, 1, 0)).reshape(kh * kw * cin, cout)


def _bn_scale_shift_from_stats(stats, count, gamma, beta, eps=1e-5):
    """BN (training-mode batch stats, biased variance) from fused kernel stats."""
    s = stats.reshape(-1, 8, stats.shape[-1])
    total = jnp.sum(s[:, 0, :], axis=0)
    total_sq = jnp.sum(s[:, 1, :], axis=0)
    mean = total / count
    var = jnp.maximum(total_sq / count - mean * mean, 0.0)
    scale = gamma * jax.lax.rsqrt(var + eps)
    shift = beta - mean * scale
    return scale, shift


def _conv_transpose_phases(h, w, compute_dtype):
    """ConvTranspose2d(k=3, s=2, p=1, output_padding=1), w: (Cin, Cout, 3, 3).

    Phase decomposition: each output-pixel parity is a small conv over the
    input (no zero-dilated patches => ~4x fewer MACs than dense conv)."""
    n, hh, ww, cin = h.shape
    cout = w.shape[1]
    hz = jnp.pad(h, ((0, 0), (0, 1), (0, 1), (0, 0)))
    x00 = hz[:, :hh, :ww, :]
    x01 = hz[:, :hh, 1:ww + 1, :]
    x10 = hz[:, 1:hh + 1, :ww, :]
    x11 = hz[:, 1:hh + 1, 1:ww + 1, :]
    flat = lambda a: a.reshape(n * hh * ww, cin)
    wm = lambda i, j: w[:, :, i, j]                    # (Cin, Cout)

    phases = [
        ([x00], [wm(1, 1)]),                                    # out[2p,   2q  ]
        ([x00, x01], [wm(1, 2), wm(1, 0)]),                     # out[2p,   2q+1]
        ([x00, x10], [wm(2, 1), wm(0, 1)]),                     # out[2p+1, 2q  ]
        ([x00, x01, x10, x11],
         [wm(2, 2), wm(2, 0), wm(0, 2), wm(0, 0)]),             # out[2p+1, 2q+1]
    ]
    outs, stats_list = [], []
    for xs, ws in phases:
        patches = (flat(xs[0]) if len(xs) == 1
                   else jnp.concatenate([flat(a) for a in xs], axis=-1))
        wmat = ws[0] if len(ws) == 1 else jnp.concatenate(ws, axis=0)
        o, st = fused_conv_matmul(patches, wmat, emit_stats=True,
                                  compute_dtype=compute_dtype)
        outs.append(o.reshape(n, hh, ww, cout))
        stats_list.append(st)

    # Interleave the 4 parities back into (n, 2H, 2W, Cout).
    stacked = jnp.stack([jnp.stack([outs[0], outs[1]], axis=0),
                         jnp.stack([outs[2], outs[3]], axis=0)], axis=0)
    y = jnp.transpose(stacked, (2, 3, 0, 4, 1, 5)).reshape(n, 2 * hh, 2 * ww,
                                                           cout)
    return y, jnp.concatenate(stats_list, axis=0)


# ----------------------------- model forward ------------------------------

def resnet_generator_forward(params, x_nchw, *, compute_dtype=jnp.float32):
    x = jnp.transpose(x_nchw.astype(jnp.float32), (0, 2, 3, 1))  # NCHW -> NHWC

    def conv_bn_relu(xpadded, w, gamma, beta, stride):
        patches, (n, ho, wo) = _im2col(xpadded, w.shape[2], w.shape[3], stride)
        flat, stats = fused_conv_matmul(patches, _weight_matrix(w),
                                        emit_stats=True,
                                        compute_dtype=compute_dtype)
        scale, shift = _bn_scale_shift_from_stats(stats, n * ho * wo,
                                                  gamma, beta)
        flat = pallas_affine_act(flat, scale, shift, act="relu")
        return flat.reshape(n, ho, wo, -1)

    # stem: ReflectionPad2d(3) -> Conv7x7 (no bias) -> BN -> ReLU
    h = conv_bn_relu(_reflect_pad(x, 3), params["conv1_w"],
                     params["bn1_g"], params["bn1_b"], 1)

    # 2 downsampling convs: Conv3x3 s2 p1 (no bias) -> BN -> ReLU
    for layer in params["down"]:
        h = conv_bn_relu(_zero_pad(h, 1), layer["w"], layer["g"], layer["b"], 2)

    # ResNet blocks (per reference code: no norm inside the block, no bias).
    # Conv1 fuses ReLU; conv2 fuses the residual add — 2 kernels per block.
    dim = h.shape[-1]
    for blk in params["blocks"]:
        n, hh, ww, _ = h.shape
        res = h.reshape(n * hh * ww, dim)
        patches, _ = _im2col(_reflect_pad(h, 1), 3, 3, 1)
        t = fused_conv_matmul(patches, _weight_matrix(blk["w1"]), act="relu",
                              compute_dtype=compute_dtype)
        patches, _ = _im2col(_reflect_pad(t.reshape(n, hh, ww, dim), 1),
                             3, 3, 1)
        flat = fused_conv_matmul(patches, _weight_matrix(blk["w2"]),
                                 residual=res, compute_dtype=compute_dtype)
        h = flat.reshape(n, hh, ww, dim)

    # 2 upsampling ConvTranspose2d (no bias) -> BN -> ReLU (phase-decomposed)
    for layer in params["up"]:
        y, stats = _conv_transpose_phases(h, layer["w"], compute_dtype)
        n, ho, wo, c = y.shape
        scale, shift = _bn_scale_shift_from_stats(stats, n * ho * wo,
                                                  layer["g"], layer["b"])
        flat = pallas_affine_act(y.reshape(n * ho * wo, c), scale, shift,
                                 act="relu")
        h = flat.reshape(n, ho, wo, c)

    # final: ReflectionPad2d(3) -> Conv7x7 (+bias) -> Tanh, fully fused.
    patches, (n, ho, wo) = _im2col(_reflect_pad(h, 3), 7, 7, 1)
    flat = fused_conv_matmul(patches, _weight_matrix(params["convf_w"]),
                             shift=params["convf_b"], act="tanh",
                             compute_dtype=compute_dtype)
    h = flat.reshape(n, ho, wo, -1)
    return jnp.transpose(h, (0, 3, 1, 2))                        # back to NCHW


# ----------------------- pure-JAX reference forward ------------------------

def _ref_forward(params, x_nchw):
    """Independent formulation (dense dilation-based transpose conv, two-pass
    BN, unfused epilogues) used only to validate the Pallas pipeline."""
    x = jnp.transpose(x_nchw.astype(jnp.float32), (0, 2, 3, 1))

    def conv(xp, w, stride):
        patches, (n, ho, wo) = _im2col(xp, w.shape[2], w.shape[3], stride)
        return jnp.dot(patches, _weight_matrix(w),
                       preferred_element_type=jnp.float32), (n, ho, wo)

    def bn(flat, gamma, beta, eps=1e-5):
        mean = jnp.mean(flat, axis=0)
        var = jnp.mean(jnp.square(flat - mean[None, :]), axis=0)
        scale = gamma * jax.lax.rsqrt(var + eps)
        return flat * scale[None, :] + (beta - mean * scale)[None, :]

    flat, (n, hh, ww) = conv(_reflect_pad(x, 3), params["conv1_w"], 1)
    h = jnp.maximum(bn(flat, params["bn1_g"], params["bn1_b"]),
                    0.0).reshape(n, hh, ww, -1)
    for layer in params["down"]:
        flat, (n, hh, ww) = conv(_zero_pad(h, 1), layer["w"], 2)
        h = jnp.maximum(bn(flat, layer["g"], layer["b"]),
                        0.0).reshape(n, hh, ww, -1)
    dim = h.shape[-1]
    for blk in params["blocks"]:
        res = h
        flat, (n, hh, ww) = conv(_reflect_pad(h, 1), blk["w1"], 1)
        t = jnp.maximum(flat, 0.0).reshape(n, hh, ww, dim)
        flat, _ = conv(_reflect_pad(t, 1), blk["w2"], 1)
        h = res + flat.reshape(n, hh, ww, dim)
    for layer in params["up"]:
        nn_, hh, ww, c = h.shape
        xd = jnp.zeros((nn_, 2 * hh - 1, 2 * ww - 1, c), h.dtype)
        xd = xd.at[:, ::2, ::2, :].set(h)
        xp = jnp.pad(xd, ((0, 0), (1, 2), (1, 2), (0, 0)))
        w_eq = jnp.transpose(jnp.flip(layer["w"], axis=(2, 3)), (1, 0, 2, 3))
        flat, (n, ho, wo) = conv(xp, w_eq, 1)
        h = jnp.maximum(bn(flat, layer["g"], layer["b"]),
                        0.0).reshape(n, ho, wo, -1)
    flat, (n, ho, wo) = conv(_reflect_pad(h, 3), params["convf_w"], 1)
    h = jnp.tanh(flat + params["convf_b"][None, :]).reshape(n, ho, wo, -1)
    return jnp.transpose(h, (0, 3, 1, 2))


# ------------------------- deterministic parameters ------------------------

def init_params(key, input_nc, output_nc, ngf, n_blocks):
    keys = iter(jax.random.split(key, 64))

    def w(shape, scale=0.05):
        return scale * jax.random.normal(next(keys), shape, jnp.float32)

    params = {
        "conv1_w": w((ngf, input_nc, 7, 7)),
        "bn1_g": jnp.ones((ngf,), jnp.float32),
        "bn1_b": jnp.zeros((ngf,), jnp.float32),
        "down": [], "blocks": [], "up": [],
    }
    for i in range(2):
        mult = 2 ** i
        params["down"].append({
            "w": w((ngf * mult * 2, ngf * mult, 3, 3)),
            "g": jnp.ones((ngf * mult * 2,), jnp.float32),
            "b": jnp.zeros((ngf * mult * 2,), jnp.float32)})
    dim = ngf * 4
    for _ in range(n_blocks):
        params["blocks"].append({"w1": w((dim, dim, 3, 3)),
                                 "w2": w((dim, dim, 3, 3))})
    for i in range(2):
        mult = 2 ** (2 - i)
        params["up"].append({
            "w": w((ngf * mult, ngf * mult // 2, 3, 3)),  # (Cin, Cout, kh, kw)
            "g": jnp.ones((ngf * mult // 2,), jnp.float32),
            "b": jnp.zeros((ngf * mult // 2,), jnp.float32)})
    params["convf_w"] = w((output_nc, ngf, 7, 7))
    params["convf_b"] = w((output_nc,))
    return params


if __name__ == "__main__":
    key = jax.random.PRNGKey(0)
    pkey, xkey = jax.random.split(key)

    # small config consistent with ResnetGenerator(input_nc, output_nc, ngf, n_blocks)
    input_nc, output_nc, ngf, n_blocks = 3, 3, 8, 2
    params = init_params(pkey, input_nc, output_nc, ngf, n_blocks)
    x = jax.random.normal(xkey, (2, input_nc, 16, 16), jnp.float32)  # NCHW

    fwd = jax.jit(functools.partial(resnet_generator_forward,
                                    compute_dtype=jnp.float32))
    out = jax.block_until_ready(fwd(params, x))

    ref = jax.jit(_ref_forward)(params, x)
    assert out.shape == (2, output_nc, 16, 16), out.shape
    assert bool(jnp.all(jnp.isfinite(out)))
    max_err = float(jnp.max(jnp.abs(out - ref)))
    assert jnp.allclose(out, ref, rtol=2e-2, atol=2e-2), max_err

    # bf16 MXU-operand path (recommended on v6e/v7x): f32 accumulation /
    # epilogues, so only a loose numerical check against the f32 reference.
    fwd_bf16 = jax.jit(functools.partial(resnet_generator_forward,
                                         compute_dtype=jnp.bfloat16))
    out_bf16 = jax.block_until_ready(fwd_bf16(params, x))
    assert bool(jnp.all(jnp.isfinite(out_bf16)))
    assert float(jnp.max(jnp.abs(out_bf16 - ref))) < 1e-1

    print("KERNEL_OK")
</pallas_src>

<mosaic_0001>
module attributes {stable_mosaic.version = 11 : i64} {
  func.func @_fused_conv_kernel(%arg0: i32, %arg1: memref<256x147xf32, #tpu.memory_space<vmem>>, %arg2: memref<147x8xf32, #tpu.memory_space<vmem>>, %arg3: memref<256x8xf32, #tpu.memory_space<vmem>>, %arg4: memref<8x8xf32, #tpu.memory_space<vmem>>) attributes {dimension_semantics = [#tpu.dimension_semantics<parallel>], iteration_bounds = array<i64: 2>, scalar_prefetch = 0 : i64, scratch_operands = 0 : i64, tpu.core_type = #tpu.core_type<tc>, window_params = [{transform_indices = @transform_0, window_bounds = array<i64: 256, 147>}, {pipeline_mode = #tpu.pipeline_mode<synchronous>, transform_indices = @transform_1, window_bounds = array<i64: 147, 8>}, {transform_indices = @transform_2, window_bounds = array<i64: 256, 8>}, {transform_indices = @transform_3, window_bounds = array<i64: 8, 8>}]} {
    %c0 = arith.constant 0 : index
    %c0_0 = arith.constant 0 : index
    %0 = vector.load %arg1[%c0, %c0_0] : memref<256x147xf32, #tpu.memory_space<vmem>>, vector<256x147xf32>
    %c0_1 = arith.constant 0 : index
    %c0_2 = arith.constant 0 : index
    %1 = vector.load %arg2[%c0_1, %c0_2] : memref<147x8xf32, #tpu.memory_space<vmem>>, vector<147x8xf32>
    %cst = arith.constant dense<0.000000e+00> : vector<256x8xf32>
    %2 = tpu.matmul %0, %1, %cst {dimension_numbers = #tpu.dot_dimension_numbers<[1], [0], [0], [1], [0, 0, 1, 1], [], []>} : vector<256x147xf32>, vector<147x8xf32>, vector<256x8xf32> -> vector<256x8xf32>
    %cst_3 = arith.constant dense<0.000000e+00> : vector<8xf32>
    %3 = vector.multi_reduction <add>, %2, %cst_3 [0] : vector<256x8xf32> to vector<8xf32>
    %4 = vector.shape_cast %3 : vector<8xf32> to vector<1x8xf32>
    %5 = arith.mulf %2, %2 : vector<256x8xf32>
    %cst_4 = arith.constant dense<0.000000e+00> : vector<8xf32>
    %6 = vector.multi_reduction <add>, %5, %cst_4 [0] : vector<256x8xf32> to vector<8xf32>
    %7 = vector.shape_cast %6 : vector<8xf32> to vector<1x8xf32>
    %8 = tpu.iota {dimensions = array<i32: 0>} : vector<8x8xi32>
    %c0_i32 = arith.constant 0 : i32
    %9 = vector.broadcast %c0_i32 : i32 to vector<8x8xi32>
    %10 = arith.cmpi eq, %8, %9 : vector<8x8xi32>
    %c1_i32 = arith.constant 1 : i32
    %11 = vector.broadcast %c1_i32 : i32 to vector<8x8xi32>
    %12 = arith.cmpi eq, %8, %11 : vector<8x8xi32>
    %cst_5 = arith.constant 0.000000e+00 : f32
    %13 = vector.shape_cast %7 : vector<1x8xf32> to vector<1x8xf32>
    %14 = vector.broadcast %13 : vector<1x8xf32> to vector<8x8xf32>
    %15 = vector.broadcast %cst_5 : f32 to vector<8x8xf32>
    %16 = arith.select %12, %14, %15 : vector<8x8xi1>, vector<8x8xf32>
    %17 = vector.shape_cast %4 : vector<1x8xf32> to vector<1x8xf32>
    %18 = vector.broadcast %17 : vector<1x8xf32> to vector<8x8xf32>
    %19 = arith.select %10, %18, %16 : vector<8x8xi1>, vector<8x8xf32>
    %c0_6 = arith.constant 0 : index
    %c0_7 = arith.constant 0 : index
    %20 = vector.load %arg4[%c0_6, %c0_7] : memref<8x8xf32, #tpu.memory_space<vmem>>, vector<8x8xf32>
    tpu.vector_store %arg4[%c0_6, %c0_7], %19 {strides = array<i32>} : memref<8x8xf32, #tpu.memory_space<vmem>>, vector<8x8xf32>,
    %c0_8 = arith.constant 0 : index
    %c0_9 = arith.constant 0 : index
    %21 = vector.load %arg3[%c0_8, %c0_9] : memref<256x8xf32, #tpu.memory_space<vmem>>, vector<256x8xf32>
    tpu.vector_store %arg3[%c0_8, %c0_9], %2 {strides = array<i32>} : memref<256x8xf32, #tpu.memory_space<vmem>>, vector<256x8xf32>,
    return
  }
  func.func @transform_0(%arg0: i32) -> (i32, i32) {
    %c0_i32 = arith.constant 0 : i32
    %c0_i32_0 = arith.constant 0 : i32
    return %arg0, %c0_i32 : i32, i32
  }
  func.func @transform_1(%arg0: i32) -> (i32, i32) {
    %c0_i32 = arith.constant 0 : i32
    %c0_i32_0 = arith.constant 0 : i32
    %c0_i32_1 = arith.constant 0 : i32
    return %c0_i32, %c0_i32_0 : i32, i32
  }
  func.func @transform_2(%arg0: i32) -> (i32, i32) {
    %c0_i32 = arith.constant 0 : i32
    %c0_i32_0 = arith.constant 0 : i32
    return %arg0, %c0_i32 : i32, i32
  }
  func.func @transform_3(%arg0: i32) -> (i32, i32) {
    %c0_i32 = arith.constant 0 : i32
    %c0_i32_0 = arith.constant 0 : i32
    return %arg0, %c0_i32 : i32, i32
  }
}

module attributes {stable_mosaic.version = 11 : i64} {
  func.func @_affine_act_kernel(%arg0: i32, %arg1: memref<512x8xf32, #tpu.memory_space<vmem>>, %arg2: memref<1x8xf32, #tpu.memory_space<vmem>>, %arg3: memref<1x8xf32, #tpu.memory_space<vmem>>, %arg4: memref<512x8xf32, #tpu.memory_space<vmem>>) attributes {dimension_semantics = [#tpu.dimension_semantics<parallel>], iteration_bounds = array<i64: 1>, scalar_prefetch = 0 : i64, scratch_operands = 0 : i64, tpu.core_type = #tpu.core_type<tc>, window_params = [{transform_indices = @transform_0, window_bounds = array<i64: 512, 8>}, {pipeline_mode = #tpu.pipeline_mode<synchronous>, transform_indices = @transform_1, window_bounds = array<i64: 1, 8>}, {pipeline_mode = #tpu.pipeline_mode<synchronous>, transform_indices = @transform_2, window_bounds = array<i64: 1, 8>}, {transform_indices = @transform_3, window_bounds = array<i64: 512, 8>}]} {
    %c0 = arith.constant 0 : index
    %c0_0 = arith.constant 0 : index
    %0 = vector.load %arg1[%c0, %c0_0] : memref<512x8xf32, #tpu.memory_space<vmem>>, vector<512x8xf32>
    %c0_1 = arith.constant 0 : index
    %c0_2 = arith.constant 0 : index
    %1 = vector.load %arg2[%c0_1, %c0_2] : memref<1x8xf32, #tpu.memory_space<vmem>>, vector<1x8xf32>
    %2 = vector.broadcast %1 : vector<1x8xf32> to vector<512x8xf32>
    %3 = arith.mulf %0, %2 : vector<512x8xf32>
    %c0_3 = arith.constant 0 : index
    %c0_4 = arith.constant 0 : index
    %4 = vector.load %arg3[%c0_3, %c0_4] : memref<1x8xf32, #tpu.memory_space<vmem>>, vector<1x8xf32>
    %5 = vector.broadcast %4 : vector<1x8xf32> to vector<512x8xf32>
    %6 = arith.addf %3, %5 : vector<512x8xf32>
    %cst = arith.constant 0.000000e+00 : f32
    %7 = vector.broadcast %cst : f32 to vector<512x8xf32>
    %8 = arith.maximumf %6, %7 : vector<512x8xf32>
    %c0_5 = arith.constant 0 : index
    %c0_6 = arith.constant 0 : index
    %9 = vector.load %arg4[%c0_5, %c0_6] : memref<512x8xf32, #tpu.memory_space<vmem>>, vector<512x8xf32>
    tpu.vector_store %arg4[%c0_5, %c0_6], %8 {strides = array<i32>} : memref<512x8xf32, #tpu.memory_space<vmem>>, vector<512x8xf32>,
    return
  }
  func.func @transform_0(%arg0: i32) -> (i32, i32) {
    %c0_i32 = arith.constant 0 : i32
    %c0_i32_0 = arith.constant 0 : i32
    return %arg0, %c0_i32 : i32, i32
  }
  func.func @transform_1(%arg0: i32) -> (i32, i32) {
    %c0_i32 = arith.constant 0 : i32
    %c0_i32_0 = arith.constant 0 : i32
    %c0_i32_1 = arith.constant 0 : i32
    return %c0_i32, %c0_i32_0 : i32, i32
  }
  func.func @transform_2(%arg0: i32) -> (i32, i32) {
    %c0_i32 = arith.constant 0 : i32
    %c0_i32_0 = arith.constant 0 : i32
    %c0_i32_1 = arith.constant 0 : i32
    return %c0_i32, %c0_i32_0 : i32, i32
  }
  func.func @transform_3(%arg0: i32) -> (i32, i32) {
    %c0_i32 = arith.constant 0 : i32
    %c0_i32_0 = arith.constant 0 : i32
    return %arg0, %c0_i32 : i32, i32
  }
}

module attributes {stable_mosaic.version = 11 : i64} {
  func.func @_affine_act_kernel(%arg0: i32, %arg1: memref<128x16xf32, #tpu.memory_space<vmem>>, %arg2: memref<1x16xf32, #tpu.memory_space<vmem>>, %arg3: memref<1x16xf32, #tpu.memory_space<vmem>>, %arg4: memref<128x16xf32, #tpu.memory_space<vmem>>) attributes {dimension_semantics = [#tpu.dimension_semantics<parallel>], iteration_bounds = array<i64: 1>, scalar_prefetch = 0 : i64, scratch_operands = 0 : i64, tpu.core_type = #tpu.core_type<tc>, window_params = [{transform_indices = @transform_0, window_bounds = array<i64: 128, 16>}, {pipeline_mode = #tpu.pipeline_mode<synchronous>, transform_indices = @transform_1, window_bounds = array<i64: 1, 16>}, {pipeline_mode = #tpu.pipeline_mode<synchronous>, transform_indices = @transform_2, window_bounds = array<i64: 1, 16>}, {transform_indices = @transform_3, window_bounds = array<i64: 128, 16>}]} {
    %c0 = arith.constant 0 : index
    %c0_0 = arith.constant 0 : index
    %0 = vector.load %arg1[%c0, %c0_0] : memref<128x16xf32, #tpu.memory_space<vmem>>, vector<128x16xf32>
    %c0_1 = arith.constant 0 : index
    %c0_2 = arith.constant 0 : index
    %1 = vector.load %arg2[%c0_1, %c0_2] : memref<1x16xf32, #tpu.memory_space<vmem>>, vector<1x16xf32>
    %2 = vector.broadcast %1 : vector<1x16xf32> to vector<128x16xf32>
    %3 = arith.mulf %0, %2 : vector<128x16xf32>
    %c0_3 = arith.constant 0 : index
    %c0_4 = arith.constant 0 : index
    %4 = vector.load %arg3[%c0_3, %c0_4] : memref<1x16xf32, #tpu.memory_space<vmem>>, vector<1x16xf32>
    %5 = vector.broadcast %4 : vector<1x16xf32> to vector<128x16xf32>
    %6 = arith.addf %3, %5 : vector<128x16xf32>
    %cst = arith.constant 0.000000e+00 : f32
    %7 = vector.broadcast %cst : f32 to vector<128x16xf32>
    %8 = arith.maximumf %6, %7 : vector<128x16xf32>
    %c0_5 = arith.constant 0 : index
    %c0_6 = arith.constant 0 : index
    %9 = vector.load %arg4[%c0_5, %c0_6] : memref<128x16xf32, #tpu.memory_space<vmem>>, vector<128x16xf32>
    tpu.vector_store %arg4[%c0_5, %c0_6], %8 {strides = array<i32>} : memref<128x16xf32, #tpu.memory_space<vmem>>, vector<128x16xf32>,
    return
  }
  func.func @transform_0(%arg0: i32) -> (i32, i32) {
    %c0_i32 = arith.constant 0 : i32
    %c0_i32_0 = arith.constant 0 : i32
    return %arg0, %c0_i32 : i32, i32
  }
  func.func @transform_1(%arg0: i32) -> (i32, i32) {
    %c0_i32 = arith.constant 0 : i32
    %c0_i32_0 = arith.constant 0 : i32
    %c0_i32_1 = arith.constant 0 : i32
    return %c0_i32, %c0_i32_0 : i32, i32
  }
  func.func @transform_2(%arg0: i32) -> (i32, i32) {
    %c0_i32 = arith.constant 0 : i32
    %c0_i32_0 = arith.constant 0 : i32
    %c0_i32_1 = arith.constant 0 : i32
    return %c0_i32, %c0_i32_0 : i32, i32
  }
  func.func @transform_3(%arg0: i32) -> (i32, i32) {
    %c0_i32 = arith.constant 0 : i32
    %c0_i32_0 = arith.constant 0 : i32
    return %arg0, %c0_i32 : i32, i32
  }
}

module attributes {stable_mosaic.version = 11 : i64} {
  func.func @_fused_conv_kernel(%arg0: i32, %arg1: memref<32x144xf32, #tpu.memory_space<vmem>>, %arg2: memref<144x32xf32, #tpu.memory_space<vmem>>, %arg3: memref<32x32xf32, #tpu.memory_space<vmem>>, %arg4: memref<8x32xf32, #tpu.memory_space<vmem>>) attributes {dimension_semantics = [#tpu.dimension_semantics<parallel>], iteration_bounds = array<i64: 1>, scalar_prefetch = 0 : i64, scratch_operands = 0 : i64, tpu.core_type = #tpu.core_type<tc>, window_params = [{transform_indices = @transform_0, window_bounds = array<i64: 32, 144>}, {pipeline_mode = #tpu.pipeline_mode<synchronous>, transform_indices = @transform_1, window_bounds = array<i64: 144, 32>}, {transform_indices = @transform_2, window_bounds = array<i64: 32, 32>}, {transform_indices = @transform_3, window_bounds = array<i64: 8, 32>}]} {
    %c0 = arith.constant 0 : index
    %c0_0 = arith.constant 0 : index
    %0 = vector.load %arg1[%c0, %c0_0] : memref<32x144xf32, #tpu.memory_space<vmem>>, vector<32x144xf32>
    %c0_1 = arith.constant 0 : index
    %c0_2 = arith.constant 0 : index
    %1 = vector.load %arg2[%c0_1, %c0_2] : memref<144x32xf32, #tpu.memory_space<vmem>>, vector<144x32xf32>
    %cst = arith.constant dense<0.000000e+00> : vector<32x32xf32>
    %2 = tpu.matmul %0, %1, %cst {dimension_numbers = #tpu.dot_dimension_numbers<[1], [0], [0], [1], [0, 0, 1, 1], [], []>} : vector<32x144xf32>, vector<144x32xf32>, vector<32x32xf32> -> vector<32x32xf32>
    %cst_3 = arith.constant dense<0.000000e+00> : vector<32xf32>
    %3 = vector.multi_reduction <add>, %2, %cst_3 [0] : vector<32x32xf32> to vector<32xf32>
    %4 = vector.shape_cast %3 : vector<32xf32> to vector<1x32xf32>
    %5 = arith.mulf %2, %2 : vector<32x32xf32>
    %cst_4 = arith.constant dense<0.000000e+00> : vector<32xf32>
    %6 = vector.multi_reduction <add>, %5, %cst_4 [0] : vector<32x32xf32> to vector<32xf32>
    %7 = vector.shape_cast %6 : vector<32xf32> to vector<1x32xf32>
    %8 = tpu.iota {dimensions = array<i32: 0>} : vector<8x32xi32>
    %c0_i32 = arith.constant 0 : i32
    %9 = vector.broadcast %c0_i32 : i32 to vector<8x32xi32>
    %10 = arith.cmpi eq, %8, %9 : vector<8x32xi32>
    %c1_i32 = arith.constant 1 : i32
    %11 = vector.broadcast %c1_i32 : i32 to vector<8x32xi32>
    %12 = arith.cmpi eq, %8, %11 : vector<8x32xi32>
    %cst_5 = arith.constant 0.000000e+00 : f32
    %13 = vector.shape_cast %7 : vector<1x32xf32> to vector<1x32xf32>
    %14 = vector.broadcast %13 : vector<1x32xf32> to vector<8x32xf32>
    %15 = vector.broadcast %cst_5 : f32 to vector<8x32xf32>
    %16 = arith.select %12, %14, %15 : vector<8x32xi1>, vector<8x32xf32>
    %17 = vector.shape_cast %4 : vector<1x32xf32> to vector<1x32xf32>
    %18 = vector.broadcast %17 : vector<1x32xf32> to vector<8x32xf32>
    %19 = arith.select %10, %18, %16 : vector<8x32xi1>, vector<8x32xf32>
    %c0_6 = arith.constant 0 : index
    %c0_7 = arith.constant 0 : index
    %20 = vector.load %arg4[%c0_6, %c0_7] : memref<8x32xf32, #tpu.memory_space<vmem>>, vector<8x32xf32>
    tpu.vector_store %arg4[%c0_6, %c0_7], %19 {strides = array<i32>} : memref<8x32xf32, #tpu.memory_space<vmem>>, vector<8x32xf32>,
    %c0_8 = arith.constant 0 : index
    %c0_9 = arith.constant 0 : index
    %21 = vector.load %arg3[%c0_8, %c0_9] : memref<32x32xf32, #tpu.memory_space<vmem>>, vector<32x32xf32>
    tpu.vector_store %arg3[%c0_8, %c0_9], %2 {strides = array<i32>} : memref<32x32xf32, #tpu.memory_space<vmem>>, vector<32x32xf32>,
    return
  }
  func.func @transform_0(%arg0: i32) -> (i32, i32) {
    %c0_i32 = arith.constant 0 : i32
    %c0_i32_0 = arith.constant 0 : i32
    return %arg0, %c0_i32 : i32, i32
  }
  func.func @transform_1(%arg0: i32) -> (i32, i32) {
    %c0_i32 = arith.constant 0 : i32
    %c0_i32_0 = arith.constant 0 : i32
    %c0_i32_1 = arith.constant 0 : i32
    return %c0_i32, %c0_i32_0 : i32, i32
  }
  func.func @transform_2(%arg0: i32) -> (i32, i32) {
    %c0_i32 = arith.constant 0 : i32
    %c0_i32_0 = arith.constant 0 : i32
    return %arg0, %c0_i32 : i32, i32
  }
  func.func @transform_3(%arg0: i32) -> (i32, i32) {
    %c0_i32 = arith.constant 0 : i32
    %c0_i32_0 = arith.constant 0 : i32
    return %arg0, %c0_i32 : i32, i32
  }
}

module attributes {stable_mosaic.version = 11 : i64} {
  func.func @_fused_conv_kernel(%arg0: i32, %arg1: memref<128x72xf32, #tpu.memory_space<vmem>>, %arg2: memref<72x16xf32, #tpu.memory_space<vmem>>, %arg3: memref<128x16xf32, #tpu.memory_space<vmem>>, %arg4: memref<8x16xf32, #tpu.memory_space<vmem>>) attributes {dimension_semantics = [#tpu.dimension_semantics<parallel>], iteration_bounds = array<i64: 1>, scalar_prefetch = 0 : i64, scratch_operands = 0 : i64, tpu.core_type = #tpu.core_type<tc>, window_params = [{transform_indices = @transform_0, window_bounds = array<i64: 128, 72>}, {pipeline_mode = #tpu.pipeline_mode<synchronous>, transform_indices = @transform_1, window_bounds = array<i64: 72, 16>}, {transform_indices = @transform_2, window_bounds = array<i64: 128, 16>}, {transform_indices = @transform_3, window_bounds = array<i64: 8, 16>}]} {
    %c0 = arith.constant 0 : index
    %c0_0 = arith.constant 0 : index
    %0 = vector.load %arg1[%c0, %c0_0] : memref<128x72xf32, #tpu.memory_space<vmem>>, vector<128x72xf32>
    %c0_1 = arith.constant 0 : index
    %c0_2 = arith.constant 0 : index
    %1 = vector.load %arg2[%c0_1, %c0_2] : memref<72x16xf32, #tpu.memory_space<vmem>>, vector<72x16xf32>
    %cst = arith.constant dense<0.000000e+00> : vector<128x16xf32>
    %2 = tpu.matmul %0, %1, %cst {dimension_numbers = #tpu.dot_dimension_numbers<[1], [0], [0], [1], [0, 0, 1, 1], [], []>} : vector<128x72xf32>, vector<72x16xf32>, vector<128x16xf32> -> vector<128x16xf32>
    %cst_3 = arith.constant dense<0.000000e+00> : vector<16xf32>
    %3 = vector.multi_reduction <add>, %2, %cst_3 [0] : vector<128x16xf32> to vector<16xf32>
    %4 = vector.shape_cast %3 : vector<16xf32> to vector<1x16xf32>
    %5 = arith.mulf %2, %2 : vector<128x16xf32>
    %cst_4 = arith.constant dense<0.000000e+00> : vector<16xf32>
    %6 = vector.multi_reduction <add>, %5, %cst_4 [0] : vector<128x16xf32> to vector<16xf32>
    %7 = vector.shape_cast %6 : vector<16xf32> to vector<1x16xf32>
    %8 = tpu.iota {dimensions = array<i32: 0>} : vector<8x16xi32>
    %c0_i32 = arith.constant 0 : i32
    %9 = vector.broadcast %c0_i32 : i32 to vector<8x16xi32>
    %10 = arith.cmpi eq, %8, %9 : vector<8x16xi32>
    %c1_i32 = arith.constant 1 : i32
    %11 = vector.broadcast %c1_i32 : i32 to vector<8x16xi32>
    %12 = arith.cmpi eq, %8, %11 : vector<8x16xi32>
    %cst_5 = arith.constant 0.000000e+00 : f32
    %13 = vector.shape_cast %7 : vector<1x16xf32> to vector<1x16xf32>
    %14 = vector.broadcast %13 : vector<1x16xf32> to vector<8x16xf32>
    %15 = vector.broadcast %cst_5 : f32 to vector<8x16xf32>
    %16 = arith.select %12, %14, %15 : vector<8x16xi1>, vector<8x16xf32>
    %17 = vector.shape_cast %4 : vector<1x16xf32> to vector<1x16xf32>
    %18 = vector.broadcast %17 : vector<1x16xf32> to vector<8x16xf32>
    %19 = arith.select %10, %18, %16 : vector<8x16xi1>, vector<8x16xf32>
    %c0_6 = arith.constant 0 : index
    %c0_7 = arith.constant 0 : index
    %20 = vector.load %arg4[%c0_6, %c0_7] : memref<8x16xf32, #tpu.memory_space<vmem>>, vector<8x16xf32>
    tpu.vector_store %arg4[%c0_6, %c0_7], %19 {strides = array<i32>} : memref<8x16xf32, #tpu.memory_space<vmem>>, vector<8x16xf32>,
    %c0_8 = arith.constant 0 : index
    %c0_9 = arith.constant 0 : index
    %21 = vector.load %arg3[%c0_8, %c0_9] : memref<128x16xf32, #tpu.memory_space<vmem>>, vector<128x16xf32>
    tpu.vector_store %arg3[%c0_8, %c0_9], %2 {strides = array<i32>} : memref<128x16xf32, #tpu.memory_space<vmem>>, vector<128x16xf32>,
    return
  }
  func.func @transform_0(%arg0: i32) -> (i32, i32) {
    %c0_i32 = arith.constant 0 : i32
    %c0_i32_0 = arith.constant 0 : i32
    return %arg0, %c0_i32 : i32, i32
  }
  func.func @transform_1(%arg0: i32) -> (i32, i32) {
    %c0_i32 = arith.constant 0 : i32
    %c0_i32_0 = arith.constant 0 : i32
    %c0_i32_1 = arith.constant 0 : i32
    return %c0_i32, %c0_i32_0 : i32, i32
  }
  func.func @transform_2(%arg0: i32) -> (i32, i32) {
    %c0_i32 = arith.constant 0 : i32
    %c0_i32_0 = arith.constant 0 : i32
    return %arg0, %c0_i32 : i32, i32
  }
  func.func @transform_3(%arg0: i32) -> (i32, i32) {
    %c0_i32 = arith.constant 0 : i32
    %c0_i32_0 = arith.constant 0 : i32
    return %arg0, %c0_i32 : i32, i32
  }
}

module attributes {stable_mosaic.version = 11 : i64} {
  func.func @_fused_conv_kernel(%arg0: i32, %arg1: memref<32x288xf32, #tpu.memory_space<vmem>>, %arg2: memref<288x32xf32, #tpu.memory_space<vmem>>, %arg3: memref<32x32xf32, #tpu.memory_space<vmem>>) attributes {dimension_semantics = [#tpu.dimension_semantics<parallel>], iteration_bounds = array<i64: 1>, scalar_prefetch = 0 : i64, scratch_operands = 0 : i64, tpu.core_type = #tpu.core_type<tc>, window_params = [{transform_indices = @transform_0, window_bounds = array<i64: 32, 288>}, {pipeline_mode = #tpu.pipeline_mode<synchronous>, transform_indices = @transform_1, window_bounds = array<i64: 288, 32>}, {transform_indices = @transform_2, window_bounds = array<i64: 32, 32>}]} {
    %c0 = arith.constant 0 : index
    %c0_0 = arith.constant 0 : index
    %0 = vector.load %arg1[%c0, %c0_0] : memref<32x288xf32, #tpu.memory_space<vmem>>, vector<32x288xf32>
    %c0_1 = arith.constant 0 : index
    %c0_2 = arith.constant 0 : index
    %1 = vector.load %arg2[%c0_1, %c0_2] : memref<288x32xf32, #tpu.memory_space<vmem>>, vector<288x32xf32>
    %cst = arith.constant dense<0.000000e+00> : vector<32x32xf32>
    %2 = tpu.matmul %0, %1, %cst {dimension_numbers = #tpu.dot_dimension_numbers<[1], [0], [0], [1], [0, 0, 1, 1], [], []>} : vector<32x288xf32>, vector<288x32xf32>, vector<32x32xf32> -> vector<32x32xf32>
    %cst_3 = arith.constant 0.000000e+00 : f32
    %3 = vector.broadcast %cst_3 : f32 to vector<32x32xf32>
    %4 = arith.maximumf %2, %3 : vector<32x32xf32>
    %c0_4 = arith.constant 0 : index
    %c0_5 = arith.constant 0 : index
    %5 = vector.load %arg3[%c0_4, %c0_5] : memref<32x32xf32, #tpu.memory_space<vmem>>, vector<32x32xf32>
    tpu.vector_store %arg3[%c0_4, %c0_5], %4 {strides = array<i32>} : memref<32x32xf32, #tpu.memory_space<vmem>>, vector<32x32xf32>,
    return
  }
  func.func @transform_0(%arg0: i32) -> (i32, i32) {
    %c0_i32 = arith.constant 0 : i32
    %c0_i32_0 = arith.constant 0 : i32
    return %arg0, %c0_i32 : i32, i32
  }
  func.func @transform_1(%arg0: i32) -> (i32, i32) {
    %c0_i32 = arith.constant 0 : i32
    %c0_i32_0 = arith.constant 0 : i32
    %c0_i32_1 = arith.constant 0 : i32
    return %c0_i32, %c0_i32_0 : i32, i32
  }
  func.func @transform_2(%arg0: i32) -> (i32, i32) {
    %c0_i32 = arith.constant 0 : i32
    %c0_i32_0 = arith.constant 0 : i32
    return %arg0, %c0_i32 : i32, i32
  }
}

module attributes {stable_mosaic.version = 11 : i64} {
  func.func @_affine_act_kernel(%arg0: i32, %arg1: memref<32x32xf32, #tpu.memory_space<vmem>>, %arg2: memref<1x32xf32, #tpu.memory_space<vmem>>, %arg3: memref<1x32xf32, #tpu.memory_space<vmem>>, %arg4: memref<32x32xf32, #tpu.memory_space<vmem>>) attributes {dimension_semantics = [#tpu.dimension_semantics<parallel>], iteration_bounds = array<i64: 1>, scalar_prefetch = 0 : i64, scratch_operands = 0 : i64, tpu.core_type = #tpu.core_type<tc>, window_params = [{transform_indices = @transform_0, window_bounds = array<i64: 32, 32>}, {pipeline_mode = #tpu.pipeline_mode<synchronous>, transform_indices = @transform_1, window_bounds = array<i64: 1, 32>}, {pipeline_mode = #tpu.pipeline_mode<synchronous>, transform_indices = @transform_2, window_bounds = array<i64: 1, 32>}, {transform_indices = @transform_3, window_bounds = array<i64: 32, 32>}]} {
    %c0 = arith.constant 0 : index
    %c0_0 = arith.constant 0 : index
    %0 = vector.load %arg1[%c0, %c0_0] : memref<32x32xf32, #tpu.memory_space<vmem>>, vector<32x32xf32>
    %c0_1 = arith.constant 0 : index
    %c0_2 = arith.constant 0 : index
    %1 = vector.load %arg2[%c0_1, %c0_2] : memref<1x32xf32, #tpu.memory_space<vmem>>, vector<1x32xf32>
    %2 = vector.broadcast %1 : vector<1x32xf32> to vector<32x32xf32>
    %3 = arith.mulf %0, %2 : vector<32x32xf32>
    %c0_3 = arith.constant 0 : index
    %c0_4 = arith.constant 0 : index
    %4 = vector.load %arg3[%c0_3, %c0_4] : memref<1x32xf32, #tpu.memory_space<vmem>>, vector<1x32xf32>
    %5 = vector.broadcast %4 : vector<1x32xf32> to vector<32x32xf32>
    %6 = arith.addf %3, %5 : vector<32x32xf32>
    %cst = arith.constant 0.000000e+00 : f32
    %7 = vector.broadcast %cst : f32 to vector<32x32xf32>
    %8 = arith.maximumf %6, %7 : vector<32x32xf32>
    %c0_5 = arith.constant 0 : index
    %c0_6 = arith.constant 0 : index
    %9 = vector.load %arg4[%c0_5, %c0_6] : memref<32x32xf32, #tpu.memory_space<vmem>>, vector<32x32xf32>
    tpu.vector_store %arg4[%c0_5, %c0_6], %8 {strides = array<i32>} : memref<32x32xf32, #tpu.memory_space<vmem>>, vector<32x32xf32>,
    return
  }
  func.func @transform_0(%arg0: i32) -> (i32, i32) {
    %c0_i32 = arith.constant 0 : i32
    %c0_i32_0 = arith.constant 0 : i32
    return %arg0, %c0_i32 : i32, i32
  }
  func.func @transform_1(%arg0: i32) -> (i32, i32) {
    %c0_i32 = arith.constant 0 : i32
    %c0_i32_0 = arith.constant 0 : i32
    %c0_i32_1 = arith.constant 0 : i32
    return %c0_i32, %c0_i32_0 : i32, i32
  }
  func.func @transform_2(%arg0: i32) -> (i32, i32) {
    %c0_i32 = arith.constant 0 : i32
    %c0_i32_0 = arith.constant 0 : i32
    %c0_i32_1 = arith.constant 0 : i32
    return %c0_i32, %c0_i32_0 : i32, i32
  }
  func.func @transform_3(%arg0: i32) -> (i32, i32) {
    %c0_i32 = arith.constant 0 : i32
    %c0_i32_0 = arith.constant 0 : i32
    return %arg0, %c0_i32 : i32, i32
  }
}

module attributes {stable_mosaic.version = 11 : i64} {
  func.func @_fused_conv_kernel(%arg0: i32, %arg1: memref<32x128xf32, #tpu.memory_space<vmem>>, %arg2: memref<128x16xf32, #tpu.memory_space<vmem>>, %arg3: memref<32x16xf32, #tpu.memory_space<vmem>>, %arg4: memref<8x16xf32, #tpu.memory_space<vmem>>) attributes {dimension_semantics = [#tpu.dimension_semantics<parallel>], iteration_bounds = array<i64: 1>, scalar_prefetch = 0 : i64, scratch_operands = 0 : i64, tpu.core_type = #tpu.core_type<tc>, window_params = [{transform_indices = @transform_0, window_bounds = array<i64: 32, 128>}, {pipeline_mode = #tpu.pipeline_mode<synchronous>, transform_indices = @transform_1, window_bounds = array<i64: 128, 16>}, {transform_indices = @transform_2, window_bounds = array<i64: 32, 16>}, {transform_indices = @transform_3, window_bounds = array<i64: 8, 16>}]} {
    %c0 = arith.constant 0 : index
    %c0_0 = arith.constant 0 : index
    %0 = vector.load %arg1[%c0, %c0_0] : memref<32x128xf32, #tpu.memory_space<vmem>>, vector<32x128xf32>
    %c0_1 = arith.constant 0 : index
    %c0_2 = arith.constant 0 : index
    %1 = vector.load %arg2[%c0_1, %c0_2] : memref<128x16xf32, #tpu.memory_space<vmem>>, vector<128x16xf32>
    %cst = arith.constant dense<0.000000e+00> : vector<32x16xf32>
    %2 = tpu.matmul %0, %1, %cst {dimension_numbers = #tpu.dot_dimension_numbers<[1], [0], [0], [1], [0, 0, 1, 1], [], []>} : vector<32x128xf32>, vector<128x16xf32>, vector<32x16xf32> -> vector<32x16xf32>
    %cst_3 = arith.constant dense<0.000000e+00> : vector<16xf32>
    %3 = vector.multi_reduction <add>, %2, %cst_3 [0] : vector<32x16xf32> to vector<16xf32>
    %4 = vector.shape_cast %3 : vector<16xf32> to vector<1x16xf32>
    %5 = arith.mulf %2, %2 : vector<32x16xf32>
    %cst_4 = arith.constant dense<0.000000e+00> : vector<16xf32>
    %6 = vector.multi_reduction <add>, %5, %cst_4 [0] : vector<32x16xf32> to vector<16xf32>
    %7 = vector.shape_cast %6 : vector<16xf32> to vector<1x16xf32>
    %8 = tpu.iota {dimensions = array<i32: 0>} : vector<8x16xi32>
    %c0_i32 = arith.constant 0 : i32
    %9 = vector.broadcast %c0_i32 : i32 to vector<8x16xi32>
    %10 = arith.cmpi eq, %8, %9 : vector<8x16xi32>
    %c1_i32 = arith.constant 1 : i32
    %11 = vector.broadcast %c1_i32 : i32 to vector<8x16xi32>
    %12 = arith.cmpi eq, %8, %11 : vector<8x16xi32>
    %cst_5 = arith.constant 0.000000e+00 : f32
    %13 = vector.shape_cast %7 : vector<1x16xf32> to vector<1x16xf32>
    %14 = vector.broadcast %13 : vector<1x16xf32> to vector<8x16xf32>
    %15 = vector.broadcast %cst_5 : f32 to vector<8x16xf32>
    %16 = arith.select %12, %14, %15 : vector<8x16xi1>, vector<8x16xf32>
    %17 = vector.shape_cast %4 : vector<1x16xf32> to vector<1x16xf32>
    %18 = vector.broadcast %17 : vector<1x16xf32> to vector<8x16xf32>
    %19 = arith.select %10, %18, %16 : vector<8x16xi1>, vector<8x16xf32>
    %c0_6 = arith.constant 0 : index
    %c0_7 = arith.constant 0 : index
    %20 = vector.load %arg4[%c0_6, %c0_7] : memref<8x16xf32, #tpu.memory_space<vmem>>, vector<8x16xf32>
    tpu.vector_store %arg4[%c0_6, %c0_7], %19 {strides = array<i32>} : memref<8x16xf32, #tpu.memory_space<vmem>>, vector<8x16xf32>,
    %c0_8 = arith.constant 0 : index
    %c0_9 = arith.constant 0 : index
    %21 = vector.load %arg3[%c0_8, %c0_9] : memref<32x16xf32, #tpu.memory_space<vmem>>, vector<32x16xf32>
    tpu.vector_store %arg3[%c0_8, %c0_9], %2 {strides = array<i32>} : memref<32x16xf32, #tpu.memory_space<vmem>>, vector<32x16xf32>,
    return
  }
  func.func @transform_0(%arg0: i32) -> (i32, i32) {
    %c0_i32 = arith.constant 0 : i32
    %c0_i32_0 = arith.constant 0 : i32
    return %arg0, %c0_i32 : i32, i32
  }
  func.func @transform_1(%arg0: i32) -> (i32, i32) {
    %c0_i32 = arith.constant 0 : i32
    %c0_i32_0 = arith.constant 0 : i32
    %c0_i32_1 = arith.constant 0 : i32
    return %c0_i32, %c0_i32_0 : i32, i32
  }
  func.func @transform_2(%arg0: i32) -> (i32, i32) {
    %c0_i32 = arith.constant 0 : i32
    %c0_i32_0 = arith.constant 0 : i32
    return %arg0, %c0_i32 : i32, i32
  }
  func.func @transform_3(%arg0: i32) -> (i32, i32) {
    %c0_i32 = arith.constant 0 : i32
    %c0_i32_0 = arith.constant 0 : i32
    return %arg0, %c0_i32 : i32, i32
  }
}

module attributes {stable_mosaic.version = 11 : i64} {
  func.func @_fused_conv_kernel(%arg0: i32, %arg1: memref<32x288xf32, #tpu.memory_space<vmem>>, %arg2: memref<288x32xf32, #tpu.memory_space<vmem>>, %arg3: memref<32x32xf32, #tpu.memory_space<vmem>>, %arg4: memref<32x32xf32, #tpu.memory_space<vmem>>) attributes {dimension_semantics = [#tpu.dimension_semantics<parallel>], iteration_bounds = array<i64: 1>, scalar_prefetch = 0 : i64, scratch_operands = 0 : i64, tpu.core_type = #tpu.core_type<tc>, window_params = [{transform_indices = @transform_0, window_bounds = array<i64: 32, 288>}, {pipeline_mode = #tpu.pipeline_mode<synchronous>, transform_indices = @transform_1, window_bounds = array<i64: 288, 32>}, {transform_indices = @transform_2, window_bounds = array<i64: 32, 32>}, {transform_indices = @transform_3, window_bounds = array<i64: 32, 32>}]} {
    %c0 = arith.constant 0 : index
    %c0_0 = arith.constant 0 : index
    %0 = vector.load %arg1[%c0, %c0_0] : memref<32x288xf32, #tpu.memory_space<vmem>>, vector<32x288xf32>
    %c0_1 = arith.constant 0 : index
    %c0_2 = arith.constant 0 : index
    %1 = vector.load %arg2[%c0_1, %c0_2] : memref<288x32xf32, #tpu.memory_space<vmem>>, vector<288x32xf32>
    %cst = arith.constant dense<0.000000e+00> : vector<32x32xf32>
    %2 = tpu.matmul %0, %1, %cst {dimension_numbers = #tpu.dot_dimension_numbers<[1], [0], [0], [1], [0, 0, 1, 1], [], []>} : vector<32x288xf32>, vector<288x32xf32>, vector<32x32xf32> -> vector<32x32xf32>
    %c0_3 = arith.constant 0 : index
    %c0_4 = arith.constant 0 : index
    %3 = vector.load %arg3[%c0_3, %c0_4] : memref<32x32xf32, #tpu.memory_space<vmem>>, vector<32x32xf32>
    %4 = arith.addf %2, %3 : vector<32x32xf32>
    %c0_5 = arith.constant 0 : index
    %c0_6 = arith.constant 0 : index
    %5 = vector.load %arg4[%c0_5, %c0_6] : memref<32x32xf32, #tpu.memory_space<vmem>>, vector<32x32xf32>
    tpu.vector_store %arg4[%c0_5, %c0_6], %4 {strides = array<i32>} : memref<32x32xf32, #tpu.memory_space<vmem>>, vector<32x32xf32>,
    return
  }
  func.func @transform_0(%arg0: i32) -> (i32, i32) {
    %c0_i32 = arith.constant 0 : i32
    %c0_i32_0 = arith.constant 0 : i32
    return %arg0, %c0_i32 : i32, i32
  }
  func.func @transform_1(%arg0: i32) -> (i32, i32) {
    %c0_i32 = arith.constant 0 : i32
    %c0_i32_0 = arith.constant 0 : i32
    %c0_i32_1 = arith.constant 0 : i32
    return %c0_i32, %c0_i32_0 : i32, i32
  }
  func.func @transform_2(%arg0: i32) -> (i32, i32) {
    %c0_i32 = arith.constant 0 : i32
    %c0_i32_0 = arith.constant 0 : i32
    return %arg0, %c0_i32 : i32, i32
  }
  func.func @transform_3(%arg0: i32) -> (i32, i32) {
    %c0_i32 = arith.constant 0 : i32
    %c0_i32_0 = arith.constant 0 : i32
    return %arg0, %c0_i32 : i32, i32
  }
}

module attributes {stable_mosaic.version = 11 : i64} {
  func.func @_fused_conv_kernel(%arg0: i32, %arg1: memref<32x64xf32, #tpu.memory_space<vmem>>, %arg2: memref<64x16xf32, #tpu.memory_space<vmem>>, %arg3: memref<32x16xf32, #tpu.memory_space<vmem>>, %arg4: memref<8x16xf32, #tpu.memory_space<vmem>>) attributes {dimension_semantics = [#tpu.dimension_semantics<parallel>], iteration_bounds = array<i64: 1>, scalar_prefetch = 0 : i64, scratch_operands = 0 : i64, tpu.core_type = #tpu.core_type<tc>, window_params = [{transform_indices = @transform_0, window_bounds = array<i64: 32, 64>}, {pipeline_mode = #tpu.pipeline_mode<synchronous>, transform_indices = @transform_1, window_bounds = array<i64: 64, 16>}, {transform_indices = @transform_2, window_bounds = array<i64: 32, 16>}, {transform_indices = @transform_3, window_bounds = array<i64: 8, 16>}]} {
    %c0 = arith.constant 0 : index
    %c0_0 = arith.constant 0 : index
    %0 = vector.load %arg1[%c0, %c0_0] : memref<32x64xf32, #tpu.memory_space<vmem>>, vector<32x64xf32>
    %c0_1 = arith.constant 0 : index
    %c0_2 = arith.constant 0 : index
    %1 = vector.load %arg2[%c0_1, %c0_2] : memref<64x16xf32, #tpu.memory_space<vmem>>, vector<64x16xf32>
    %cst = arith.constant dense<0.000000e+00> : vector<32x16xf32>
    %2 = tpu.matmul %0, %1, %cst {dimension_numbers = #tpu.dot_dimension_numbers<[1], [0], [0], [1], [0, 0, 1, 1], [], []>} : vector<32x64xf32>, vector<64x16xf32>, vector<32x16xf32> -> vector<32x16xf32>
    %cst_3 = arith.constant dense<0.000000e+00> : vector<16xf32>
    %3 = vector.multi_reduction <add>, %2, %cst_3 [0] : vector<32x16xf32> to vector<16xf32>
    %4 = vector.shape_cast %3 : vector<16xf32> to vector<1x16xf32>
    %5 = arith.mulf %2, %2 : vector<32x16xf32>
    %cst_4 = arith.constant dense<0.000000e+00> : vector<16xf32>
    %6 = vector.multi_reduction <add>, %5, %cst_4 [0] : vector<32x16xf32> to vector<16xf32>
    %7 = vector.shape_cast %6 : vector<16xf32> to vector<1x16xf32>
    %8 = tpu.iota {dimensions = array<i32: 0>} : vector<8x16xi32>
    %c0_i32 = arith.constant 0 : i32
    %9 = vector.broadcast %c0_i32 : i32 to vector<8x16xi32>
    %10 = arith.cmpi eq, %8, %9 : vector<8x16xi32>
    %c1_i32 = arith.constant 1 : i32
    %11 = vector.broadcast %c1_i32 : i32 to vector<8x16xi32>
    %12 = arith.cmpi eq, %8, %11 : vector<8x16xi32>
    %cst_5 = arith.constant 0.000000e+00 : f32
    %13 = vector.shape_cast %7 : vector<1x16xf32> to vector<1x16xf32>
    %14 = vector.broadcast %13 : vector<1x16xf32> to vector<8x16xf32>
    %15 = vector.broadcast %cst_5 : f32 to vector<8x16xf32>
    %16 = arith.select %12, %14, %15 : vector<8x16xi1>, vector<8x16xf32>
    %17 = vector.shape_cast %4 : vector<1x16xf32> to vector<1x16xf32>
    %18 = vector.broadcast %17 : vector<1x16xf32> to vector<8x16xf32>
    %19 = arith.select %10, %18, %16 : vector<8x16xi1>, vector<8x16xf32>
    %c0_6 = arith.constant 0 : index
    %c0_7 = arith.constant 0 : index
    %20 = vector.load %arg4[%c0_6, %c0_7] : memref<8x16xf32, #tpu.memory_space<vmem>>, vector<8x16xf32>
    tpu.vector_store %arg4[%c0_6, %c0_7], %19 {strides = array<i32>} : memref<8x16xf32, #tpu.memory_space<vmem>>, vector<8x16xf32>,
    %c0_8 = arith.constant 0 : index
    %c0_9 = arith.constant 0 : index
    %21 = vector.load %arg3[%c0_8, %c0_9] : memref<32x16xf32, #tpu.memory_space<vmem>>, vector<32x16xf32>
    tpu.vector_store %arg3[%c0_8, %c0_9], %2 {strides = array<i32>} : memref<32x16xf32, #tpu.memory_space<vmem>>, vector<32x16xf32>,
    return
  }
  func.func @transform_0(%arg0: i32) -> (i32, i32) {
    %c0_i32 = arith.constant 0 : i32
    %c0_i32_0 = arith.constant 0 : i32
    return %arg0, %c0_i32 : i32, i32
  }
  func.func @transform_1(%arg0: i32) -> (i32, i32) {
    %c0_i32 = arith.constant 0 : i32
    %c0_i32_0 = arith.constant 0 : i32
    %c0_i32_1 = arith.constant 0 : i32
    return %c0_i32, %c0_i32_0 : i32, i32
  }
  func.func @transform_2(%arg0: i32) -> (i32, i32) {
    %c0_i32 = arith.constant 0 : i32
    %c0_i32_0 = arith.constant 0 : i32
    return %arg0, %c0_i32 : i32, i32
  }
  func.func @transform_3(%arg0: i32) -> (i32, i32) {
    %c0_i32 = arith.constant 0 : i32
    %c0_i32_0 = arith.constant 0 : i32
    return %arg0, %c0_i32 : i32, i32
  }
}

module attributes {stable_mosaic.version = 11 : i64} {
  func.func @_fused_conv_kernel(%arg0: i32, %arg1: memref<32x32xf32, #tpu.memory_space<vmem>>, %arg2: memref<32x16xf32, #tpu.memory_space<vmem>>, %arg3: memref<32x16xf32, #tpu.memory_space<vmem>>, %arg4: memref<8x16xf32, #tpu.memory_space<vmem>>) attributes {dimension_semantics = [#tpu.dimension_semantics<parallel>], iteration_bounds = array<i64: 1>, scalar_prefetch = 0 : i64, scratch_operands = 0 : i64, tpu.core_type = #tpu.core_type<tc>, window_params = [{transform_indices = @transform_0, window_bounds = array<i64: 32, 32>}, {pipeline_mode = #tpu.pipeline_mode<synchronous>, transform_indices = @transform_1, window_bounds = array<i64: 32, 16>}, {transform_indices = @transform_2, window_bounds = array<i64: 32, 16>}, {transform_indices = @transform_3, window_bounds = array<i64: 8, 16>}]} {
    %c0 = arith.constant 0 : index
    %c0_0 = arith.constant 0 : index
    %0 = vector.load %arg1[%c0, %c0_0] : memref<32x32xf32, #tpu.memory_space<vmem>>, vector<32x32xf32>
    %c0_1 = arith.constant 0 : index
    %c0_2 = arith.constant 0 : index
    %1 = vector.load %arg2[%c0_1, %c0_2] : memref<32x16xf32, #tpu.memory_space<vmem>>, vector<32x16xf32>
    %cst = arith.constant dense<0.000000e+00> : vector<32x16xf32>
    %2 = tpu.matmul %0, %1, %cst {dimension_numbers = #tpu.dot_dimension_numbers<[1], [0], [0], [1], [0, 0, 1, 1], [], []>} : vector<32x32xf32>, vector<32x16xf32>, vector<32x16xf32> -> vector<32x16xf32>
    %cst_3 = arith.constant dense<0.000000e+00> : vector<16xf32>
    %3 = vector.multi_reduction <add>, %2, %cst_3 [0] : vector<32x16xf32> to vector<16xf32>
    %4 = vector.shape_cast %3 : vector<16xf32> to vector<1x16xf32>
    %5 = arith.mulf %2, %2 : vector<32x16xf32>
    %cst_4 = arith.constant dense<0.000000e+00> : vector<16xf32>
    %6 = vector.multi_reduction <add>, %5, %cst_4 [0] : vector<32x16xf32> to vector<16xf32>
    %7 = vector.shape_cast %6 : vector<16xf32> to vector<1x16xf32>
    %8 = tpu.iota {dimensions = array<i32: 0>} : vector<8x16xi32>
    %c0_i32 = arith.constant 0 : i32
    %9 = vector.broadcast %c0_i32 : i32 to vector<8x16xi32>
    %10 = arith.cmpi eq, %8, %9 : vector<8x16xi32>
    %c1_i32 = arith.constant 1 : i32
    %11 = vector.broadcast %c1_i32 : i32 to vector<8x16xi32>
    %12 = arith.cmpi eq, %8, %11 : vector<8x16xi32>
    %cst_5 = arith.constant 0.000000e+00 : f32
    %13 = vector.shape_cast %7 : vector<1x16xf32> to vector<1x16xf32>
    %14 = vector.broadcast %13 : vector<1x16xf32> to vector<8x16xf32>
    %15 = vector.broadcast %cst_5 : f32 to vector<8x16xf32>
    %16 = arith.select %12, %14, %15 : vector<8x16xi1>, vector<8x16xf32>
    %17 = vector.shape_cast %4 : vector<1x16xf32> to vector<1x16xf32>
    %18 = vector.broadcast %17 : vector<1x16xf32> to vector<8x16xf32>
    %19 = arith.select %10, %18, %16 : vector<8x16xi1>, vector<8x16xf32>
    %c0_6 = arith.constant 0 : index
    %c0_7 = arith.constant 0 : index
    %20 = vector.load %arg4[%c0_6, %c0_7] : memref<8x16xf32, #tpu.memory_space<vmem>>, vector<8x16xf32>
    tpu.vector_store %arg4[%c0_6, %c0_7], %19 {strides = array<i32>} : memref<8x16xf32, #tpu.memory_space<vmem>>, vector<8x16xf32>,
    %c0_8 = arith.constant 0 : index
    %c0_9 = arith.constant 0 : index
    %21 = vector.load %arg3[%c0_8, %c0_9] : memref<32x16xf32, #tpu.memory_space<vmem>>, vector<32x16xf32>
    tpu.vector_store %arg3[%c0_8, %c0_9], %2 {strides = array<i32>} : memref<32x16xf32, #tpu.memory_space<vmem>>, vector<32x16xf32>,
    return
  }
  func.func @transform_0(%arg0: i32) -> (i32, i32) {
    %c0_i32 = arith.constant 0 : i32
    %c0_i32_0 = arith.constant 0 : i32
    return %arg0, %c0_i32 : i32, i32
  }
  func.func @transform_1(%arg0: i32) -> (i32, i32) {
    %c0_i32 = arith.constant 0 : i32
    %c0_i32_0 = arith.constant 0 : i32
    %c0_i32_1 = arith.constant 0 : i32
    return %c0_i32, %c0_i32_0 : i32, i32
  }
  func.func @transform_2(%arg0: i32) -> (i32, i32) {
    %c0_i32 = arith.constant 0 : i32
    %c0_i32_0 = arith.constant 0 : i32
    return %arg0, %c0_i32 : i32, i32
  }
  func.func @transform_3(%arg0: i32) -> (i32, i32) {
    %c0_i32 = arith.constant 0 : i32
    %c0_i32_0 = arith.constant 0 : i32
    return %arg0, %c0_i32 : i32, i32
  }
}

module attributes {stable_mosaic.version = 11 : i64} {
  func.func @_fused_conv_kernel(%arg0: i32, %arg1: memref<128x32xf32, #tpu.memory_space<vmem>>, %arg2: memref<32x8xf32, #tpu.memory_space<vmem>>, %arg3: memref<128x8xf32, #tpu.memory_space<vmem>>, %arg4: memref<8x8xf32, #tpu.memory_space<vmem>>) attributes {dimension_semantics = [#tpu.dimension_semantics<parallel>], iteration_bounds = array<i64: 1>, scalar_prefetch = 0 : i64, scratch_operands = 0 : i64, tpu.core_type = #tpu.core_type<tc>, window_params = [{transform_indices = @transform_0, window_bounds = array<i64: 128, 32>}, {pipeline_mode = #tpu.pipeline_mode<synchronous>, transform_indices = @transform_1, window_bounds = array<i64: 32, 8>}, {transform_indices = @transform_2, window_bounds = array<i64: 128, 8>}, {transform_indices = @transform_3, window_bounds = array<i64: 8, 8>}]} {
    %c0 = arith.constant 0 : index
    %c0_0 = arith.constant 0 : index
    %0 = vector.load %arg1[%c0, %c0_0] : memref<128x32xf32, #tpu.memory_space<vmem>>, vector<128x32xf32>
    %c0_1 = arith.constant 0 : index
    %c0_2 = arith.constant 0 : index
    %1 = vector.load %arg2[%c0_1, %c0_2] : memref<32x8xf32, #tpu.memory_space<vmem>>, vector<32x8xf32>
    %cst = arith.constant dense<0.000000e+00> : vector<128x8xf32>
    %2 = tpu.matmul %0, %1, %cst {dimension_numbers = #tpu.dot_dimension_numbers<[1], [0], [0], [1], [0, 0, 1, 1], [], []>} : vector<128x32xf32>, vector<32x8xf32>, vector<128x8xf32> -> vector<128x8xf32>
    %cst_3 = arith.constant dense<0.000000e+00> : vector<8xf32>
    %3 = vector.multi_reduction <add>, %2, %cst_3 [0] : vector<128x8xf32> to vector<8xf32>
    %4 = vector.shape_cast %3 : vector<8xf32> to vector<1x8xf32>
    %5 = arith.mulf %2, %2 : vector<128x8xf32>
    %cst_4 = arith.constant dense<0.000000e+00> : vector<8xf32>
    %6 = vector.multi_reduction <add>, %5, %cst_4 [0] : vector<128x8xf32> to vector<8xf32>
    %7 = vector.shape_cast %6 : vector<8xf32> to vector<1x8xf32>
    %8 = tpu.iota {dimensions = array<i32: 0>} : vector<8x8xi32>
    %c0_i32 = arith.constant 0 : i32
    %9 = vector.broadcast %c0_i32 : i32 to vector<8x8xi32>
    %10 = arith.cmpi eq, %8, %9 : vector<8x8xi32>
    %c1_i32 = arith.constant 1 : i32
    %11 = vector.broadcast %c1_i32 : i32 to vector<8x8xi32>
    %12 = arith.cmpi eq, %8, %11 : vector<8x8xi32>
    %cst_5 = arith.constant 0.000000e+00 : f32
    %13 = vector.shape_cast %7 : vector<1x8xf32> to vector<1x8xf32>
    %14 = vector.broadcast %13 : vector<1x8xf32> to vector<8x8xf32>
    %15 = vector.broadcast %cst_5 : f32 to vector<8x8xf32>
    %16 = arith.select %12, %14, %15 : vector<8x8xi1>, vector<8x8xf32>
    %17 = vector.shape_cast %4 : vector<1x8xf32> to vector<1x8xf32>
    %18 = vector.broadcast %17 : vector<1x8xf32> to vector<8x8xf32>
    %19 = arith.select %10, %18, %16 : vector<8x8xi1>, vector<8x8xf32>
    %c0_6 = arith.constant 0 : index
    %c0_7 = arith.constant 0 : index
    %20 = vector.load %arg4[%c0_6, %c0_7] : memref<8x8xf32, #tpu.memory_space<vmem>>, vector<8x8xf32>
    tpu.vector_store %arg4[%c0_6, %c0_7], %19 {strides = array<i32>} : memref<8x8xf32, #tpu.memory_space<vmem>>, vector<8x8xf32>,
    %c0_8 = arith.constant 0 : index
    %c0_9 = arith.constant 0 : index
    %21 = vector.load %arg3[%c0_8, %c0_9] : memref<128x8xf32, #tpu.memory_space<vmem>>, vector<128x8xf32>
    tpu.vector_store %arg3[%c0_8, %c0_9], %2 {strides = array<i32>} : memref<128x8xf32, #tpu.memory_space<vmem>>, vector<128x8xf32>,
    return
  }
  func.func @transform_0(%arg0: i32) -> (i32, i32) {
    %c0_i32 = arith.constant 0 : i32
    %c0_i32_0 = arith.constant 0 : i32
    return %arg0, %c0_i32 : i32, i32
  }
  func.func @transform_1(%arg0: i32) -> (i32, i32) {
    %c0_i32 = arith.constant 0 : i32
    %c0_i32_0 = arith.constant 0 : i32
    %c0_i32_1 = arith.constant 0 : i32
    return %c0_i32, %c0_i32_0 : i32, i32
  }
  func.func @transform_2(%arg0: i32) -> (i32, i32) {
    %c0_i32 = arith.constant 0 : i32
    %c0_i32_0 = arith.constant 0 : i32
    return %arg0, %c0_i32 : i32, i32
  }
  func.func @transform_3(%arg0: i32) -> (i32, i32) {
    %c0_i32 = arith.constant 0 : i32
    %c0_i32_0 = arith.constant 0 : i32
    return %arg0, %c0_i32 : i32, i32
  }
}

module attributes {stable_mosaic.version = 11 : i64} {
  func.func @_fused_conv_kernel(%arg0: i32, %arg1: memref<128x64xf32, #tpu.memory_space<vmem>>, %arg2: memref<64x8xf32, #tpu.memory_space<vmem>>, %arg3: memref<128x8xf32, #tpu.memory_space<vmem>>, %arg4: memref<8x8xf32, #tpu.memory_space<vmem>>) attributes {dimension_semantics = [#tpu.dimension_semantics<parallel>], iteration_bounds = array<i64: 1>, scalar_prefetch = 0 : i64, scratch_operands = 0 : i64, tpu.core_type = #tpu.core_type<tc>, window_params = [{transform_indices = @transform_0, window_bounds = array<i64: 128, 64>}, {pipeline_mode = #tpu.pipeline_mode<synchronous>, transform_indices = @transform_1, window_bounds = array<i64: 64, 8>}, {transform_indices = @transform_2, window_bounds = array<i64: 128, 8>}, {transform_indices = @transform_3, window_bounds = array<i64: 8, 8>}]} {
    %c0 = arith.constant 0 : index
    %c0_0 = arith.constant 0 : index
    %0 = vector.load %arg1[%c0, %c0_0] : memref<128x64xf32, #tpu.memory_space<vmem>>, vector<128x64xf32>
    %c0_1 = arith.constant 0 : index
    %c0_2 = arith.constant 0 : index
    %1 = vector.load %arg2[%c0_1, %c0_2] : memref<64x8xf32, #tpu.memory_space<vmem>>, vector<64x8xf32>
    %cst = arith.constant dense<0.000000e+00> : vector<128x8xf32>
    %2 = tpu.matmul %0, %1, %cst {dimension_numbers = #tpu.dot_dimension_numbers<[1], [0], [0], [1], [0, 0, 1, 1], [], []>} : vector<128x64xf32>, vector<64x8xf32>, vector<128x8xf32> -> vector<128x8xf32>
    %cst_3 = arith.constant dense<0.000000e+00> : vector<8xf32>
    %3 = vector.multi_reduction <add>, %2, %cst_3 [0] : vector<128x8xf32> to vector<8xf32>
    %4 = vector.shape_cast %3 : vector<8xf32> to vector<1x8xf32>
    %5 = arith.mulf %2, %2 : vector<128x8xf32>
    %cst_4 = arith.constant dense<0.000000e+00> : vector<8xf32>
    %6 = vector.multi_reduction <add>, %5, %cst_4 [0] : vector<128x8xf32> to vector<8xf32>
    %7 = vector.shape_cast %6 : vector<8xf32> to vector<1x8xf32>
    %8 = tpu.iota {dimensions = array<i32: 0>} : vector<8x8xi32>
    %c0_i32 = arith.constant 0 : i32
    %9 = vector.broadcast %c0_i32 : i32 to vector<8x8xi32>
    %10 = arith.cmpi eq, %8, %9 : vector<8x8xi32>
    %c1_i32 = arith.constant 1 : i32
    %11 = vector.broadcast %c1_i32 : i32 to vector<8x8xi32>
    %12 = arith.cmpi eq, %8, %11 : vector<8x8xi32>
    %cst_5 = arith.constant 0.000000e+00 : f32
    %13 = vector.shape_cast %7 : vector<1x8xf32> to vector<1x8xf32>
    %14 = vector.broadcast %13 : vector<1x8xf32> to vector<8x8xf32>
    %15 = vector.broadcast %cst_5 : f32 to vector<8x8xf32>
    %16 = arith.select %12, %14, %15 : vector<8x8xi1>, vector<8x8xf32>
    %17 = vector.shape_cast %4 : vector<1x8xf32> to vector<1x8xf32>
    %18 = vector.broadcast %17 : vector<1x8xf32> to vector<8x8xf32>
    %19 = arith.select %10, %18, %16 : vector<8x8xi1>, vector<8x8xf32>
    %c0_6 = arith.constant 0 : index
    %c0_7 = arith.constant 0 : index
    %20 = vector.load %arg4[%c0_6, %c0_7] : memref<8x8xf32, #tpu.memory_space<vmem>>, vector<8x8xf32>
    tpu.vector_store %arg4[%c0_6, %c0_7], %19 {strides = array<i32>} : memref<8x8xf32, #tpu.memory_space<vmem>>, vector<8x8xf32>,
    %c0_8 = arith.constant 0 : index
    %c0_9 = arith.constant 0 : index
    %21 = vector.load %arg3[%c0_8, %c0_9] : memref<128x8xf32, #tpu.memory_space<vmem>>, vector<128x8xf32>
    tpu.vector_store %arg3[%c0_8, %c0_9], %2 {strides = array<i32>} : memref<128x8xf32, #tpu.memory_space<vmem>>, vector<128x8xf32>,
    return
  }
  func.func @transform_0(%arg0: i32) -> (i32, i32) {
    %c0_i32 = arith.constant 0 : i32
    %c0_i32_0 = arith.constant 0 : i32
    return %arg0, %c0_i32 : i32, i32
  }
  func.func @transform_1(%arg0: i32) -> (i32, i32) {
    %c0_i32 = arith.constant 0 : i32
    %c0_i32_0 = arith.constant 0 : i32
    %c0_i32_1 = arith.constant 0 : i32
    return %c0_i32, %c0_i32_0 : i32, i32
  }
  func.func @transform_2(%arg0: i32) -> (i32, i32) {
    %c0_i32 = arith.constant 0 : i32
    %c0_i32_0 = arith.constant 0 : i32
    return %arg0, %c0_i32 : i32, i32
  }
  func.func @transform_3(%arg0: i32) -> (i32, i32) {
    %c0_i32 = arith.constant 0 : i32
    %c0_i32_0 = arith.constant 0 : i32
    return %arg0, %c0_i32 : i32, i32
  }
}

module attributes {stable_mosaic.version = 11 : i64} {
  func.func @_fused_conv_kernel(%arg0: i32, %arg1: memref<128x16xf32, #tpu.memory_space<vmem>>, %arg2: memref<16x8xf32, #tpu.memory_space<vmem>>, %arg3: memref<128x8xf32, #tpu.memory_space<vmem>>, %arg4: memref<8x8xf32, #tpu.memory_space<vmem>>) attributes {dimension_semantics = [#tpu.dimension_semantics<parallel>], iteration_bounds = array<i64: 1>, scalar_prefetch = 0 : i64, scratch_operands = 0 : i64, tpu.core_type = #tpu.core_type<tc>, window_params = [{transform_indices = @transform_0, window_bounds = array<i64: 128, 16>}, {pipeline_mode = #tpu.pipeline_mode<synchronous>, transform_indices = @transform_1, window_bounds = array<i64: 16, 8>}, {transform_indices = @transform_2, window_bounds = array<i64: 128, 8>}, {transform_indices = @transform_3, window_bounds = array<i64: 8, 8>}]} {
    %c0 = arith.constant 0 : index
    %c0_0 = arith.constant 0 : index
    %0 = vector.load %arg1[%c0, %c0_0] : memref<128x16xf32, #tpu.memory_space<vmem>>, vector<128x16xf32>
    %c0_1 = arith.constant 0 : index
    %c0_2 = arith.constant 0 : index
    %1 = vector.load %arg2[%c0_1, %c0_2] : memref<16x8xf32, #tpu.memory_space<vmem>>, vector<16x8xf32>
    %cst = arith.constant dense<0.000000e+00> : vector<128x8xf32>
    %2 = tpu.matmul %0, %1, %cst {dimension_numbers = #tpu.dot_dimension_numbers<[1], [0], [0], [1], [0, 0, 1, 1], [], []>} : vector<128x16xf32>, vector<16x8xf32>, vector<128x8xf32> -> vector<128x8xf32>
    %cst_3 = arith.constant dense<0.000000e+00> : vector<8xf32>
    %3 = vector.multi_reduction <add>, %2, %cst_3 [0] : vector<128x8xf32> to vector<8xf32>
    %4 = vector.shape_cast %3 : vector<8xf32> to vector<1x8xf32>
    %5 = arith.mulf %2, %2 : vector<128x8xf32>
    %cst_4 = arith.constant dense<0.000000e+00> : vector<8xf32>
    %6 = vector.multi_reduction <add>, %5, %cst_4 [0] : vector<128x8xf32> to vector<8xf32>
    %7 = vector.shape_cast %6 : vector<8xf32> to vector<1x8xf32>
    %8 = tpu.iota {dimensions = array<i32: 0>} : vector<8x8xi32>
    %c0_i32 = arith.constant 0 : i32
    %9 = vector.broadcast %c0_i32 : i32 to vector<8x8xi32>
    %10 = arith.cmpi eq, %8, %9 : vector<8x8xi32>
    %c1_i32 = arith.constant 1 : i32
    %11 = vector.broadcast %c1_i32 : i32 to vector<8x8xi32>
    %12 = arith.cmpi eq, %8, %11 : vector<8x8xi32>
    %cst_5 = arith.constant 0.000000e+00 : f32
    %13 = vector.shape_cast %7 : vector<1x8xf32> to vector<1x8xf32>
    %14 = vector.broadcast %13 : vector<1x8xf32> to vector<8x8xf32>
    %15 = vector.broadcast %cst_5 : f32 to vector<8x8xf32>
    %16 = arith.select %12, %14, %15 : vector<8x8xi1>, vector<8x8xf32>
    %17 = vector.shape_cast %4 : vector<1x8xf32> to vector<1x8xf32>
    %18 = vector.broadcast %17 : vector<1x8xf32> to vector<8x8xf32>
    %19 = arith.select %10, %18, %16 : vector<8x8xi1>, vector<8x8xf32>
    %c0_6 = arith.constant 0 : index
    %c0_7 = arith.constant 0 : index
    %20 = vector.load %arg4[%c0_6, %c0_7] : memref<8x8xf32, #tpu.memory_space<vmem>>, vector<8x8xf32>
    tpu.vector_store %arg4[%c0_6, %c0_7], %19 {strides = array<i32>} : memref<8x8xf32, #tpu.memory_space<vmem>>, vector<8x8xf32>,
    %c0_8 = arith.constant 0 : index
    %c0_9 = arith.constant 0 : index
    %21 = vector.load %arg3[%c0_8, %c0_9] : memref<128x8xf32, #tpu.memory_space<vmem>>, vector<128x8xf32>
    tpu.vector_store %arg3[%c0_8, %c0_9], %2 {strides = array<i32>} : memref<128x8xf32, #tpu.memory_space<vmem>>, vector<128x8xf32>,
    return
  }
  func.func @transform_0(%arg0: i32) -> (i32, i32) {
    %c0_i32 = arith.constant 0 : i32
    %c0_i32_0 = arith.constant 0 : i32
    return %arg0, %c0_i32 : i32, i32
  }
  func.func @transform_1(%arg0: i32) -> (i32, i32) {
    %c0_i32 = arith.constant 0 : i32
    %c0_i32_0 = arith.constant 0 : i32
    %c0_i32_1 = arith.constant 0 : i32
    return %c0_i32, %c0_i32_0 : i32, i32
  }
  func.func @transform_2(%arg0: i32) -> (i32, i32) {
    %c0_i32 = arith.constant 0 : i32
    %c0_i32_0 = arith.constant 0 : i32
    return %arg0, %c0_i32 : i32, i32
  }
  func.func @transform_3(%arg0: i32) -> (i32, i32) {
    %c0_i32 = arith.constant 0 : i32
    %c0_i32_0 = arith.constant 0 : i32
    return %arg0, %c0_i32 : i32, i32
  }
}

module attributes {stable_mosaic.version = 11 : i64} {
  func.func @_fused_conv_kernel(%arg0: i32, %arg1: memref<256x392xf32, #tpu.memory_space<vmem>>, %arg2: memref<392x3xf32, #tpu.memory_space<vmem>>, %arg3: memref<1x3xf32, #tpu.memory_space<vmem>>, %arg4: memref<256x3xf32, #tpu.memory_space<vmem>>) attributes {dimension_semantics = [#tpu.dimension_semantics<parallel>], iteration_bounds = array<i64: 2>, scalar_prefetch = 0 : i64, scratch_operands = 0 : i64, tpu.core_type = #tpu.core_type<tc>, window_params = [{transform_indices = @transform_0, window_bounds = array<i64: 256, 392>}, {pipeline_mode = #tpu.pipeline_mode<synchronous>, transform_indices = @transform_1, window_bounds = array<i64: 392, 3>}, {pipeline_mode = #tpu.pipeline_mode<synchronous>, transform_indices = @transform_2, window_bounds = array<i64: 1, 3>}, {transform_indices = @transform_3, window_bounds = array<i64: 256, 3>}]} {
    %c0 = arith.constant 0 : index
    %c0_0 = arith.constant 0 : index
    %0 = vector.load %arg1[%c0, %c0_0] : memref<256x392xf32, #tpu.memory_space<vmem>>, vector<256x392xf32>
    %c0_1 = arith.constant 0 : index
    %c0_2 = arith.constant 0 : index
    %1 = vector.load %arg2[%c0_1, %c0_2] : memref<392x3xf32, #tpu.memory_space<vmem>>, vector<392x3xf32>
    %cst = arith.constant dense<0.000000e+00> : vector<256x3xf32>
    %2 = tpu.matmul %0, %1, %cst {dimension_numbers = #tpu.dot_dimension_numbers<[1], [0], [0], [1], [0, 0, 1, 1], [], []>} : vector<256x392xf32>, vector<392x3xf32>, vector<256x3xf32> -> vector<256x3xf32>
    %c0_3 = arith.constant 0 : index
    %c0_4 = arith.constant 0 : index
    %3 = vector.load %arg3[%c0_3, %c0_4] : memref<1x3xf32, #tpu.memory_space<vmem>>, vector<1x3xf32>
    %4 = vector.broadcast %3 : vector<1x3xf32> to vector<256x3xf32>
    %5 = arith.addf %2, %4 : vector<256x3xf32>
    %6 = math.tanh %5 : vector<256x3xf32>
    %c0_5 = arith.constant 0 : index
    %c0_6 = arith.constant 0 : index
    %7 = vector.load %arg4[%c0_5, %c0_6] : memref<256x3xf32, #tpu.memory_space<vmem>>, vector<256x3xf32>
    tpu.vector_store %arg4[%c0_5, %c0_6], %6 {strides = array<i32>} : memref<256x3xf32, #tpu.memory_space<vmem>>, vector<256x3xf32>,
    return
  }
  func.func @transform_0(%arg0: i32) -> (i32, i32) {
    %c0_i32 = arith.constant 0 : i32
    %c0_i32_0 = arith.constant 0 : i32
    return %arg0, %c0_i32 : i32, i32
  }
  func.func @transform_1(%arg0: i32) -> (i32, i32) {
    %c0_i32 = arith.constant 0 : i32
    %c0_i32_0 = arith.constant 0 : i32
    %c0_i32_1 = arith.constant 0 : i32
    return %c0_i32, %c0_i32_0 : i32, i32
  }
  func.func @transform_2(%arg0: i32) -> (i32, i32) {
    %c0_i32 = arith.constant 0 : i32
    %c0_i32_0 = arith.constant 0 : i32
    %c0_i32_1 = arith.constant 0 : i32
    return %c0_i32, %c0_i32_0 : i32, i32
  }
  func.func @transform_3(%arg0: i32) -> (i32, i32) {
    %c0_i32 = arith.constant 0 : i32
    %c0_i32_0 = arith.constant 0 : i32
    return %arg0, %c0_i32 : i32, i32
  }
}

</mosaic_0001>

<llo_original>
// kernel: resnet_generator_forward.22
$region0: #{resnet_generator_forward.22}
  #allocation0 [shape = 'u32[]', space=smem, size = 0x4, offset = 0x4, fixed_abs, tag = 'smem constant byte address 0x4 - core index']
  #allocation1 [shape = 'u32[144,128]{1,0:T(1,128)}', space=vmem, size = 0x12000, scoped, tag = 'internal scratch']
  %s0 = inlined_call_operand.vmem [shape: f32[512,8], index: 0, kind: input, shape index: {}]
  %s1 = inlined_call_operand.vmem [shape: f32[1,8], index: 1, kind: input, shape index: {}]
  %s2 = inlined_call_operand.vmem [shape: f32[1,8], index: 2, kind: input, shape index: {}]
  %s3 = inlined_call_operand.vmem [shape: f32[512,8], index: 3, kind: output, shape index: {}]
  %s4 = sld [smem:[#allocation0]]
  $region22: #{resnet_generator_forward.22} parent=0
    _
  %s6 = ssub.s32 1, %s4
  %s7 = scalar_select 0, %s6, %s4
  // Predicated region
  $region2: #{resnet_generator_forward.22} parent=0 // pred_check
    _
  $region3: #{resnet_generator_forward.22} parent=0 // pred_check_branch
    %9 = sbr.rel (0) target = $region5
  $region4: #{resnet_generator_forward.22} parent=0 // pred_region
    _
  $region5: #{resnet_generator_forward.22} parent=0 // pred_fallthru
    _
  // Predicated region
  $region6: #{resnet_generator_forward.22} parent=0 // pred_check
    _
  $region7: #{resnet_generator_forward.22} parent=0 // pred_check_branch
    %11 = sbr.rel (0) target = $region9
  $region8: #{resnet_generator_forward.22} parent=0 // pred_region
    _
  $region9: #{resnet_generator_forward.22} parent=0 // pred_fallthru
    _
  // Predicated region
  $region10: #{resnet_generator_forward.22} parent=0 // pred_check
    _
  $region11: #{resnet_generator_forward.22} parent=0 // pred_check_branch
    %13 = sbr.rel (0) target = $region13
  $region12: #{resnet_generator_forward.22} parent=0 // pred_region
    _
  $region13: #{resnet_generator_forward.22} parent=0 // pred_fallthru
    _
  %v14 = vld [vmem:[%s0] sm:$0xff]
  %v15 = vld [vmem:[%s0 + $0x8] sm:$0xff]
  %v16 = vld [vmem:[%s0 + $0x10] sm:$0xff]
  %v17 = vld [vmem:[%s0 + $0x18] sm:$0xff]
  %v18 = vld [vmem:[%s0 + $0x20] sm:$0xff]
  %v19 = vld [vmem:[%s0 + $0x28] sm:$0xff]
  %v20 = vld [vmem:[%s0 + $0x30] sm:$0xff]
  %v21 = vld [vmem:[%s0 + $0x38] sm:$0xff]
  %v22 = vld [vmem:[%s0 + $0x40] sm:$0xff]
  %v23 = vld [vmem:[%s0 + $0x48] sm:$0xff]
  %v24 = vld [vmem:[%s0 + $0x50] sm:$0xff]
  %v25 = vld [vmem:[%s0 + $0x58] sm:$0xff]
  %v26 = vld [vmem:[%s0 + $0x60] sm:$0xff]
  %v27 = vld [vmem:[%s0 + $0x68] sm:$0xff]
  %v28 = vld [vmem:[%s0 + $0x70] sm:$0xff]
  %v29 = vld [vmem:[%s0 + $0x78] sm:$0xff]
  %v30 = vld [vmem:[%s0 + $0x80] sm:$0xff]
  %v31 = vld [vmem:[%s0 + $0x88] sm:$0xff]
  %v32 = vld [vmem:[%s0 + $0x90] sm:$0xff]
  %v33 = vld [vmem:[%s0 + $0x98] sm:$0xff]
  %v34 = vld [vmem:[%s0 + $0xa0] sm:$0xff]
  %v35 = vld [vmem:[%s0 + $0xa8] sm:$0xff]
  %v36 = vld [vmem:[%s0 + $0xb0] sm:$0xff]
  %v37 = vld [vmem:[%s0 + $0xb8] sm:$0xff]
  %v38 = vld [vmem:[%s0 + $0xc0] sm:$0xff]
  %v39 = vld [vmem:[%s0 + $0xc8] sm:$0xff]
  %v40 = vld [vmem:[%s0 + $0xd0] sm:$0xff]
  %v41 = vld [vmem:[%s0 + $0xd8] sm:$0xff]
  %v42 = vld [vmem:[%s0 + $0xe0] sm:$0xff]
  %v43 = vld [vmem:[%s0 + $0xe8] sm:$0xff]
  %v44 = vld [vmem:[%s0 + $0xf0] sm:$0xff]
  %v45 = vld [vmem:[%s0 + $0xf8] sm:$0xff]
  %v46 = vld [vmem:[%s0 + $0x100] sm:$0xff]
  %v47 = vld [vmem:[%s0 + $0x108] sm:$0xff]
  %v48 = vld [vmem:[%s0 + $0x110] sm:$0xff]
  %v49 = vld [vmem:[%s0 + $0x118] sm:$0xff]
  %v50 = vld [vmem:[%s0 + $0x120] sm:$0xff]
  %v51 = vld [vmem:[%s0 + $0x128] sm:$0xff]
  %v52 = vld [vmem:[%s0 + $0x130] sm:$0xff]
  %v53 = vld [vmem:[%s0 + $0x138] sm:$0xff]
  %v54 = vld [vmem:[%s0 + $0x140] sm:$0xff]
  %v55 = vld [vmem:[%s0 + $0x148] sm:$0xff]
  %v56 = vld [vmem:[%s0 + $0x150] sm:$0xff]
  %v57 = vld [vmem:[%s0 + $0x158] sm:$0xff]
  %v58 = vld [vmem:[%s0 + $0x160] sm:$0xff]
  %v59 = vld [vmem:[%s0 + $0x168] sm:$0xff]
  %v60 = vld [vmem:[%s0 + $0x170] sm:$0xff]
  %v61 = vld [vmem:[%s0 + $0x178] sm:$0xff]
  %v62 = vld [vmem:[%s0 + $0x180] sm:$0xff]
  %v63 = vld [vmem:[%s0 + $0x188] sm:$0xff]
  %v64 = vld [vmem:[%s0 + $0x190] sm:$0xff]
  %v65 = vld [vmem:[%s0 + $0x198] sm:$0xff]
  %v66 = vld [vmem:[%s0 + $0x1a0] sm:$0xff]
  %v67 = vld [vmem:[%s0 + $0x1a8] sm:$0xff]
  %v68 = vld [vmem:[%s0 + $0x1b0] sm:$0xff]
  %v69 = vld [vmem:[%s0 + $0x1b8] sm:$0xff]
  %v70 = vld [vmem:[%s0 + $0x1c0] sm:$0xff]
  %v71 = vld [vmem:[%s0 + $0x1c8] sm:$0xff]
  %v72 = vld [vmem:[%s0 + $0x1d0] sm:$0xff]
  %v73 = vld [vmem:[%s0 + $0x1d8] sm:$0xff]
  %v74 = vld [vmem:[%s0 + $0x1e0] sm:$0xff]
  %v75 = vld [vmem:[%s0 + $0x1e8] sm:$0xff]
  %v76 = vld [vmem:[%s0 + $0x1f0] sm:$0xff]
  %v77 = vld [vmem:[%s0 + $0x1f8] sm:$0xff]
  %v78 = vld [vmem:[%s1] sm:$0x1]
  %v80 = vlaneseq
  %v81 = vshrl.u32 %v80, 7
  %v82 = vsub.s32 0, %v81
  %v83 = vrot.slane %v78, %v82
  %v85 = vmul.f32 %v14, %v83
  %v86 = vmul.f32 %v15, %v83
  %v87 = vmul.f32 %v16, %v83
  %v88 = vmul.f32 %v17, %v83
  %v89 = vmul.f32 %v18, %v83
  %v90 = vmul.f32 %v19, %v83
  %v91 = vmul.f32 %v20, %v83
  %v92 = vmul.f32 %v21, %v83
  %v93 = vmul.f32 %v22, %v83
  %v94 = vmul.f32 %v23, %v83
  %v95 = vmul.f32 %v24, %v83
  %v96 = vmul.f32 %v25, %v83
  %v97 = vmul.f32 %v26, %v83
  %v98 = vmul.f32 %v27, %v83
  %v99 = vmul.f32 %v28, %v83
  %v100 = vmul.f32 %v29, %v83
  %v101 = vmul.f32 %v30, %v83
  %v102 = vmul.f32 %v31, %v83
  %v103 = vmul.f32 %v32, %v83
  %v104 = vmul.f32 %v33, %v83
  %v105 = vmul.f32 %v34, %v83
  %v106 = vmul.f32 %v35, %v83
  %v107 = vmul.f32 %v36, %v83
  %v108 = vmul.f32 %v37, %v83
  %v109 = vmul.f32 %v38, %v83
  %v110 = vmul.f32 %v39, %v83
  %v111 = vmul.f32 %v40, %v83
  %v112 = vmul.f32 %v41, %v83
  %v113 = vmul.f32 %v42, %v83
  %v114 = vmul.f32 %v43, %v83
  %v115 = vmul.f32 %v44, %v83
  %v116 = vmul.f32 %v45, %v83
  %v117 = vmul.f32 %v46, %v83
  %v118 = vmul.f32 %v47, %v83
  %v119 = vmul.f32 %v48, %v83
  %v120 = vmul.f32 %v49, %v83
  %v121 = vmul.f32 %v50, %v83
  %v122 = vmul.f32 %v51, %v83
  %v123 = vmul.f32 %v52, %v83
  %v124 = vmul.f32 %v53, %v83
  %v125 = vmul.f32 %v54, %v83
  %v126 = vmul.f32 %v55, %v83
  %v127 = vmul.f32 %v56, %v83
  %v128 = vmul.f32 %v57, %v83
  %v129 = vmul.f32 %v58, %v83
  %v130 = vmul.f32 %v59, %v83
  %v131 = vmul.f32 %v60, %v83
  %v132 = vmul.f32 %v61, %v83
  %v133 = vmul.f32 %v62, %v83
  %v134 = vmul.f32 %v63, %v83
  %v135 = vmul.f32 %v64, %v83
  %v136 = vmul.f32 %v65, %v83
  %v137 = vmul.f32 %v66, %v83
  %v138 = vmul.f32 %v67, %v83
  %v139 = vmul.f32 %v68, %v83
  %v140 = vmul.f32 %v69, %v83
  %v141 = vmul.f32 %v70, %v83
  %v142 = vmul.f32 %v71, %v83
  %v143 = vmul.f32 %v72, %v83
  %v144 = vmul.f32 %v73, %v83
  %v145 = vmul.f32 %v74, %v83
  %v146 = vmul.f32 %v75, %v83
  %v147 = vmul.f32 %v76, %v83
  %v148 = vmul.f32 %v77, %v83
  %v149 = vld [vmem:[%s2] sm:$0x1]
  %v151 = vlaneseq
  %v152 = vshrl.u32 %v151, 7
  %v153 = vsub.s32 0, %v152
  %v154 = vrot.slane %v149, %v153
  %v156 = vadd.f32 %v85, %v154
  %v157 = vadd.f32 %v86, %v154
  %v158 = vadd.f32 %v87, %v154
  %v159 = vadd.f32 %v88, %v154
  %v160 = vadd.f32 %v89, %v154
  %v161 = vadd.f32 %v90, %v154
  %v162 = vadd.f32 %v91, %v154
  %v163 = vadd.f32 %v92, %v154
  %v164 = vadd.f32 %v93, %v154
  %v165 = vadd.f32 %v94, %v154
  %v166 = vadd.f32 %v95, %v154
  %v167 = vadd.f32 %v96, %v154
  %v168 = vadd.f32 %v97, %v154
  %v169 = vadd.f32 %v98, %v154
  %v170 = vadd.f32 %v99, %v154
  %v171 = vadd.f32 %v100, %v154
  %v172 = vadd.f32 %v101, %v154
  %v173 = vadd.f32 %v102, %v154
  %v174 = vadd.f32 %v103, %v154
  %v175 = vadd.f32 %v104, %v154
  %v176 = vadd.f32 %v105, %v154
  %v177 = vadd.f32 %v106, %v154
  %v178 = vadd.f32 %v107, %v154
  %v179 = vadd.f32 %v108, %v154
  %v180 = vadd.f32 %v109, %v154
  %v181 = vadd.f32 %v110, %v154
  %v182 = vadd.f32 %v111, %v154
  %v183 = vadd.f32 %v112, %v154
  %v184 = vadd.f32 %v113, %v154
  %v185 = vadd.f32 %v114, %v154
  %v186 = vadd.f32 %v115, %v154
  %v187 = vadd.f32 %v116, %v154
  %v188 = vadd.f32 %v117, %v154
  %v189 = vadd.f32 %v118, %v154
  %v190 = vadd.f32 %v119, %v154
  %v191 = vadd.f32 %v120, %v154
  %v192 = vadd.f32 %v121, %v154
  %v193 = vadd.f32 %v122, %v154
  %v194 = vadd.f32 %v123, %v154
  %v195 = vadd.f32 %v124, %v154
  %v196 = vadd.f32 %v125, %v154
  %v197 = vadd.f32 %v126, %v154
  %v198 = vadd.f32 %v127, %v154
  %v199 = vadd.f32 %v128, %v154
  %v200 = vadd.f32 %v129, %v154
  %v201 = vadd.f32 %v130, %v154
  %v202 = vadd.f32 %v131, %v154
  %v203 = vadd.f32 %v132, %v154
  %v204 = vadd.f32 %v133, %v154
  %v205 = vadd.f32 %v134, %v154
  %v206 = vadd.f32 %v135, %v154
  %v207 = vadd.f32 %v136, %v154
  %v208 = vadd.f32 %v137, %v154
  %v209 = vadd.f32 %v138, %v154
  %v210 = vadd.f32 %v139, %v154
  %v211 = vadd.f32 %v140, %v154
  %v212 = vadd.f32 %v141, %v154
  %v213 = vadd.f32 %v142, %v154
  %v214 = vadd.f32 %v143, %v154
  %v215 = vadd.f32 %v144, %v154
  %v216 = vadd.f32 %v145, %v154
  %v217 = vadd.f32 %v146, %v154
  %v218 = vadd.f32 %v147, %v154
  %v219 = vadd.f32 %v148, %v154
  %v220 = vmax.f32 %v156, 0.0
  %v221 = vmax.f32 %v157, 0.0
  %v222 = vmax.f32 %v158, 0.0
  %v223 = vmax.f32 %v159, 0.0
  %v224 = vmax.f32 %v160, 0.0
  %v225 = vmax.f32 %v161, 0.0
  %v226 = vmax.f32 %v162, 0.0
  %v227 = vmax.f32 %v163, 0.0
  %v228 = vmax.f32 %v164, 0.0
  %v229 = vmax.f32 %v165, 0.0
  %v230 = vmax.f32 %v166, 0.0
  %v231 = vmax.f32 %v167, 0.0
  %v232 = vmax.f32 %v168, 0.0
  %v233 = vmax.f32 %v169, 0.0
  %v234 = vmax.f32 %v170, 0.0
  %v235 = vmax.f32 %v171, 0.0
  %v236 = vmax.f32 %v172, 0.0
  %v237 = vmax.f32 %v173, 0.0
  %v238 = vmax.f32 %v174, 0.0
  %v239 = vmax.f32 %v175, 0.0
  %v240 = vmax.f32 %v176, 0.0
  %v241 = vmax.f32 %v177, 0.0
  %v242 = vmax.f32 %v178, 0.0
  %v243 = vmax.f32 %v179, 0.0
  %v244 = vmax.f32 %v180, 0.0
  %v245 = vmax.f32 %v181, 0.0
  %v246 = vmax.f32 %v182, 0.0
  %v247 = vmax.f32 %v183, 0.0
  %v248 = vmax.f32 %v184, 0.0
  %v249 = vmax.f32 %v185, 0.0
  %v250 = vmax.f32 %v186, 0.0
  %v251 = vmax.f32 %v187, 0.0
  %v252 = vmax.f32 %v188, 0.0
  %v253 = vmax.f32 %v189, 0.0
  %v254 = vmax.f32 %v190, 0.0
  %v255 = vmax.f32 %v191, 0.0
  %v256 = vmax.f32 %v192, 0.0
  %v257 = vmax.f32 %v193, 0.0
  %v258 = vmax.f32 %v194, 0.0
  %v259 = vmax.f32 %v195, 0.0
  %v260 = vmax.f32 %v196, 0.0
  %v261 = vmax.f32 %v197, 0.0
  %v262 = vmax.f32 %v198, 0.0
  %v263 = vmax.f32 %v199, 0.0
  %v264 = vmax.f32 %v200, 0.0
  %v265 = vmax.f32 %v201, 0.0
  %v266 = vmax.f32 %v202, 0.0
  %v267 = vmax.f32 %v203, 0.0
  %v268 = vmax.f32 %v204, 0.0
  %v269 = vmax.f32 %v205, 0.0
  %v270 = vmax.f32 %v206, 0.0
  %v271 = vmax.f32 %v207, 0.0
  %v272 = vmax.f32 %v208, 0.0
  %v273 = vmax.f32 %v209, 0.0
  %v274 = vmax.f32 %v210, 0.0
  %v275 = vmax.f32 %v211, 0.0
  %v276 = vmax.f32 %v212, 0.0
  %v277 = vmax.f32 %v213, 0.0
  %v278 = vmax.f32 %v214, 0.0
  %v279 = vmax.f32 %v215, 0.0
  %v280 = vmax.f32 %v216, 0.0
  %v281 = vmax.f32 %v217, 0.0
  %v282 = vmax.f32 %v218, 0.0
  %v283 = vmax.f32 %v219, 0.0
  %vm284 = vcmask 64512
  %285 = vst.msk [vmem:[%s3] sm:$0xff] %vm284, %v220
  %286 = vst.msk [vmem:[%s3 + $0x8] sm:$0xff] %vm284, %v221
  %287 = vst.msk [vmem:[%s3 + $0x10] sm:$0xff] %vm284, %v222
  %288 = vst.msk [vmem:[%s3 + $0x18] sm:$0xff] %vm284, %v223
  %289 = vst.msk [vmem:[%s3 + $0x20] sm:$0xff] %vm284, %v224
  %290 = vst.msk [vmem:[%s3 + $0x28] sm:$0xff] %vm284, %v225
  %291 = vst.msk [vmem:[%s3 + $0x30] sm:$0xff] %vm284, %v226
  %292 = vst.msk [vmem:[%s3 + $0x38] sm:$0xff] %vm284, %v227
  %293 = vst.msk [vmem:[%s3 + $0x40] sm:$0xff] %vm284, %v228
  %294 = vst.msk [vmem:[%s3 + $0x48] sm:$0xff] %vm284, %v229
  %295 = vst.msk [vmem:[%s3 + $0x50] sm:$0xff] %vm284, %v230
  %296 = vst.msk [vmem:[%s3 + $0x58] sm:$0xff] %vm284, %v231
  %297 = vst.msk [vmem:[%s3 + $0x60] sm:$0xff] %vm284, %v232
  %298 = vst.msk [vmem:[%s3 + $0x68] sm:$0xff] %vm284, %v233
  %299 = vst.msk [vmem:[%s3 + $0x70] sm:$0xff] %vm284, %v234
  %300 = vst.msk [vmem:[%s3 + $0x78] sm:$0xff] %vm284, %v235
  %301 = vst.msk [vmem:[%s3 + $0x80] sm:$0xff] %vm284, %v236
  %302 = vst.msk [vmem:[%s3 + $0x88] sm:$0xff] %vm284, %v237
  %303 = vst.msk [vmem:[%s3 + $0x90] sm:$0xff] %vm284, %v238
  %304 = vst.msk [vmem:[%s3 + $0x98] sm:$0xff] %vm284, %v239
  %305 = vst.msk [vmem:[%s3 + $0xa0] sm:$0xff] %vm284, %v240
  %306 = vst.msk [vmem:[%s3 + $0xa8] sm:$0xff] %vm284, %v241
  %307 = vst.msk [vmem:[%s3 + $0xb0] sm:$0xff] %vm284, %v242
  %308 = vst.msk [vmem:[%s3 + $0xb8] sm:$0xff] %vm284, %v243
  %309 = vst.msk [vmem:[%s3 + $0xc0] sm:$0xff] %vm284, %v244
  %310 = vst.msk [vmem:[%s3 + $0xc8] sm:$0xff] %vm284, %v245
  %311 = vst.msk [vmem:[%s3 + $0xd0] sm:$0xff] %vm284, %v246
  %312 = vst.msk [vmem:[%s3 + $0xd8] sm:$0xff] %vm284, %v247
  %313 = vst.msk [vmem:[%s3 + $0xe0] sm:$0xff] %vm284, %v248
  %314 = vst.msk [vmem:[%s3 + $0xe8] sm:$0xff] %vm284, %v249
  %315 = vst.msk [vmem:[%s3 + $0xf0] sm:$0xff] %vm284, %v250
  %316 = vst.msk [vmem:[%s3 + $0xf8] sm:$0xff] %vm284, %v251
  %317 = vst.msk [vmem:[%s3 + $0x100] sm:$0xff] %vm284, %v252
  %318 = vst.msk [vmem:[%s3 + $0x108] sm:$0xff] %vm284, %v253
  %319 = vst.msk [vmem:[%s3 + $0x110] sm:$0xff] %vm284, %v254
  %320 = vst.msk [vmem:[%s3 + $0x118] sm:$0xff] %vm284, %v255
  %321 = vst.msk [vmem:[%s3 + $0x120] sm:$0xff] %vm284, %v256
  %322 = vst.msk [vmem:[%s3 + $0x128] sm:$0xff] %vm284, %v257
  %323 = vst.msk [vmem:[%s3 + $0x130] sm:$0xff] %vm284, %v258
  %324 = vst.msk [vmem:[%s3 + $0x138] sm:$0xff] %vm284, %v259
  %325 = vst.msk [vmem:[%s3 + $0x140] sm:$0xff] %vm284, %v260
  %326 = vst.msk [vmem:[%s3 + $0x148] sm:$0xff] %vm284, %v261
  %327 = vst.msk [vmem:[%s3 + $0x150] sm:$0xff] %vm284, %v262
  %328 = vst.msk [vmem:[%s3 + $0x158] sm:$0xff] %vm284, %v263
  %329 = vst.msk [vmem:[%s3 + $0x160] sm:$0xff] %vm284, %v264
  %330 = vst.msk [vmem:[%s3 + $0x168] sm:$0xff] %vm284, %v265
  %331 = vst.msk [vmem:[%s3 + $0x170] sm:$0xff] %vm284, %v266
  %332 = vst.msk [vmem:[%s3 + $0x178] sm:$0xff] %vm284, %v267
  %333 = vst.msk [vmem:[%s3 + $0x180] sm:$0xff] %vm284, %v268
  %334 = vst.msk [vmem:[%s3 + $0x188] sm:$0xff] %vm284, %v269
  %335 = vst.msk [vmem:[%s3 + $0x190] sm:$0xff] %vm284, %v270
  %336 = vst.msk [vmem:[%s3 + $0x198] sm:$0xff] %vm284, %v271
  %337 = vst.msk [vmem:[%s3 + $0x1a0] sm:$0xff] %vm284, %v272
  %338 = vst.msk [vmem:[%s3 + $0x1a8] sm:$0xff] %vm284, %v273
  %339 = vst.msk [vmem:[%s3 + $0x1b0] sm:$0xff] %vm284, %v274
  %340 = vst.msk [vmem:[%s3 + $0x1b8] sm:$0xff] %vm284, %v275
  %341 = vst.msk [vmem:[%s3 + $0x1c0] sm:$0xff] %vm284, %v276
  %342 = vst.msk [vmem:[%s3 + $0x1c8] sm:$0xff] %vm284, %v277
  %343 = vst.msk [vmem:[%s3 + $0x1d0] sm:$0xff] %vm284, %v278
  %344 = vst.msk [vmem:[%s3 + $0x1d8] sm:$0xff] %vm284, %v279
  %345 = vst.msk [vmem:[%s3 + $0x1e0] sm:$0xff] %vm284, %v280
  %346 = vst.msk [vmem:[%s3 + $0x1e8] sm:$0xff] %vm284, %v281
  %347 = vst.msk [vmem:[%s3 + $0x1f0] sm:$0xff] %vm284, %v282
  %348 = vst.msk [vmem:[%s3 + $0x1f8] sm:$0xff] %vm284, %v283
  // Predicated region
  $region14: #{resnet_generator_forward.22} parent=0 // pred_check
    _
  $region15: #{resnet_generator_forward.22} parent=0 // pred_check_branch
    %350 = sbr.rel (0) target = $region17
  $region16: #{resnet_generator_forward.22} parent=0 // pred_region
    _
  $region17: #{resnet_generator_forward.22} parent=0 // pred_fallthru
    _
  // Predicated region
  $region18: #{resnet_generator_forward.22} parent=0 // pred_check
    _
  $region19: #{resnet_generator_forward.22} parent=0 // pred_check_branch
    %352 = sbr.rel (0) target = $region21
  $region20: #{resnet_generator_forward.22} parent=0 // pred_region
    _
  $region21: #{resnet_generator_forward.22} parent=0 // pred_fallthru
    _

// kernel: resnet_generator_forward.21
$region0: #{resnet_generator_forward.21}
  #allocation0 [shape = 'u32[]', space=smem, size = 0x4, offset = 0x4, fixed_abs, tag = 'smem constant byte address 0x4 - core index']
  #allocation1 [shape = 'u32[144,128]{1,0:T(1,128)}', space=vmem, size = 0x12000, scoped, tag = 'internal scratch']
  %s0 = inlined_call_operand.vmem [shape: f32[512,147], index: 0, kind: input, shape index: {}]
  %s1 = inlined_call_operand.vmem [shape: f32[147,8], index: 1, kind: input, shape index: {}]
  %s2 = inlined_call_operand.vmem [shape: f32[512,8], index: 2, kind: output, shape index: {0}]
  %s3 = inlined_call_operand.vmem [shape: f32[16,8], index: 3, kind: output, shape index: {1}]
  %4 = xla_tuple %s2, %s3
  %s5 = sld [smem:[#allocation0]]
  $region49: #{resnet_generator_forward.21} parent=0
    _
  %s7 = ssub.s32 1, %s5
  %s8 = scalar_select 0, %s7, %s5
  loop: start=0, step=1, limit=4
  $region2: #{resnet_generator_forward.21} parent=0 // loop_pre_header
    _
  $region3: #{resnet_generator_forward.21} parent=0 // loop_header
    %s10 = sphi 0, %s14
    %p11 = scmp.ge.s32.totalorder %s10, 4
    %s20 = sphi 0, %s22
    %s23 = sphi 0, %s20
    %s24 = sphi 0, %s23
    %s40 = sphi 0, %s24
    %s44 = sphi 0, %s44
    %s46 = sphi 0, %s44
    %s47 = sphi 0, %s46
    %s61 = sphi 0, %s47
    %s67 = sphi 0, %s69
    %s70 = sphi 0, %s67
    %s71 = sphi 0, %s70
    %s87 = sphi 0, %s71
    %s93 = sphi 0, %s95
    %s96 = sphi 0, %s93
    %s97 = sphi 0, %s96
    %s113 = sphi 0, %s97
  $region4: #{resnet_generator_forward.21} parent=0 // loop_header_branch
    %13 = sbr.rel (%p11) target = $region8
  $region5: #{resnet_generator_forward.21} parent=0 // loop_body
    %s15 = ssub.s32 %s10, 1
    %s16 = ssub.s32 %s10, 2
    %s17 = sadd.s32 %s10, 1
    %s18 = ssub.s32 %s10, %s17
    %p19 = scmp.eq.s32.totalorder %s18, 0
    %s21 = sadd.s32 %s20, 1
    %s22 = scalar_select %p19, %s20, %s21
    %p25 = pneg %p19
    %p26 = scmp.eq.s32.totalorder %s10, 1
    %p27 = por %p25, %p26
    %p28 = scmp.ne.s32.totalorder %s20, %s23
    %p29 = scmp.eq.s32.totalorder %s10, 0
    %p30 = por %p28, %p29
    %p31 = scmp.ne.s32.totalorder %s20, %s23
    %p32 = scmp.eq.s32.totalorder %s15, 1
    %p33 = por %p31, %p32
    %p34 = scmp.ne.s32.totalorder %s23, %s24
    %p35 = scmp.eq.s32.totalorder %s15, 0
    %p36 = por %p34, %p35
    %p37 = scmp.ne.s32.totalorder %s23, %s24
    %p38 = scmp.eq.s32.totalorder %s16, 1
    %p39 = por %p37, %p38
    %p41 = scmp.ne.s32.totalorder %s24, %s40
    %p42 = scmp.eq.s32.totalorder %s16, 0
    %p43 = por %p41, %p42
    %s45 = sadd.s32 %s44, 1
    %p48 = scmp.eq.s32.totalorder %s10, 1
    %p49 = scmp.ne.s32.totalorder %s44, %s46
    %p50 = scmp.eq.s32.totalorder %s10, 0
    %p51 = por %p49, %p50
    %p52 = scmp.ne.s32.totalorder %s44, %s46
    %p53 = scmp.eq.s32.totalorder %s15, 1
    %p54 = por %p52, %p53
    %p55 = scmp.ne.s32.totalorder %s46, %s47
    %p56 = scmp.eq.s32.totalorder %s15, 0
    %p57 = por %p55, %p56
    %p58 = scmp.ne.s32.totalorder %s46, %s47
    %p59 = scmp.eq.s32.totalorder %s16, 1
    %p60 = por %p58, %p59
    %p62 = scmp.ne.s32.totalorder %s47, %s61
    %p63 = scmp.eq.s32.totalorder %s16, 0
    %p64 = por %p62, %p63
    %s65 = ssub.s32 %s10, %s17
    %p66 = scmp.eq.s32.totalorder %s65, 0
    %s68 = sadd.s32 %s67, 1
    %s69 = scalar_select %p66, %s67, %s68
    %p72 = pneg %p66
    %p73 = scmp.eq.s32.totalorder %s10, 1
    %p74 = por %p72, %p73
    %p75 = scmp.ne.s32.totalorder %s67, %s70
    %p76 = scmp.eq.s32.totalorder %s10, 0
    %p77 = por %p75, %p76
    %p78 = scmp.ne.s32.totalorder %s67, %s70
    %p79 = scmp.eq.s32.totalorder %s15, 1
    %p80 = por %p78, %p79
    %p81 = scmp.ne.s32.totalorder %s70, %s71
    %p82 = scmp.eq.s32.totalorder %s15, 0
    %p83 = por %p81, %p82
    %p84 = scmp.ne.s32.totalorder %s70, %s71
    %p85 = scmp.eq.s32.totalorder %s16, 1
    %p86 = por %p84, %p85
    %p88 = scmp.ne.s32.totalorder %s71, %s87
    %p89 = scmp.eq.s32.totalorder %s16, 0
    %p90 = por %p88, %p89
    %s91 = ssub.s32 %s10, %s17
    %p92 = scmp.eq.s32.totalorder %s91, 0
    %s94 = sadd.s32 %s93, 1
    %s95 = scalar_select %p92, %s93, %s94
    %p98 = pneg %p92
    %p99 = scmp.eq.s32.totalorder %s10, 1
    %p100 = por %p98, %p99
    %p101 = scmp.ne.s32.totalorder %s93, %s96
    %p102 = scmp.eq.s32.totalorder %s10, 0
    %p103 = por %p101, %p102
    %p104 = scmp.ne.s32.totalorder %s93, %s96
    %p105 = scmp.eq.s32.totalorder %s15, 1
    %p106 = por %p104, %p105
    %p107 = scmp.ne.s32.totalorder %s96, %s97
    %p108 = scmp.eq.s32.totalorder %s15, 0
    %p109 = por %p107, %p108
    %p110 = scmp.ne.s32.totalorder %s96, %s97
    %p111 = scmp.eq.s32.totalorder %s16, 1
    %p112 = por %p110, %p111
    %p114 = scmp.ne.s32.totalorder %s97, %s113
    %p115 = scmp.eq.s32.totalorder %s16, 0
    %p116 = por %p114, %p115
    %p117 = scmp.le.s32.totalorder 1, %s10
    %p118 = scmp.lt.s32.totalorder %s10, 3
    %p119 = pnand %p117, %p118
    %p120 = pneg %p119
    // Predicated region
    $region9: #{resnet_generator_forward.21} parent=5 // pred_check
      _
    $region10: #{resnet_generator_forward.21} parent=5 // pred_check_branch
      %122 = sbr.rel (%p119) target = $region12
    $region11: #{resnet_generator_forward.21} parent=5 // pred_region
      %s123 = ssub.s32 %s10, 1
      // Predicated region
      $region13: #{resnet_generator_forward.21} parent=11 // pred_check
        %p124 = pneg %p57
      $region14: #{resnet_generator_forward.21} parent=11 // pred_check_branch
        %126 = sbr.rel (%p124) target = $region16
      $region15: #{resnet_generator_forward.21} parent=11 // pred_region
        _
      $region16: #{resnet_generator_forward.21} parent=11 // pred_fallthru
        _
    $region12: #{resnet_generator_forward.21} parent=5 // pred_fallthru
      _
    %p127 = scmp.lt.s32.totalorder %s10, 2
    // Predicated region
    $region17: #{resnet_generator_forward.21} parent=5 // pred_check
      %p128 = pneg %p127
    $region18: #{resnet_generator_forward.21} parent=5 // pred_check_branch
      %130 = sbr.rel (%p128) target = $region20
    $region19: #{resnet_generator_forward.21} parent=5 // pred_region
      // Predicated region
      $region21: #{resnet_generator_forward.21} parent=19 // pred_check
        %p131 = pneg %p30
      $region22: #{resnet_generator_forward.21} parent=19 // pred_check_branch
        %133 = sbr.rel (%p131) target = $region24
      $region23: #{resnet_generator_forward.21} parent=19 // pred_region
        %s134 = smul.u32 32, %s10
        %p135 = scmp.lt.s32.totalorder %s134, 63
        %s136 = scalar_select %p135, %s134, 63
        %s137 = smul.addr %s136, 2
        %s138 = smul.addr %s137, 8
        %s139 = scalar_lea.vmem %s0, %s138
        %s140 = smul.u32 32, %s10
      $region24: #{resnet_generator_forward.21} parent=19 // pred_fallthru
        _
    $region20: #{resnet_generator_forward.21} parent=5 // pred_fallthru
      _
    %p141 = scmp.le.s32.totalorder 1, %s10
    %p142 = scmp.lt.s32.totalorder %s10, 3
    %p143 = pnand %p141, %p142
    %p144 = pneg %p143
    // Predicated region
    $region25: #{resnet_generator_forward.21} parent=5 // pred_check
      _
    $region26: #{resnet_generator_forward.21} parent=5 // pred_check_branch
      %146 = sbr.rel (%p143) target = $region28
    $region27: #{resnet_generator_forward.21} parent=5 // pred_region
      %s147 = ssub.s32 %s10, 1
      %s148 = smul.u32 32, %s15
      %p149 = scmp.lt.s32.totalorder %s148, 63
      %s150 = scalar_select %p149, %s148, 63
      %s151 = smul.addr %s150, 2
      %s152 = smul.addr %s151, 8
      %s153 = scalar_lea.vmem %s0, %s152
      %p154 = pneg %p36
      %p155 = pneg %p33
      %p156 = pneg %p57
      %p157 = pneg %p54
      %p158 = pneg %p83
      %p159 = pneg %p80
      %s160 = smul.u32 32, %s15
      %p161 = scmp.lt.s32.totalorder %s160, 63
      %s162 = scalar_select %p161, %s160, 63
      %s163 = smul.addr %s162, 8
      %s164 = scalar_lea.vmem %s2, %s163
      %p165 = pneg %p109
      %p166 = pneg %p106
      %p167 = scmp.lt.s32.totalorder %s15, 1
      %s168 = scalar_select %p167, %s15, 1
      %s169 = smul.addr %s168, 8
      %s170 = scalar_lea.vmem %s3, %s169
      %s171 = smul.u32 32, %s15
      %p172 = scmp.lt.s32.totalorder %s171, 63
      %s173 = scalar_select %p172, %s171, 63
      %s174 = smul.addr %s173, 2
      %s175 = smul.addr %s174, 8
      %s176 = scalar_lea.vmem %s0, %s175
      %s177 = smul.u32 32, %s15
      %s178 = smul.u32 32, %s15
      %p179 = scmp.lt.s32.totalorder %s178, 63
      %s180 = scalar_select %p179, %s178, 63
      %s181 = smul.addr %s180, 8
      %s182 = scalar_lea.vmem %s2, %s181
      %s183 = smul.u32 32, %s15
      %p184 = scmp.lt.s32.totalorder %s15, 1
      %s185 = scalar_select %p184, %s15, 1
      %s186 = smul.addr %s185, 8
      %s187 = scalar_lea.vmem %s3, %s186
      %v188 = vld [vmem:[%s176] sm:$0xff]
      %v189 = vld [vmem:[%s176 + $0x8] sm:$0xff]
      %v190 = vld [vmem:[%s176 + $0x10] sm:$0xff]
      %v191 = vld [vmem:[%s176 + $0x18] sm:$0xff]
      %v192 = vld [vmem:[%s176 + $0x20] sm:$0xff]
      %v193 = vld [vmem:[%s176 + $0x28] sm:$0xff]
      %v194 = vld [vmem:[%s176 + $0x30] sm:$0xff]
      %v195 = vld [vmem:[%s176 + $0x38] sm:$0xff]
      %v196 = vld [vmem:[%s176 + $0x40] sm:$0xff]
      %v197 = vld [vmem:[%s176 + $0x48] sm:$0xff]
      %v198 = vld [vmem:[%s176 + $0x50] sm:$0xff]
      %v199 = vld [vmem:[%s176 + $0x58] sm:$0xff]
      %v200 = vld [vmem:[%s176 + $0x60] sm:$0xff]
      %v201 = vld [vmem:[%s176 + $0x68] sm:$0xff]
      %v202 = vld [vmem:[%s176 + $0x70] sm:$0xff]
      %v203 = vld [vmem:[%s176 + $0x78] sm:$0xff]
      %v204 = vld [vmem:[%s176 + $0x80] sm:$0xff]
      %v205 = vld [vmem:[%s176 + $0x88] sm:$0xff]
      %v206 = vld [vmem:[%s176 + $0x90] sm:$0xff]
      %v207 = vld [vmem:[%s176 + $0x98] sm:$0xff]
      %v208 = vld [vmem:[%s176 + $0xa0] sm:$0xff]
      %v209 = vld [vmem:[%s176 + $0xa8] sm:$0xff]
      %v210 = vld [vmem:[%s176 + $0xb0] sm:$0xff]
      %v211 = vld [vmem:[%s176 + $0xb8] sm:$0xff]
      %v212 = vld [vmem:[%s176 + $0xc0] sm:$0xff]
      %v213 = vld [vmem:[%s176 + $0xc8] sm:$0xff]
      %v214 = vld [vmem:[%s176 + $0xd0] sm:$0xff]
      %v215 = vld [vmem:[%s176 + $0xd8] sm:$0xff]
      %v216 = vld [vmem:[%s176 + $0xe0] sm:$0xff]
      %v217 = vld [vmem:[%s176 + $0xe8] sm:$0xff]
      %v218 = vld [vmem:[%s176 + $0xf0] sm:$0xff]
      %v219 = vld [vmem:[%s176 + $0xf8] sm:$0xff]
      %v220 = vld [vmem:[%s176 + $0x100] sm:$0xff]
      %v221 = vld [vmem:[%s176 + $0x108] sm:$0xff]
      %v222 = vld [vmem:[%s176 + $0x110] sm:$0xff]
      %v223 = vld [vmem:[%s176 + $0x118] sm:$0xff]
      %v224 = vld [vmem:[%s176 + $0x120] sm:$0xff]
      %v225 = vld [vmem:[%s176 + $0x128] sm:$0xff]
      %v226 = vld [vmem:[%s176 + $0x130] sm:$0xff]
      %v227 = vld [vmem:[%s176 + $0x138] sm:$0xff]
      %v228 = vld [vmem:[%s176 + $0x140] sm:$0xff]
      %v229 = vld [vmem:[%s176 + $0x148] sm:$0xff]
      %v230 = vld [vmem:[%s176 + $0x150] sm:$0xff]
      %v231 = vld [vmem:[%s176 + $0x158] sm:$0xff]
      %v232 = vld [vmem:[%s176 + $0x160] sm:$0xff]
      %v233 = vld [vmem:[%s176 + $0x168] sm:$0xff]
      %v234 = vld [vmem:[%s176 + $0x170] sm:$0xff]
      %v235 = vld [vmem:[%s176 + $0x178] sm:$0xff]
      %v236 = vld [vmem:[%s176 + $0x180] sm:$0xff]
      %v237 = vld [vmem:[%s176 + $0x188] sm:$0xff]
      %v238 = vld [vmem:[%s176 + $0x190] sm:$0xff]
      %v239 = vld [vmem:[%s176 + $0x198] sm:$0xff]
      %v240 = vld [vmem:[%s176 + $0x1a0] sm:$0xff]
      %v241 = vld [vmem:[%s176 + $0x1a8] sm:$0xff]
      %v242 = vld [vmem:[%s176 + $0x1b0] sm:$0xff]
      %v243 = vld [vmem:[%s176 + $0x1b8] sm:$0xff]
      %v244 = vld [vmem:[%s176 + $0x1c0] sm:$0xff]
      %v245 = vld [vmem:[%s176 + $0x1c8] sm:$0xff]
      %v246 = vld [vmem:[%s176 + $0x1d0] sm:$0xff]
      %v247 = vld [vmem:[%s176 + $0x1d8] sm:$0xff]
      %v248 = vld [vmem:[%s176 + $0x1e0] sm:$0xff]
      %v249 = vld [vmem:[%s176 + $0x1e8] sm:$0xff]
      %v250 = vld [vmem:[%s176 + $0x1f0] sm:$0xff]
      %v251 = vld [vmem:[%s176 + $0x1f8] sm:$0xff]
      %v252 = vld [vmem:[%s1] sm:$0xff]
      %v253 = vld [vmem:[%s1 + $0x8] sm:$0xff]
      %v254 = vld [vmem:[%s1 + $0x10] sm:$0xff]
      %v255 = vld [vmem:[%s1 + $0x18] sm:$0xff]
      %v256 = vld [vmem:[%s1 + $0x20] sm:$0xff]
      %v257 = vld [vmem:[%s1 + $0x28] sm:$0xff]
      %v258 = vld [vmem:[%s1 + $0x30] sm:$0xff]
      %v259 = vld [vmem:[%s1 + $0x38] sm:$0xff]
      %v260 = vld [vmem:[%s1 + $0x40] sm:$0xff]
      %v261 = vld [vmem:[%s1 + $0x48] sm:$0xff]
      %v262 = vld [vmem:[%s1 + $0x50] sm:$0xff]
      %v263 = vld [vmem:[%s1 + $0x58] sm:$0xff]
      %v264 = vld [vmem:[%s1 + $0x60] sm:$0xff]
      %v265 = vld [vmem:[%s1 + $0x68] sm:$0xff]
      %v266 = vld [vmem:[%s1 + $0x70] sm:$0xff]
      %v267 = vld [vmem:[%s1 + $0x78] sm:$0xff]
      %v268 = vld [vmem:[%s1 + $0x80] sm:$0xff]
      %v269 = vld [vmem:[%s1 + $0x88] sm:$0xff]
      %v270 = vld [vmem:[%s1 + $0x90] sm:$0x7]
      %vm271 = vcmask 154624
      %v273 = vsel %vm271, %v189, 0
      %v276 = vsel %vm271, %v191, 0
      %v279 = vsel %vm271, %v193, 0
      %v282 = vsel %vm271, %v195, 0
      %v285 = vsel %vm271, %v197, 0
      %v288 = vsel %vm271, %v199, 0
      %v291 = vsel %vm271, %v201, 0
      %v294 = vsel %vm271, %v203, 0
      %v297 = vsel %vm271, %v205, 0
      %v300 = vsel %vm271, %v207, 0
      %v303 = vsel %vm271, %v209, 0
      %v306 = vsel %vm271, %v211, 0
      %v309 = vsel %vm271, %v213, 0
      %v312 = vsel %vm271, %v215, 0
      %v315 = vsel %vm271, %v217, 0
      %v318 = vsel %vm271, %v219, 0
      %v321 = vsel %vm271, %v221, 0
      %v324 = vsel %vm271, %v223, 0
      %v327 = vsel %vm271, %v225, 0
      %v330 = vsel %vm271, %v227, 0
      %v333 = vsel %vm271, %v229, 0
      %v336 = vsel %vm271, %v231, 0
      %v339 = vsel %vm271, %v233, 0
      %v342 = vsel %vm271, %v235, 0
      %v345 = vsel %vm271, %v237, 0
      %v348 = vsel %vm271, %v239, 0
      %v351 = vsel %vm271, %v241, 0
      %v354 = vsel %vm271, %v243, 0
      %v357 = vsel %vm271, %v245, 0
      %v360 = vsel %vm271, %v247, 0
      %v363 = vsel %vm271, %v249, 0
      %v366 = vsel %vm271, %v251, 0
      %vm368 = vcmask 1042432
      %v370 = vsel %vm368, %v270, 0
      %372 = vmatprep.subr.mxu0 0.0
      %373 = vmatpush1.msra.mxu0 %v267
      %374 = vmatprep.subr.mxu0 0.0
      %375 = vmatpush1.msra.mxu0 %v266
      %376 = vmatprep.subr.mxu0 0.0
      %377 = vmatpush1.msra.mxu0 %v265
      %378 = vmatprep.subr.mxu0 0.0
      %379 = vmatpush1.msra.mxu0 %v264
      %380 = vmatprep.subr.mxu0 0.0
      %381 = vmatpush1.msra.mxu0 %v263
      %382 = vmatprep.subr.mxu0 0.0
      %383 = vmatpush1.msra.mxu0 %v262
      %384 = vmatprep.subr.mxu0 0.0
      %385 = vmatpush1.msra.mxu0 %v261
      %386 = vmatprep.subr.mxu0 0.0
      %387 = vmatpush1.msra.mxu0 %v260
      %388 = vmatprep.subr.mxu0 0.0
      %389 = vmatpush1.msra.mxu0 %v259
      %390 = vmatprep.subr.mxu0 0.0
      %391 = vmatpush1.msra.mxu0 %v258
      %392 = vmatprep.subr.mxu0 0.0
      %393 = vmatpush1.msra.mxu0 %v257
      %394 = vmatprep.subr.mxu0 0.0
      %395 = vmatpush1.msra.mxu0 %v256
      %396 = vmatprep.subr.mxu0 0.0
      %397 = vmatpush1.msra.mxu0 %v255
      %398 = vmatprep.subr.mxu0 0.0
      %399 = vmatpush1.msra.mxu0 %v254
      %400 = vmatprep.subr.mxu0 0.0
      %401 = vmatpush1.msra.mxu0 %v253
      %402 = vmatprep.subr.mxu0 0.0
      %403 = vmatpush1.msra.mxu0 %v252
      %404 = vmatprep.subr.mxu0 0.0
      %405 = vmatpush2.msra.mxu0 0.0
      %406 = vmatprep.subr.mxu0 0.0
      %407 = vmatpush2.msra.mxu0 0.0
      %408 = vmatprep.subr.mxu0 0.0
      %409 = vmatpush2.msra.mxu0 0.0
      %410 = vmatprep.subr.mxu0 0.0
      %411 = vmatpush2.msra.mxu0 0.0
      %412 = vmatprep.subr.mxu0 0.0
      %413 = vmatpush2.msra.mxu0 0.0
      %414 = vmatprep.subr.mxu0 0.0
      %415 = vmatpush2.msra.mxu0 0.0
      %416 = vmatprep.subr.mxu0 0.0
      %417 = vmatpush2.msra.mxu0 0.0
      %418 = vmatprep.subr.mxu0 0.0
      %419 = vmatpush2.msra.mxu0 0.0
      %420 = vmatprep.subr.mxu0 0.0
      %421 = vmatpush2.msra.mxu0 0.0
      %422 = vmatprep.subr.mxu0 0.0
      %423 = vmatpush2.msra.mxu0 0.0
      %424 = vmatprep.subr.mxu0 0.0
      %425 = vmatpush2.msra.mxu0 0.0
      %426 = vmatprep.subr.mxu0 0.0
      %427 = vmatpush2.msra.mxu0 0.0
      %428 = vmatprep.subr.mxu0 0.0
      %429 = vmatpush2.msra.mxu0 0.0
      %430 = vmatprep.subr.mxu0 0.0
      %431 = vmatpush2.msra.mxu0 %v370
      %432 = vmatprep.subr.mxu0 0.0
      %433 = vmatpush2.msra.mxu0 %v269
      %434 = vmatprep.subr.mxu0 0.0
      %435 = vmatpush2.msra.mxu0 %v268
      %436 = vmatprep.mubr.f32.mxu0 %v273
      %437 = vmatmul.mubr.f32.gmra.mxu0 %v188
      %v438 = vpop.f32.mrf.mxu0
      %v439 = vadd.f32 0.0, %v438
      %v440 = vpop.f32.mrf.mxu0
      %441 = vmatprep.mubr.f32.mxu0 %v276
      %442 = vmatmul.mubr.f32.gmra.mxu0 %v190
      %v443 = vpop.f32.mrf.mxu0
      %v444 = vadd.f32 0.0, %v443
      %v445 = vpop.f32.mrf.mxu0
      %446 = vmatprep.mubr.f32.mxu0 %v279
      %447 = vmatmul.mubr.f32.gmra.mxu0 %v192
      %v448 = vpop.f32.mrf.mxu0
      %v449 = vadd.f32 0.0, %v448
      %v450 = vpop.f32.mrf.mxu0
      %451 = vmatprep.mubr.f32.mxu0 %v282
      %452 = vmatmul.mubr.f32.gmra.mxu0 %v194
      %v453 = vpop.f32.mrf.mxu0
      %v454 = vadd.f32 0.0, %v453
      %v455 = vpop.f32.mrf.mxu0
      %456 = vmatprep.mubr.f32.mxu0 %v285
      %457 = vmatmul.mubr.f32.gmra.mxu0 %v196
      %v458 = vpop.f32.mrf.mxu0
      %v459 = vadd.f32 0.0, %v458
      %v460 = vpop.f32.mrf.mxu0
      %461 = vmatprep.mubr.f32.mxu0 %v288
      %462 = vmatmul.mubr.f32.gmra.mxu0 %v198
      %v463 = vpop.f32.mrf.mxu0
      %v464 = vadd.f32 0.0, %v463
      %v465 = vpop.f32.mrf.mxu0
      %466 = vmatprep.mubr.f32.mxu0 %v291
      %467 = vmatmul.mubr.f32.gmra.mxu0 %v200
      %v468 = vpop.f32.mrf.mxu0
      %v469 = vadd.f32 0.0, %v468
      %v470 = vpop.f32.mrf.mxu0
      %471 = vmatprep.mubr.f32.mxu0 %v294
      %472 = vmatmul.mubr.f32.gmra.mxu0 %v202
      %v473 = vpop.f32.mrf.mxu0
      %v474 = vadd.f32 0.0, %v473
      %v475 = vpop.f32.mrf.mxu0
      %476 = vmatprep.mubr.f32.mxu0 %v297
      %477 = vmatmul.mubr.f32.gmra.mxu0 %v204
      %v478 = vpop.f32.mrf.mxu0
      %v479 = vadd.f32 0.0, %v478
      %v480 = vpop.f32.mrf.mxu0
      %481 = vmatprep.mubr.f32.mxu0 %v300
      %482 = vmatmul.mubr.f32.gmra.mxu0 %v206
      %v483 = vpop.f32.mrf.mxu0
      %v484 = vadd.f32 0.0, %v483
      %v485 = vpop.f32.mrf.mxu0
      %486 = vmatprep.mubr.f32.mxu0 %v303
      %487 = vmatmul.mubr.f32.gmra.mxu0 %v208
      %v488 = vpop.f32.mrf.mxu0
      %v489 = vadd.f32 0.0, %v488
      %v490 = vpop.f32.mrf.mxu0
      %491 = vmatprep.mubr.f32.mxu0 %v306
      %492 = vmatmul.mubr.f32.gmra.mxu0 %v210
      %v493 = vpop.f32.mrf.mxu0
      %v494 = vadd.f32 0.0, %v493
      %v495 = vpop.f32.mrf.mxu0
      %496 = vmatprep.mubr.f32.mxu0 %v309
      %497 = vmatmul.mubr.f32.gmra.mxu0 %v212
      %v498 = vpop.f32.mrf.mxu0
      %v499 = vadd.f32 0.0, %v498
      %v500 = vpop.f32.mrf.mxu0
      %501 = vmatprep.mubr.f32.mxu0 %v312
      %502 = vmatmul.mubr.f32.gmra.mxu0 %v214
      %v503 = vpop.f32.mrf.mxu0
      %v504 = vadd.f32 0.0, %v503
      %v505 = vpop.f32.mrf.mxu0
      %506 = vmatprep.mubr.f32.mxu0 %v315
      %507 = vmatmul.mubr.f32.gmra.mxu0 %v216
      %v508 = vpop.f32.mrf.mxu0
      %v509 = vadd.f32 0.0, %v508
      %v510 = vpop.f32.mrf.mxu0
      %511 = vmatprep.mubr.f32.mxu0 %v318
      %512 = vmatmul.mubr.f32.gmra.mxu0 %v218
      %v513 = vpop.f32.mrf.mxu0
      %v514 = vadd.f32 0.0, %v513
      %v515 = vpop.f32.mrf.mxu0
      %516 = vmatprep.mubr.f32.mxu0 %v321
      %517 = vmatmul.mubr.f32.gmra.mxu0 %v220
      %v518 = vpop.f32.mrf.mxu0
      %v519 = vadd.f32 0.0, %v518
      %v520 = vpop.f32.mrf.mxu0
      %521 = vmatprep.mubr.f32.mxu0 %v324
      %522 = vmatmul.mubr.f32.gmra.mxu0 %v222
      %v523 = vpop.f32.mrf.mxu0
      %v524 = vadd.f32 0.0, %v523
      %v525 = vpop.f32.mrf.mxu0
      %526 = vmatprep.mubr.f32.mxu0 %v327
      %527 = vmatmul.mubr.f32.gmra.mxu0 %v224
      %v528 = vpop.f32.mrf.mxu0
      %v529 = vadd.f32 0.0, %v528
      %v530 = vpop.f32.mrf.mxu0
      %531 = vmatprep.mubr.f32.mxu0 %v330
      %532 = vmatmul.mubr.f32.gmra.mxu0 %v226
      %v533 = vpop.f32.mrf.mxu0
      %v534 = vadd.f32 0.0, %v533
      %v535 = vpop.f32.mrf.mxu0
      %536 = vmatprep.mubr.f32.mxu0 %v333
      %537 = vmatmul.mubr.f32.gmra.mxu0 %v228
      %v538 = vpop.f32.mrf.mxu0
      %v539 = vadd.f32 0.0, %v538
      %v540 = vpop.f32.mrf.mxu0
      %541 = vmatprep.mubr.f32.mxu0 %v336
      %542 = vmatmul.mubr.f32.gmra.mxu0 %v230
      %v543 = vpop.f32.mrf.mxu0
      %v544 = vadd.f32 0.0, %v543
      %v545 = vpop.f32.mrf.mxu0
      %546 = vmatprep.mubr.f32.mxu0 %v339
      %547 = vmatmul.mubr.f32.gmra.mxu0 %v232
      %v548 = vpop.f32.mrf.mxu0
      %v549 = vadd.f32 0.0, %v548
      %v550 = vpop.f32.mrf.mxu0
      %551 = vmatprep.mubr.f32.mxu0 %v342
      %552 = vmatmul.mubr.f32.gmra.mxu0 %v234
      %v553 = vpop.f32.mrf.mxu0
      %v554 = vadd.f32 0.0, %v553
      %v555 = vpop.f32.mrf.mxu0
      %556 = vmatprep.mubr.f32.mxu0 %v345
      %557 = vmatmul.mubr.f32.gmra.mxu0 %v236
      %v558 = vpop.f32.mrf.mxu0
      %v559 = vadd.f32 0.0, %v558
      %v560 = vpop.f32.mrf.mxu0
      %561 = vmatprep.mubr.f32.mxu0 %v348
      %562 = vmatmul.mubr.f32.gmra.mxu0 %v238
      %v563 = vpop.f32.mrf.mxu0
      %v564 = vadd.f32 0.0, %v563
      %v565 = vpop.f32.mrf.mxu0
      %566 = vmatprep.mubr.f32.mxu0 %v351
      %567 = vmatmul.mubr.f32.gmra.mxu0 %v240
      %v568 = vpop.f32.mrf.mxu0
      %v569 = vadd.f32 0.0, %v568
      %v570 = vpop.f32.mrf.mxu0
      %571 = vmatprep.mubr.f32.mxu0 %v354
      %572 = vmatmul.mubr.f32.gmra.mxu0 %v242
      %v573 = vpop.f32.mrf.mxu0
      %v574 = vadd.f32 0.0, %v573
      %v575 = vpop.f32.mrf.mxu0
      %576 = vmatprep.mubr.f32.mxu0 %v357
      %577 = vmatmul.mubr.f32.gmra.mxu0 %v244
      %v578 = vpop.f32.mrf.mxu0
      %v579 = vadd.f32 0.0, %v578
      %v580 = vpop.f32.mrf.mxu0
      %581 = vmatprep.mubr.f32.mxu0 %v360
      %582 = vmatmul.mubr.f32.gmra.mxu0 %v246
      %v583 = vpop.f32.mrf.mxu0
      %v584 = vadd.f32 0.0, %v583
      %v585 = vpop.f32.mrf.mxu0
      %586 = vmatprep.mubr.f32.mxu0 %v363
      %587 = vmatmul.mubr.f32.gmra.mxu0 %v248
      %v588 = vpop.f32.mrf.mxu0
      %v589 = vadd.f32 0.0, %v588
      %v590 = vpop.f32.mrf.mxu0
      %591 = vmatprep.mubr.f32.mxu0 %v366
      %592 = vmatmul.mubr.f32.gmra.mxu0 %v250
      %v593 = vpop.f32.mrf.mxu0
      %v594 = vadd.f32 0.0, %v593
      %v595 = vpop.f32.mrf.mxu0
      %596 = vdwg.mxu0
      %vm597 = vcmask 64512
      %v598 = vsel %vm597, %v439, 0.0
      %v599 = vsel %vm597, %v444, 0.0
      %v600 = vadd.f32 %v598, %v599
      %v601 = vsel %vm597, %v449, 0.0
      %v602 = vadd.f32 %v600, %v601
      %v603 = vsel %vm597, %v454, 0.0
      %v604 = vadd.f32 %v602, %v603
      %v605 = vsel %vm597, %v459, 0.0
      %v606 = vadd.f32 %v604, %v605
      %v607 = vsel %vm597, %v464, 0.0
      %v608 = vadd.f32 %v606, %v607
      %v609 = vsel %vm597, %v469, 0.0
      %v610 = vadd.f32 %v608, %v609
      %v611 = vsel %vm597, %v474, 0.0
      %v612 = vadd.f32 %v610, %v611
      %v613 = vsel %vm597, %v479, 0.0
      %v614 = vadd.f32 %v612, %v613
      %v615 = vsel %vm597, %v484, 0.0
      %v616 = vadd.f32 %v614, %v615
      %v617 = vsel %vm597, %v489, 0.0
      %v618 = vadd.f32 %v616, %v617
      %v619 = vsel %vm597, %v494, 0.0
      %v620 = vadd.f32 %v618, %v619
      %v621 = vsel %vm597, %v499, 0.0
      %v622 = vadd.f32 %v620, %v621
      %v623 = vsel %vm597, %v504, 0.0
      %v624 = vadd.f32 %v622, %v623
      %v625 = vsel %vm597, %v509, 0.0
      %v626 = vadd.f32 %v624, %v625
      %v627 = vsel %vm597, %v514, 0.0
      %v628 = vadd.f32 %v626, %v627
      %v629 = vsel %vm597, %v519, 0.0
      %v630 = vadd.f32 %v628, %v629
      %v631 = vsel %vm597, %v524, 0.0
      %v632 = vadd.f32 %v630, %v631
      %v633 = vsel %vm597, %v529, 0.0
      %v634 = vadd.f32 %v632, %v633
      %v635 = vsel %vm597, %v534, 0.0
      %v636 = vadd.f32 %v634, %v635
      %v637 = vsel %vm597, %v539, 0.0
      %v638 = vadd.f32 %v636, %v637
      %v639 = vsel %vm597, %v544, 0.0
      %v640 = vadd.f32 %v638, %v639
      %v641 = vsel %vm597, %v549, 0.0
      %v642 = vadd.f32 %v640, %v641
      %v643 = vsel %vm597, %v554, 0.0
      %v644 = vadd.f32 %v642, %v643
      %v645 = vsel %vm597, %v559, 0.0
      %v646 = vadd.f32 %v644, %v645
      %v647 = vsel %vm597, %v564, 0.0
      %v648 = vadd.f32 %v646, %v647
      %v649 = vsel %vm597, %v569, 0.0
      %v650 = vadd.f32 %v648, %v649
      %v651 = vsel %vm597, %v574, 0.0
      %v652 = vadd.f32 %v650, %v651
      %v653 = vsel %vm597, %v579, 0.0
      %v654 = vadd.f32 %v652, %v653
      %v655 = vsel %vm597, %v584, 0.0
      %v656 = vadd.f32 %v654, %v655
      %v657 = vsel %vm597, %v589, 0.0
      %v658 = vadd.f32 %v656, %v657
      %v659 = vsel %vm597, %v594, 0.0
      %v660 = vadd.f32 %v658, %v659
      %v661 = vrot.slane %v660, 4
      %v662 = vadd.f32 %v660, %v661
      %v663 = vrot.slane %v662, 2
      %v664 = vadd.f32 %v662, %v663
      %v665 = vrot.slane %v664, 1
      %v666 = vadd.f32 %v664, %v665
      %v667 = vmul.f32 %v439, %v439
      %v668 = vmul.f32 %v444, %v444
      %v669 = vmul.f32 %v449, %v449
      %v670 = vmul.f32 %v454, %v454
      %v671 = vmul.f32 %v459, %v459
      %v672 = vmul.f32 %v464, %v464
      %v673 = vmul.f32 %v469, %v469
      %v674 = vmul.f32 %v474, %v474
      %v675 = vmul.f32 %v479, %v479
      %v676 = vmul.f32 %v484, %v484
      %v677 = vmul.f32 %v489, %v489
      %v678 = vmul.f32 %v494, %v494
      %v679 = vmul.f32 %v499, %v499
      %v680 = vmul.f32 %v504, %v504
      %v681 = vmul.f32 %v509, %v509
      %v682 = vmul.f32 %v514, %v514
      %v683 = vmul.f32 %v519, %v519
      %v684 = vmul.f32 %v524, %v524
      %v685 = vmul.f32 %v529, %v529
      %v686 = vmul.f32 %v534, %v534
      %v687 = vmul.f32 %v539, %v539
      %v688 = vmul.f32 %v544, %v544
      %v689 = vmul.f32 %v549, %v549
      %v690 = vmul.f32 %v554, %v554
      %v691 = vmul.f32 %v559, %v559
      %v692 = vmul.f32 %v564, %v564
      %v693 = vmul.f32 %v569, %v569
      %v694 = vmul.f32 %v574, %v574
      %v695 = vmul.f32 %v579, %v579
      %v696 = vmul.f32 %v584, %v584
      %v697 = vmul.f32 %v589, %v589
      %v698 = vmul.f32 %v594, %v594
      %v699 = vsel %vm597, %v667, 0.0
      %v700 = vsel %vm597, %v668, 0.0
      %v701 = vadd.f32 %v699, %v700
      %v702 = vsel %vm597, %v669, 0.0
      %v703 = vadd.f32 %v701, %v702
      %v704 = vsel %vm597, %v670, 0.0
      %v705 = vadd.f32 %v703, %v704
      %v706 = vsel %vm597, %v671, 0.0
      %v707 = vadd.f32 %v705, %v706
      %v708 = vsel %vm597, %v672, 0.0
      %v709 = vadd.f32 %v707, %v708
      %v710 = vsel %vm597, %v673, 0.0
      %v711 = vadd.f32 %v709, %v710
      %v712 = vsel %vm597, %v674, 0.0
      %v713 = vadd.f32 %v711, %v712
      %v714 = vsel %vm597, %v675, 0.0
      %v715 = vadd.f32 %v713, %v714
      %v716 = vsel %vm597, %v676, 0.0
      %v717 = vadd.f32 %v715, %v716
      %v718 = vsel %vm597, %v677, 0.0
      %v719 = vadd.f32 %v717, %v718
      %v720 = vsel %vm597, %v678, 0.0
      %v721 = vadd.f32 %v719, %v720
      %v722 = vsel %vm597, %v679, 0.0
      %v723 = vadd.f32 %v721, %v722
      %v724 = vsel %vm597, %v680, 0.0
      %v725 = vadd.f32 %v723, %v724
      %v726 = vsel %vm597, %v681, 0.0
      %v727 = vadd.f32 %v725, %v726
      %v728 = vsel %vm597, %v682, 0.0
      %v729 = vadd.f32 %v727, %v728
      %v730 = vsel %vm597, %v683, 0.0
      %v731 = vadd.f32 %v729, %v730
      %v732 = vsel %vm597, %v684, 0.0
      %v733 = vadd.f32 %v731, %v732
      %v734 = vsel %vm597, %v685, 0.0
      %v735 = vadd.f32 %v733, %v734
      %v736 = vsel %vm597, %v686, 0.0
      %v737 = vadd.f32 %v735, %v736
      %v738 = vsel %vm597, %v687, 0.0
      %v739 = vadd.f32 %v737, %v738
      %v740 = vsel %vm597, %v688, 0.0
      %v741 = vadd.f32 %v739, %v740
      %v742 = vsel %vm597, %v689, 0.0
      %v743 = vadd.f32 %v741, %v742
      %v744 = vsel %vm597, %v690, 0.0
      %v745 = vadd.f32 %v743, %v744
      %v746 = vsel %vm597, %v691, 0.0
      %v747 = vadd.f32 %v745, %v746
      %v748 = vsel %vm597, %v692, 0.0
      %v749 = vadd.f32 %v747, %v748
      %v750 = vsel %vm597, %v693, 0.0
      %v751 = vadd.f32 %v749, %v750
      %v752 = vsel %vm597, %v694, 0.0
      %v753 = vadd.f32 %v751, %v752
      %v754 = vsel %vm597, %v695, 0.0
      %v755 = vadd.f32 %v753, %v754
      %v756 = vsel %vm597, %v696, 0.0
      %v757 = vadd.f32 %v755, %v756
      %v758 = vsel %vm597, %v697, 0.0
      %v759 = vadd.f32 %v757, %v758
      %v760 = vsel %vm597, %v698, 0.0
      %v761 = vadd.f32 %v759, %v760
      %v762 = vrot.slane %v761, 4
      %v763 = vadd.f32 %v761, %v762
      %v764 = vrot.slane %v763, 2
      %v765 = vadd.f32 %v763, %v764
      %v766 = vrot.slane %v765, 1
      %v767 = vadd.f32 %v765, %v766
      %v768 = vlaneseq
      %v769 = vshrl.u32 %v768, 7
      %vm770 = vcmp.eq.s32.totalorder %v769, 0
      %vm771 = vcmp.eq.s32.totalorder %v769, 1
      %v772 = vsel %vm771, %v767, 0.0
      %v773 = vsel %vm770, %v666, %v772
      %774 = vst.msk [vmem:[%s187] sm:$0xff] %vm597, %v773
      %775 = vst.msk [vmem:[%s182] sm:$0xff] %vm597, %v439
      %776 = vst.msk [vmem:[%s182 + $0x8] sm:$0xff] %vm597, %v444
      %777 = vst.msk [vmem:[%s182 + $0x10] sm:$0xff] %vm597, %v449
      %778 = vst.msk [vmem:[%s182 + $0x18] sm:$0xff] %vm597, %v454
      %779 = vst.msk [vmem:[%s182 + $0x20] sm:$0xff] %vm597, %v459
      %780 = vst.msk [vmem:[%s182 + $0x28] sm:$0xff] %vm597, %v464
      %781 = vst.msk [vmem:[%s182 + $0x30] sm:$0xff] %vm597, %v469
      %782 = vst.msk [vmem:[%s182 + $0x38] sm:$0xff] %vm597, %v474
      %783 = vst.msk [vmem:[%s182 + $0x40] sm:$0xff] %vm597, %v479
      %784 = vst.msk [vmem:[%s182 + $0x48] sm:$0xff] %vm597, %v484
      %785 = vst.msk [vmem:[%s182 + $0x50] sm:$0xff] %vm597, %v489
      %786 = vst.msk [vmem:[%s182 + $0x58] sm:$0xff] %vm597, %v494
      %787 = vst.msk [vmem:[%s182 + $0x60] sm:$0xff] %vm597, %v499
      %788 = vst.msk [vmem:[%s182 + $0x68] sm:$0xff] %vm597, %v504
      %789 = vst.msk [vmem:[%s182 + $0x70] sm:$0xff] %vm597, %v509
      %790 = vst.msk [vmem:[%s182 + $0x78] sm:$0xff] %vm597, %v514
      %791 = vst.msk [vmem:[%s182 + $0x80] sm:$0xff] %vm597, %v519
      %792 = vst.msk [vmem:[%s182 + $0x88] sm:$0xff] %vm597, %v524
      %793 = vst.msk [vmem:[%s182 + $0x90] sm:$0xff] %vm597, %v529
      %794 = vst.msk [vmem:[%s182 + $0x98] sm:$0xff] %vm597, %v534
      %795 = vst.msk [vmem:[%s182 + $0xa0] sm:$0xff] %vm597, %v539
      %796 = vst.msk [vmem:[%s182 + $0xa8] sm:$0xff] %vm597, %v544
      %797 = vst.msk [vmem:[%s182 + $0xb0] sm:$0xff] %vm597, %v549
      %798 = vst.msk [vmem:[%s182 + $0xb8] sm:$0xff] %vm597, %v554
      %799 = vst.msk [vmem:[%s182 + $0xc0] sm:$0xff] %vm597, %v559
      %800 = vst.msk [vmem:[%s182 + $0xc8] sm:$0xff] %vm597, %v564
      %801 = vst.msk [vmem:[%s182 + $0xd0] sm:$0xff] %vm597, %v569
      %802 = vst.msk [vmem:[%s182 + $0xd8] sm:$0xff] %vm597, %v574
      %803 = vst.msk [vmem:[%s182 + $0xe0] sm:$0xff] %vm597, %v579
      %804 = vst.msk [vmem:[%s182 + $0xe8] sm:$0xff] %vm597, %v584
      %805 = vst.msk [vmem:[%s182 + $0xf0] sm:$0xff] %vm597, %v589
      %806 = vst.msk [vmem:[%s182 + $0xf8] sm:$0xff] %vm597, %v594
      %s807 = smul.u32 32, %s15
      %p808 = scmp.lt.s32.totalorder %s807, 63
      %s809 = scalar_select %p808, %s807, 63
      %s810 = smul.addr %s809, 8
      %s811 = scalar_lea.vmem %s2, %s810
      %p812 = scmp.lt.s32.totalorder %s15, 1
      %s813 = scalar_select %p812, %s15, 1
      %s814 = smul.addr %s813, 8
      %s815 = scalar_lea.vmem %s3, %s814
      // Predicated region
      $region29: #{resnet_generator_forward.21} parent=27 // pred_check
        %p816 = pneg %p80
      $region30: #{resnet_generator_forward.21} parent=27 // pred_check_branch
        %818 = sbr.rel (%p816) target = $region32
      $region31: #{resnet_generator_forward.21} parent=27 // pred_region
        %s819 = smul.u32 32, %s15
      $region32: #{resnet_generator_forward.21} parent=27 // pred_fallthru
        _
      // Predicated region
      $region33: #{resnet_generator_forward.21} parent=27 // pred_check
        %p820 = pneg %p106
      $region34: #{resnet_generator_forward.21} parent=27 // pred_check_branch
        %822 = sbr.rel (%p820) target = $region36
      $region35: #{resnet_generator_forward.21} parent=27 // pred_region
        _
      $region36: #{resnet_generator_forward.21} parent=27 // pred_fallthru
        _
    $region28: #{resnet_generator_forward.21} parent=5 // pred_fallthru
      _
    %p823 = scmp.le.s32.totalorder 2, %s10
    // Predicated region
    $region37: #{resnet_generator_forward.21} parent=5 // pred_check
      %p824 = pneg %p823
    $region38: #{resnet_generator_forward.21} parent=5 // pred_check_branch
      %826 = sbr.rel (%p824) target = $region40
    $region39: #{resnet_generator_forward.21} parent=5 // pred_region
      %s827 = ssub.s32 %s10, 2
      // Predicated region
      $region41: #{resnet_generator_forward.21} parent=39 // pred_check
        %p828 = pneg %p86
      $region42: #{resnet_generator_forward.21} parent=39 // pred_check_branch
        %830 = sbr.rel (%p828) target = $region44
      $region43: #{resnet_generator_forward.21} parent=39 // pred_region
        %s831 = smul.u32 32, %s16
        %p832 = scmp.lt.s32.totalorder %s831, 63
        %s833 = scalar_select %p832, %s831, 63
        %s834 = smul.addr %s833, 8
        %s835 = scalar_lea.vmem %s2, %s834
      $region44: #{resnet_generator_forward.21} parent=39 // pred_fallthru
        _
      // Predicated region
      $region45: #{resnet_generator_forward.21} parent=39 // pred_check
        %p836 = pneg %p112
      $region46: #{resnet_generator_forward.21} parent=39 // pred_check_branch
        %838 = sbr.rel (%p836) target = $region48
      $region47: #{resnet_generator_forward.21} parent=39 // pred_region
        %p839 = scmp.lt.s32.totalorder %s16, 1
        %s840 = scalar_select %p839, %s16, 1
        %s841 = smul.addr %s840, 8
        %s842 = scalar_lea.vmem %s3, %s841
      $region48: #{resnet_generator_forward.21} parent=39 // pred_fallthru
        _
    $region40: #{resnet_generator_forward.21} parent=5 // pred_fallthru
      _
  $region6: #{resnet_generator_forward.21} parent=0 // loop_footer
    %s14 = sadd.s32 1, %s10
  $region7: #{resnet_generator_forward.21} parent=0 // loop_footer_branch
    %9 = sbr.rel target = $region3
  $region8: #{resnet_generator_forward.21} parent=0 // loop_exit
    _

// kernel: resnet_generator_forward.24
$region0: #{resnet_generator_forward.24}
  #allocation0 [shape = 'u32[]', space=smem, size = 0x4, offset = 0x4, fixed_abs, tag = 'smem constant byte address 0x4 - core index']
  #allocation1 [shape = 'u32[144,128]{1,0:T(1,128)}', space=vmem, size = 0x12000, scoped, tag = 'internal scratch']
  %s0 = inlined_call_operand.vmem [shape: f32[128,16], index: 0, kind: input, shape index: {}]
  %s1 = inlined_call_operand.vmem [shape: f32[1,16], index: 1, kind: input, shape index: {}]
  %s2 = inlined_call_operand.vmem [shape: f32[1,16], index: 2, kind: input, shape index: {}]
  %s3 = inlined_call_operand.vmem [shape: f32[128,16], index: 3, kind: output, shape index: {}]
  %s4 = sld [smem:[#allocation0]]
  $region22: #{resnet_generator_forward.24} parent=0
    _
  %s6 = ssub.s32 1, %s4
  %s7 = scalar_select 0, %s6, %s4
  // Predicated region
  $region2: #{resnet_generator_forward.24} parent=0 // pred_check
    _
  $region3: #{resnet_generator_forward.24} parent=0 // pred_check_branch
    %9 = sbr.rel (0) target = $region5
  $region4: #{resnet_generator_forward.24} parent=0 // pred_region
    _
  $region5: #{resnet_generator_forward.24} parent=0 // pred_fallthru
    _
  // Predicated region
  $region6: #{resnet_generator_forward.24} parent=0 // pred_check
    _
  $region7: #{resnet_generator_forward.24} parent=0 // pred_check_branch
    %11 = sbr.rel (0) target = $region9
  $region8: #{resnet_generator_forward.24} parent=0 // pred_region
    _
  $region9: #{resnet_generator_forward.24} parent=0 // pred_fallthru
    _
  // Predicated region
  $region10: #{resnet_generator_forward.24} parent=0 // pred_check
    _
  $region11: #{resnet_generator_forward.24} parent=0 // pred_check_branch
    %13 = sbr.rel (0) target = $region13
  $region12: #{resnet_generator_forward.24} parent=0 // pred_region
    _
  $region13: #{resnet_generator_forward.24} parent=0 // pred_fallthru
    _
  %v14 = vld [vmem:[%s0] sm:$0xff]
  %v15 = vld [vmem:[%s0 + $0x8] sm:$0xff]
  %v16 = vld [vmem:[%s0 + $0x10] sm:$0xff]
  %v17 = vld [vmem:[%s0 + $0x18] sm:$0xff]
  %v18 = vld [vmem:[%s0 + $0x20] sm:$0xff]
  %v19 = vld [vmem:[%s0 + $0x28] sm:$0xff]
  %v20 = vld [vmem:[%s0 + $0x30] sm:$0xff]
  %v21 = vld [vmem:[%s0 + $0x38] sm:$0xff]
  %v22 = vld [vmem:[%s0 + $0x40] sm:$0xff]
  %v23 = vld [vmem:[%s0 + $0x48] sm:$0xff]
  %v24 = vld [vmem:[%s0 + $0x50] sm:$0xff]
  %v25 = vld [vmem:[%s0 + $0x58] sm:$0xff]
  %v26 = vld [vmem:[%s0 + $0x60] sm:$0xff]
  %v27 = vld [vmem:[%s0 + $0x68] sm:$0xff]
  %v28 = vld [vmem:[%s0 + $0x70] sm:$0xff]
  %v29 = vld [vmem:[%s0 + $0x78] sm:$0xff]
  %v30 = vld [vmem:[%s1] sm:$0x1]
  %v32 = vlaneseq
  %v33 = vshrl.u32 %v32, 7
  %v34 = vsub.s32 0, %v33
  %v35 = vrot.slane %v30, %v34
  %v37 = vmul.f32 %v14, %v35
  %v38 = vmul.f32 %v15, %v35
  %v39 = vmul.f32 %v16, %v35
  %v40 = vmul.f32 %v17, %v35
  %v41 = vmul.f32 %v18, %v35
  %v42 = vmul.f32 %v19, %v35
  %v43 = vmul.f32 %v20, %v35
  %v44 = vmul.f32 %v21, %v35
  %v45 = vmul.f32 %v22, %v35
  %v46 = vmul.f32 %v23, %v35
  %v47 = vmul.f32 %v24, %v35
  %v48 = vmul.f32 %v25, %v35
  %v49 = vmul.f32 %v26, %v35
  %v50 = vmul.f32 %v27, %v35
  %v51 = vmul.f32 %v28, %v35
  %v52 = vmul.f32 %v29, %v35
  %v53 = vld [vmem:[%s2] sm:$0x1]
  %v55 = vlaneseq
  %v56 = vshrl.u32 %v55, 7
  %v57 = vsub.s32 0, %v56
  %v58 = vrot.slane %v53, %v57
  %v60 = vadd.f32 %v37, %v58
  %v61 = vadd.f32 %v38, %v58
  %v62 = vadd.f32 %v39, %v58
  %v63 = vadd.f32 %v40, %v58
  %v64 = vadd.f32 %v41, %v58
  %v65 = vadd.f32 %v42, %v58
  %v66 = vadd.f32 %v43, %v58
  %v67 = vadd.f32 %v44, %v58
  %v68 = vadd.f32 %v45, %v58
  %v69 = vadd.f32 %v46, %v58
  %v70 = vadd.f32 %v47, %v58
  %v71 = vadd.f32 %v48, %v58
  %v72 = vadd.f32 %v49, %v58
  %v73 = vadd.f32 %v50, %v58
  %v74 = vadd.f32 %v51, %v58
  %v75 = vadd.f32 %v52, %v58
  %v76 = vmax.f32 %v60, 0.0
  %v77 = vmax.f32 %v61, 0.0
  %v78 = vmax.f32 %v62, 0.0
  %v79 = vmax.f32 %v63, 0.0
  %v80 = vmax.f32 %v64, 0.0
  %v81 = vmax.f32 %v65, 0.0
  %v82 = vmax.f32 %v66, 0.0
  %v83 = vmax.f32 %v67, 0.0
  %v84 = vmax.f32 %v68, 0.0
  %v85 = vmax.f32 %v69, 0.0
  %v86 = vmax.f32 %v70, 0.0
  %v87 = vmax.f32 %v71, 0.0
  %v88 = vmax.f32 %v72, 0.0
  %v89 = vmax.f32 %v73, 0.0
  %v90 = vmax.f32 %v74, 0.0
  %v91 = vmax.f32 %v75, 0.0
  %vm92 = vcmask 130048
  %93 = vst.msk [vmem:[%s3] sm:$0xff] %vm92, %v76
  %94 = vst.msk [vmem:[%s3 + $0x8] sm:$0xff] %vm92, %v77
  %95 = vst.msk [vmem:[%s3 + $0x10] sm:$0xff] %vm92, %v78
  %96 = vst.msk [vmem:[%s3 + $0x18] sm:$0xff] %vm92, %v79
  %97 = vst.msk [vmem:[%s3 + $0x20] sm:$0xff] %vm92, %v80
  %98 = vst.msk [vmem:[%s3 + $0x28] sm:$0xff] %vm92, %v81
  %99 = vst.msk [vmem:[%s3 + $0x30] sm:$0xff] %vm92, %v82
  %100 = vst.msk [vmem:[%s3 + $0x38] sm:$0xff] %vm92, %v83
  %101 = vst.msk [vmem:[%s3 + $0x40] sm:$0xff] %vm92, %v84
  %102 = vst.msk [vmem:[%s3 + $0x48] sm:$0xff] %vm92, %v85
  %103 = vst.msk [vmem:[%s3 + $0x50] sm:$0xff] %vm92, %v86
  %104 = vst.msk [vmem:[%s3 + $0x58] sm:$0xff] %vm92, %v87
  %105 = vst.msk [vmem:[%s3 + $0x60] sm:$0xff] %vm92, %v88
  %106 = vst.msk [vmem:[%s3 + $0x68] sm:$0xff] %vm92, %v89
  %107 = vst.msk [vmem:[%s3 + $0x70] sm:$0xff] %vm92, %v90
  %108 = vst.msk [vmem:[%s3 + $0x78] sm:$0xff] %vm92, %v91
  // Predicated region
  $region14: #{resnet_generator_forward.24} parent=0 // pred_check
    _
  $region15: #{resnet_generator_forward.24} parent=0 // pred_check_branch
    %110 = sbr.rel (0) target = $region17
  $region16: #{resnet_generator_forward.24} parent=0 // pred_region
    _
  $region17: #{resnet_generator_forward.24} parent=0 // pred_fallthru
    _
  // Predicated region
  $region18: #{resnet_generator_forward.24} parent=0 // pred_check
    _
  $region19: #{resnet_generator_forward.24} parent=0 // pred_check_branch
    %112 = sbr.rel (0) target = $region21
  $region20: #{resnet_generator_forward.24} parent=0 // pred_region
    _
  $region21: #{resnet_generator_forward.24} parent=0 // pred_fallthru
    _

// kernel: resnet_generator_forward.25
$region0: #{resnet_generator_forward.25}
  #allocation0 [shape = 'u32[]', space=smem, size = 0x4, offset = 0x4, fixed_abs, tag = 'smem constant byte address 0x4 - core index']
  #allocation1 [shape = 'u32[144,128]{1,0:T(1,128)}', space=vmem, size = 0x12000, scoped, tag = 'internal scratch']
  %s0 = inlined_call_operand.vmem [shape: f32[32,144], index: 0, kind: input, shape index: {}]
  %s1 = inlined_call_operand.vmem [shape: f32[144,32], index: 1, kind: input, shape index: {}]
  %s2 = inlined_call_operand.vmem [shape: f32[32,32], index: 2, kind: output, shape index: {0}]
  %s3 = inlined_call_operand.vmem [shape: f32[8,32], index: 3, kind: output, shape index: {1}]
  %4 = xla_tuple %s2, %s3
  %s5 = sld [smem:[#allocation0]]
  $region26: #{resnet_generator_forward.25} parent=0
    _
  %s7 = ssub.s32 1, %s5
  %s8 = scalar_select 0, %s7, %s5
  // Predicated region
  $region2: #{resnet_generator_forward.25} parent=0 // pred_check
    _
  $region3: #{resnet_generator_forward.25} parent=0 // pred_check_branch
    %10 = sbr.rel (0) target = $region5
  $region4: #{resnet_generator_forward.25} parent=0 // pred_region
    _
  $region5: #{resnet_generator_forward.25} parent=0 // pred_fallthru
    _
  // Predicated region
  $region6: #{resnet_generator_forward.25} parent=0 // pred_check
    _
  $region7: #{resnet_generator_forward.25} parent=0 // pred_check_branch
    %12 = sbr.rel (0) target = $region9
  $region8: #{resnet_generator_forward.25} parent=0 // pred_region
    _
  $region9: #{resnet_generator_forward.25} parent=0 // pred_fallthru
    _
  %v13 = vld [vmem:[%s0] sm:$0xff]
  %v14 = vld [vmem:[%s0 + $0x8] sm:$0xff]
  %v15 = vld [vmem:[%s0 + $0x10] sm:$0xff]
  %v16 = vld [vmem:[%s0 + $0x18] sm:$0xff]
  %v17 = vld [vmem:[%s0 + $0x20] sm:$0xff]
  %v18 = vld [vmem:[%s0 + $0x28] sm:$0xff]
  %v19 = vld [vmem:[%s0 + $0x30] sm:$0xff]
  %v20 = vld [vmem:[%s0 + $0x38] sm:$0xff]
  %v21 = vld [vmem:[%s1] sm:$0xff]
  %v22 = vld [vmem:[%s1 + $0x8] sm:$0xff]
  %v23 = vld [vmem:[%s1 + $0x10] sm:$0xff]
  %v24 = vld [vmem:[%s1 + $0x18] sm:$0xff]
  %v25 = vld [vmem:[%s1 + $0x20] sm:$0xff]
  %v26 = vld [vmem:[%s1 + $0x28] sm:$0xff]
  %v27 = vld [vmem:[%s1 + $0x30] sm:$0xff]
  %v28 = vld [vmem:[%s1 + $0x38] sm:$0xff]
  %v29 = vld [vmem:[%s1 + $0x40] sm:$0xff]
  %v30 = vld [vmem:[%s1 + $0x48] sm:$0xff]
  %v31 = vld [vmem:[%s1 + $0x50] sm:$0xff]
  %v32 = vld [vmem:[%s1 + $0x58] sm:$0xff]
  %v33 = vld [vmem:[%s1 + $0x60] sm:$0xff]
  %v34 = vld [vmem:[%s1 + $0x68] sm:$0xff]
  %v35 = vld [vmem:[%s1 + $0x70] sm:$0xff]
  %v36 = vld [vmem:[%s1 + $0x78] sm:$0xff]
  %v37 = vld [vmem:[%s1 + $0x80] sm:$0xff]
  %v38 = vld [vmem:[%s1 + $0x88] sm:$0xff]
  %vm39 = vcmask 130048
  %v41 = vsel %vm39, %v14, 0
  %v44 = vsel %vm39, %v16, 0
  %v47 = vsel %vm39, %v18, 0
  %v50 = vsel %vm39, %v20, 0
  %52 = vmatprep.subr.mxu0 0.0
  %53 = vmatpush1.msra.mxu0 %v36
  %54 = vmatprep.subr.mxu0 0.0
  %55 = vmatpush1.msra.mxu0 %v35
  %56 = vmatprep.subr.mxu0 0.0
  %57 = vmatpush1.msra.mxu0 %v34
  %58 = vmatprep.subr.mxu0 0.0
  %59 = vmatpush1.msra.mxu0 %v33
  %60 = vmatprep.subr.mxu0 0.0
  %61 = vmatpush1.msra.mxu0 %v32
  %62 = vmatprep.subr.mxu0 0.0
  %63 = vmatpush1.msra.mxu0 %v31
  %64 = vmatprep.subr.mxu0 0.0
  %65 = vmatpush1.msra.mxu0 %v30
  %66 = vmatprep.subr.mxu0 0.0
  %67 = vmatpush1.msra.mxu0 %v29
  %68 = vmatprep.subr.mxu0 0.0
  %69 = vmatpush1.msra.mxu0 %v28
  %70 = vmatprep.subr.mxu0 0.0
  %71 = vmatpush1.msra.mxu0 %v27
  %72 = vmatprep.subr.mxu0 0.0
  %73 = vmatpush1.msra.mxu0 %v26
  %74 = vmatprep.subr.mxu0 0.0
  %75 = vmatpush1.msra.mxu0 %v25
  %76 = vmatprep.subr.mxu0 0.0
  %77 = vmatpush1.msra.mxu0 %v24
  %78 = vmatprep.subr.mxu0 0.0
  %79 = vmatpush1.msra.mxu0 %v23
  %80 = vmatprep.subr.mxu0 0.0
  %81 = vmatpush1.msra.mxu0 %v22
  %82 = vmatprep.subr.mxu0 0.0
  %83 = vmatpush1.msra.mxu0 %v21
  %84 = vmatprep.subr.mxu0 0.0
  %85 = vmatpush2.msra.mxu0 0.0
  %86 = vmatprep.subr.mxu0 0.0
  %87 = vmatpush2.msra.mxu0 0.0
  %88 = vmatprep.subr.mxu0 0.0
  %89 = vmatpush2.msra.mxu0 0.0
  %90 = vmatprep.subr.mxu0 0.0
  %91 = vmatpush2.msra.mxu0 0.0
  %92 = vmatprep.subr.mxu0 0.0
  %93 = vmatpush2.msra.mxu0 0.0
  %94 = vmatprep.subr.mxu0 0.0
  %95 = vmatpush2.msra.mxu0 0.0
  %96 = vmatprep.subr.mxu0 0.0
  %97 = vmatpush2.msra.mxu0 0.0
  %98 = vmatprep.subr.mxu0 0.0
  %99 = vmatpush2.msra.mxu0 0.0
  %100 = vmatprep.subr.mxu0 0.0
  %101 = vmatpush2.msra.mxu0 0.0
  %102 = vmatprep.subr.mxu0 0.0
  %103 = vmatpush2.msra.mxu0 0.0
  %104 = vmatprep.subr.mxu0 0.0
  %105 = vmatpush2.msra.mxu0 0.0
  %106 = vmatprep.subr.mxu0 0.0
  %107 = vmatpush2.msra.mxu0 0.0
  %108 = vmatprep.subr.mxu0 0.0
  %109 = vmatpush2.msra.mxu0 0.0
  %110 = vmatprep.subr.mxu0 0.0
  %111 = vmatpush2.msra.mxu0 0.0
  %112 = vmatprep.subr.mxu0 0.0
  %113 = vmatpush2.msra.mxu0 %v38
  %114 = vmatprep.subr.mxu0 0.0
  %115 = vmatpush2.msra.mxu0 %v37
  %116 = vmatprep.mubr.f32.mxu0 %v41
  %117 = vmatmul.mubr.f32.gmra.mxu0 %v13
  %v118 = vpop.f32.mrf.mxu0
  %v119 = vadd.f32 0.0, %v118
  %v120 = vpop.f32.mrf.mxu0
  %121 = vmatprep.mubr.f32.mxu0 %v44
  %122 = vmatmul.mubr.f32.gmra.mxu0 %v15
  %v123 = vpop.f32.mrf.mxu0
  %v124 = vadd.f32 0.0, %v123
  %v125 = vpop.f32.mrf.mxu0
  %126 = vmatprep.mubr.f32.mxu0 %v47
  %127 = vmatmul.mubr.f32.gmra.mxu0 %v17
  %v128 = vpop.f32.mrf.mxu0
  %v129 = vadd.f32 0.0, %v128
  %v130 = vpop.f32.mrf.mxu0
  %131 = vmatprep.mubr.f32.mxu0 %v50
  %132 = vmatmul.mubr.f32.gmra.mxu0 %v19
  %v133 = vpop.f32.mrf.mxu0
  %v134 = vadd.f32 0.0, %v133
  %v135 = vpop.f32.mrf.mxu0
  %136 = vdwg.mxu0
  %vm137 = vcmask 261120
  %v138 = vsel %vm137, %v119, 0.0
  %v139 = vsel %vm137, %v124, 0.0
  %v140 = vadd.f32 %v138, %v139
  %v141 = vsel %vm137, %v129, 0.0
  %v142 = vadd.f32 %v140, %v141
  %v143 = vsel %vm137, %v134, 0.0
  %v144 = vadd.f32 %v142, %v143
  %v145 = vrot.slane %v144, 4
  %v146 = vadd.f32 %v144, %v145
  %v147 = vrot.slane %v146, 2
  %v148 = vadd.f32 %v146, %v147
  %v149 = vrot.slane %v148, 1
  %v150 = vadd.f32 %v148, %v149
  %v151 = vmul.f32 %v119, %v119
  %v152 = vmul.f32 %v124, %v124
  %v153 = vmul.f32 %v129, %v129
  %v154 = vmul.f32 %v134, %v134
  %v155 = vsel %vm137, %v151, 0.0
  %v156 = vsel %vm137, %v152, 0.0
  %v157 = vadd.f32 %v155, %v156
  %v158 = vsel %vm137, %v153, 0.0
  %v159 = vadd.f32 %v157, %v158
  %v160 = vsel %vm137, %v154, 0.0
  %v161 = vadd.f32 %v159, %v160
  %v162 = vrot.slane %v161, 4
  %v163 = vadd.f32 %v161, %v162
  %v164 = vrot.slane %v163, 2
  %v165 = vadd.f32 %v163, %v164
  %v166 = vrot.slane %v165, 1
  %v167 = vadd.f32 %v165, %v166
  %v168 = vlaneseq
  %v169 = vshrl.u32 %v168, 7
  %vm170 = vcmp.eq.s32.totalorder %v169, 0
  %vm171 = vcmp.eq.s32.totalorder %v169, 1
  %v172 = vsel %vm171, %v167, 0.0
  %v173 = vsel %vm170, %v150, %v172
  %174 = vst.msk [vmem:[%s3] sm:$0xff] %vm137, %v173
  %175 = vst.msk [vmem:[%s2] sm:$0xff] %vm137, %v119
  %176 = vst.msk [vmem:[%s2 + $0x8] sm:$0xff] %vm137, %v124
  %177 = vst.msk [vmem:[%s2 + $0x10] sm:$0xff] %vm137, %v129
  %178 = vst.msk [vmem:[%s2 + $0x18] sm:$0xff] %vm137, %v134
  // Predicated region
  $region10: #{resnet_generator_forward.25} parent=0 // pred_check
    _
  $region11: #{resnet_generator_forward.25} parent=0 // pred_check_branch
    %180 = sbr.rel (0) target = $region13
  $region12: #{resnet_generator_forward.25} parent=0 // pred_region
    _
  $region13: #{resnet_generator_forward.25} parent=0 // pred_fallthru
    _
  // Predicated region
  $region14: #{resnet_generator_forward.25} parent=0 // pred_check
    _
  $region15: #{resnet_generator_forward.25} parent=0 // pred_check_branch
    %182 = sbr.rel (0) target = $region17
  $region16: #{resnet_generator_forward.25} parent=0 // pred_region
    _
  $region17: #{resnet_generator_forward.25} parent=0 // pred_fallthru
    _
  // Predicated region
  $region18: #{resnet_generator_forward.25} parent=0 // pred_check
    _
  $region19: #{resnet_generator_forward.25} parent=0 // pred_check_branch
    %184 = sbr.rel (0) target = $region21
  $region20: #{resnet_generator_forward.25} parent=0 // pred_region
    _
  $region21: #{resnet_generator_forward.25} parent=0 // pred_fallthru
    _
  // Predicated region
  $region22: #{resnet_generator_forward.25} parent=0 // pred_check
    _
  $region23: #{resnet_generator_forward.25} parent=0 // pred_check_branch
    %186 = sbr.rel (0) target = $region25
  $region24: #{resnet_generator_forward.25} parent=0 // pred_region
    _
  $region25: #{resnet_generator_forward.25} parent=0 // pred_fallthru
    _

// kernel: resnet_generator_forward.23
$region0: #{resnet_generator_forward.23}
  #allocation0 [shape = 'u32[]', space=smem, size = 0x4, offset = 0x4, fixed_abs, tag = 'smem constant byte address 0x4 - core index']
  #allocation1 [shape = 'u32[144,128]{1,0:T(1,128)}', space=vmem, size = 0x12000, scoped, tag = 'internal scratch']
  %s0 = inlined_call_operand.vmem [shape: f32[128,72], index: 0, kind: input, shape index: {}]
  %s1 = inlined_call_operand.vmem [shape: f32[72,16], index: 1, kind: input, shape index: {}]
  %s2 = inlined_call_operand.vmem [shape: f32[128,16], index: 2, kind: output, shape index: {0}]
  %s3 = inlined_call_operand.vmem [shape: f32[8,16], index: 3, kind: output, shape index: {1}]
  %4 = xla_tuple %s2, %s3
  %s5 = sld [smem:[#allocation0]]
  $region26: #{resnet_generator_forward.23} parent=0
    _
  %s7 = ssub.s32 1, %s5
  %s8 = scalar_select 0, %s7, %s5
  // Predicated region
  $region2: #{resnet_generator_forward.23} parent=0 // pred_check
    _
  $region3: #{resnet_generator_forward.23} parent=0 // pred_check_branch
    %10 = sbr.rel (0) target = $region5
  $region4: #{resnet_generator_forward.23} parent=0 // pred_region
    _
  $region5: #{resnet_generator_forward.23} parent=0 // pred_fallthru
    _
  // Predicated region
  $region6: #{resnet_generator_forward.23} parent=0 // pred_check
    _
  $region7: #{resnet_generator_forward.23} parent=0 // pred_check_branch
    %12 = sbr.rel (0) target = $region9
  $region8: #{resnet_generator_forward.23} parent=0 // pred_region
    _
  $region9: #{resnet_generator_forward.23} parent=0 // pred_fallthru
    _
  %v13 = vld [vmem:[%s0] sm:$0xff]
  %v14 = vld [vmem:[%s0 + $0x8] sm:$0xff]
  %v15 = vld [vmem:[%s0 + $0x10] sm:$0xff]
  %v16 = vld [vmem:[%s0 + $0x18] sm:$0xff]
  %v17 = vld [vmem:[%s0 + $0x20] sm:$0xff]
  %v18 = vld [vmem:[%s0 + $0x28] sm:$0xff]
  %v19 = vld [vmem:[%s0 + $0x30] sm:$0xff]
  %v20 = vld [vmem:[%s0 + $0x38] sm:$0xff]
  %v21 = vld [vmem:[%s0 + $0x40] sm:$0xff]
  %v22 = vld [vmem:[%s0 + $0x48] sm:$0xff]
  %v23 = vld [vmem:[%s0 + $0x50] sm:$0xff]
  %v24 = vld [vmem:[%s0 + $0x58] sm:$0xff]
  %v25 = vld [vmem:[%s0 + $0x60] sm:$0xff]
  %v26 = vld [vmem:[%s0 + $0x68] sm:$0xff]
  %v27 = vld [vmem:[%s0 + $0x70] sm:$0xff]
  %v28 = vld [vmem:[%s0 + $0x78] sm:$0xff]
  %v29 = vld [vmem:[%s1] sm:$0xff]
  %v30 = vld [vmem:[%s1 + $0x8] sm:$0xff]
  %v31 = vld [vmem:[%s1 + $0x10] sm:$0xff]
  %v32 = vld [vmem:[%s1 + $0x18] sm:$0xff]
  %v33 = vld [vmem:[%s1 + $0x20] sm:$0xff]
  %v34 = vld [vmem:[%s1 + $0x28] sm:$0xff]
  %v35 = vld [vmem:[%s1 + $0x30] sm:$0xff]
  %v36 = vld [vmem:[%s1 + $0x38] sm:$0xff]
  %v37 = vld [vmem:[%s1 + $0x40] sm:$0xff]
  %vm38 = vcmask 588800
  %v40 = vsel %vm38, %v13, 0
  %v43 = vsel %vm38, %v14, 0
  %v46 = vsel %vm38, %v15, 0
  %v49 = vsel %vm38, %v16, 0
  %v52 = vsel %vm38, %v17, 0
  %v55 = vsel %vm38, %v18, 0
  %v58 = vsel %vm38, %v19, 0
  %v61 = vsel %vm38, %v20, 0
  %v64 = vsel %vm38, %v21, 0
  %v67 = vsel %vm38, %v22, 0
  %v70 = vsel %vm38, %v23, 0
  %v73 = vsel %vm38, %v24, 0
  %v76 = vsel %vm38, %v25, 0
  %v79 = vsel %vm38, %v26, 0
  %v82 = vsel %vm38, %v27, 0
  %v85 = vsel %vm38, %v28, 0
  %87 = vmatprep.subr.mxu0 0.0
  %88 = vmatpush1.msra.mxu0 0.0
  %89 = vmatprep.subr.mxu0 0.0
  %90 = vmatpush1.msra.mxu0 0.0
  %91 = vmatprep.subr.mxu0 0.0
  %92 = vmatpush1.msra.mxu0 0.0
  %93 = vmatprep.subr.mxu0 0.0
  %94 = vmatpush1.msra.mxu0 0.0
  %95 = vmatprep.subr.mxu0 0.0
  %96 = vmatpush1.msra.mxu0 0.0
  %97 = vmatprep.subr.mxu0 0.0
  %98 = vmatpush1.msra.mxu0 0.0
  %99 = vmatprep.subr.mxu0 0.0
  %100 = vmatpush1.msra.mxu0 0.0
  %101 = vmatprep.subr.mxu0 0.0
  %102 = vmatpush1.msra.mxu0 %v37
  %103 = vmatprep.subr.mxu0 0.0
  %104 = vmatpush1.msra.mxu0 %v36
  %105 = vmatprep.subr.mxu0 0.0
  %106 = vmatpush1.msra.mxu0 %v35
  %107 = vmatprep.subr.mxu0 0.0
  %108 = vmatpush1.msra.mxu0 %v34
  %109 = vmatprep.subr.mxu0 0.0
  %110 = vmatpush1.msra.mxu0 %v33
  %111 = vmatprep.subr.mxu0 0.0
  %112 = vmatpush1.msra.mxu0 %v32
  %113 = vmatprep.subr.mxu0 0.0
  %114 = vmatpush1.msra.mxu0 %v31
  %115 = vmatprep.subr.mxu0 0.0
  %116 = vmatpush1.msra.mxu0 %v30
  %117 = vmatprep.subr.mxu0 0.0
  %118 = vmatpush1.msra.mxu0 %v29
  %119 = vmatprep.subr.mxu0 0.0
  %120 = vmatpush2.msra.mxu0 0.0
  %121 = vmatprep.subr.mxu0 0.0
  %122 = vmatpush2.msra.mxu0 0.0
  %123 = vmatprep.subr.mxu0 0.0
  %124 = vmatpush2.msra.mxu0 0.0
  %125 = vmatprep.subr.mxu0 0.0
  %126 = vmatpush2.msra.mxu0 0.0
  %127 = vmatprep.subr.mxu0 0.0
  %128 = vmatpush2.msra.mxu0 0.0
  %129 = vmatprep.subr.mxu0 0.0
  %130 = vmatpush2.msra.mxu0 0.0
  %131 = vmatprep.subr.mxu0 0.0
  %132 = vmatpush2.msra.mxu0 0.0
  %133 = vmatprep.subr.mxu0 0.0
  %134 = vmatpush2.msra.mxu0 0.0
  %135 = vmatprep.subr.mxu0 0.0
  %136 = vmatpush2.msra.mxu0 0.0
  %137 = vmatprep.subr.mxu0 0.0
  %138 = vmatpush2.msra.mxu0 0.0
  %139 = vmatprep.subr.mxu0 0.0
  %140 = vmatpush2.msra.mxu0 0.0
  %141 = vmatprep.subr.mxu0 0.0
  %142 = vmatpush2.msra.mxu0 0.0
  %143 = vmatprep.subr.mxu0 0.0
  %144 = vmatpush2.msra.mxu0 0.0
  %145 = vmatprep.subr.mxu0 0.0
  %146 = vmatpush2.msra.mxu0 0.0
  %147 = vmatprep.subr.mxu0 0.0
  %148 = vmatpush2.msra.mxu0 0.0
  %149 = vmatprep.subr.mxu0 0.0
  %150 = vmatpush2.msra.mxu0 0.0
  %151 = vmatprep.mubr.f32.mxu0 0.0
  %152 = vmatmul.mubr.f32.gmra.mxu0 %v40
  %v153 = vpop.f32.mrf.mxu0
  %v154 = vadd.f32 0.0, %v153
  %v155 = vpop.f32.mrf.mxu0
  %156 = vmatprep.mubr.f32.mxu0 0.0
  %157 = vmatmul.mubr.f32.gmra.mxu0 %v43
  %v158 = vpop.f32.mrf.mxu0
  %v159 = vadd.f32 0.0, %v158
  %v160 = vpop.f32.mrf.mxu0
  %161 = vmatprep.mubr.f32.mxu0 0.0
  %162 = vmatmul.mubr.f32.gmra.mxu0 %v46
  %v163 = vpop.f32.mrf.mxu0
  %v164 = vadd.f32 0.0, %v163
  %v165 = vpop.f32.mrf.mxu0
  %166 = vmatprep.mubr.f32.mxu0 0.0
  %167 = vmatmul.mubr.f32.gmra.mxu0 %v49
  %v168 = vpop.f32.mrf.mxu0
  %v169 = vadd.f32 0.0, %v168
  %v170 = vpop.f32.mrf.mxu0
  %171 = vmatprep.mubr.f32.mxu0 0.0
  %172 = vmatmul.mubr.f32.gmra.mxu0 %v52
  %v173 = vpop.f32.mrf.mxu0
  %v174 = vadd.f32 0.0, %v173
  %v175 = vpop.f32.mrf.mxu0
  %176 = vmatprep.mubr.f32.mxu0 0.0
  %177 = vmatmul.mubr.f32.gmra.mxu0 %v55
  %v178 = vpop.f32.mrf.mxu0
  %v179 = vadd.f32 0.0, %v178
  %v180 = vpop.f32.mrf.mxu0
  %181 = vmatprep.mubr.f32.mxu0 0.0
  %182 = vmatmul.mubr.f32.gmra.mxu0 %v58
  %v183 = vpop.f32.mrf.mxu0
  %v184 = vadd.f32 0.0, %v183
  %v185 = vpop.f32.mrf.mxu0
  %186 = vmatprep.mubr.f32.mxu0 0.0
  %187 = vmatmul.mubr.f32.gmra.mxu0 %v61
  %v188 = vpop.f32.mrf.mxu0
  %v189 = vadd.f32 0.0, %v188
  %v190 = vpop.f32.mrf.mxu0
  %191 = vmatprep.mubr.f32.mxu0 0.0
  %192 = vmatmul.mubr.f32.gmra.mxu0 %v64
  %v193 = vpop.f32.mrf.mxu0
  %v194 = vadd.f32 0.0, %v193
  %v195 = vpop.f32.mrf.mxu0
  %196 = vmatprep.mubr.f32.mxu0 0.0
  %197 = vmatmul.mubr.f32.gmra.mxu0 %v67
  %v198 = vpop.f32.mrf.mxu0
  %v199 = vadd.f32 0.0, %v198
  %v200 = vpop.f32.mrf.mxu0
  %201 = vmatprep.mubr.f32.mxu0 0.0
  %202 = vmatmul.mubr.f32.gmra.mxu0 %v70
  %v203 = vpop.f32.mrf.mxu0
  %v204 = vadd.f32 0.0, %v203
  %v205 = vpop.f32.mrf.mxu0
  %206 = vmatprep.mubr.f32.mxu0 0.0
  %207 = vmatmul.mubr.f32.gmra.mxu0 %v73
  %v208 = vpop.f32.mrf.mxu0
  %v209 = vadd.f32 0.0, %v208
  %v210 = vpop.f32.mrf.mxu0
  %211 = vmatprep.mubr.f32.mxu0 0.0
  %212 = vmatmul.mubr.f32.gmra.mxu0 %v76
  %v213 = vpop.f32.mrf.mxu0
  %v214 = vadd.f32 0.0, %v213
  %v215 = vpop.f32.mrf.mxu0
  %216 = vmatprep.mubr.f32.mxu0 0.0
  %217 = vmatmul.mubr.f32.gmra.mxu0 %v79
  %v218 = vpop.f32.mrf.mxu0
  %v219 = vadd.f32 0.0, %v218
  %v220 = vpop.f32.mrf.mxu0
  %221 = vmatprep.mubr.f32.mxu0 0.0
  %222 = vmatmul.mubr.f32.gmra.mxu0 %v82
  %v223 = vpop.f32.mrf.mxu0
  %v224 = vadd.f32 0.0, %v223
  %v225 = vpop.f32.mrf.mxu0
  %226 = vmatprep.mubr.f32.mxu0 0.0
  %227 = vmatmul.mubr.f32.gmra.mxu0 %v85
  %v228 = vpop.f32.mrf.mxu0
  %v229 = vadd.f32 0.0, %v228
  %v230 = vpop.f32.mrf.mxu0
  %231 = vdwg.mxu0
  %vm232 = vcmask 130048
  %v233 = vsel %vm232, %v154, 0.0
  %v234 = vsel %vm232, %v159, 0.0
  %v235 = vadd.f32 %v233, %v234
  %v236 = vsel %vm232, %v164, 0.0
  %v237 = vadd.f32 %v235, %v236
  %v238 = vsel %vm232, %v169, 0.0
  %v239 = vadd.f32 %v237, %v238
  %v240 = vsel %vm232, %v174, 0.0
  %v241 = vadd.f32 %v239, %v240
  %v242 = vsel %vm232, %v179, 0.0
  %v243 = vadd.f32 %v241, %v242
  %v244 = vsel %vm232, %v184, 0.0
  %v245 = vadd.f32 %v243, %v244
  %v246 = vsel %vm232, %v189, 0.0
  %v247 = vadd.f32 %v245, %v246
  %v248 = vsel %vm232, %v194, 0.0
  %v249 = vadd.f32 %v247, %v248
  %v250 = vsel %vm232, %v199, 0.0
  %v251 = vadd.f32 %v249, %v250
  %v252 = vsel %vm232, %v204, 0.0
  %v253 = vadd.f32 %v251, %v252
  %v254 = vsel %vm232, %v209, 0.0
  %v255 = vadd.f32 %v253, %v254
  %v256 = vsel %vm232, %v214, 0.0
  %v257 = vadd.f32 %v255, %v256
  %v258 = vsel %vm232, %v219, 0.0
  %v259 = vadd.f32 %v257, %v258
  %v260 = vsel %vm232, %v224, 0.0
  %v261 = vadd.f32 %v259, %v260
  %v262 = vsel %vm232, %v229, 0.0
  %v263 = vadd.f32 %v261, %v262
  %v264 = vrot.slane %v263, 4
  %v265 = vadd.f32 %v263, %v264
  %v266 = vrot.slane %v265, 2
  %v267 = vadd.f32 %v265, %v266
  %v268 = vrot.slane %v267, 1
  %v269 = vadd.f32 %v267, %v268
  %v270 = vmul.f32 %v154, %v154
  %v271 = vmul.f32 %v159, %v159
  %v272 = vmul.f32 %v164, %v164
  %v273 = vmul.f32 %v169, %v169
  %v274 = vmul.f32 %v174, %v174
  %v275 = vmul.f32 %v179, %v179
  %v276 = vmul.f32 %v184, %v184
  %v277 = vmul.f32 %v189, %v189
  %v278 = vmul.f32 %v194, %v194
  %v279 = vmul.f32 %v199, %v199
  %v280 = vmul.f32 %v204, %v204
  %v281 = vmul.f32 %v209, %v209
  %v282 = vmul.f32 %v214, %v214
  %v283 = vmul.f32 %v219, %v219
  %v284 = vmul.f32 %v224, %v224
  %v285 = vmul.f32 %v229, %v229
  %v286 = vsel %vm232, %v270, 0.0
  %v287 = vsel %vm232, %v271, 0.0
  %v288 = vadd.f32 %v286, %v287
  %v289 = vsel %vm232, %v272, 0.0
  %v290 = vadd.f32 %v288, %v289
  %v291 = vsel %vm232, %v273, 0.0
  %v292 = vadd.f32 %v290, %v291
  %v293 = vsel %vm232, %v274, 0.0
  %v294 = vadd.f32 %v292, %v293
  %v295 = vsel %vm232, %v275, 0.0
  %v296 = vadd.f32 %v294, %v295
  %v297 = vsel %vm232, %v276, 0.0
  %v298 = vadd.f32 %v296, %v297
  %v299 = vsel %vm232, %v277, 0.0
  %v300 = vadd.f32 %v298, %v299
  %v301 = vsel %vm232, %v278, 0.0
  %v302 = vadd.f32 %v300, %v301
  %v303 = vsel %vm232, %v279, 0.0
  %v304 = vadd.f32 %v302, %v303
  %v305 = vsel %vm232, %v280, 0.0
  %v306 = vadd.f32 %v304, %v305
  %v307 = vsel %vm232, %v281, 0.0
  %v308 = vadd.f32 %v306, %v307
  %v309 = vsel %vm232, %v282, 0.0
  %v310 = vadd.f32 %v308, %v309
  %v311 = vsel %vm232, %v283, 0.0
  %v312 = vadd.f32 %v310, %v311
  %v313 = vsel %vm232, %v284, 0.0
  %v314 = vadd.f32 %v312, %v313
  %v315 = vsel %vm232, %v285, 0.0
  %v316 = vadd.f32 %v314, %v315
  %v317 = vrot.slane %v316, 4
  %v318 = vadd.f32 %v316, %v317
  %v319 = vrot.slane %v318, 2
  %v320 = vadd.f32 %v318, %v319
  %v321 = vrot.slane %v320, 1
  %v322 = vadd.f32 %v320, %v321
  %v323 = vlaneseq
  %v324 = vshrl.u32 %v323, 7
  %vm325 = vcmp.eq.s32.totalorder %v324, 0
  %vm326 = vcmp.eq.s32.totalorder %v324, 1
  %v327 = vsel %vm326, %v322, 0.0
  %v328 = vsel %vm325, %v269, %v327
  %329 = vst.msk [vmem:[%s3] sm:$0xff] %vm232, %v328
  %330 = vst.msk [vmem:[%s2] sm:$0xff] %vm232, %v154
  %331 = vst.msk [vmem:[%s2 + $0x8] sm:$0xff] %vm232, %v159
  %332 = vst.msk [vmem:[%s2 + $0x10] sm:$0xff] %vm232, %v164
  %333 = vst.msk [vmem:[%s2 + $0x18] sm:$0xff] %vm232, %v169
  %334 = vst.msk [vmem:[%s2 + $0x20] sm:$0xff] %vm232, %v174
  %335 = vst.msk [vmem:[%s2 + $0x28] sm:$0xff] %vm232, %v179
  %336 = vst.msk [vmem:[%s2 + $0x30] sm:$0xff] %vm232, %v184
  %337 = vst.msk [vmem:[%s2 + $0x38] sm:$0xff] %vm232, %v189
  %338 = vst.msk [vmem:[%s2 + $0x40] sm:$0xff] %vm232, %v194
  %339 = vst.msk [vmem:[%s2 + $0x48] sm:$0xff] %vm232, %v199
  %340 = vst.msk [vmem:[%s2 + $0x50] sm:$0xff] %vm232, %v204
  %341 = vst.msk [vmem:[%s2 + $0x58] sm:$0xff] %vm232, %v209
  %342 = vst.msk [vmem:[%s2 + $0x60] sm:$0xff] %vm232, %v214
  %343 = vst.msk [vmem:[%s2 + $0x68] sm:$0xff] %vm232, %v219
  %344 = vst.msk [vmem:[%s2 + $0x70] sm:$0xff] %vm232, %v224
  %345 = vst.msk [vmem:[%s2 + $0x78] sm:$0xff] %vm232, %v229
  // Predicated region
  $region10: #{resnet_generator_forward.23} parent=0 // pred_check
    _
  $region11: #{resnet_generator_forward.23} parent=0 // pred_check_branch
    %347 = sbr.rel (0) target = $region13
  $region12: #{resnet_generator_forward.23} parent=0 // pred_region
    _
  $region13: #{resnet_generator_forward.23} parent=0 // pred_fallthru
    _
  // Predicated region
  $region14: #{resnet_generator_forward.23} parent=0 // pred_check
    _
  $region15: #{resnet_generator_forward.23} parent=0 // pred_check_branch
    %349 = sbr.rel (0) target = $region17
  $region16: #{resnet_generator_forward.23} parent=0 // pred_region
    _
  $region17: #{resnet_generator_forward.23} parent=0 // pred_fallthru
    _
  // Predicated region
  $region18: #{resnet_generator_forward.23} parent=0 // pred_check
    _
  $region19: #{resnet_generator_forward.23} parent=0 // pred_check_branch
    %351 = sbr.rel (0) target = $region21
  $region20: #{resnet_generator_forward.23} parent=0 // pred_region
    _
  $region21: #{resnet_generator_forward.23} parent=0 // pred_fallthru
    _
  // Predicated region
  $region22: #{resnet_generator_forward.23} parent=0 // pred_check
    _
  $region23: #{resnet_generator_forward.23} parent=0 // pred_check_branch
    %353 = sbr.rel (0) target = $region25
  $region24: #{resnet_generator_forward.23} parent=0 // pred_region
    _
  $region25: #{resnet_generator_forward.23} parent=0 // pred_fallthru
    _

// kernel: resnet_generator_forward.27
$region0: #{resnet_generator_forward.27}
  #allocation0 [shape = 'u32[]', space=smem, size = 0x4, offset = 0x4, fixed_abs, tag = 'smem constant byte address 0x4 - core index']
  #allocation1 [shape = 'u32[144,128]{1,0:T(1,128)}', space=vmem, size = 0x12000, scoped, tag = 'internal scratch']
  %s0 = inlined_call_operand.vmem [shape: f32[32,288], index: 0, kind: input, shape index: {}]
  %s1 = inlined_call_operand.vmem [shape: f32[288,32], index: 1, kind: input, shape index: {}]
  %s2 = inlined_call_operand.vmem [shape: f32[32,32], index: 2, kind: output, shape index: {}]
  %s3 = sld [smem:[#allocation0]]
  $region18: #{resnet_generator_forward.27} parent=0
    _
  %s5 = ssub.s32 1, %s3
  %s6 = scalar_select 0, %s5, %s3
  // Predicated region
  $region2: #{resnet_generator_forward.27} parent=0 // pred_check
    _
  $region3: #{resnet_generator_forward.27} parent=0 // pred_check_branch
    %8 = sbr.rel (0) target = $region5
  $region4: #{resnet_generator_forward.27} parent=0 // pred_region
    _
  $region5: #{resnet_generator_forward.27} parent=0 // pred_fallthru
    _
  // Predicated region
  $region6: #{resnet_generator_forward.27} parent=0 // pred_check
    _
  $region7: #{resnet_generator_forward.27} parent=0 // pred_check_branch
    %10 = sbr.rel (0) target = $region9
  $region8: #{resnet_generator_forward.27} parent=0 // pred_region
    _
  $region9: #{resnet_generator_forward.27} parent=0 // pred_fallthru
    _
  %v11 = vld [vmem:[%s0] sm:$0xff]
  %v12 = vld [vmem:[%s0 + $0x8] sm:$0xff]
  %v13 = vld [vmem:[%s0 + $0x10] sm:$0xff]
  %v14 = vld [vmem:[%s0 + $0x18] sm:$0xff]
  %v15 = vld [vmem:[%s0 + $0x20] sm:$0xff]
  %v16 = vld [vmem:[%s0 + $0x28] sm:$0xff]
  %v17 = vld [vmem:[%s0 + $0x30] sm:$0xff]
  %v18 = vld [vmem:[%s0 + $0x38] sm:$0xff]
  %v19 = vld [vmem:[%s0 + $0x40] sm:$0xff]
  %v20 = vld [vmem:[%s0 + $0x48] sm:$0xff]
  %v21 = vld [vmem:[%s0 + $0x50] sm:$0xff]
  %v22 = vld [vmem:[%s0 + $0x58] sm:$0xff]
  %v23 = vld [vmem:[%s1] sm:$0xff]
  %v24 = vld [vmem:[%s1 + $0x8] sm:$0xff]
  %v25 = vld [vmem:[%s1 + $0x10] sm:$0xff]
  %v26 = vld [vmem:[%s1 + $0x18] sm:$0xff]
  %v27 = vld [vmem:[%s1 + $0x20] sm:$0xff]
  %v28 = vld [vmem:[%s1 + $0x28] sm:$0xff]
  %v29 = vld [vmem:[%s1 + $0x30] sm:$0xff]
  %v30 = vld [vmem:[%s1 + $0x38] sm:$0xff]
  %v31 = vld [vmem:[%s1 + $0x40] sm:$0xff]
  %v32 = vld [vmem:[%s1 + $0x48] sm:$0xff]
  %v33 = vld [vmem:[%s1 + $0x50] sm:$0xff]
  %v34 = vld [vmem:[%s1 + $0x58] sm:$0xff]
  %v35 = vld [vmem:[%s1 + $0x60] sm:$0xff]
  %v36 = vld [vmem:[%s1 + $0x68] sm:$0xff]
  %v37 = vld [vmem:[%s1 + $0x70] sm:$0xff]
  %v38 = vld [vmem:[%s1 + $0x78] sm:$0xff]
  %v39 = vld [vmem:[%s1 + $0x80] sm:$0xff]
  %v40 = vld [vmem:[%s1 + $0x88] sm:$0xff]
  %v41 = vld [vmem:[%s1 + $0x90] sm:$0xff]
  %v42 = vld [vmem:[%s1 + $0x98] sm:$0xff]
  %v43 = vld [vmem:[%s1 + $0xa0] sm:$0xff]
  %v44 = vld [vmem:[%s1 + $0xa8] sm:$0xff]
  %v45 = vld [vmem:[%s1 + $0xb0] sm:$0xff]
  %v46 = vld [vmem:[%s1 + $0xb8] sm:$0xff]
  %v47 = vld [vmem:[%s1 + $0xc0] sm:$0xff]
  %v48 = vld [vmem:[%s1 + $0xc8] sm:$0xff]
  %v49 = vld [vmem:[%s1 + $0xd0] sm:$0xff]
  %v50 = vld [vmem:[%s1 + $0xd8] sm:$0xff]
  %v51 = vld [vmem:[%s1 + $0xe0] sm:$0xff]
  %v52 = vld [vmem:[%s1 + $0xe8] sm:$0xff]
  %v53 = vld [vmem:[%s1 + $0xf0] sm:$0xff]
  %v54 = vld [vmem:[%s1 + $0xf8] sm:$0xff]
  %v55 = vld [vmem:[%s1 + $0x100] sm:$0xff]
  %v56 = vld [vmem:[%s1 + $0x108] sm:$0xff]
  %v57 = vld [vmem:[%s1 + $0x110] sm:$0xff]
  %v58 = vld [vmem:[%s1 + $0x118] sm:$0xff]
  %vm59 = vcmask 261120
  %v61 = vsel %vm59, %v13, 0
  %v64 = vsel %vm59, %v16, 0
  %v67 = vsel %vm59, %v19, 0
  %v70 = vsel %vm59, %v22, 0
  %72 = vmatprep.subr.mxu0 0.0
  %73 = vmatpush1.msra.mxu0 %v38
  %74 = vmatprep.subr.mxu0 0.0
  %75 = vmatpush1.msra.mxu0 %v37
  %76 = vmatprep.subr.mxu0 0.0
  %77 = vmatpush1.msra.mxu0 %v36
  %78 = vmatprep.subr.mxu0 0.0
  %79 = vmatpush1.msra.mxu0 %v35
  %80 = vmatprep.subr.mxu0 0.0
  %81 = vmatpush1.msra.mxu0 %v34
  %82 = vmatprep.subr.mxu0 0.0
  %83 = vmatpush1.msra.mxu0 %v33
  %84 = vmatprep.subr.mxu0 0.0
  %85 = vmatpush1.msra.mxu0 %v32
  %86 = vmatprep.subr.mxu0 0.0
  %87 = vmatpush1.msra.mxu0 %v31
  %88 = vmatprep.subr.mxu0 0.0
  %89 = vmatpush1.msra.mxu0 %v30
  %90 = vmatprep.subr.mxu0 0.0
  %91 = vmatpush1.msra.mxu0 %v29
  %92 = vmatprep.subr.mxu0 0.0
  %93 = vmatpush1.msra.mxu0 %v28
  %94 = vmatprep.subr.mxu0 0.0
  %95 = vmatpush1.msra.mxu0 %v27
  %96 = vmatprep.subr.mxu0 0.0
  %97 = vmatpush1.msra.mxu0 %v26
  %98 = vmatprep.subr.mxu0 0.0
  %99 = vmatpush1.msra.mxu0 %v25
  %100 = vmatprep.subr.mxu0 0.0
  %101 = vmatpush1.msra.mxu0 %v24
  %102 = vmatprep.subr.mxu0 0.0
  %103 = vmatpush1.msra.mxu0 %v23
  %104 = vmatprep.subr.mxu0 0.0
  %105 = vmatpush2.msra.mxu0 %v54
  %106 = vmatprep.subr.mxu0 0.0
  %107 = vmatpush2.msra.mxu0 %v53
  %108 = vmatprep.subr.mxu0 0.0
  %109 = vmatpush2.msra.mxu0 %v52
  %110 = vmatprep.subr.mxu0 0.0
  %111 = vmatpush2.msra.mxu0 %v51
  %112 = vmatprep.subr.mxu0 0.0
  %113 = vmatpush2.msra.mxu0 %v50
  %114 = vmatprep.subr.mxu0 0.0
  %115 = vmatpush2.msra.mxu0 %v49
  %116 = vmatprep.subr.mxu0 0.0
  %117 = vmatpush2.msra.mxu0 %v48
  %118 = vmatprep.subr.mxu0 0.0
  %119 = vmatpush2.msra.mxu0 %v47
  %120 = vmatprep.subr.mxu0 0.0
  %121 = vmatpush2.msra.mxu0 %v46
  %122 = vmatprep.subr.mxu0 0.0
  %123 = vmatpush2.msra.mxu0 %v45
  %124 = vmatprep.subr.mxu0 0.0
  %125 = vmatpush2.msra.mxu0 %v44
  %126 = vmatprep.subr.mxu0 0.0
  %127 = vmatpush2.msra.mxu0 %v43
  %128 = vmatprep.subr.mxu0 0.0
  %129 = vmatpush2.msra.mxu0 %v42
  %130 = vmatprep.subr.mxu0 0.0
  %131 = vmatpush2.msra.mxu0 %v41
  %132 = vmatprep.subr.mxu0 0.0
  %133 = vmatpush2.msra.mxu0 %v40
  %134 = vmatprep.subr.mxu0 0.0
  %135 = vmatpush2.msra.mxu0 %v39
  %136 = vmatprep.mubr.f32.mxu0 %v12
  %137 = vmatmul.mubr.f32.gmra.mxu0 %v11
  %v138 = vpop.f32.mrf.mxu0
  %v139 = vadd.f32 0.0, %v138
  %v140 = vpop.f32.mrf.mxu0
  %141 = vmatprep.mubr.f32.mxu0 %v15
  %142 = vmatmul.mubr.f32.gmra.mxu0 %v14
  %v143 = vpop.f32.mrf.mxu0
  %v144 = vadd.f32 0.0, %v143
  %v145 = vpop.f32.mrf.mxu0
  %146 = vmatprep.mubr.f32.mxu0 %v18
  %147 = vmatmul.mubr.f32.gmra.mxu0 %v17
  %v148 = vpop.f32.mrf.mxu0
  %v149 = vadd.f32 0.0, %v148
  %v150 = vpop.f32.mrf.mxu0
  %151 = vmatprep.mubr.f32.mxu0 %v21
  %152 = vmatmul.mubr.f32.gmra.mxu0 %v20
  %v153 = vpop.f32.mrf.mxu0
  %v154 = vadd.f32 0.0, %v153
  %v155 = vpop.f32.mrf.mxu0
  %156 = vdwg.mxu0
  %157 = vmatprep.subr.mxu0 0.0
  %158 = vmatpush1.msra.mxu0 0.0
  %159 = vmatprep.subr.mxu0 0.0
  %160 = vmatpush1.msra.mxu0 0.0
  %161 = vmatprep.subr.mxu0 0.0
  %162 = vmatpush1.msra.mxu0 0.0
  %163 = vmatprep.subr.mxu0 0.0
  %164 = vmatpush1.msra.mxu0 0.0
  %165 = vmatprep.subr.mxu0 0.0
  %166 = vmatpush1.msra.mxu0 0.0
  %167 = vmatprep.subr.mxu0 0.0
  %168 = vmatpush1.msra.mxu0 0.0
  %169 = vmatprep.subr.mxu0 0.0
  %170 = vmatpush1.msra.mxu0 0.0
  %171 = vmatprep.subr.mxu0 0.0
  %172 = vmatpush1.msra.mxu0 0.0
  %173 = vmatprep.subr.mxu0 0.0
  %174 = vmatpush1.msra.mxu0 0.0
  %175 = vmatprep.subr.mxu0 0.0
  %176 = vmatpush1.msra.mxu0 0.0
  %177 = vmatprep.subr.mxu0 0.0
  %178 = vmatpush1.msra.mxu0 0.0
  %179 = vmatprep.subr.mxu0 0.0
  %180 = vmatpush1.msra.mxu0 0.0
  %181 = vmatprep.subr.mxu0 0.0
  %182 = vmatpush1.msra.mxu0 %v58
  %183 = vmatprep.subr.mxu0 0.0
  %184 = vmatpush1.msra.mxu0 %v57
  %185 = vmatprep.subr.mxu0 0.0
  %186 = vmatpush1.msra.mxu0 %v56
  %187 = vmatprep.subr.mxu0 0.0
  %188 = vmatpush1.msra.mxu0 %v55
  %189 = vmatprep.subr.mxu0 0.0
  %190 = vmatpush2.msra.mxu0 0.0
  %191 = vmatprep.subr.mxu0 0.0
  %192 = vmatpush2.msra.mxu0 0.0
  %193 = vmatprep.subr.mxu0 0.0
  %194 = vmatpush2.msra.mxu0 0.0
  %195 = vmatprep.subr.mxu0 0.0
  %196 = vmatpush2.msra.mxu0 0.0
  %197 = vmatprep.subr.mxu0 0.0
  %198 = vmatpush2.msra.mxu0 0.0
  %199 = vmatprep.subr.mxu0 0.0
  %200 = vmatpush2.msra.mxu0 0.0
  %201 = vmatprep.subr.mxu0 0.0
  %202 = vmatpush2.msra.mxu0 0.0
  %203 = vmatprep.subr.mxu0 0.0
  %204 = vmatpush2.msra.mxu0 0.0
  %205 = vmatprep.subr.mxu0 0.0
  %206 = vmatpush2.msra.mxu0 0.0
  %207 = vmatprep.subr.mxu0 0.0
  %208 = vmatpush2.msra.mxu0 0.0
  %209 = vmatprep.subr.mxu0 0.0
  %210 = vmatpush2.msra.mxu0 0.0
  %211 = vmatprep.subr.mxu0 0.0
  %212 = vmatpush2.msra.mxu0 0.0
  %213 = vmatprep.subr.mxu0 0.0
  %214 = vmatpush2.msra.mxu0 0.0
  %215 = vmatprep.subr.mxu0 0.0
  %216 = vmatpush2.msra.mxu0 0.0
  %217 = vmatprep.subr.mxu0 0.0
  %218 = vmatpush2.msra.mxu0 0.0
  %219 = vmatprep.subr.mxu0 0.0
  %220 = vmatpush2.msra.mxu0 0.0
  %221 = vmatprep.mubr.f32.mxu0 0.0
  %222 = vmatmul.mubr.f32.gmra.mxu0 %v61
  %v223 = vpop.f32.mrf.mxu0
  %v224 = vadd.f32 %v139, %v223
  %v225 = vpop.f32.mrf.mxu0
  %226 = vmatprep.mubr.f32.mxu0 0.0
  %227 = vmatmul.mubr.f32.gmra.mxu0 %v64
  %v228 = vpop.f32.mrf.mxu0
  %v229 = vadd.f32 %v144, %v228
  %v230 = vpop.f32.mrf.mxu0
  %231 = vmatprep.mubr.f32.mxu0 0.0
  %232 = vmatmul.mubr.f32.gmra.mxu0 %v67
  %v233 = vpop.f32.mrf.mxu0
  %v234 = vadd.f32 %v149, %v233
  %v235 = vpop.f32.mrf.mxu0
  %236 = vmatprep.mubr.f32.mxu0 0.0
  %237 = vmatmul.mubr.f32.gmra.mxu0 %v70
  %v238 = vpop.f32.mrf.mxu0
  %v239 = vadd.f32 %v154, %v238
  %v240 = vpop.f32.mrf.mxu0
  %241 = vdwg.mxu0
  %v242 = vmax.f32 %v224, 0.0
  %v243 = vmax.f32 %v229, 0.0
  %v244 = vmax.f32 %v234, 0.0
  %v245 = vmax.f32 %v239, 0.0
  %246 = vst.msk [vmem:[%s2] sm:$0xff] %vm59, %v242
  %247 = vst.msk [vmem:[%s2 + $0x8] sm:$0xff] %vm59, %v243
  %248 = vst.msk [vmem:[%s2 + $0x10] sm:$0xff] %vm59, %v244
  %249 = vst.msk [vmem:[%s2 + $0x18] sm:$0xff] %vm59, %v245
  // Predicated region
  $region10: #{resnet_generator_forward.27} parent=0 // pred_check
    _
  $region11: #{resnet_generator_forward.27} parent=0 // pred_check_branch
    %251 = sbr.rel (0) target = $region13
  $region12: #{resnet_generator_forward.27} parent=0 // pred_region
    _
  $region13: #{resnet_generator_forward.27} parent=0 // pred_fallthru
    _
  // Predicated region
  $region14: #{resnet_generator_forward.27} parent=0 // pred_check
    _
  $region15: #{resnet_generator_forward.27} parent=0 // pred_check_branch
    %253 = sbr.rel (0) target = $region17
  $region16: #{resnet_generator_forward.27} parent=0 // pred_region
    _
  $region17: #{resnet_generator_forward.27} parent=0 // pred_fallthru
    _

// kernel: resnet_generator_forward.26
$region0: #{resnet_generator_forward.26}
  #allocation0 [shape = 'u32[]', space=smem, size = 0x4, offset = 0x4, fixed_abs, tag = 'smem constant byte address 0x4 - core index']
  #allocation1 [shape = 'u32[144,128]{1,0:T(1,128)}', space=vmem, size = 0x12000, scoped, tag = 'internal scratch']
  %s0 = inlined_call_operand.vmem [shape: f32[32,32], index: 0, kind: input, shape index: {}]
  %s1 = inlined_call_operand.vmem [shape: f32[1,32], index: 1, kind: input, shape index: {}]
  %s2 = inlined_call_operand.vmem [shape: f32[1,32], index: 2, kind: input, shape index: {}]
  %s3 = inlined_call_operand.vmem [shape: f32[32,32], index: 3, kind: output, shape index: {}]
  %s4 = sld [smem:[#allocation0]]
  $region22: #{resnet_generator_forward.26} parent=0
    _
  %s6 = ssub.s32 1, %s4
  %s7 = scalar_select 0, %s6, %s4
  // Predicated region
  $region2: #{resnet_generator_forward.26} parent=0 // pred_check
    _
  $region3: #{resnet_generator_forward.26} parent=0 // pred_check_branch
    %9 = sbr.rel (0) target = $region5
  $region4: #{resnet_generator_forward.26} parent=0 // pred_region
    _
  $region5: #{resnet_generator_forward.26} parent=0 // pred_fallthru
    _
  // Predicated region
  $region6: #{resnet_generator_forward.26} parent=0 // pred_check
    _
  $region7: #{resnet_generator_forward.26} parent=0 // pred_check_branch
    %11 = sbr.rel (0) target = $region9
  $region8: #{resnet_generator_forward.26} parent=0 // pred_region
    _
  $region9: #{resnet_generator_forward.26} parent=0 // pred_fallthru
    _
  // Predicated region
  $region10: #{resnet_generator_forward.26} parent=0 // pred_check
    _
  $region11: #{resnet_generator_forward.26} parent=0 // pred_check_branch
    %13 = sbr.rel (0) target = $region13
  $region12: #{resnet_generator_forward.26} parent=0 // pred_region
    _
  $region13: #{resnet_generator_forward.26} parent=0 // pred_fallthru
    _
  %v14 = vld [vmem:[%s0] sm:$0xff]
  %v15 = vld [vmem:[%s0 + $0x8] sm:$0xff]
  %v16 = vld [vmem:[%s0 + $0x10] sm:$0xff]
  %v17 = vld [vmem:[%s0 + $0x18] sm:$0xff]
  %v18 = vld [vmem:[%s1] sm:$0x1]
  %v20 = vlaneseq
  %v21 = vshrl.u32 %v20, 7
  %v22 = vsub.s32 0, %v21
  %v23 = vrot.slane %v18, %v22
  %v25 = vmul.f32 %v14, %v23
  %v26 = vmul.f32 %v15, %v23
  %v27 = vmul.f32 %v16, %v23
  %v28 = vmul.f32 %v17, %v23
  %v29 = vld [vmem:[%s2] sm:$0x1]
  %v31 = vlaneseq
  %v32 = vshrl.u32 %v31, 7
  %v33 = vsub.s32 0, %v32
  %v34 = vrot.slane %v29, %v33
  %v36 = vadd.f32 %v25, %v34
  %v37 = vadd.f32 %v26, %v34
  %v38 = vadd.f32 %v27, %v34
  %v39 = vadd.f32 %v28, %v34
  %v40 = vmax.f32 %v36, 0.0
  %v41 = vmax.f32 %v37, 0.0
  %v42 = vmax.f32 %v38, 0.0
  %v43 = vmax.f32 %v39, 0.0
  %vm44 = vcmask 261120
  %45 = vst.msk [vmem:[%s3] sm:$0xff] %vm44, %v40
  %46 = vst.msk [vmem:[%s3 + $0x8] sm:$0xff] %vm44, %v41
  %47 = vst.msk [vmem:[%s3 + $0x10] sm:$0xff] %vm44, %v42
  %48 = vst.msk [vmem:[%s3 + $0x18] sm:$0xff] %vm44, %v43
  // Predicated region
  $region14: #{resnet_generator_forward.26} parent=0 // pred_check
    _
  $region15: #{resnet_generator_forward.26} parent=0 // pred_check_branch
    %50 = sbr.rel (0) target = $region17
  $region16: #{resnet_generator_forward.26} parent=0 // pred_region
    _
  $region17: #{resnet_generator_forward.26} parent=0 // pred_fallthru
    _
  // Predicated region
  $region18: #{resnet_generator_forward.26} parent=0 // pred_check
    _
  $region19: #{resnet_generator_forward.26} parent=0 // pred_check_branch
    %52 = sbr.rel (0) target = $region21
  $region20: #{resnet_generator_forward.26} parent=0 // pred_region
    _
  $region21: #{resnet_generator_forward.26} parent=0 // pred_fallthru
    _

// kernel: resnet_generator_forward.34
$region0: #{resnet_generator_forward.34}
  #allocation0 [shape = 'u32[]', space=smem, size = 0x4, offset = 0x4, fixed_abs, tag = 'smem constant byte address 0x4 - core index']
  #allocation1 [shape = 'u32[144,128]{1,0:T(1,128)}', space=vmem, size = 0x12000, scoped, tag = 'internal scratch']
  %s0 = inlined_call_operand.vmem [shape: f32[32,128], index: 0, kind: input, shape index: {}]
  %s1 = inlined_call_operand.vmem [shape: f32[128,16], index: 1, kind: input, shape index: {}]
  %s2 = inlined_call_operand.vmem [shape: f32[32,16], index: 2, kind: output, shape index: {0}]
  %s3 = inlined_call_operand.vmem [shape: f32[8,16], index: 3, kind: output, shape index: {1}]
  %4 = xla_tuple %s2, %s3
  %s5 = sld [smem:[#allocation0]]
  $region26: #{resnet_generator_forward.34} parent=0
    _
  %s7 = ssub.s32 1, %s5
  %s8 = scalar_select 0, %s7, %s5
  // Predicated region
  $region2: #{resnet_generator_forward.34} parent=0 // pred_check
    _
  $region3: #{resnet_generator_forward.34} parent=0 // pred_check_branch
    %10 = sbr.rel (0) target = $region5
  $region4: #{resnet_generator_forward.34} parent=0 // pred_region
    _
  $region5: #{resnet_generator_forward.34} parent=0 // pred_fallthru
    _
  // Predicated region
  $region6: #{resnet_generator_forward.34} parent=0 // pred_check
    _
  $region7: #{resnet_generator_forward.34} parent=0 // pred_check_branch
    %12 = sbr.rel (0) target = $region9
  $region8: #{resnet_generator_forward.34} parent=0 // pred_region
    _
  $region9: #{resnet_generator_forward.34} parent=0 // pred_fallthru
    _
  %v13 = vld [vmem:[%s0] sm:$0xff]
  %v14 = vld [vmem:[%s0 + $0x8] sm:$0xff]
  %v15 = vld [vmem:[%s0 + $0x10] sm:$0xff]
  %v16 = vld [vmem:[%s0 + $0x18] sm:$0xff]
  %v17 = vld [vmem:[%s1] sm:$0xff]
  %v18 = vld [vmem:[%s1 + $0x8] sm:$0xff]
  %v19 = vld [vmem:[%s1 + $0x10] sm:$0xff]
  %v20 = vld [vmem:[%s1 + $0x18] sm:$0xff]
  %v21 = vld [vmem:[%s1 + $0x20] sm:$0xff]
  %v22 = vld [vmem:[%s1 + $0x28] sm:$0xff]
  %v23 = vld [vmem:[%s1 + $0x30] sm:$0xff]
  %v24 = vld [vmem:[%s1 + $0x38] sm:$0xff]
  %v25 = vld [vmem:[%s1 + $0x40] sm:$0xff]
  %v26 = vld [vmem:[%s1 + $0x48] sm:$0xff]
  %v27 = vld [vmem:[%s1 + $0x50] sm:$0xff]
  %v28 = vld [vmem:[%s1 + $0x58] sm:$0xff]
  %v29 = vld [vmem:[%s1 + $0x60] sm:$0xff]
  %v30 = vld [vmem:[%s1 + $0x68] sm:$0xff]
  %v31 = vld [vmem:[%s1 + $0x70] sm:$0xff]
  %v32 = vld [vmem:[%s1 + $0x78] sm:$0xff]
  %33 = vmatprep.subr.mxu0 0.0
  %34 = vmatpush1.msra.mxu0 %v32
  %35 = vmatprep.subr.mxu0 0.0
  %36 = vmatpush1.msra.mxu0 %v31
  %37 = vmatprep.subr.mxu0 0.0
  %38 = vmatpush1.msra.mxu0 %v30
  %39 = vmatprep.subr.mxu0 0.0
  %40 = vmatpush1.msra.mxu0 %v29
  %41 = vmatprep.subr.mxu0 0.0
  %42 = vmatpush1.msra.mxu0 %v28
  %43 = vmatprep.subr.mxu0 0.0
  %44 = vmatpush1.msra.mxu0 %v27
  %45 = vmatprep.subr.mxu0 0.0
  %46 = vmatpush1.msra.mxu0 %v26
  %47 = vmatprep.subr.mxu0 0.0
  %48 = vmatpush1.msra.mxu0 %v25
  %49 = vmatprep.subr.mxu0 0.0
  %50 = vmatpush1.msra.mxu0 %v24
  %51 = vmatprep.subr.mxu0 0.0
  %52 = vmatpush1.msra.mxu0 %v23
  %53 = vmatprep.subr.mxu0 0.0
  %54 = vmatpush1.msra.mxu0 %v22
  %55 = vmatprep.subr.mxu0 0.0
  %56 = vmatpush1.msra.mxu0 %v21
  %57 = vmatprep.subr.mxu0 0.0
  %58 = vmatpush1.msra.mxu0 %v20
  %59 = vmatprep.subr.mxu0 0.0
  %60 = vmatpush1.msra.mxu0 %v19
  %61 = vmatprep.subr.mxu0 0.0
  %62 = vmatpush1.msra.mxu0 %v18
  %63 = vmatprep.subr.mxu0 0.0
  %64 = vmatpush1.msra.mxu0 %v17
  %65 = vmatprep.subr.mxu0 0.0
  %66 = vmatpush2.msra.mxu0 0.0
  %67 = vmatprep.subr.mxu0 0.0
  %68 = vmatpush2.msra.mxu0 0.0
  %69 = vmatprep.subr.mxu0 0.0
  %70 = vmatpush2.msra.mxu0 0.0
  %71 = vmatprep.subr.mxu0 0.0
  %72 = vmatpush2.msra.mxu0 0.0
  %73 = vmatprep.subr.mxu0 0.0
  %74 = vmatpush2.msra.mxu0 0.0
  %75 = vmatprep.subr.mxu0 0.0
  %76 = vmatpush2.msra.mxu0 0.0
  %77 = vmatprep.subr.mxu0 0.0
  %78 = vmatpush2.msra.mxu0 0.0
  %79 = vmatprep.subr.mxu0 0.0
  %80 = vmatpush2.msra.mxu0 0.0
  %81 = vmatprep.subr.mxu0 0.0
  %82 = vmatpush2.msra.mxu0 0.0
  %83 = vmatprep.subr.mxu0 0.0
  %84 = vmatpush2.msra.mxu0 0.0
  %85 = vmatprep.subr.mxu0 0.0
  %86 = vmatpush2.msra.mxu0 0.0
  %87 = vmatprep.subr.mxu0 0.0
  %88 = vmatpush2.msra.mxu0 0.0
  %89 = vmatprep.subr.mxu0 0.0
  %90 = vmatpush2.msra.mxu0 0.0
  %91 = vmatprep.subr.mxu0 0.0
  %92 = vmatpush2.msra.mxu0 0.0
  %93 = vmatprep.subr.mxu0 0.0
  %94 = vmatpush2.msra.mxu0 0.0
  %95 = vmatprep.subr.mxu0 0.0
  %96 = vmatpush2.msra.mxu0 0.0
  %97 = vmatprep.mubr.f32.mxu0 0.0
  %98 = vmatmul.mubr.f32.gmra.mxu0 %v13
  %v99 = vpop.f32.mrf.mxu0
  %v100 = vadd.f32 0.0, %v99
  %v101 = vpop.f32.mrf.mxu0
  %102 = vmatprep.mubr.f32.mxu0 0.0
  %103 = vmatmul.mubr.f32.gmra.mxu0 %v14
  %v104 = vpop.f32.mrf.mxu0
  %v105 = vadd.f32 0.0, %v104
  %v106 = vpop.f32.mrf.mxu0
  %107 = vmatprep.mubr.f32.mxu0 0.0
  %108 = vmatmul.mubr.f32.gmra.mxu0 %v15
  %v109 = vpop.f32.mrf.mxu0
  %v110 = vadd.f32 0.0, %v109
  %v111 = vpop.f32.mrf.mxu0
  %112 = vmatprep.mubr.f32.mxu0 0.0
  %113 = vmatmul.mubr.f32.gmra.mxu0 %v16
  %v114 = vpop.f32.mrf.mxu0
  %v115 = vadd.f32 0.0, %v114
  %v116 = vpop.f32.mrf.mxu0
  %117 = vdwg.mxu0
  %vm118 = vcmask 130048
  %v119 = vsel %vm118, %v100, 0.0
  %v120 = vsel %vm118, %v105, 0.0
  %v121 = vadd.f32 %v119, %v120
  %v122 = vsel %vm118, %v110, 0.0
  %v123 = vadd.f32 %v121, %v122
  %v124 = vsel %vm118, %v115, 0.0
  %v125 = vadd.f32 %v123, %v124
  %v126 = vrot.slane %v125, 4
  %v127 = vadd.f32 %v125, %v126
  %v128 = vrot.slane %v127, 2
  %v129 = vadd.f32 %v127, %v128
  %v130 = vrot.slane %v129, 1
  %v131 = vadd.f32 %v129, %v130
  %v132 = vmul.f32 %v100, %v100
  %v133 = vmul.f32 %v105, %v105
  %v134 = vmul.f32 %v110, %v110
  %v135 = vmul.f32 %v115, %v115
  %v136 = vsel %vm118, %v132, 0.0
  %v137 = vsel %vm118, %v133, 0.0
  %v138 = vadd.f32 %v136, %v137
  %v139 = vsel %vm118, %v134, 0.0
  %v140 = vadd.f32 %v138, %v139
  %v141 = vsel %vm118, %v135, 0.0
  %v142 = vadd.f32 %v140, %v141
  %v143 = vrot.slane %v142, 4
  %v144 = vadd.f32 %v142, %v143
  %v145 = vrot.slane %v144, 2
  %v146 = vadd.f32 %v144, %v145
  %v147 = vrot.slane %v146, 1
  %v148 = vadd.f32 %v146, %v147
  %v149 = vlaneseq
  %v150 = vshrl.u32 %v149, 7
  %vm151 = vcmp.eq.s32.totalorder %v150, 0
  %vm152 = vcmp.eq.s32.totalorder %v150, 1
  %v153 = vsel %vm152, %v148, 0.0
  %v154 = vsel %vm151, %v131, %v153
  %155 = vst.msk [vmem:[%s3] sm:$0xff] %vm118, %v154
  %156 = vst.msk [vmem:[%s2] sm:$0xff] %vm118, %v100
  %157 = vst.msk [vmem:[%s2 + $0x8] sm:$0xff] %vm118, %v105
  %158 = vst.msk [vmem:[%s2 + $0x10] sm:$0xff] %vm118, %v110
  %159 = vst.msk [vmem:[%s2 + $0x18] sm:$0xff] %vm118, %v115
  // Predicated region
  $region10: #{resnet_generator_forward.34} parent=0 // pred_check
    _
  $region11: #{resnet_generator_forward.34} parent=0 // pred_check_branch
    %161 = sbr.rel (0) target = $region13
  $region12: #{resnet_generator_forward.34} parent=0 // pred_region
    _
  $region13: #{resnet_generator_forward.34} parent=0 // pred_fallthru
    _
  // Predicated region
  $region14: #{resnet_generator_forward.34} parent=0 // pred_check
    _
  $region15: #{resnet_generator_forward.34} parent=0 // pred_check_branch
    %163 = sbr.rel (0) target = $region17
  $region16: #{resnet_generator_forward.34} parent=0 // pred_region
    _
  $region17: #{resnet_generator_forward.34} parent=0 // pred_fallthru
    _
  // Predicated region
  $region18: #{resnet_generator_forward.34} parent=0 // pred_check
    _
  $region19: #{resnet_generator_forward.34} parent=0 // pred_check_branch
    %165 = sbr.rel (0) target = $region21
  $region20: #{resnet_generator_forward.34} parent=0 // pred_region
    _
  $region21: #{resnet_generator_forward.34} parent=0 // pred_fallthru
    _
  // Predicated region
  $region22: #{resnet_generator_forward.34} parent=0 // pred_check
    _
  $region23: #{resnet_generator_forward.34} parent=0 // pred_check_branch
    %167 = sbr.rel (0) target = $region25
  $region24: #{resnet_generator_forward.34} parent=0 // pred_region
    _
  $region25: #{resnet_generator_forward.34} parent=0 // pred_fallthru
    _

// kernel: resnet_generator_forward.28
$region0: #{resnet_generator_forward.28}
  #allocation0 [shape = 'u32[]', space=smem, size = 0x4, offset = 0x4, fixed_abs, tag = 'smem constant byte address 0x4 - core index']
  #allocation1 [shape = 'u32[144,128]{1,0:T(1,128)}', space=vmem, size = 0x12000, scoped, tag = 'internal scratch']
  %s0 = inlined_call_operand.vmem [shape: f32[32,288], index: 0, kind: input, shape index: {}]
  %s1 = inlined_call_operand.vmem [shape: f32[288,32], index: 1, kind: input, shape index: {}]
  %s2 = inlined_call_operand.vmem [shape: f32[32,32], index: 2, kind: input, shape index: {}]
  %s3 = inlined_call_operand.vmem [shape: f32[32,32], index: 3, kind: output, shape index: {}]
  %s4 = sld [smem:[#allocation0]]
  $region22: #{resnet_generator_forward.28} parent=0
    _
  %s6 = ssub.s32 1, %s4
  %s7 = scalar_select 0, %s6, %s4
  // Predicated region
  $region2: #{resnet_generator_forward.28} parent=0 // pred_check
    _
  $region3: #{resnet_generator_forward.28} parent=0 // pred_check_branch
    %9 = sbr.rel (0) target = $region5
  $region4: #{resnet_generator_forward.28} parent=0 // pred_region
    _
  $region5: #{resnet_generator_forward.28} parent=0 // pred_fallthru
    _
  // Predicated region
  $region6: #{resnet_generator_forward.28} parent=0 // pred_check
    _
  $region7: #{resnet_generator_forward.28} parent=0 // pred_check_branch
    %11 = sbr.rel (0) target = $region9
  $region8: #{resnet_generator_forward.28} parent=0 // pred_region
    _
  $region9: #{resnet_generator_forward.28} parent=0 // pred_fallthru
    _
  // Predicated region
  $region10: #{resnet_generator_forward.28} parent=0 // pred_check
    _
  $region11: #{resnet_generator_forward.28} parent=0 // pred_check_branch
    %13 = sbr.rel (0) target = $region13
  $region12: #{resnet_generator_forward.28} parent=0 // pred_region
    _
  $region13: #{resnet_generator_forward.28} parent=0 // pred_fallthru
    _
  %v14 = vld [vmem:[%s0] sm:$0xff]
  %v15 = vld [vmem:[%s0 + $0x8] sm:$0xff]
  %v16 = vld [vmem:[%s0 + $0x10] sm:$0xff]
  %v17 = vld [vmem:[%s0 + $0x18] sm:$0xff]
  %v18 = vld [vmem:[%s0 + $0x20] sm:$0xff]
  %v19 = vld [vmem:[%s0 + $0x28] sm:$0xff]
  %v20 = vld [vmem:[%s0 + $0x30] sm:$0xff]
  %v21 = vld [vmem:[%s0 + $0x38] sm:$0xff]
  %v22 = vld [vmem:[%s0 + $0x40] sm:$0xff]
  %v23 = vld [vmem:[%s0 + $0x48] sm:$0xff]
  %v24 = vld [vmem:[%s0 + $0x50] sm:$0xff]
  %v25 = vld [vmem:[%s0 + $0x58] sm:$0xff]
  %v26 = vld [vmem:[%s1] sm:$0xff]
  %v27 = vld [vmem:[%s1 + $0x8] sm:$0xff]
  %v28 = vld [vmem:[%s1 + $0x10] sm:$0xff]
  %v29 = vld [vmem:[%s1 + $0x18] sm:$0xff]
  %v30 = vld [vmem:[%s1 + $0x20] sm:$0xff]
  %v31 = vld [vmem:[%s1 + $0x28] sm:$0xff]
  %v32 = vld [vmem:[%s1 + $0x30] sm:$0xff]
  %v33 = vld [vmem:[%s1 + $0x38] sm:$0xff]
  %v34 = vld [vmem:[%s1 + $0x40] sm:$0xff]
  %v35 = vld [vmem:[%s1 + $0x48] sm:$0xff]
  %v36 = vld [vmem:[%s1 + $0x50] sm:$0xff]
  %v37 = vld [vmem:[%s1 + $0x58] sm:$0xff]
  %v38 = vld [vmem:[%s1 + $0x60] sm:$0xff]
  %v39 = vld [vmem:[%s1 + $0x68] sm:$0xff]
  %v40 = vld [vmem:[%s1 + $0x70] sm:$0xff]
  %v41 = vld [vmem:[%s1 + $0x78] sm:$0xff]
  %v42 = vld [vmem:[%s1 + $0x80] sm:$0xff]
  %v43 = vld [vmem:[%s1 + $0x88] sm:$0xff]
  %v44 = vld [vmem:[%s1 + $0x90] sm:$0xff]
  %v45 = vld [vmem:[%s1 + $0x98] sm:$0xff]
  %v46 = vld [vmem:[%s1 + $0xa0] sm:$0xff]
  %v47 = vld [vmem:[%s1 + $0xa8] sm:$0xff]
  %v48 = vld [vmem:[%s1 + $0xb0] sm:$0xff]
  %v49 = vld [vmem:[%s1 + $0xb8] sm:$0xff]
  %v50 = vld [vmem:[%s1 + $0xc0] sm:$0xff]
  %v51 = vld [vmem:[%s1 + $0xc8] sm:$0xff]
  %v52 = vld [vmem:[%s1 + $0xd0] sm:$0xff]
  %v53 = vld [vmem:[%s1 + $0xd8] sm:$0xff]
  %v54 = vld [vmem:[%s1 + $0xe0] sm:$0xff]
  %v55 = vld [vmem:[%s1 + $0xe8] sm:$0xff]
  %v56 = vld [vmem:[%s1 + $0xf0] sm:$0xff]
  %v57 = vld [vmem:[%s1 + $0xf8] sm:$0xff]
  %v58 = vld [vmem:[%s1 + $0x100] sm:$0xff]
  %v59 = vld [vmem:[%s1 + $0x108] sm:$0xff]
  %v60 = vld [vmem:[%s1 + $0x110] sm:$0xff]
  %v61 = vld [vmem:[%s1 + $0x118] sm:$0xff]
  %v62 = vld [vmem:[%s2] sm:$0xff]
  %v63 = vld [vmem:[%s2 + $0x8] sm:$0xff]
  %v64 = vld [vmem:[%s2 + $0x10] sm:$0xff]
  %v65 = vld [vmem:[%s2 + $0x18] sm:$0xff]
  %vm66 = vcmask 261120
  %v68 = vsel %vm66, %v16, 0
  %v71 = vsel %vm66, %v19, 0
  %v74 = vsel %vm66, %v22, 0
  %v77 = vsel %vm66, %v25, 0
  %79 = vmatprep.subr.mxu0 0.0
  %80 = vmatpush1.msra.mxu0 %v41
  %81 = vmatprep.subr.mxu0 0.0
  %82 = vmatpush1.msra.mxu0 %v40
  %83 = vmatprep.subr.mxu0 0.0
  %84 = vmatpush1.msra.mxu0 %v39
  %85 = vmatprep.subr.mxu0 0.0
  %86 = vmatpush1.msra.mxu0 %v38
  %87 = vmatprep.subr.mxu0 0.0
  %88 = vmatpush1.msra.mxu0 %v37
  %89 = vmatprep.subr.mxu0 0.0
  %90 = vmatpush1.msra.mxu0 %v36
  %91 = vmatprep.subr.mxu0 0.0
  %92 = vmatpush1.msra.mxu0 %v35
  %93 = vmatprep.subr.mxu0 0.0
  %94 = vmatpush1.msra.mxu0 %v34
  %95 = vmatprep.subr.mxu0 0.0
  %96 = vmatpush1.msra.mxu0 %v33
  %97 = vmatprep.subr.mxu0 0.0
  %98 = vmatpush1.msra.mxu0 %v32
  %99 = vmatprep.subr.mxu0 0.0
  %100 = vmatpush1.msra.mxu0 %v31
  %101 = vmatprep.subr.mxu0 0.0
  %102 = vmatpush1.msra.mxu0 %v30
  %103 = vmatprep.subr.mxu0 0.0
  %104 = vmatpush1.msra.mxu0 %v29
  %105 = vmatprep.subr.mxu0 0.0
  %106 = vmatpush1.msra.mxu0 %v28
  %107 = vmatprep.subr.mxu0 0.0
  %108 = vmatpush1.msra.mxu0 %v27
  %109 = vmatprep.subr.mxu0 0.0
  %110 = vmatpush1.msra.mxu0 %v26
  %111 = vmatprep.subr.mxu0 0.0
  %112 = vmatpush2.msra.mxu0 %v57
  %113 = vmatprep.subr.mxu0 0.0
  %114 = vmatpush2.msra.mxu0 %v56
  %115 = vmatprep.subr.mxu0 0.0
  %116 = vmatpush2.msra.mxu0 %v55
  %117 = vmatprep.subr.mxu0 0.0
  %118 = vmatpush2.msra.mxu0 %v54
  %119 = vmatprep.subr.mxu0 0.0
  %120 = vmatpush2.msra.mxu0 %v53
  %121 = vmatprep.subr.mxu0 0.0
  %122 = vmatpush2.msra.mxu0 %v52
  %123 = vmatprep.subr.mxu0 0.0
  %124 = vmatpush2.msra.mxu0 %v51
  %125 = vmatprep.subr.mxu0 0.0
  %126 = vmatpush2.msra.mxu0 %v50
  %127 = vmatprep.subr.mxu0 0.0
  %128 = vmatpush2.msra.mxu0 %v49
  %129 = vmatprep.subr.mxu0 0.0
  %130 = vmatpush2.msra.mxu0 %v48
  %131 = vmatprep.subr.mxu0 0.0
  %132 = vmatpush2.msra.mxu0 %v47
  %133 = vmatprep.subr.mxu0 0.0
  %134 = vmatpush2.msra.mxu0 %v46
  %135 = vmatprep.subr.mxu0 0.0
  %136 = vmatpush2.msra.mxu0 %v45
  %137 = vmatprep.subr.mxu0 0.0
  %138 = vmatpush2.msra.mxu0 %v44
  %139 = vmatprep.subr.mxu0 0.0
  %140 = vmatpush2.msra.mxu0 %v43
  %141 = vmatprep.subr.mxu0 0.0
  %142 = vmatpush2.msra.mxu0 %v42
  %143 = vmatprep.mubr.f32.mxu0 %v15
  %144 = vmatmul.mubr.f32.gmra.mxu0 %v14
  %v145 = vpop.f32.mrf.mxu0
  %v146 = vadd.f32 %v62, %v145
  %v147 = vpop.f32.mrf.mxu0
  %148 = vmatprep.mubr.f32.mxu0 %v18
  %149 = vmatmul.mubr.f32.gmra.mxu0 %v17
  %v150 = vpop.f32.mrf.mxu0
  %v151 = vadd.f32 %v63, %v150
  %v152 = vpop.f32.mrf.mxu0
  %153 = vmatprep.mubr.f32.mxu0 %v21
  %154 = vmatmul.mubr.f32.gmra.mxu0 %v20
  %v155 = vpop.f32.mrf.mxu0
  %v156 = vadd.f32 %v64, %v155
  %v157 = vpop.f32.mrf.mxu0
  %158 = vmatprep.mubr.f32.mxu0 %v24
  %159 = vmatmul.mubr.f32.gmra.mxu0 %v23
  %v160 = vpop.f32.mrf.mxu0
  %v161 = vadd.f32 %v65, %v160
  %v162 = vpop.f32.mrf.mxu0
  %163 = vdwg.mxu0
  %164 = vmatprep.subr.mxu0 0.0
  %165 = vmatpush1.msra.mxu0 0.0
  %166 = vmatprep.subr.mxu0 0.0
  %167 = vmatpush1.msra.mxu0 0.0
  %168 = vmatprep.subr.mxu0 0.0
  %169 = vmatpush1.msra.mxu0 0.0
  %170 = vmatprep.subr.mxu0 0.0
  %171 = vmatpush1.msra.mxu0 0.0
  %172 = vmatprep.subr.mxu0 0.0
  %173 = vmatpush1.msra.mxu0 0.0
  %174 = vmatprep.subr.mxu0 0.0
  %175 = vmatpush1.msra.mxu0 0.0
  %176 = vmatprep.subr.mxu0 0.0
  %177 = vmatpush1.msra.mxu0 0.0
  %178 = vmatprep.subr.mxu0 0.0
  %179 = vmatpush1.msra.mxu0 0.0
  %180 = vmatprep.subr.mxu0 0.0
  %181 = vmatpush1.msra.mxu0 0.0
  %182 = vmatprep.subr.mxu0 0.0
  %183 = vmatpush1.msra.mxu0 0.0
  %184 = vmatprep.subr.mxu0 0.0
  %185 = vmatpush1.msra.mxu0 0.0
  %186 = vmatprep.subr.mxu0 0.0
  %187 = vmatpush1.msra.mxu0 0.0
  %188 = vmatprep.subr.mxu0 0.0
  %189 = vmatpush1.msra.mxu0 %v61
  %190 = vmatprep.subr.mxu0 0.0
  %191 = vmatpush1.msra.mxu0 %v60
  %192 = vmatprep.subr.mxu0 0.0
  %193 = vmatpush1.msra.mxu0 %v59
  %194 = vmatprep.subr.mxu0 0.0
  %195 = vmatpush1.msra.mxu0 %v58
  %196 = vmatprep.subr.mxu0 0.0
  %197 = vmatpush2.msra.mxu0 0.0
  %198 = vmatprep.subr.mxu0 0.0
  %199 = vmatpush2.msra.mxu0 0.0
  %200 = vmatprep.subr.mxu0 0.0
  %201 = vmatpush2.msra.mxu0 0.0
  %202 = vmatprep.subr.mxu0 0.0
  %203 = vmatpush2.msra.mxu0 0.0
  %204 = vmatprep.subr.mxu0 0.0
  %205 = vmatpush2.msra.mxu0 0.0
  %206 = vmatprep.subr.mxu0 0.0
  %207 = vmatpush2.msra.mxu0 0.0
  %208 = vmatprep.subr.mxu0 0.0
  %209 = vmatpush2.msra.mxu0 0.0
  %210 = vmatprep.subr.mxu0 0.0
  %211 = vmatpush2.msra.mxu0 0.0
  %212 = vmatprep.subr.mxu0 0.0
  %213 = vmatpush2.msra.mxu0 0.0
  %214 = vmatprep.subr.mxu0 0.0
  %215 = vmatpush2.msra.mxu0 0.0
  %216 = vmatprep.subr.mxu0 0.0
  %217 = vmatpush2.msra.mxu0 0.0
  %218 = vmatprep.subr.mxu0 0.0
  %219 = vmatpush2.msra.mxu0 0.0
  %220 = vmatprep.subr.mxu0 0.0
  %221 = vmatpush2.msra.mxu0 0.0
  %222 = vmatprep.subr.mxu0 0.0
  %223 = vmatpush2.msra.mxu0 0.0
  %224 = vmatprep.subr.mxu0 0.0
  %225 = vmatpush2.msra.mxu0 0.0
  %226 = vmatprep.subr.mxu0 0.0
  %227 = vmatpush2.msra.mxu0 0.0
  %228 = vmatprep.mubr.f32.mxu0 0.0
  %229 = vmatmul.mubr.f32.gmra.mxu0 %v68
  %v230 = vpop.f32.mrf.mxu0
  %v231 = vadd.f32 %v146, %v230
  %v232 = vpop.f32.mrf.mxu0
  %233 = vmatprep.mubr.f32.mxu0 0.0
  %234 = vmatmul.mubr.f32.gmra.mxu0 %v71
  %v235 = vpop.f32.mrf.mxu0
  %v236 = vadd.f32 %v151, %v235
  %v237 = vpop.f32.mrf.mxu0
  %238 = vmatprep.mubr.f32.mxu0 0.0
  %239 = vmatmul.mubr.f32.gmra.mxu0 %v74
  %v240 = vpop.f32.mrf.mxu0
  %v241 = vadd.f32 %v156, %v240
  %v242 = vpop.f32.mrf.mxu0
  %243 = vmatprep.mubr.f32.mxu0 0.0
  %244 = vmatmul.mubr.f32.gmra.mxu0 %v77
  %v245 = vpop.f32.mrf.mxu0
  %v246 = vadd.f32 %v161, %v245
  %v247 = vpop.f32.mrf.mxu0
  %248 = vdwg.mxu0
  %249 = vst.msk [vmem:[%s3] sm:$0xff] %vm66, %v231
  %250 = vst.msk [vmem:[%s3 + $0x8] sm:$0xff] %vm66, %v236
  %251 = vst.msk [vmem:[%s3 + $0x10] sm:$0xff] %vm66, %v241
  %252 = vst.msk [vmem:[%s3 + $0x18] sm:$0xff] %vm66, %v246
  // Predicated region
  $region14: #{resnet_generator_forward.28} parent=0 // pred_check
    _
  $region15: #{resnet_generator_forward.28} parent=0 // pred_check_branch
    %254 = sbr.rel (0) target = $region17
  $region16: #{resnet_generator_forward.28} parent=0 // pred_region
    _
  $region17: #{resnet_generator_forward.28} parent=0 // pred_fallthru
    _
  // Predicated region
  $region18: #{resnet_generator_forward.28} parent=0 // pred_check
    _
  $region19: #{resnet_generator_forward.28} parent=0 // pred_check_branch
    %256 = sbr.rel (0) target = $region21
  $region20: #{resnet_generator_forward.28} parent=0 // pred_region
    _
  $region21: #{resnet_generator_forward.28} parent=0 // pred_fallthru
    _

// kernel: resnet_generator_forward.32
$region0: #{resnet_generator_forward.32}
  #allocation0 [shape = 'u32[]', space=smem, size = 0x4, offset = 0x4, fixed_abs, tag = 'smem constant byte address 0x4 - core index']
  #allocation1 [shape = 'u32[144,128]{1,0:T(1,128)}', space=vmem, size = 0x12000, scoped, tag = 'internal scratch']
  %s0 = inlined_call_operand.vmem [shape: f32[32,64], index: 0, kind: input, shape index: {}]
  %s1 = inlined_call_operand.vmem [shape: f32[64,16], index: 1, kind: input, shape index: {}]
  %s2 = inlined_call_operand.vmem [shape: f32[32,16], index: 2, kind: output, shape index: {0}]
  %s3 = inlined_call_operand.vmem [shape: f32[8,16], index: 3, kind: output, shape index: {1}]
  %4 = xla_tuple %s2, %s3
  %s5 = sld [smem:[#allocation0]]
  $region26: #{resnet_generator_forward.32} parent=0
    _
  %s7 = ssub.s32 1, %s5
  %s8 = scalar_select 0, %s7, %s5
  // Predicated region
  $region2: #{resnet_generator_forward.32} parent=0 // pred_check
    _
  $region3: #{resnet_generator_forward.32} parent=0 // pred_check_branch
    %10 = sbr.rel (0) target = $region5
  $region4: #{resnet_generator_forward.32} parent=0 // pred_region
    _
  $region5: #{resnet_generator_forward.32} parent=0 // pred_fallthru
    _
  // Predicated region
  $region6: #{resnet_generator_forward.32} parent=0 // pred_check
    _
  $region7: #{resnet_generator_forward.32} parent=0 // pred_check_branch
    %12 = sbr.rel (0) target = $region9
  $region8: #{resnet_generator_forward.32} parent=0 // pred_region
    _
  $region9: #{resnet_generator_forward.32} parent=0 // pred_fallthru
    _
  %v13 = vld [vmem:[%s0] sm:$0xff]
  %v14 = vld [vmem:[%s0 + $0x8] sm:$0xff]
  %v15 = vld [vmem:[%s0 + $0x10] sm:$0xff]
  %v16 = vld [vmem:[%s0 + $0x18] sm:$0xff]
  %v17 = vld [vmem:[%s1] sm:$0xff]
  %v18 = vld [vmem:[%s1 + $0x8] sm:$0xff]
  %v19 = vld [vmem:[%s1 + $0x10] sm:$0xff]
  %v20 = vld [vmem:[%s1 + $0x18] sm:$0xff]
  %v21 = vld [vmem:[%s1 + $0x20] sm:$0xff]
  %v22 = vld [vmem:[%s1 + $0x28] sm:$0xff]
  %v23 = vld [vmem:[%s1 + $0x30] sm:$0xff]
  %v24 = vld [vmem:[%s1 + $0x38] sm:$0xff]
  %vm25 = vcmask 523264
  %v27 = vsel %vm25, %v13, 0
  %v30 = vsel %vm25, %v14, 0
  %v33 = vsel %vm25, %v15, 0
  %v36 = vsel %vm25, %v16, 0
  %38 = vmatprep.subr.mxu0 0.0
  %39 = vmatpush1.msra.mxu0 0.0
  %40 = vmatprep.subr.mxu0 0.0
  %41 = vmatpush1.msra.mxu0 0.0
  %42 = vmatprep.subr.mxu0 0.0
  %43 = vmatpush1.msra.mxu0 0.0
  %44 = vmatprep.subr.mxu0 0.0
  %45 = vmatpush1.msra.mxu0 0.0
  %46 = vmatprep.subr.mxu0 0.0
  %47 = vmatpush1.msra.mxu0 0.0
  %48 = vmatprep.subr.mxu0 0.0
  %49 = vmatpush1.msra.mxu0 0.0
  %50 = vmatprep.subr.mxu0 0.0
  %51 = vmatpush1.msra.mxu0 0.0
  %52 = vmatprep.subr.mxu0 0.0
  %53 = vmatpush1.msra.mxu0 0.0
  %54 = vmatprep.subr.mxu0 0.0
  %55 = vmatpush1.msra.mxu0 %v24
  %56 = vmatprep.subr.mxu0 0.0
  %57 = vmatpush1.msra.mxu0 %v23
  %58 = vmatprep.subr.mxu0 0.0
  %59 = vmatpush1.msra.mxu0 %v22
  %60 = vmatprep.subr.mxu0 0.0
  %61 = vmatpush1.msra.mxu0 %v21
  %62 = vmatprep.subr.mxu0 0.0
  %63 = vmatpush1.msra.mxu0 %v20
  %64 = vmatprep.subr.mxu0 0.0
  %65 = vmatpush1.msra.mxu0 %v19
  %66 = vmatprep.subr.mxu0 0.0
  %67 = vmatpush1.msra.mxu0 %v18
  %68 = vmatprep.subr.mxu0 0.0
  %69 = vmatpush1.msra.mxu0 %v17
  %70 = vmatprep.subr.mxu0 0.0
  %71 = vmatpush2.msra.mxu0 0.0
  %72 = vmatprep.subr.mxu0 0.0
  %73 = vmatpush2.msra.mxu0 0.0
  %74 = vmatprep.subr.mxu0 0.0
  %75 = vmatpush2.msra.mxu0 0.0
  %76 = vmatprep.subr.mxu0 0.0
  %77 = vmatpush2.msra.mxu0 0.0
  %78 = vmatprep.subr.mxu0 0.0
  %79 = vmatpush2.msra.mxu0 0.0
  %80 = vmatprep.subr.mxu0 0.0
  %81 = vmatpush2.msra.mxu0 0.0
  %82 = vmatprep.subr.mxu0 0.0
  %83 = vmatpush2.msra.mxu0 0.0
  %84 = vmatprep.subr.mxu0 0.0
  %85 = vmatpush2.msra.mxu0 0.0
  %86 = vmatprep.subr.mxu0 0.0
  %87 = vmatpush2.msra.mxu0 0.0
  %88 = vmatprep.subr.mxu0 0.0
  %89 = vmatpush2.msra.mxu0 0.0
  %90 = vmatprep.subr.mxu0 0.0
  %91 = vmatpush2.msra.mxu0 0.0
  %92 = vmatprep.subr.mxu0 0.0
  %93 = vmatpush2.msra.mxu0 0.0
  %94 = vmatprep.subr.mxu0 0.0
  %95 = vmatpush2.msra.mxu0 0.0
  %96 = vmatprep.subr.mxu0 0.0
  %97 = vmatpush2.msra.mxu0 0.0
  %98 = vmatprep.subr.mxu0 0.0
  %99 = vmatpush2.msra.mxu0 0.0
  %100 = vmatprep.subr.mxu0 0.0
  %101 = vmatpush2.msra.mxu0 0.0
  %102 = vmatprep.mubr.f32.mxu0 0.0
  %103 = vmatmul.mubr.f32.gmra.mxu0 %v27
  %v104 = vpop.f32.mrf.mxu0
  %v105 = vadd.f32 0.0, %v104
  %v106 = vpop.f32.mrf.mxu0
  %107 = vmatprep.mubr.f32.mxu0 0.0
  %108 = vmatmul.mubr.f32.gmra.mxu0 %v30
  %v109 = vpop.f32.mrf.mxu0
  %v110 = vadd.f32 0.0, %v109
  %v111 = vpop.f32.mrf.mxu0
  %112 = vmatprep.mubr.f32.mxu0 0.0
  %113 = vmatmul.mubr.f32.gmra.mxu0 %v33
  %v114 = vpop.f32.mrf.mxu0
  %v115 = vadd.f32 0.0, %v114
  %v116 = vpop.f32.mrf.mxu0
  %117 = vmatprep.mubr.f32.mxu0 0.0
  %118 = vmatmul.mubr.f32.gmra.mxu0 %v36
  %v119 = vpop.f32.mrf.mxu0
  %v120 = vadd.f32 0.0, %v119
  %v121 = vpop.f32.mrf.mxu0
  %122 = vdwg.mxu0
  %vm123 = vcmask 130048
  %v124 = vsel %vm123, %v105, 0.0
  %v125 = vsel %vm123, %v110, 0.0
  %v126 = vadd.f32 %v124, %v125
  %v127 = vsel %vm123, %v115, 0.0
  %v128 = vadd.f32 %v126, %v127
  %v129 = vsel %vm123, %v120, 0.0
  %v130 = vadd.f32 %v128, %v129
  %v131 = vrot.slane %v130, 4
  %v132 = vadd.f32 %v130, %v131
  %v133 = vrot.slane %v132, 2
  %v134 = vadd.f32 %v132, %v133
  %v135 = vrot.slane %v134, 1
  %v136 = vadd.f32 %v134, %v135
  %v137 = vmul.f32 %v105, %v105
  %v138 = vmul.f32 %v110, %v110
  %v139 = vmul.f32 %v115, %v115
  %v140 = vmul.f32 %v120, %v120
  %v141 = vsel %vm123, %v137, 0.0
  %v142 = vsel %vm123, %v138, 0.0
  %v143 = vadd.f32 %v141, %v142
  %v144 = vsel %vm123, %v139, 0.0
  %v145 = vadd.f32 %v143, %v144
  %v146 = vsel %vm123, %v140, 0.0
  %v147 = vadd.f32 %v145, %v146
  %v148 = vrot.slane %v147, 4
  %v149 = vadd.f32 %v147, %v148
  %v150 = vrot.slane %v149, 2
  %v151 = vadd.f32 %v149, %v150
  %v152 = vrot.slane %v151, 1
  %v153 = vadd.f32 %v151, %v152
  %v154 = vlaneseq
  %v155 = vshrl.u32 %v154, 7
  %vm156 = vcmp.eq.s32.totalorder %v155, 0
  %vm157 = vcmp.eq.s32.totalorder %v155, 1
  %v158 = vsel %vm157, %v153, 0.0
  %v159 = vsel %vm156, %v136, %v158
  %160 = vst.msk [vmem:[%s3] sm:$0xff] %vm123, %v159
  %161 = vst.msk [vmem:[%s2] sm:$0xff] %vm123, %v105
  %162 = vst.msk [vmem:[%s2 + $0x8] sm:$0xff] %vm123, %v110
  %163 = vst.msk [vmem:[%s2 + $0x10] sm:$0xff] %vm123, %v115
  %164 = vst.msk [vmem:[%s2 + $0x18] sm:$0xff] %vm123, %v120
  // Predicated region
  $region10: #{resnet_generator_forward.32} parent=0 // pred_check
    _
  $region11: #{resnet_generator_forward.32} parent=0 // pred_check_branch
    %166 = sbr.rel (0) target = $region13
  $region12: #{resnet_generator_forward.32} parent=0 // pred_region
    _
  $region13: #{resnet_generator_forward.32} parent=0 // pred_fallthru
    _
  // Predicated region
  $region14: #{resnet_generator_forward.32} parent=0 // pred_check
    _
  $region15: #{resnet_generator_forward.32} parent=0 // pred_check_branch
    %168 = sbr.rel (0) target = $region17
  $region16: #{resnet_generator_forward.32} parent=0 // pred_region
    _
  $region17: #{resnet_generator_forward.32} parent=0 // pred_fallthru
    _
  // Predicated region
  $region18: #{resnet_generator_forward.32} parent=0 // pred_check
    _
  $region19: #{resnet_generator_forward.32} parent=0 // pred_check_branch
    %170 = sbr.rel (0) target = $region21
  $region20: #{resnet_generator_forward.32} parent=0 // pred_region
    _
  $region21: #{resnet_generator_forward.32} parent=0 // pred_fallthru
    _
  // Predicated region
  $region22: #{resnet_generator_forward.32} parent=0 // pred_check
    _
  $region23: #{resnet_generator_forward.32} parent=0 // pred_check_branch
    %172 = sbr.rel (0) target = $region25
  $region24: #{resnet_generator_forward.32} parent=0 // pred_region
    _
  $region25: #{resnet_generator_forward.32} parent=0 // pred_fallthru
    _

// kernel: resnet_generator_forward.31
$region0: #{resnet_generator_forward.31}
  #allocation0 [shape = 'u32[]', space=smem, size = 0x4, offset = 0x4, fixed_abs, tag = 'smem constant byte address 0x4 - core index']
  #allocation1 [shape = 'u32[144,128]{1,0:T(1,128)}', space=vmem, size = 0x12000, scoped, tag = 'internal scratch']
  %s0 = inlined_call_operand.vmem [shape: f32[32,32], index: 0, kind: input, shape index: {}]
  %s1 = inlined_call_operand.vmem [shape: f32[32,16], index: 1, kind: input, shape index: {}]
  %s2 = inlined_call_operand.vmem [shape: f32[32,16], index: 2, kind: output, shape index: {0}]
  %s3 = inlined_call_operand.vmem [shape: f32[8,16], index: 3, kind: output, shape index: {1}]
  %4 = xla_tuple %s2, %s3
  %s5 = sld [smem:[#allocation0]]
  $region26: #{resnet_generator_forward.31} parent=0
    _
  %s7 = ssub.s32 1, %s5
  %s8 = scalar_select 0, %s7, %s5
  // Predicated region
  $region2: #{resnet_generator_forward.31} parent=0 // pred_check
    _
  $region3: #{resnet_generator_forward.31} parent=0 // pred_check_branch
    %10 = sbr.rel (0) target = $region5
  $region4: #{resnet_generator_forward.31} parent=0 // pred_region
    _
  $region5: #{resnet_generator_forward.31} parent=0 // pred_fallthru
    _
  // Predicated region
  $region6: #{resnet_generator_forward.31} parent=0 // pred_check
    _
  $region7: #{resnet_generator_forward.31} parent=0 // pred_check_branch
    %12 = sbr.rel (0) target = $region9
  $region8: #{resnet_generator_forward.31} parent=0 // pred_region
    _
  $region9: #{resnet_generator_forward.31} parent=0 // pred_fallthru
    _
  %v13 = vld [vmem:[%s0] sm:$0xff]
  %v14 = vld [vmem:[%s0 + $0x8] sm:$0xff]
  %v15 = vld [vmem:[%s0 + $0x10] sm:$0xff]
  %v16 = vld [vmem:[%s0 + $0x18] sm:$0xff]
  %v17 = vld [vmem:[%s1] sm:$0xff]
  %v18 = vld [vmem:[%s1 + $0x8] sm:$0xff]
  %v19 = vld [vmem:[%s1 + $0x10] sm:$0xff]
  %v20 = vld [vmem:[%s1 + $0x18] sm:$0xff]
  %vm21 = vcmask 261120
  %v23 = vsel %vm21, %v13, 0
  %v26 = vsel %vm21, %v14, 0
  %v29 = vsel %vm21, %v15, 0
  %v32 = vsel %vm21, %v16, 0
  %34 = vmatprep.subr.mxu0 0.0
  %35 = vmatpush1.msra.mxu0 0.0
  %36 = vmatprep.subr.mxu0 0.0
  %37 = vmatpush1.msra.mxu0 0.0
  %38 = vmatprep.subr.mxu0 0.0
  %39 = vmatpush1.msra.mxu0 0.0
  %40 = vmatprep.subr.mxu0 0.0
  %41 = vmatpush1.msra.mxu0 0.0
  %42 = vmatprep.subr.mxu0 0.0
  %43 = vmatpush1.msra.mxu0 0.0
  %44 = vmatprep.subr.mxu0 0.0
  %45 = vmatpush1.msra.mxu0 0.0
  %46 = vmatprep.subr.mxu0 0.0
  %47 = vmatpush1.msra.mxu0 0.0
  %48 = vmatprep.subr.mxu0 0.0
  %49 = vmatpush1.msra.mxu0 0.0
  %50 = vmatprep.subr.mxu0 0.0
  %51 = vmatpush1.msra.mxu0 0.0
  %52 = vmatprep.subr.mxu0 0.0
  %53 = vmatpush1.msra.mxu0 0.0
  %54 = vmatprep.subr.mxu0 0.0
  %55 = vmatpush1.msra.mxu0 0.0
  %56 = vmatprep.subr.mxu0 0.0
  %57 = vmatpush1.msra.mxu0 0.0
  %58 = vmatprep.subr.mxu0 0.0
  %59 = vmatpush1.msra.mxu0 %v20
  %60 = vmatprep.subr.mxu0 0.0
  %61 = vmatpush1.msra.mxu0 %v19
  %62 = vmatprep.subr.mxu0 0.0
  %63 = vmatpush1.msra.mxu0 %v18
  %64 = vmatprep.subr.mxu0 0.0
  %65 = vmatpush1.msra.mxu0 %v17
  %66 = vmatprep.subr.mxu0 0.0
  %67 = vmatpush2.msra.mxu0 0.0
  %68 = vmatprep.subr.mxu0 0.0
  %69 = vmatpush2.msra.mxu0 0.0
  %70 = vmatprep.subr.mxu0 0.0
  %71 = vmatpush2.msra.mxu0 0.0
  %72 = vmatprep.subr.mxu0 0.0
  %73 = vmatpush2.msra.mxu0 0.0
  %74 = vmatprep.subr.mxu0 0.0
  %75 = vmatpush2.msra.mxu0 0.0
  %76 = vmatprep.subr.mxu0 0.0
  %77 = vmatpush2.msra.mxu0 0.0
  %78 = vmatprep.subr.mxu0 0.0
  %79 = vmatpush2.msra.mxu0 0.0
  %80 = vmatprep.subr.mxu0 0.0
  %81 = vmatpush2.msra.mxu0 0.0
  %82 = vmatprep.subr.mxu0 0.0
  %83 = vmatpush2.msra.mxu0 0.0
  %84 = vmatprep.subr.mxu0 0.0
  %85 = vmatpush2.msra.mxu0 0.0
  %86 = vmatprep.subr.mxu0 0.0
  %87 = vmatpush2.msra.mxu0 0.0
  %88 = vmatprep.subr.mxu0 0.0
  %89 = vmatpush2.msra.mxu0 0.0
  %90 = vmatprep.subr.mxu0 0.0
  %91 = vmatpush2.msra.mxu0 0.0
  %92 = vmatprep.subr.mxu0 0.0
  %93 = vmatpush2.msra.mxu0 0.0
  %94 = vmatprep.subr.mxu0 0.0
  %95 = vmatpush2.msra.mxu0 0.0
  %96 = vmatprep.subr.mxu0 0.0
  %97 = vmatpush2.msra.mxu0 0.0
  %98 = vmatprep.mubr.f32.mxu0 0.0
  %99 = vmatmul.mubr.f32.gmra.mxu0 %v23
  %v100 = vpop.f32.mrf.mxu0
  %v101 = vadd.f32 0.0, %v100
  %v102 = vpop.f32.mrf.mxu0
  %103 = vmatprep.mubr.f32.mxu0 0.0
  %104 = vmatmul.mubr.f32.gmra.mxu0 %v26
  %v105 = vpop.f32.mrf.mxu0
  %v106 = vadd.f32 0.0, %v105
  %v107 = vpop.f32.mrf.mxu0
  %108 = vmatprep.mubr.f32.mxu0 0.0
  %109 = vmatmul.mubr.f32.gmra.mxu0 %v29
  %v110 = vpop.f32.mrf.mxu0
  %v111 = vadd.f32 0.0, %v110
  %v112 = vpop.f32.mrf.mxu0
  %113 = vmatprep.mubr.f32.mxu0 0.0
  %114 = vmatmul.mubr.f32.gmra.mxu0 %v32
  %v115 = vpop.f32.mrf.mxu0
  %v116 = vadd.f32 0.0, %v115
  %v117 = vpop.f32.mrf.mxu0
  %118 = vdwg.mxu0
  %vm119 = vcmask 130048
  %v120 = vsel %vm119, %v101, 0.0
  %v121 = vsel %vm119, %v106, 0.0
  %v122 = vadd.f32 %v120, %v121
  %v123 = vsel %vm119, %v111, 0.0
  %v124 = vadd.f32 %v122, %v123
  %v125 = vsel %vm119, %v116, 0.0
  %v126 = vadd.f32 %v124, %v125
  %v127 = vrot.slane %v126, 4
  %v128 = vadd.f32 %v126, %v127
  %v129 = vrot.slane %v128, 2
  %v130 = vadd.f32 %v128, %v129
  %v131 = vrot.slane %v130, 1
  %v132 = vadd.f32 %v130, %v131
  %v133 = vmul.f32 %v101, %v101
  %v134 = vmul.f32 %v106, %v106
  %v135 = vmul.f32 %v111, %v111
  %v136 = vmul.f32 %v116, %v116
  %v137 = vsel %vm119, %v133, 0.0
  %v138 = vsel %vm119, %v134, 0.0
  %v139 = vadd.f32 %v137, %v138
  %v140 = vsel %vm119, %v135, 0.0
  %v141 = vadd.f32 %v139, %v140
  %v142 = vsel %vm119, %v136, 0.0
  %v143 = vadd.f32 %v141, %v142
  %v144 = vrot.slane %v143, 4
  %v145 = vadd.f32 %v143, %v144
  %v146 = vrot.slane %v145, 2
  %v147 = vadd.f32 %v145, %v146
  %v148 = vrot.slane %v147, 1
  %v149 = vadd.f32 %v147, %v148
  %v150 = vlaneseq
  %v151 = vshrl.u32 %v150, 7
  %vm152 = vcmp.eq.s32.totalorder %v151, 0
  %vm153 = vcmp.eq.s32.totalorder %v151, 1
  %v154 = vsel %vm153, %v149, 0.0
  %v155 = vsel %vm152, %v132, %v154
  %156 = vst.msk [vmem:[%s3] sm:$0xff] %vm119, %v155
  %157 = vst.msk [vmem:[%s2] sm:$0xff] %vm119, %v101
  %158 = vst.msk [vmem:[%s2 + $0x8] sm:$0xff] %vm119, %v106
  %159 = vst.msk [vmem:[%s2 + $0x10] sm:$0xff] %vm119, %v111
  %160 = vst.msk [vmem:[%s2 + $0x18] sm:$0xff] %vm119, %v116
  // Predicated region
  $region10: #{resnet_generator_forward.31} parent=0 // pred_check
    _
  $region11: #{resnet_generator_forward.31} parent=0 // pred_check_branch
    %162 = sbr.rel (0) target = $region13
  $region12: #{resnet_generator_forward.31} parent=0 // pred_region
    _
  $region13: #{resnet_generator_forward.31} parent=0 // pred_fallthru
    _
  // Predicated region
  $region14: #{resnet_generator_forward.31} parent=0 // pred_check
    _
  $region15: #{resnet_generator_forward.31} parent=0 // pred_check_branch
    %164 = sbr.rel (0) target = $region17
  $region16: #{resnet_generator_forward.31} parent=0 // pred_region
    _
  $region17: #{resnet_generator_forward.31} parent=0 // pred_fallthru
    _
  // Predicated region
  $region18: #{resnet_generator_forward.31} parent=0 // pred_check
    _
  $region19: #{resnet_generator_forward.31} parent=0 // pred_check_branch
    %166 = sbr.rel (0) target = $region21
  $region20: #{resnet_generator_forward.31} parent=0 // pred_region
    _
  $region21: #{resnet_generator_forward.31} parent=0 // pred_fallthru
    _
  // Predicated region
  $region22: #{resnet_generator_forward.31} parent=0 // pred_check
    _
  $region23: #{resnet_generator_forward.31} parent=0 // pred_check_branch
    %168 = sbr.rel (0) target = $region25
  $region24: #{resnet_generator_forward.31} parent=0 // pred_region
    _
  $region25: #{resnet_generator_forward.31} parent=0 // pred_fallthru
    _

// kernel: resnet_generator_forward.39
$region0: #{resnet_generator_forward.39}
  #allocation0 [shape = 'u32[]', space=smem, size = 0x4, offset = 0x4, fixed_abs, tag = 'smem constant byte address 0x4 - core index']
  #allocation1 [shape = 'u32[144,128]{1,0:T(1,128)}', space=vmem, size = 0x12000, scoped, tag = 'internal scratch']
  %s0 = inlined_call_operand.vmem [shape: f32[128,64], index: 0, kind: input, shape index: {}]
  %s1 = inlined_call_operand.vmem [shape: f32[64,8], index: 1, kind: input, shape index: {}]
  %s2 = inlined_call_operand.vmem [shape: f32[128,8], index: 2, kind: output, shape index: {0}]
  %s3 = inlined_call_operand.vmem [shape: f32[8,8], index: 3, kind: output, shape index: {1}]
  %4 = xla_tuple %s2, %s3
  %s5 = sld [smem:[#allocation0]]
  $region26: #{resnet_generator_forward.39} parent=0
    _
  %s7 = ssub.s32 1, %s5
  %s8 = scalar_select 0, %s7, %s5
  // Predicated region
  $region2: #{resnet_generator_forward.39} parent=0 // pred_check
    _
  $region3: #{resnet_generator_forward.39} parent=0 // pred_check_branch
    %10 = sbr.rel (0) target = $region5
  $region4: #{resnet_generator_forward.39} parent=0 // pred_region
    _
  $region5: #{resnet_generator_forward.39} parent=0 // pred_fallthru
    _
  // Predicated region
  $region6: #{resnet_generator_forward.39} parent=0 // pred_check
    _
  $region7: #{resnet_generator_forward.39} parent=0 // pred_check_branch
    %12 = sbr.rel (0) target = $region9
  $region8: #{resnet_generator_forward.39} parent=0 // pred_region
    _
  $region9: #{resnet_generator_forward.39} parent=0 // pred_fallthru
    _
  %v13 = vld [vmem:[%s0] sm:$0xff]
  %v14 = vld [vmem:[%s0 + $0x8] sm:$0xff]
  %v15 = vld [vmem:[%s0 + $0x10] sm:$0xff]
  %v16 = vld [vmem:[%s0 + $0x18] sm:$0xff]
  %v17 = vld [vmem:[%s0 + $0x20] sm:$0xff]
  %v18 = vld [vmem:[%s0 + $0x28] sm:$0xff]
  %v19 = vld [vmem:[%s0 + $0x30] sm:$0xff]
  %v20 = vld [vmem:[%s0 + $0x38] sm:$0xff]
  %v21 = vld [vmem:[%s0 + $0x40] sm:$0xff]
  %v22 = vld [vmem:[%s0 + $0x48] sm:$0xff]
  %v23 = vld [vmem:[%s0 + $0x50] sm:$0xff]
  %v24 = vld [vmem:[%s0 + $0x58] sm:$0xff]
  %v25 = vld [vmem:[%s0 + $0x60] sm:$0xff]
  %v26 = vld [vmem:[%s0 + $0x68] sm:$0xff]
  %v27 = vld [vmem:[%s0 + $0x70] sm:$0xff]
  %v28 = vld [vmem:[%s0 + $0x78] sm:$0xff]
  %v29 = vld [vmem:[%s1] sm:$0xff]
  %v30 = vld [vmem:[%s1 + $0x8] sm:$0xff]
  %v31 = vld [vmem:[%s1 + $0x10] sm:$0xff]
  %v32 = vld [vmem:[%s1 + $0x18] sm:$0xff]
  %v33 = vld [vmem:[%s1 + $0x20] sm:$0xff]
  %v34 = vld [vmem:[%s1 + $0x28] sm:$0xff]
  %v35 = vld [vmem:[%s1 + $0x30] sm:$0xff]
  %v36 = vld [vmem:[%s1 + $0x38] sm:$0xff]
  %vm37 = vcmask 523264
  %v39 = vsel %vm37, %v13, 0
  %v42 = vsel %vm37, %v14, 0
  %v45 = vsel %vm37, %v15, 0
  %v48 = vsel %vm37, %v16, 0
  %v51 = vsel %vm37, %v17, 0
  %v54 = vsel %vm37, %v18, 0
  %v57 = vsel %vm37, %v19, 0
  %v60 = vsel %vm37, %v20, 0
  %v63 = vsel %vm37, %v21, 0
  %v66 = vsel %vm37, %v22, 0
  %v69 = vsel %vm37, %v23, 0
  %v72 = vsel %vm37, %v24, 0
  %v75 = vsel %vm37, %v25, 0
  %v78 = vsel %vm37, %v26, 0
  %v81 = vsel %vm37, %v27, 0
  %v84 = vsel %vm37, %v28, 0
  %86 = vmatprep.subr.mxu0 0.0
  %87 = vmatpush1.msra.mxu0 0.0
  %88 = vmatprep.subr.mxu0 0.0
  %89 = vmatpush1.msra.mxu0 0.0
  %90 = vmatprep.subr.mxu0 0.0
  %91 = vmatpush1.msra.mxu0 0.0
  %92 = vmatprep.subr.mxu0 0.0
  %93 = vmatpush1.msra.mxu0 0.0
  %94 = vmatprep.subr.mxu0 0.0
  %95 = vmatpush1.msra.mxu0 0.0
  %96 = vmatprep.subr.mxu0 0.0
  %97 = vmatpush1.msra.mxu0 0.0
  %98 = vmatprep.subr.mxu0 0.0
  %99 = vmatpush1.msra.mxu0 0.0
  %100 = vmatprep.subr.mxu0 0.0
  %101 = vmatpush1.msra.mxu0 0.0
  %102 = vmatprep.subr.mxu0 0.0
  %103 = vmatpush1.msra.mxu0 %v36
  %104 = vmatprep.subr.mxu0 0.0
  %105 = vmatpush1.msra.mxu0 %v35
  %106 = vmatprep.subr.mxu0 0.0
  %107 = vmatpush1.msra.mxu0 %v34
  %108 = vmatprep.subr.mxu0 0.0
  %109 = vmatpush1.msra.mxu0 %v33
  %110 = vmatprep.subr.mxu0 0.0
  %111 = vmatpush1.msra.mxu0 %v32
  %112 = vmatprep.subr.mxu0 0.0
  %113 = vmatpush1.msra.mxu0 %v31
  %114 = vmatprep.subr.mxu0 0.0
  %115 = vmatpush1.msra.mxu0 %v30
  %116 = vmatprep.subr.mxu0 0.0
  %117 = vmatpush1.msra.mxu0 %v29
  %118 = vmatprep.subr.mxu0 0.0
  %119 = vmatpush2.msra.mxu0 0.0
  %120 = vmatprep.subr.mxu0 0.0
  %121 = vmatpush2.msra.mxu0 0.0
  %122 = vmatprep.subr.mxu0 0.0
  %123 = vmatpush2.msra.mxu0 0.0
  %124 = vmatprep.subr.mxu0 0.0
  %125 = vmatpush2.msra.mxu0 0.0
  %126 = vmatprep.subr.mxu0 0.0
  %127 = vmatpush2.msra.mxu0 0.0
  %128 = vmatprep.subr.mxu0 0.0
  %129 = vmatpush2.msra.mxu0 0.0
  %130 = vmatprep.subr.mxu0 0.0
  %131 = vmatpush2.msra.mxu0 0.0
  %132 = vmatprep.subr.mxu0 0.0
  %133 = vmatpush2.msra.mxu0 0.0
  %134 = vmatprep.subr.mxu0 0.0
  %135 = vmatpush2.msra.mxu0 0.0
  %136 = vmatprep.subr.mxu0 0.0
  %137 = vmatpush2.msra.mxu0 0.0
  %138 = vmatprep.subr.mxu0 0.0
  %139 = vmatpush2.msra.mxu0 0.0
  %140 = vmatprep.subr.mxu0 0.0
  %141 = vmatpush2.msra.mxu0 0.0
  %142 = vmatprep.subr.mxu0 0.0
  %143 = vmatpush2.msra.mxu0 0.0
  %144 = vmatprep.subr.mxu0 0.0
  %145 = vmatpush2.msra.mxu0 0.0
  %146 = vmatprep.subr.mxu0 0.0
  %147 = vmatpush2.msra.mxu0 0.0
  %148 = vmatprep.subr.mxu0 0.0
  %149 = vmatpush2.msra.mxu0 0.0
  %150 = vmatprep.mubr.f32.mxu0 0.0
  %151 = vmatmul.mubr.f32.gmra.mxu0 %v39
  %v152 = vpop.f32.mrf.mxu0
  %v153 = vadd.f32 0.0, %v152
  %v154 = vpop.f32.mrf.mxu0
  %155 = vmatprep.mubr.f32.mxu0 0.0
  %156 = vmatmul.mubr.f32.gmra.mxu0 %v42
  %v157 = vpop.f32.mrf.mxu0
  %v158 = vadd.f32 0.0, %v157
  %v159 = vpop.f32.mrf.mxu0
  %160 = vmatprep.mubr.f32.mxu0 0.0
  %161 = vmatmul.mubr.f32.gmra.mxu0 %v45
  %v162 = vpop.f32.mrf.mxu0
  %v163 = vadd.f32 0.0, %v162
  %v164 = vpop.f32.mrf.mxu0
  %165 = vmatprep.mubr.f32.mxu0 0.0
  %166 = vmatmul.mubr.f32.gmra.mxu0 %v48
  %v167 = vpop.f32.mrf.mxu0
  %v168 = vadd.f32 0.0, %v167
  %v169 = vpop.f32.mrf.mxu0
  %170 = vmatprep.mubr.f32.mxu0 0.0
  %171 = vmatmul.mubr.f32.gmra.mxu0 %v51
  %v172 = vpop.f32.mrf.mxu0
  %v173 = vadd.f32 0.0, %v172
  %v174 = vpop.f32.mrf.mxu0
  %175 = vmatprep.mubr.f32.mxu0 0.0
  %176 = vmatmul.mubr.f32.gmra.mxu0 %v54
  %v177 = vpop.f32.mrf.mxu0
  %v178 = vadd.f32 0.0, %v177
  %v179 = vpop.f32.mrf.mxu0
  %180 = vmatprep.mubr.f32.mxu0 0.0
  %181 = vmatmul.mubr.f32.gmra.mxu0 %v57
  %v182 = vpop.f32.mrf.mxu0
  %v183 = vadd.f32 0.0, %v182
  %v184 = vpop.f32.mrf.mxu0
  %185 = vmatprep.mubr.f32.mxu0 0.0
  %186 = vmatmul.mubr.f32.gmra.mxu0 %v60
  %v187 = vpop.f32.mrf.mxu0
  %v188 = vadd.f32 0.0, %v187
  %v189 = vpop.f32.mrf.mxu0
  %190 = vmatprep.mubr.f32.mxu0 0.0
  %191 = vmatmul.mubr.f32.gmra.mxu0 %v63
  %v192 = vpop.f32.mrf.mxu0
  %v193 = vadd.f32 0.0, %v192
  %v194 = vpop.f32.mrf.mxu0
  %195 = vmatprep.mubr.f32.mxu0 0.0
  %196 = vmatmul.mubr.f32.gmra.mxu0 %v66
  %v197 = vpop.f32.mrf.mxu0
  %v198 = vadd.f32 0.0, %v197
  %v199 = vpop.f32.mrf.mxu0
  %200 = vmatprep.mubr.f32.mxu0 0.0
  %201 = vmatmul.mubr.f32.gmra.mxu0 %v69
  %v202 = vpop.f32.mrf.mxu0
  %v203 = vadd.f32 0.0, %v202
  %v204 = vpop.f32.mrf.mxu0
  %205 = vmatprep.mubr.f32.mxu0 0.0
  %206 = vmatmul.mubr.f32.gmra.mxu0 %v72
  %v207 = vpop.f32.mrf.mxu0
  %v208 = vadd.f32 0.0, %v207
  %v209 = vpop.f32.mrf.mxu0
  %210 = vmatprep.mubr.f32.mxu0 0.0
  %211 = vmatmul.mubr.f32.gmra.mxu0 %v75
  %v212 = vpop.f32.mrf.mxu0
  %v213 = vadd.f32 0.0, %v212
  %v214 = vpop.f32.mrf.mxu0
  %215 = vmatprep.mubr.f32.mxu0 0.0
  %216 = vmatmul.mubr.f32.gmra.mxu0 %v78
  %v217 = vpop.f32.mrf.mxu0
  %v218 = vadd.f32 0.0, %v217
  %v219 = vpop.f32.mrf.mxu0
  %220 = vmatprep.mubr.f32.mxu0 0.0
  %221 = vmatmul.mubr.f32.gmra.mxu0 %v81
  %v222 = vpop.f32.mrf.mxu0
  %v223 = vadd.f32 0.0, %v222
  %v224 = vpop.f32.mrf.mxu0
  %225 = vmatprep.mubr.f32.mxu0 0.0
  %226 = vmatmul.mubr.f32.gmra.mxu0 %v84
  %v227 = vpop.f32.mrf.mxu0
  %v228 = vadd.f32 0.0, %v227
  %v229 = vpop.f32.mrf.mxu0
  %230 = vdwg.mxu0
  %vm231 = vcmask 64512
  %v232 = vsel %vm231, %v153, 0.0
  %v233 = vsel %vm231, %v158, 0.0
  %v234 = vadd.f32 %v232, %v233
  %v235 = vsel %vm231, %v163, 0.0
  %v236 = vadd.f32 %v234, %v235
  %v237 = vsel %vm231, %v168, 0.0
  %v238 = vadd.f32 %v236, %v237
  %v239 = vsel %vm231, %v173, 0.0
  %v240 = vadd.f32 %v238, %v239
  %v241 = vsel %vm231, %v178, 0.0
  %v242 = vadd.f32 %v240, %v241
  %v243 = vsel %vm231, %v183, 0.0
  %v244 = vadd.f32 %v242, %v243
  %v245 = vsel %vm231, %v188, 0.0
  %v246 = vadd.f32 %v244, %v245
  %v247 = vsel %vm231, %v193, 0.0
  %v248 = vadd.f32 %v246, %v247
  %v249 = vsel %vm231, %v198, 0.0
  %v250 = vadd.f32 %v248, %v249
  %v251 = vsel %vm231, %v203, 0.0
  %v252 = vadd.f32 %v250, %v251
  %v253 = vsel %vm231, %v208, 0.0
  %v254 = vadd.f32 %v252, %v253
  %v255 = vsel %vm231, %v213, 0.0
  %v256 = vadd.f32 %v254, %v255
  %v257 = vsel %vm231, %v218, 0.0
  %v258 = vadd.f32 %v256, %v257
  %v259 = vsel %vm231, %v223, 0.0
  %v260 = vadd.f32 %v258, %v259
  %v261 = vsel %vm231, %v228, 0.0
  %v262 = vadd.f32 %v260, %v261
  %v263 = vrot.slane %v262, 4
  %v264 = vadd.f32 %v262, %v263
  %v265 = vrot.slane %v264, 2
  %v266 = vadd.f32 %v264, %v265
  %v267 = vrot.slane %v266, 1
  %v268 = vadd.f32 %v266, %v267
  %v269 = vmul.f32 %v153, %v153
  %v270 = vmul.f32 %v158, %v158
  %v271 = vmul.f32 %v163, %v163
  %v272 = vmul.f32 %v168, %v168
  %v273 = vmul.f32 %v173, %v173
  %v274 = vmul.f32 %v178, %v178
  %v275 = vmul.f32 %v183, %v183
  %v276 = vmul.f32 %v188, %v188
  %v277 = vmul.f32 %v193, %v193
  %v278 = vmul.f32 %v198, %v198
  %v279 = vmul.f32 %v203, %v203
  %v280 = vmul.f32 %v208, %v208
  %v281 = vmul.f32 %v213, %v213
  %v282 = vmul.f32 %v218, %v218
  %v283 = vmul.f32 %v223, %v223
  %v284 = vmul.f32 %v228, %v228
  %v285 = vsel %vm231, %v269, 0.0
  %v286 = vsel %vm231, %v270, 0.0
  %v287 = vadd.f32 %v285, %v286
  %v288 = vsel %vm231, %v271, 0.0
  %v289 = vadd.f32 %v287, %v288
  %v290 = vsel %vm231, %v272, 0.0
  %v291 = vadd.f32 %v289, %v290
  %v292 = vsel %vm231, %v273, 0.0
  %v293 = vadd.f32 %v291, %v292
  %v294 = vsel %vm231, %v274, 0.0
  %v295 = vadd.f32 %v293, %v294
  %v296 = vsel %vm231, %v275, 0.0
  %v297 = vadd.f32 %v295, %v296
  %v298 = vsel %vm231, %v276, 0.0
  %v299 = vadd.f32 %v297, %v298
  %v300 = vsel %vm231, %v277, 0.0
  %v301 = vadd.f32 %v299, %v300
  %v302 = vsel %vm231, %v278, 0.0
  %v303 = vadd.f32 %v301, %v302
  %v304 = vsel %vm231, %v279, 0.0
  %v305 = vadd.f32 %v303, %v304
  %v306 = vsel %vm231, %v280, 0.0
  %v307 = vadd.f32 %v305, %v306
  %v308 = vsel %vm231, %v281, 0.0
  %v309 = vadd.f32 %v307, %v308
  %v310 = vsel %vm231, %v282, 0.0
  %v311 = vadd.f32 %v309, %v310
  %v312 = vsel %vm231, %v283, 0.0
  %v313 = vadd.f32 %v311, %v312
  %v314 = vsel %vm231, %v284, 0.0
  %v315 = vadd.f32 %v313, %v314
  %v316 = vrot.slane %v315, 4
  %v317 = vadd.f32 %v315, %v316
  %v318 = vrot.slane %v317, 2
  %v319 = vadd.f32 %v317, %v318
  %v320 = vrot.slane %v319, 1
  %v321 = vadd.f32 %v319, %v320
  %v322 = vlaneseq
  %v323 = vshrl.u32 %v322, 7
  %vm324 = vcmp.eq.s32.totalorder %v323, 0
  %vm325 = vcmp.eq.s32.totalorder %v323, 1
  %v326 = vsel %vm325, %v321, 0.0
  %v327 = vsel %vm324, %v268, %v326
  %328 = vst.msk [vmem:[%s3] sm:$0xff] %vm231, %v327
  %329 = vst.msk [vmem:[%s2] sm:$0xff] %vm231, %v153
  %330 = vst.msk [vmem:[%s2 + $0x8] sm:$0xff] %vm231, %v158
  %331 = vst.msk [vmem:[%s2 + $0x10] sm:$0xff] %vm231, %v163
  %332 = vst.msk [vmem:[%s2 + $0x18] sm:$0xff] %vm231, %v168
  %333 = vst.msk [vmem:[%s2 + $0x20] sm:$0xff] %vm231, %v173
  %334 = vst.msk [vmem:[%s2 + $0x28] sm:$0xff] %vm231, %v178
  %335 = vst.msk [vmem:[%s2 + $0x30] sm:$0xff] %vm231, %v183
  %336 = vst.msk [vmem:[%s2 + $0x38] sm:$0xff] %vm231, %v188
  %337 = vst.msk [vmem:[%s2 + $0x40] sm:$0xff] %vm231, %v193
  %338 = vst.msk [vmem:[%s2 + $0x48] sm:$0xff] %vm231, %v198
  %339 = vst.msk [vmem:[%s2 + $0x50] sm:$0xff] %vm231, %v203
  %340 = vst.msk [vmem:[%s2 + $0x58] sm:$0xff] %vm231, %v208
  %341 = vst.msk [vmem:[%s2 + $0x60] sm:$0xff] %vm231, %v213
  %342 = vst.msk [vmem:[%s2 + $0x68] sm:$0xff] %vm231, %v218
  %343 = vst.msk [vmem:[%s2 + $0x70] sm:$0xff] %vm231, %v223
  %344 = vst.msk [vmem:[%s2 + $0x78] sm:$0xff] %vm231, %v228
  // Predicated region
  $region10: #{resnet_generator_forward.39} parent=0 // pred_check
    _
  $region11: #{resnet_generator_forward.39} parent=0 // pred_check_branch
    %346 = sbr.rel (0) target = $region13
  $region12: #{resnet_generator_forward.39} parent=0 // pred_region
    _
  $region13: #{resnet_generator_forward.39} parent=0 // pred_fallthru
    _
  // Predicated region
  $region14: #{resnet_generator_forward.39} parent=0 // pred_check
    _
  $region15: #{resnet_generator_forward.39} parent=0 // pred_check_branch
    %348 = sbr.rel (0) target = $region17
  $region16: #{resnet_generator_forward.39} parent=0 // pred_region
    _
  $region17: #{resnet_generator_forward.39} parent=0 // pred_fallthru
    _
  // Predicated region
  $region18: #{resnet_generator_forward.39} parent=0 // pred_check
    _
  $region19: #{resnet_generator_forward.39} parent=0 // pred_check_branch
    %350 = sbr.rel (0) target = $region21
  $region20: #{resnet_generator_forward.39} parent=0 // pred_region
    _
  $region21: #{resnet_generator_forward.39} parent=0 // pred_fallthru
    _
  // Predicated region
  $region22: #{resnet_generator_forward.39} parent=0 // pred_check
    _
  $region23: #{resnet_generator_forward.39} parent=0 // pred_check_branch
    %352 = sbr.rel (0) target = $region25
  $region24: #{resnet_generator_forward.39} parent=0 // pred_region
    _
  $region25: #{resnet_generator_forward.39} parent=0 // pred_fallthru
    _

// kernel: resnet_generator_forward.37
$region0: #{resnet_generator_forward.37}
  #allocation0 [shape = 'u32[]', space=smem, size = 0x4, offset = 0x4, fixed_abs, tag = 'smem constant byte address 0x4 - core index']
  #allocation1 [shape = 'u32[144,128]{1,0:T(1,128)}', space=vmem, size = 0x12000, scoped, tag = 'internal scratch']
  %s0 = inlined_call_operand.vmem [shape: f32[128,32], index: 0, kind: input, shape index: {}]
  %s1 = inlined_call_operand.vmem [shape: f32[32,8], index: 1, kind: input, shape index: {}]
  %s2 = inlined_call_operand.vmem [shape: f32[128,8], index: 2, kind: output, shape index: {0}]
  %s3 = inlined_call_operand.vmem [shape: f32[8,8], index: 3, kind: output, shape index: {1}]
  %4 = xla_tuple %s2, %s3
  %s5 = sld [smem:[#allocation0]]
  $region26: #{resnet_generator_forward.37} parent=0
    _
  %s7 = ssub.s32 1, %s5
  %s8 = scalar_select 0, %s7, %s5
  // Predicated region
  $region2: #{resnet_generator_forward.37} parent=0 // pred_check
    _
  $region3: #{resnet_generator_forward.37} parent=0 // pred_check_branch
    %10 = sbr.rel (0) target = $region5
  $region4: #{resnet_generator_forward.37} parent=0 // pred_region
    _
  $region5: #{resnet_generator_forward.37} parent=0 // pred_fallthru
    _
  // Predicated region
  $region6: #{resnet_generator_forward.37} parent=0 // pred_check
    _
  $region7: #{resnet_generator_forward.37} parent=0 // pred_check_branch
    %12 = sbr.rel (0) target = $region9
  $region8: #{resnet_generator_forward.37} parent=0 // pred_region
    _
  $region9: #{resnet_generator_forward.37} parent=0 // pred_fallthru
    _
  %v13 = vld [vmem:[%s0] sm:$0xff]
  %v14 = vld [vmem:[%s0 + $0x8] sm:$0xff]
  %v15 = vld [vmem:[%s0 + $0x10] sm:$0xff]
  %v16 = vld [vmem:[%s0 + $0x18] sm:$0xff]
  %v17 = vld [vmem:[%s0 + $0x20] sm:$0xff]
  %v18 = vld [vmem:[%s0 + $0x28] sm:$0xff]
  %v19 = vld [vmem:[%s0 + $0x30] sm:$0xff]
  %v20 = vld [vmem:[%s0 + $0x38] sm:$0xff]
  %v21 = vld [vmem:[%s0 + $0x40] sm:$0xff]
  %v22 = vld [vmem:[%s0 + $0x48] sm:$0xff]
  %v23 = vld [vmem:[%s0 + $0x50] sm:$0xff]
  %v24 = vld [vmem:[%s0 + $0x58] sm:$0xff]
  %v25 = vld [vmem:[%s0 + $0x60] sm:$0xff]
  %v26 = vld [vmem:[%s0 + $0x68] sm:$0xff]
  %v27 = vld [vmem:[%s0 + $0x70] sm:$0xff]
  %v28 = vld [vmem:[%s0 + $0x78] sm:$0xff]
  %v29 = vld [vmem:[%s1] sm:$0xff]
  %v30 = vld [vmem:[%s1 + $0x8] sm:$0xff]
  %v31 = vld [vmem:[%s1 + $0x10] sm:$0xff]
  %v32 = vld [vmem:[%s1 + $0x18] sm:$0xff]
  %vm33 = vcmask 261120
  %v35 = vsel %vm33, %v13, 0
  %v38 = vsel %vm33, %v14, 0
  %v41 = vsel %vm33, %v15, 0
  %v44 = vsel %vm33, %v16, 0
  %v47 = vsel %vm33, %v17, 0
  %v50 = vsel %vm33, %v18, 0
  %v53 = vsel %vm33, %v19, 0
  %v56 = vsel %vm33, %v20, 0
  %v59 = vsel %vm33, %v21, 0
  %v62 = vsel %vm33, %v22, 0
  %v65 = vsel %vm33, %v23, 0
  %v68 = vsel %vm33, %v24, 0
  %v71 = vsel %vm33, %v25, 0
  %v74 = vsel %vm33, %v26, 0
  %v77 = vsel %vm33, %v27, 0
  %v80 = vsel %vm33, %v28, 0
  %82 = vmatprep.subr.mxu0 0.0
  %83 = vmatpush1.msra.mxu0 0.0
  %84 = vmatprep.subr.mxu0 0.0
  %85 = vmatpush1.msra.mxu0 0.0
  %86 = vmatprep.subr.mxu0 0.0
  %87 = vmatpush1.msra.mxu0 0.0
  %88 = vmatprep.subr.mxu0 0.0
  %89 = vmatpush1.msra.mxu0 0.0
  %90 = vmatprep.subr.mxu0 0.0
  %91 = vmatpush1.msra.mxu0 0.0
  %92 = vmatprep.subr.mxu0 0.0
  %93 = vmatpush1.msra.mxu0 0.0
  %94 = vmatprep.subr.mxu0 0.0
  %95 = vmatpush1.msra.mxu0 0.0
  %96 = vmatprep.subr.mxu0 0.0
  %97 = vmatpush1.msra.mxu0 0.0
  %98 = vmatprep.subr.mxu0 0.0
  %99 = vmatpush1.msra.mxu0 0.0
  %100 = vmatprep.subr.mxu0 0.0
  %101 = vmatpush1.msra.mxu0 0.0
  %102 = vmatprep.subr.mxu0 0.0
  %103 = vmatpush1.msra.mxu0 0.0
  %104 = vmatprep.subr.mxu0 0.0
  %105 = vmatpush1.msra.mxu0 0.0
  %106 = vmatprep.subr.mxu0 0.0
  %107 = vmatpush1.msra.mxu0 %v32
  %108 = vmatprep.subr.mxu0 0.0
  %109 = vmatpush1.msra.mxu0 %v31
  %110 = vmatprep.subr.mxu0 0.0
  %111 = vmatpush1.msra.mxu0 %v30
  %112 = vmatprep.subr.mxu0 0.0
  %113 = vmatpush1.msra.mxu0 %v29
  %114 = vmatprep.subr.mxu0 0.0
  %115 = vmatpush2.msra.mxu0 0.0
  %116 = vmatprep.subr.mxu0 0.0
  %117 = vmatpush2.msra.mxu0 0.0
  %118 = vmatprep.subr.mxu0 0.0
  %119 = vmatpush2.msra.mxu0 0.0
  %120 = vmatprep.subr.mxu0 0.0
  %121 = vmatpush2.msra.mxu0 0.0
  %122 = vmatprep.subr.mxu0 0.0
  %123 = vmatpush2.msra.mxu0 0.0
  %124 = vmatprep.subr.mxu0 0.0
  %125 = vmatpush2.msra.mxu0 0.0
  %126 = vmatprep.subr.mxu0 0.0
  %127 = vmatpush2.msra.mxu0 0.0
  %128 = vmatprep.subr.mxu0 0.0
  %129 = vmatpush2.msra.mxu0 0.0
  %130 = vmatprep.subr.mxu0 0.0
  %131 = vmatpush2.msra.mxu0 0.0
  %132 = vmatprep.subr.mxu0 0.0
  %133 = vmatpush2.msra.mxu0 0.0
  %134 = vmatprep.subr.mxu0 0.0
  %135 = vmatpush2.msra.mxu0 0.0
  %136 = vmatprep.subr.mxu0 0.0
  %137 = vmatpush2.msra.mxu0 0.0
  %138 = vmatprep.subr.mxu0 0.0
  %139 = vmatpush2.msra.mxu0 0.0
  %140 = vmatprep.subr.mxu0 0.0
  %141 = vmatpush2.msra.mxu0 0.0
  %142 = vmatprep.subr.mxu0 0.0
  %143 = vmatpush2.msra.mxu0 0.0
  %144 = vmatprep.subr.mxu0 0.0
  %145 = vmatpush2.msra.mxu0 0.0
  %146 = vmatprep.mubr.f32.mxu0 0.0
  %147 = vmatmul.mubr.f32.gmra.mxu0 %v35
  %v148 = vpop.f32.mrf.mxu0
  %v149 = vadd.f32 0.0, %v148
  %v150 = vpop.f32.mrf.mxu0
  %151 = vmatprep.mubr.f32.mxu0 0.0
  %152 = vmatmul.mubr.f32.gmra.mxu0 %v38
  %v153 = vpop.f32.mrf.mxu0
  %v154 = vadd.f32 0.0, %v153
  %v155 = vpop.f32.mrf.mxu0
  %156 = vmatprep.mubr.f32.mxu0 0.0
  %157 = vmatmul.mubr.f32.gmra.mxu0 %v41
  %v158 = vpop.f32.mrf.mxu0
  %v159 = vadd.f32 0.0, %v158
  %v160 = vpop.f32.mrf.mxu0
  %161 = vmatprep.mubr.f32.mxu0 0.0
  %162 = vmatmul.mubr.f32.gmra.mxu0 %v44
  %v163 = vpop.f32.mrf.mxu0
  %v164 = vadd.f32 0.0, %v163
  %v165 = vpop.f32.mrf.mxu0
  %166 = vmatprep.mubr.f32.mxu0 0.0
  %167 = vmatmul.mubr.f32.gmra.mxu0 %v47
  %v168 = vpop.f32.mrf.mxu0
  %v169 = vadd.f32 0.0, %v168
  %v170 = vpop.f32.mrf.mxu0
  %171 = vmatprep.mubr.f32.mxu0 0.0
  %172 = vmatmul.mubr.f32.gmra.mxu0 %v50
  %v173 = vpop.f32.mrf.mxu0
  %v174 = vadd.f32 0.0, %v173
  %v175 = vpop.f32.mrf.mxu0
  %176 = vmatprep.mubr.f32.mxu0 0.0
  %177 = vmatmul.mubr.f32.gmra.mxu0 %v53
  %v178 = vpop.f32.mrf.mxu0
  %v179 = vadd.f32 0.0, %v178
  %v180 = vpop.f32.mrf.mxu0
  %181 = vmatprep.mubr.f32.mxu0 0.0
  %182 = vmatmul.mubr.f32.gmra.mxu0 %v56
  %v183 = vpop.f32.mrf.mxu0
  %v184 = vadd.f32 0.0, %v183
  %v185 = vpop.f32.mrf.mxu0
  %186 = vmatprep.mubr.f32.mxu0 0.0
  %187 = vmatmul.mubr.f32.gmra.mxu0 %v59
  %v188 = vpop.f32.mrf.mxu0
  %v189 = vadd.f32 0.0, %v188
  %v190 = vpop.f32.mrf.mxu0
  %191 = vmatprep.mubr.f32.mxu0 0.0
  %192 = vmatmul.mubr.f32.gmra.mxu0 %v62
  %v193 = vpop.f32.mrf.mxu0
  %v194 = vadd.f32 0.0, %v193
  %v195 = vpop.f32.mrf.mxu0
  %196 = vmatprep.mubr.f32.mxu0 0.0
  %197 = vmatmul.mubr.f32.gmra.mxu0 %v65
  %v198 = vpop.f32.mrf.mxu0
  %v199 = vadd.f32 0.0, %v198
  %v200 = vpop.f32.mrf.mxu0
  %201 = vmatprep.mubr.f32.mxu0 0.0
  %202 = vmatmul.mubr.f32.gmra.mxu0 %v68
  %v203 = vpop.f32.mrf.mxu0
  %v204 = vadd.f32 0.0, %v203
  %v205 = vpop.f32.mrf.mxu0
  %206 = vmatprep.mubr.f32.mxu0 0.0
  %207 = vmatmul.mubr.f32.gmra.mxu0 %v71
  %v208 = vpop.f32.mrf.mxu0
  %v209 = vadd.f32 0.0, %v208
  %v210 = vpop.f32.mrf.mxu0
  %211 = vmatprep.mubr.f32.mxu0 0.0
  %212 = vmatmul.mubr.f32.gmra.mxu0 %v74
  %v213 = vpop.f32.mrf.mxu0
  %v214 = vadd.f32 0.0, %v213
  %v215 = vpop.f32.mrf.mxu0
  %216 = vmatprep.mubr.f32.mxu0 0.0
  %217 = vmatmul.mubr.f32.gmra.mxu0 %v77
  %v218 = vpop.f32.mrf.mxu0
  %v219 = vadd.f32 0.0, %v218
  %v220 = vpop.f32.mrf.mxu0
  %221 = vmatprep.mubr.f32.mxu0 0.0
  %222 = vmatmul.mubr.f32.gmra.mxu0 %v80
  %v223 = vpop.f32.mrf.mxu0
  %v224 = vadd.f32 0.0, %v223
  %v225 = vpop.f32.mrf.mxu0
  %226 = vdwg.mxu0
  %vm227 = vcmask 64512
  %v228 = vsel %vm227, %v149, 0.0
  %v229 = vsel %vm227, %v154, 0.0
  %v230 = vadd.f32 %v228, %v229
  %v231 = vsel %vm227, %v159, 0.0
  %v232 = vadd.f32 %v230, %v231
  %v233 = vsel %vm227, %v164, 0.0
  %v234 = vadd.f32 %v232, %v233
  %v235 = vsel %vm227, %v169, 0.0
  %v236 = vadd.f32 %v234, %v235
  %v237 = vsel %vm227, %v174, 0.0
  %v238 = vadd.f32 %v236, %v237
  %v239 = vsel %vm227, %v179, 0.0
  %v240 = vadd.f32 %v238, %v239
  %v241 = vsel %vm227, %v184, 0.0
  %v242 = vadd.f32 %v240, %v241
  %v243 = vsel %vm227, %v189, 0.0
  %v244 = vadd.f32 %v242, %v243
  %v245 = vsel %vm227, %v194, 0.0
  %v246 = vadd.f32 %v244, %v245
  %v247 = vsel %vm227, %v199, 0.0
  %v248 = vadd.f32 %v246, %v247
  %v249 = vsel %vm227, %v204, 0.0
  %v250 = vadd.f32 %v248, %v249
  %v251 = vsel %vm227, %v209, 0.0
  %v252 = vadd.f32 %v250, %v251
  %v253 = vsel %vm227, %v214, 0.0
  %v254 = vadd.f32 %v252, %v253
  %v255 = vsel %vm227, %v219, 0.0
  %v256 = vadd.f32 %v254, %v255
  %v257 = vsel %vm227, %v224, 0.0
  %v258 = vadd.f32 %v256, %v257
  %v259 = vrot.slane %v258, 4
  %v260 = vadd.f32 %v258, %v259
  %v261 = vrot.slane %v260, 2
  %v262 = vadd.f32 %v260, %v261
  %v263 = vrot.slane %v262, 1
  %v264 = vadd.f32 %v262, %v263
  %v265 = vmul.f32 %v149, %v149
  %v266 = vmul.f32 %v154, %v154
  %v267 = vmul.f32 %v159, %v159
  %v268 = vmul.f32 %v164, %v164
  %v269 = vmul.f32 %v169, %v169
  %v270 = vmul.f32 %v174, %v174
  %v271 = vmul.f32 %v179, %v179
  %v272 = vmul.f32 %v184, %v184
  %v273 = vmul.f32 %v189, %v189
  %v274 = vmul.f32 %v194, %v194
  %v275 = vmul.f32 %v199, %v199
  %v276 = vmul.f32 %v204, %v204
  %v277 = vmul.f32 %v209, %v209
  %v278 = vmul.f32 %v214, %v214
  %v279 = vmul.f32 %v219, %v219
  %v280 = vmul.f32 %v224, %v224
  %v281 = vsel %vm227, %v265, 0.0
  %v282 = vsel %vm227, %v266, 0.0
  %v283 = vadd.f32 %v281, %v282
  %v284 = vsel %vm227, %v267, 0.0
  %v285 = vadd.f32 %v283, %v284
  %v286 = vsel %vm227, %v268, 0.0
  %v287 = vadd.f32 %v285, %v286
  %v288 = vsel %vm227, %v269, 0.0
  %v289 = vadd.f32 %v287, %v288
  %v290 = vsel %vm227, %v270, 0.0
  %v291 = vadd.f32 %v289, %v290
  %v292 = vsel %vm227, %v271, 0.0
  %v293 = vadd.f32 %v291, %v292
  %v294 = vsel %vm227, %v272, 0.0
  %v295 = vadd.f32 %v293, %v294
  %v296 = vsel %vm227, %v273, 0.0
  %v297 = vadd.f32 %v295, %v296
  %v298 = vsel %vm227, %v274, 0.0
  %v299 = vadd.f32 %v297, %v298
  %v300 = vsel %vm227, %v275, 0.0
  %v301 = vadd.f32 %v299, %v300
  %v302 = vsel %vm227, %v276, 0.0
  %v303 = vadd.f32 %v301, %v302
  %v304 = vsel %vm227, %v277, 0.0
  %v305 = vadd.f32 %v303, %v304
  %v306 = vsel %vm227, %v278, 0.0
  %v307 = vadd.f32 %v305, %v306
  %v308 = vsel %vm227, %v279, 0.0
  %v309 = vadd.f32 %v307, %v308
  %v310 = vsel %vm227, %v280, 0.0
  %v311 = vadd.f32 %v309, %v310
  %v312 = vrot.slane %v311, 4
  %v313 = vadd.f32 %v311, %v312
  %v314 = vrot.slane %v313, 2
  %v315 = vadd.f32 %v313, %v314
  %v316 = vrot.slane %v315, 1
  %v317 = vadd.f32 %v315, %v316
  %v318 = vlaneseq
  %v319 = vshrl.u32 %v318, 7
  %vm320 = vcmp.eq.s32.totalorder %v319, 0
  %vm321 = vcmp.eq.s32.totalorder %v319, 1
  %v322 = vsel %vm321, %v317, 0.0
  %v323 = vsel %vm320, %v264, %v322
  %324 = vst.msk [vmem:[%s3] sm:$0xff] %vm227, %v323
  %325 = vst.msk [vmem:[%s2] sm:$0xff] %vm227, %v149
  %326 = vst.msk [vmem:[%s2 + $0x8] sm:$0xff] %vm227, %v154
  %327 = vst.msk [vmem:[%s2 + $0x10] sm:$0xff] %vm227, %v159
  %328 = vst.msk [vmem:[%s2 + $0x18] sm:$0xff] %vm227, %v164
  %329 = vst.msk [vmem:[%s2 + $0x20] sm:$0xff] %vm227, %v169
  %330 = vst.msk [vmem:[%s2 + $0x28] sm:$0xff] %vm227, %v174
  %331 = vst.msk [vmem:[%s2 + $0x30] sm:$0xff] %vm227, %v179
  %332 = vst.msk [vmem:[%s2 + $0x38] sm:$0xff] %vm227, %v184
  %333 = vst.msk [vmem:[%s2 + $0x40] sm:$0xff] %vm227, %v189
  %334 = vst.msk [vmem:[%s2 + $0x48] sm:$0xff] %vm227, %v194
  %335 = vst.msk [vmem:[%s2 + $0x50] sm:$0xff] %vm227, %v199
  %336 = vst.msk [vmem:[%s2 + $0x58] sm:$0xff] %vm227, %v204
  %337 = vst.msk [vmem:[%s2 + $0x60] sm:$0xff] %vm227, %v209
  %338 = vst.msk [vmem:[%s2 + $0x68] sm:$0xff] %vm227, %v214
  %339 = vst.msk [vmem:[%s2 + $0x70] sm:$0xff] %vm227, %v219
  %340 = vst.msk [vmem:[%s2 + $0x78] sm:$0xff] %vm227, %v224
  // Predicated region
  $region10: #{resnet_generator_forward.37} parent=0 // pred_check
    _
  $region11: #{resnet_generator_forward.37} parent=0 // pred_check_branch
    %342 = sbr.rel (0) target = $region13
  $region12: #{resnet_generator_forward.37} parent=0 // pred_region
    _
  $region13: #{resnet_generator_forward.37} parent=0 // pred_fallthru
    _
  // Predicated region
  $region14: #{resnet_generator_forward.37} parent=0 // pred_check
    _
  $region15: #{resnet_generator_forward.37} parent=0 // pred_check_branch
    %344 = sbr.rel (0) target = $region17
  $region16: #{resnet_generator_forward.37} parent=0 // pred_region
    _
  $region17: #{resnet_generator_forward.37} parent=0 // pred_fallthru
    _
  // Predicated region
  $region18: #{resnet_generator_forward.37} parent=0 // pred_check
    _
  $region19: #{resnet_generator_forward.37} parent=0 // pred_check_branch
    %346 = sbr.rel (0) target = $region21
  $region20: #{resnet_generator_forward.37} parent=0 // pred_region
    _
  $region21: #{resnet_generator_forward.37} parent=0 // pred_fallthru
    _
  // Predicated region
  $region22: #{resnet_generator_forward.37} parent=0 // pred_check
    _
  $region23: #{resnet_generator_forward.37} parent=0 // pred_check_branch
    %348 = sbr.rel (0) target = $region25
  $region24: #{resnet_generator_forward.37} parent=0 // pred_region
    _
  $region25: #{resnet_generator_forward.37} parent=0 // pred_fallthru
    _

// kernel: resnet_generator_forward.36
$region0: #{resnet_generator_forward.36}
  #allocation0 [shape = 'u32[]', space=smem, size = 0x4, offset = 0x4, fixed_abs, tag = 'smem constant byte address 0x4 - core index']
  #allocation1 [shape = 'u32[144,128]{1,0:T(1,128)}', space=vmem, size = 0x12000, scoped, tag = 'internal scratch']
  %s0 = inlined_call_operand.vmem [shape: f32[128,16], index: 0, kind: input, shape index: {}]
  %s1 = inlined_call_operand.vmem [shape: f32[16,8], index: 1, kind: input, shape index: {}]
  %s2 = inlined_call_operand.vmem [shape: f32[128,8], index: 2, kind: output, shape index: {0}]
  %s3 = inlined_call_operand.vmem [shape: f32[8,8], index: 3, kind: output, shape index: {1}]
  %4 = xla_tuple %s2, %s3
  %s5 = sld [smem:[#allocation0]]
  $region26: #{resnet_generator_forward.36} parent=0
    _
  %s7 = ssub.s32 1, %s5
  %s8 = scalar_select 0, %s7, %s5
  // Predicated region
  $region2: #{resnet_generator_forward.36} parent=0 // pred_check
    _
  $region3: #{resnet_generator_forward.36} parent=0 // pred_check_branch
    %10 = sbr.rel (0) target = $region5
  $region4: #{resnet_generator_forward.36} parent=0 // pred_region
    _
  $region5: #{resnet_generator_forward.36} parent=0 // pred_fallthru
    _
  // Predicated region
  $region6: #{resnet_generator_forward.36} parent=0 // pred_check
    _
  $region7: #{resnet_generator_forward.36} parent=0 // pred_check_branch
    %12 = sbr.rel (0) target = $region9
  $region8: #{resnet_generator_forward.36} parent=0 // pred_region
    _
  $region9: #{resnet_generator_forward.36} parent=0 // pred_fallthru
    _
  %v13 = vld [vmem:[%s0] sm:$0xff]
  %v14 = vld [vmem:[%s0 + $0x8] sm:$0xff]
  %v15 = vld [vmem:[%s0 + $0x10] sm:$0xff]
  %v16 = vld [vmem:[%s0 + $0x18] sm:$0xff]
  %v17 = vld [vmem:[%s0 + $0x20] sm:$0xff]
  %v18 = vld [vmem:[%s0 + $0x28] sm:$0xff]
  %v19 = vld [vmem:[%s0 + $0x30] sm:$0xff]
  %v20 = vld [vmem:[%s0 + $0x38] sm:$0xff]
  %v21 = vld [vmem:[%s0 + $0x40] sm:$0xff]
  %v22 = vld [vmem:[%s0 + $0x48] sm:$0xff]
  %v23 = vld [vmem:[%s0 + $0x50] sm:$0xff]
  %v24 = vld [vmem:[%s0 + $0x58] sm:$0xff]
  %v25 = vld [vmem:[%s0 + $0x60] sm:$0xff]
  %v26 = vld [vmem:[%s0 + $0x68] sm:$0xff]
  %v27 = vld [vmem:[%s0 + $0x70] sm:$0xff]
  %v28 = vld [vmem:[%s0 + $0x78] sm:$0xff]
  %v29 = vld [vmem:[%s1] sm:$0xff]
  %v30 = vld [vmem:[%s1 + $0x8] sm:$0xff]
  %vm31 = vcmask 130048
  %v33 = vsel %vm31, %v13, 0
  %v36 = vsel %vm31, %v14, 0
  %v39 = vsel %vm31, %v15, 0
  %v42 = vsel %vm31, %v16, 0
  %v45 = vsel %vm31, %v17, 0
  %v48 = vsel %vm31, %v18, 0
  %v51 = vsel %vm31, %v19, 0
  %v54 = vsel %vm31, %v20, 0
  %v57 = vsel %vm31, %v21, 0
  %v60 = vsel %vm31, %v22, 0
  %v63 = vsel %vm31, %v23, 0
  %v66 = vsel %vm31, %v24, 0
  %v69 = vsel %vm31, %v25, 0
  %v72 = vsel %vm31, %v26, 0
  %v75 = vsel %vm31, %v27, 0
  %v78 = vsel %vm31, %v28, 0
  %80 = vmatprep.subr.mxu0 0.0
  %81 = vmatpush1.msra.mxu0 0.0
  %82 = vmatprep.subr.mxu0 0.0
  %83 = vmatpush1.msra.mxu0 0.0
  %84 = vmatprep.subr.mxu0 0.0
  %85 = vmatpush1.msra.mxu0 0.0
  %86 = vmatprep.subr.mxu0 0.0
  %87 = vmatpush1.msra.mxu0 0.0
  %88 = vmatprep.subr.mxu0 0.0
  %89 = vmatpush1.msra.mxu0 0.0
  %90 = vmatprep.subr.mxu0 0.0
  %91 = vmatpush1.msra.mxu0 0.0
  %92 = vmatprep.subr.mxu0 0.0
  %93 = vmatpush1.msra.mxu0 0.0
  %94 = vmatprep.subr.mxu0 0.0
  %95 = vmatpush1.msra.mxu0 0.0
  %96 = vmatprep.subr.mxu0 0.0
  %97 = vmatpush1.msra.mxu0 0.0
  %98 = vmatprep.subr.mxu0 0.0
  %99 = vmatpush1.msra.mxu0 0.0
  %100 = vmatprep.subr.mxu0 0.0
  %101 = vmatpush1.msra.mxu0 0.0
  %102 = vmatprep.subr.mxu0 0.0
  %103 = vmatpush1.msra.mxu0 0.0
  %104 = vmatprep.subr.mxu0 0.0
  %105 = vmatpush1.msra.mxu0 0.0
  %106 = vmatprep.subr.mxu0 0.0
  %107 = vmatpush1.msra.mxu0 0.0
  %108 = vmatprep.subr.mxu0 0.0
  %109 = vmatpush1.msra.mxu0 %v30
  %110 = vmatprep.subr.mxu0 0.0
  %111 = vmatpush1.msra.mxu0 %v29
  %112 = vmatprep.subr.mxu0 0.0
  %113 = vmatpush2.msra.mxu0 0.0
  %114 = vmatprep.subr.mxu0 0.0
  %115 = vmatpush2.msra.mxu0 0.0
  %116 = vmatprep.subr.mxu0 0.0
  %117 = vmatpush2.msra.mxu0 0.0
  %118 = vmatprep.subr.mxu0 0.0
  %119 = vmatpush2.msra.mxu0 0.0
  %120 = vmatprep.subr.mxu0 0.0
  %121 = vmatpush2.msra.mxu0 0.0
  %122 = vmatprep.subr.mxu0 0.0
  %123 = vmatpush2.msra.mxu0 0.0
  %124 = vmatprep.subr.mxu0 0.0
  %125 = vmatpush2.msra.mxu0 0.0
  %126 = vmatprep.subr.mxu0 0.0
  %127 = vmatpush2.msra.mxu0 0.0
  %128 = vmatprep.subr.mxu0 0.0
  %129 = vmatpush2.msra.mxu0 0.0
  %130 = vmatprep.subr.mxu0 0.0
  %131 = vmatpush2.msra.mxu0 0.0
  %132 = vmatprep.subr.mxu0 0.0
  %133 = vmatpush2.msra.mxu0 0.0
  %134 = vmatprep.subr.mxu0 0.0
  %135 = vmatpush2.msra.mxu0 0.0
  %136 = vmatprep.subr.mxu0 0.0
  %137 = vmatpush2.msra.mxu0 0.0
  %138 = vmatprep.subr.mxu0 0.0
  %139 = vmatpush2.msra.mxu0 0.0
  %140 = vmatprep.subr.mxu0 0.0
  %141 = vmatpush2.msra.mxu0 0.0
  %142 = vmatprep.subr.mxu0 0.0
  %143 = vmatpush2.msra.mxu0 0.0
  %144 = vmatprep.mubr.f32.mxu0 0.0
  %145 = vmatmul.mubr.f32.gmra.mxu0 %v33
  %v146 = vpop.f32.mrf.mxu0
  %v147 = vadd.f32 0.0, %v146
  %v148 = vpop.f32.mrf.mxu0
  %149 = vmatprep.mubr.f32.mxu0 0.0
  %150 = vmatmul.mubr.f32.gmra.mxu0 %v36
  %v151 = vpop.f32.mrf.mxu0
  %v152 = vadd.f32 0.0, %v151
  %v153 = vpop.f32.mrf.mxu0
  %154 = vmatprep.mubr.f32.mxu0 0.0
  %155 = vmatmul.mubr.f32.gmra.mxu0 %v39
  %v156 = vpop.f32.mrf.mxu0
  %v157 = vadd.f32 0.0, %v156
  %v158 = vpop.f32.mrf.mxu0
  %159 = vmatprep.mubr.f32.mxu0 0.0
  %160 = vmatmul.mubr.f32.gmra.mxu0 %v42
  %v161 = vpop.f32.mrf.mxu0
  %v162 = vadd.f32 0.0, %v161
  %v163 = vpop.f32.mrf.mxu0
  %164 = vmatprep.mubr.f32.mxu0 0.0
  %165 = vmatmul.mubr.f32.gmra.mxu0 %v45
  %v166 = vpop.f32.mrf.mxu0
  %v167 = vadd.f32 0.0, %v166
  %v168 = vpop.f32.mrf.mxu0
  %169 = vmatprep.mubr.f32.mxu0 0.0
  %170 = vmatmul.mubr.f32.gmra.mxu0 %v48
  %v171 = vpop.f32.mrf.mxu0
  %v172 = vadd.f32 0.0, %v171
  %v173 = vpop.f32.mrf.mxu0
  %174 = vmatprep.mubr.f32.mxu0 0.0
  %175 = vmatmul.mubr.f32.gmra.mxu0 %v51
  %v176 = vpop.f32.mrf.mxu0
  %v177 = vadd.f32 0.0, %v176
  %v178 = vpop.f32.mrf.mxu0
  %179 = vmatprep.mubr.f32.mxu0 0.0
  %180 = vmatmul.mubr.f32.gmra.mxu0 %v54
  %v181 = vpop.f32.mrf.mxu0
  %v182 = vadd.f32 0.0, %v181
  %v183 = vpop.f32.mrf.mxu0
  %184 = vmatprep.mubr.f32.mxu0 0.0
  %185 = vmatmul.mubr.f32.gmra.mxu0 %v57
  %v186 = vpop.f32.mrf.mxu0
  %v187 = vadd.f32 0.0, %v186
  %v188 = vpop.f32.mrf.mxu0
  %189 = vmatprep.mubr.f32.mxu0 0.0
  %190 = vmatmul.mubr.f32.gmra.mxu0 %v60
  %v191 = vpop.f32.mrf.mxu0
  %v192 = vadd.f32 0.0, %v191
  %v193 = vpop.f32.mrf.mxu0
  %194 = vmatprep.mubr.f32.mxu0 0.0
  %195 = vmatmul.mubr.f32.gmra.mxu0 %v63
  %v196 = vpop.f32.mrf.mxu0
  %v197 = vadd.f32 0.0, %v196
  %v198 = vpop.f32.mrf.mxu0
  %199 = vmatprep.mubr.f32.mxu0 0.0
  %200 = vmatmul.mubr.f32.gmra.mxu0 %v66
  %v201 = vpop.f32.mrf.mxu0
  %v202 = vadd.f32 0.0, %v201
  %v203 = vpop.f32.mrf.mxu0
  %204 = vmatprep.mubr.f32.mxu0 0.0
  %205 = vmatmul.mubr.f32.gmra.mxu0 %v69
  %v206 = vpop.f32.mrf.mxu0
  %v207 = vadd.f32 0.0, %v206
  %v208 = vpop.f32.mrf.mxu0
  %209 = vmatprep.mubr.f32.mxu0 0.0
  %210 = vmatmul.mubr.f32.gmra.mxu0 %v72
  %v211 = vpop.f32.mrf.mxu0
  %v212 = vadd.f32 0.0, %v211
  %v213 = vpop.f32.mrf.mxu0
  %214 = vmatprep.mubr.f32.mxu0 0.0
  %215 = vmatmul.mubr.f32.gmra.mxu0 %v75
  %v216 = vpop.f32.mrf.mxu0
  %v217 = vadd.f32 0.0, %v216
  %v218 = vpop.f32.mrf.mxu0
  %219 = vmatprep.mubr.f32.mxu0 0.0
  %220 = vmatmul.mubr.f32.gmra.mxu0 %v78
  %v221 = vpop.f32.mrf.mxu0
  %v222 = vadd.f32 0.0, %v221
  %v223 = vpop.f32.mrf.mxu0
  %224 = vdwg.mxu0
  %vm225 = vcmask 64512
  %v226 = vsel %vm225, %v147, 0.0
  %v227 = vsel %vm225, %v152, 0.0
  %v228 = vadd.f32 %v226, %v227
  %v229 = vsel %vm225, %v157, 0.0
  %v230 = vadd.f32 %v228, %v229
  %v231 = vsel %vm225, %v162, 0.0
  %v232 = vadd.f32 %v230, %v231
  %v233 = vsel %vm225, %v167, 0.0
  %v234 = vadd.f32 %v232, %v233
  %v235 = vsel %vm225, %v172, 0.0
  %v236 = vadd.f32 %v234, %v235
  %v237 = vsel %vm225, %v177, 0.0
  %v238 = vadd.f32 %v236, %v237
  %v239 = vsel %vm225, %v182, 0.0
  %v240 = vadd.f32 %v238, %v239
  %v241 = vsel %vm225, %v187, 0.0
  %v242 = vadd.f32 %v240, %v241
  %v243 = vsel %vm225, %v192, 0.0
  %v244 = vadd.f32 %v242, %v243
  %v245 = vsel %vm225, %v197, 0.0
  %v246 = vadd.f32 %v244, %v245
  %v247 = vsel %vm225, %v202, 0.0
  %v248 = vadd.f32 %v246, %v247
  %v249 = vsel %vm225, %v207, 0.0
  %v250 = vadd.f32 %v248, %v249
  %v251 = vsel %vm225, %v212, 0.0
  %v252 = vadd.f32 %v250, %v251
  %v253 = vsel %vm225, %v217, 0.0
  %v254 = vadd.f32 %v252, %v253
  %v255 = vsel %vm225, %v222, 0.0
  %v256 = vadd.f32 %v254, %v255
  %v257 = vrot.slane %v256, 4
  %v258 = vadd.f32 %v256, %v257
  %v259 = vrot.slane %v258, 2
  %v260 = vadd.f32 %v258, %v259
  %v261 = vrot.slane %v260, 1
  %v262 = vadd.f32 %v260, %v261
  %v263 = vmul.f32 %v147, %v147
  %v264 = vmul.f32 %v152, %v152
  %v265 = vmul.f32 %v157, %v157
  %v266 = vmul.f32 %v162, %v162
  %v267 = vmul.f32 %v167, %v167
  %v268 = vmul.f32 %v172, %v172
  %v269 = vmul.f32 %v177, %v177
  %v270 = vmul.f32 %v182, %v182
  %v271 = vmul.f32 %v187, %v187
  %v272 = vmul.f32 %v192, %v192
  %v273 = vmul.f32 %v197, %v197
  %v274 = vmul.f32 %v202, %v202
  %v275 = vmul.f32 %v207, %v207
  %v276 = vmul.f32 %v212, %v212
  %v277 = vmul.f32 %v217, %v217
  %v278 = vmul.f32 %v222, %v222
  %v279 = vsel %vm225, %v263, 0.0
  %v280 = vsel %vm225, %v264, 0.0
  %v281 = vadd.f32 %v279, %v280
  %v282 = vsel %vm225, %v265, 0.0
  %v283 = vadd.f32 %v281, %v282
  %v284 = vsel %vm225, %v266, 0.0
  %v285 = vadd.f32 %v283, %v284
  %v286 = vsel %vm225, %v267, 0.0
  %v287 = vadd.f32 %v285, %v286
  %v288 = vsel %vm225, %v268, 0.0
  %v289 = vadd.f32 %v287, %v288
  %v290 = vsel %vm225, %v269, 0.0
  %v291 = vadd.f32 %v289, %v290
  %v292 = vsel %vm225, %v270, 0.0
  %v293 = vadd.f32 %v291, %v292
  %v294 = vsel %vm225, %v271, 0.0
  %v295 = vadd.f32 %v293, %v294
  %v296 = vsel %vm225, %v272, 0.0
  %v297 = vadd.f32 %v295, %v296
  %v298 = vsel %vm225, %v273, 0.0
  %v299 = vadd.f32 %v297, %v298
  %v300 = vsel %vm225, %v274, 0.0
  %v301 = vadd.f32 %v299, %v300
  %v302 = vsel %vm225, %v275, 0.0
  %v303 = vadd.f32 %v301, %v302
  %v304 = vsel %vm225, %v276, 0.0
  %v305 = vadd.f32 %v303, %v304
  %v306 = vsel %vm225, %v277, 0.0
  %v307 = vadd.f32 %v305, %v306
  %v308 = vsel %vm225, %v278, 0.0
  %v309 = vadd.f32 %v307, %v308
  %v310 = vrot.slane %v309, 4
  %v311 = vadd.f32 %v309, %v310
  %v312 = vrot.slane %v311, 2
  %v313 = vadd.f32 %v311, %v312
  %v314 = vrot.slane %v313, 1
  %v315 = vadd.f32 %v313, %v314
  %v316 = vlaneseq
  %v317 = vshrl.u32 %v316, 7
  %vm318 = vcmp.eq.s32.totalorder %v317, 0
  %vm319 = vcmp.eq.s32.totalorder %v317, 1
  %v320 = vsel %vm319, %v315, 0.0
  %v321 = vsel %vm318, %v262, %v320
  %322 = vst.msk [vmem:[%s3] sm:$0xff] %vm225, %v321
  %323 = vst.msk [vmem:[%s2] sm:$0xff] %vm225, %v147
  %324 = vst.msk [vmem:[%s2 + $0x8] sm:$0xff] %vm225, %v152
  %325 = vst.msk [vmem:[%s2 + $0x10] sm:$0xff] %vm225, %v157
  %326 = vst.msk [vmem:[%s2 + $0x18] sm:$0xff] %vm225, %v162
  %327 = vst.msk [vmem:[%s2 + $0x20] sm:$0xff] %vm225, %v167
  %328 = vst.msk [vmem:[%s2 + $0x28] sm:$0xff] %vm225, %v172
  %329 = vst.msk [vmem:[%s2 + $0x30] sm:$0xff] %vm225, %v177
  %330 = vst.msk [vmem:[%s2 + $0x38] sm:$0xff] %vm225, %v182
  %331 = vst.msk [vmem:[%s2 + $0x40] sm:$0xff] %vm225, %v187
  %332 = vst.msk [vmem:[%s2 + $0x48] sm:$0xff] %vm225, %v192
  %333 = vst.msk [vmem:[%s2 + $0x50] sm:$0xff] %vm225, %v197
  %334 = vst.msk [vmem:[%s2 + $0x58] sm:$0xff] %vm225, %v202
  %335 = vst.msk [vmem:[%s2 + $0x60] sm:$0xff] %vm225, %v207
  %336 = vst.msk [vmem:[%s2 + $0x68] sm:$0xff] %vm225, %v212
  %337 = vst.msk [vmem:[%s2 + $0x70] sm:$0xff] %vm225, %v217
  %338 = vst.msk [vmem:[%s2 + $0x78] sm:$0xff] %vm225, %v222
  // Predicated region
  $region10: #{resnet_generator_forward.36} parent=0 // pred_check
    _
  $region11: #{resnet_generator_forward.36} parent=0 // pred_check_branch
    %340 = sbr.rel (0) target = $region13
  $region12: #{resnet_generator_forward.36} parent=0 // pred_region
    _
  $region13: #{resnet_generator_forward.36} parent=0 // pred_fallthru
    _
  // Predicated region
  $region14: #{resnet_generator_forward.36} parent=0 // pred_check
    _
  $region15: #{resnet_generator_forward.36} parent=0 // pred_check_branch
    %342 = sbr.rel (0) target = $region17
  $region16: #{resnet_generator_forward.36} parent=0 // pred_region
    _
  $region17: #{resnet_generator_forward.36} parent=0 // pred_fallthru
    _
  // Predicated region
  $region18: #{resnet_generator_forward.36} parent=0 // pred_check
    _
  $region19: #{resnet_generator_forward.36} parent=0 // pred_check_branch
    %344 = sbr.rel (0) target = $region21
  $region20: #{resnet_generator_forward.36} parent=0 // pred_region
    _
  $region21: #{resnet_generator_forward.36} parent=0 // pred_fallthru
    _
  // Predicated region
  $region22: #{resnet_generator_forward.36} parent=0 // pred_check
    _
  $region23: #{resnet_generator_forward.36} parent=0 // pred_check_branch
    %346 = sbr.rel (0) target = $region25
  $region24: #{resnet_generator_forward.36} parent=0 // pred_region
    _
  $region25: #{resnet_generator_forward.36} parent=0 // pred_fallthru
    _

// kernel: resnet_generator_forward.41
$region0: #{resnet_generator_forward.41}
  #allocation0 [shape = 'u32[]', space=smem, size = 0x4, offset = 0x4, fixed_abs, tag = 'smem constant byte address 0x4 - core index']
  #allocation1 [shape = 'u32[144,128]{1,0:T(1,128)}', space=vmem, size = 0x12000, scoped, tag = 'internal scratch']
  %s0 = inlined_call_operand.vmem [shape: f32[512,392], index: 0, kind: input, shape index: {}]
  %s1 = inlined_call_operand.vmem [shape: f32[392,3], index: 1, kind: input, shape index: {}]
  %s2 = inlined_call_operand.vmem [shape: f32[1,3], index: 2, kind: input, shape index: {}]
  %s3 = inlined_call_operand.vmem [shape: f32[512,3], index: 3, kind: output, shape index: {}]
  %s4 = sld [smem:[#allocation0]]
  $region45: #{resnet_generator_forward.41} parent=0
    _
  %s6 = ssub.s32 1, %s4
  %s7 = scalar_select 0, %s6, %s4
  loop: start=0, step=1, limit=4
  $region2: #{resnet_generator_forward.41} parent=0 // loop_pre_header
    _
  $region3: #{resnet_generator_forward.41} parent=0 // loop_header
    %s9 = sphi 0, %s13
    %p10 = scmp.ge.s32.totalorder %s9, 4
    %s19 = sphi 0, %s21
    %s22 = sphi 0, %s19
    %s23 = sphi 0, %s22
    %s39 = sphi 0, %s23
    %s43 = sphi 0, %s43
    %s45 = sphi 0, %s43
    %s46 = sphi 0, %s45
    %s60 = sphi 0, %s46
    %s64 = sphi 0, %s64
    %s66 = sphi 0, %s64
    %s67 = sphi 0, %s66
    %s81 = sphi 0, %s67
    %s87 = sphi 0, %s89
    %s90 = sphi 0, %s87
    %s91 = sphi 0, %s90
    %s107 = sphi 0, %s91
  $region4: #{resnet_generator_forward.41} parent=0 // loop_header_branch
    %12 = sbr.rel (%p10) target = $region8
  $region5: #{resnet_generator_forward.41} parent=0 // loop_body
    %s14 = ssub.s32 %s9, 1
    %s15 = ssub.s32 %s9, 2
    %s16 = sadd.s32 %s9, 1
    %s17 = ssub.s32 %s9, %s16
    %p18 = scmp.eq.s32.totalorder %s17, 0
    %s20 = sadd.s32 %s19, 1
    %s21 = scalar_select %p18, %s19, %s20
    %p24 = pneg %p18
    %p25 = scmp.eq.s32.totalorder %s9, 1
    %p26 = por %p24, %p25
    %p27 = scmp.ne.s32.totalorder %s19, %s22
    %p28 = scmp.eq.s32.totalorder %s9, 0
    %p29 = por %p27, %p28
    %p30 = scmp.ne.s32.totalorder %s19, %s22
    %p31 = scmp.eq.s32.totalorder %s14, 1
    %p32 = por %p30, %p31
    %p33 = scmp.ne.s32.totalorder %s22, %s23
    %p34 = scmp.eq.s32.totalorder %s14, 0
    %p35 = por %p33, %p34
    %p36 = scmp.ne.s32.totalorder %s22, %s23
    %p37 = scmp.eq.s32.totalorder %s15, 1
    %p38 = por %p36, %p37
    %p40 = scmp.ne.s32.totalorder %s23, %s39
    %p41 = scmp.eq.s32.totalorder %s15, 0
    %p42 = por %p40, %p41
    %s44 = sadd.s32 %s43, 1
    %p47 = scmp.eq.s32.totalorder %s9, 1
    %p48 = scmp.ne.s32.totalorder %s43, %s45
    %p49 = scmp.eq.s32.totalorder %s9, 0
    %p50 = por %p48, %p49
    %p51 = scmp.ne.s32.totalorder %s43, %s45
    %p52 = scmp.eq.s32.totalorder %s14, 1
    %p53 = por %p51, %p52
    %p54 = scmp.ne.s32.totalorder %s45, %s46
    %p55 = scmp.eq.s32.totalorder %s14, 0
    %p56 = por %p54, %p55
    %p57 = scmp.ne.s32.totalorder %s45, %s46
    %p58 = scmp.eq.s32.totalorder %s15, 1
    %p59 = por %p57, %p58
    %p61 = scmp.ne.s32.totalorder %s46, %s60
    %p62 = scmp.eq.s32.totalorder %s15, 0
    %p63 = por %p61, %p62
    %s65 = sadd.s32 %s64, 1
    %p68 = scmp.eq.s32.totalorder %s9, 1
    %p69 = scmp.ne.s32.totalorder %s64, %s66
    %p70 = scmp.eq.s32.totalorder %s9, 0
    %p71 = por %p69, %p70
    %p72 = scmp.ne.s32.totalorder %s64, %s66
    %p73 = scmp.eq.s32.totalorder %s14, 1
    %p74 = por %p72, %p73
    %p75 = scmp.ne.s32.totalorder %s66, %s67
    %p76 = scmp.eq.s32.totalorder %s14, 0
    %p77 = por %p75, %p76
    %p78 = scmp.ne.s32.totalorder %s66, %s67
    %p79 = scmp.eq.s32.totalorder %s15, 1
    %p80 = por %p78, %p79
    %p82 = scmp.ne.s32.totalorder %s67, %s81
    %p83 = scmp.eq.s32.totalorder %s15, 0
    %p84 = por %p82, %p83
    %s85 = ssub.s32 %s9, %s16
    %p86 = scmp.eq.s32.totalorder %s85, 0
    %s88 = sadd.s32 %s87, 1
    %s89 = scalar_select %p86, %s87, %s88
    %p92 = pneg %p86
    %p93 = scmp.eq.s32.totalorder %s9, 1
    %p94 = por %p92, %p93
    %p95 = scmp.ne.s32.totalorder %s87, %s90
    %p96 = scmp.eq.s32.totalorder %s9, 0
    %p97 = por %p95, %p96
    %p98 = scmp.ne.s32.totalorder %s87, %s90
    %p99 = scmp.eq.s32.totalorder %s14, 1
    %p100 = por %p98, %p99
    %p101 = scmp.ne.s32.totalorder %s90, %s91
    %p102 = scmp.eq.s32.totalorder %s14, 0
    %p103 = por %p101, %p102
    %p104 = scmp.ne.s32.totalorder %s90, %s91
    %p105 = scmp.eq.s32.totalorder %s15, 1
    %p106 = por %p104, %p105
    %p108 = scmp.ne.s32.totalorder %s91, %s107
    %p109 = scmp.eq.s32.totalorder %s15, 0
    %p110 = por %p108, %p109
    %p111 = scmp.le.s32.totalorder 1, %s9
    %p112 = scmp.lt.s32.totalorder %s9, 3
    %p113 = pnand %p111, %p112
    %p114 = pneg %p113
    // Predicated region
    $region9: #{resnet_generator_forward.41} parent=5 // pred_check
      _
    $region10: #{resnet_generator_forward.41} parent=5 // pred_check_branch
      %116 = sbr.rel (%p113) target = $region12
    $region11: #{resnet_generator_forward.41} parent=5 // pred_region
      %s117 = ssub.s32 %s9, 1
      // Predicated region
      $region13: #{resnet_generator_forward.41} parent=11 // pred_check
        %p118 = pneg %p56
      $region14: #{resnet_generator_forward.41} parent=11 // pred_check_branch
        %120 = sbr.rel (%p118) target = $region16
      $region15: #{resnet_generator_forward.41} parent=11 // pred_region
        _
      $region16: #{resnet_generator_forward.41} parent=11 // pred_fallthru
        _
      // Predicated region
      $region17: #{resnet_generator_forward.41} parent=11 // pred_check
        %p121 = pneg %p77
      $region18: #{resnet_generator_forward.41} parent=11 // pred_check_branch
        %123 = sbr.rel (%p121) target = $region20
      $region19: #{resnet_generator_forward.41} parent=11 // pred_region
        _
      $region20: #{resnet_generator_forward.41} parent=11 // pred_fallthru
        _
    $region12: #{resnet_generator_forward.41} parent=5 // pred_fallthru
      _
    %p124 = scmp.lt.s32.totalorder %s9, 2
    // Predicated region
    $region21: #{resnet_generator_forward.41} parent=5 // pred_check
      %p125 = pneg %p124
    $region22: #{resnet_generator_forward.41} parent=5 // pred_check_branch
      %127 = sbr.rel (%p125) target = $region24
    $region23: #{resnet_generator_forward.41} parent=5 // pred_region
      // Predicated region
      $region25: #{resnet_generator_forward.41} parent=23 // pred_check
        %p128 = pneg %p29
      $region26: #{resnet_generator_forward.41} parent=23 // pred_check_branch
        %130 = sbr.rel (%p128) target = $region28
      $region27: #{resnet_generator_forward.41} parent=23 // pred_region
        %s131 = smul.u32 32, %s9
        %p132 = scmp.lt.s32.totalorder %s131, 63
        %s133 = scalar_select %p132, %s131, 63
        %s134 = smul.addr %s133, 4
        %s135 = smul.addr %s134, 8
        %s136 = scalar_lea.vmem %s0, %s135
        %s137 = smul.u32 32, %s9
      $region28: #{resnet_generator_forward.41} parent=23 // pred_fallthru
        _
    $region24: #{resnet_generator_forward.41} parent=5 // pred_fallthru
      _
    %p138 = scmp.le.s32.totalorder 1, %s9
    %p139 = scmp.lt.s32.totalorder %s9, 3
    %p140 = pnand %p138, %p139
    %p141 = pneg %p140
    // Predicated region
    $region29: #{resnet_generator_forward.41} parent=5 // pred_check
      _
    $region30: #{resnet_generator_forward.41} parent=5 // pred_check_branch
      %143 = sbr.rel (%p140) target = $region32
    $region31: #{resnet_generator_forward.41} parent=5 // pred_region
      %s144 = ssub.s32 %s9, 1
      %s145 = smul.u32 32, %s14
      %p146 = scmp.lt.s32.totalorder %s145, 63
      %s147 = scalar_select %p146, %s145, 63
      %s148 = smul.addr %s147, 4
      %s149 = smul.addr %s148, 8
      %s150 = scalar_lea.vmem %s0, %s149
      %p151 = pneg %p35
      %p152 = pneg %p32
      %p153 = pneg %p56
      %p154 = pneg %p53
      %p155 = pneg %p77
      %p156 = pneg %p74
      %p157 = pneg %p103
      %p158 = pneg %p100
      %s159 = smul.u32 32, %s14
      %p160 = scmp.lt.s32.totalorder %s159, 63
      %s161 = scalar_select %p160, %s159, 63
      %s162 = smul.addr %s161, 8
      %s163 = scalar_lea.vmem %s3, %s162
      %s164 = smul.u32 32, %s14
      %p165 = scmp.lt.s32.totalorder %s164, 63
      %s166 = scalar_select %p165, %s164, 63
      %s167 = smul.addr %s166, 4
      %s168 = smul.addr %s167, 8
      %s169 = scalar_lea.vmem %s0, %s168
      %s170 = smul.u32 32, %s14
      %s171 = smul.u32 32, %s14
      %p172 = scmp.lt.s32.totalorder %s171, 63
      %s173 = scalar_select %p172, %s171, 63
      %s174 = smul.addr %s173, 8
      %s175 = scalar_lea.vmem %s3, %s174
      %s176 = smul.u32 32, %s14
      %v177 = vld [vmem:[%s169] sm:$0xff]
      %v178 = vld [vmem:[%s169 + $0x8] sm:$0xff]
      %v179 = vld [vmem:[%s169 + $0x10] sm:$0xff]
      %v180 = vld [vmem:[%s169 + $0x18] sm:$0xff]
      %v181 = vld [vmem:[%s169 + $0x20] sm:$0xff]
      %v182 = vld [vmem:[%s169 + $0x28] sm:$0xff]
      %v183 = vld [vmem:[%s169 + $0x30] sm:$0xff]
      %v184 = vld [vmem:[%s169 + $0x38] sm:$0xff]
      %v185 = vld [vmem:[%s169 + $0x40] sm:$0xff]
      %v186 = vld [vmem:[%s169 + $0x48] sm:$0xff]
      %v187 = vld [vmem:[%s169 + $0x50] sm:$0xff]
      %v188 = vld [vmem:[%s169 + $0x58] sm:$0xff]
      %v189 = vld [vmem:[%s169 + $0x60] sm:$0xff]
      %v190 = vld [vmem:[%s169 + $0x68] sm:$0xff]
      %v191 = vld [vmem:[%s169 + $0x70] sm:$0xff]
      %v192 = vld [vmem:[%s169 + $0x78] sm:$0xff]
      %v193 = vld [vmem:[%s169 + $0x80] sm:$0xff]
      %v194 = vld [vmem:[%s169 + $0x88] sm:$0xff]
      %v195 = vld [vmem:[%s169 + $0x90] sm:$0xff]
      %v196 = vld [vmem:[%s169 + $0x98] sm:$0xff]
      %v197 = vld [vmem:[%s169 + $0xa0] sm:$0xff]
      %v198 = vld [vmem:[%s169 + $0xa8] sm:$0xff]
      %v199 = vld [vmem:[%s169 + $0xb0] sm:$0xff]
      %v200 = vld [vmem:[%s169 + $0xb8] sm:$0xff]
      %v201 = vld [vmem:[%s169 + $0xc0] sm:$0xff]
      %v202 = vld [vmem:[%s169 + $0xc8] sm:$0xff]
      %v203 = vld [vmem:[%s169 + $0xd0] sm:$0xff]
      %v204 = vld [vmem:[%s169 + $0xd8] sm:$0xff]
      %v205 = vld [vmem:[%s169 + $0xe0] sm:$0xff]
      %v206 = vld [vmem:[%s169 + $0xe8] sm:$0xff]
      %v207 = vld [vmem:[%s169 + $0xf0] sm:$0xff]
      %v208 = vld [vmem:[%s169 + $0xf8] sm:$0xff]
      %v209 = vld [vmem:[%s169 + $0x100] sm:$0xff]
      %v210 = vld [vmem:[%s169 + $0x108] sm:$0xff]
      %v211 = vld [vmem:[%s169 + $0x110] sm:$0xff]
      %v212 = vld [vmem:[%s169 + $0x118] sm:$0xff]
      %v213 = vld [vmem:[%s169 + $0x120] sm:$0xff]
      %v214 = vld [vmem:[%s169 + $0x128] sm:$0xff]
      %v215 = vld [vmem:[%s169 + $0x130] sm:$0xff]
      %v216 = vld [vmem:[%s169 + $0x138] sm:$0xff]
      %v217 = vld [vmem:[%s169 + $0x140] sm:$0xff]
      %v218 = vld [vmem:[%s169 + $0x148] sm:$0xff]
      %v219 = vld [vmem:[%s169 + $0x150] sm:$0xff]
      %v220 = vld [vmem:[%s169 + $0x158] sm:$0xff]
      %v221 = vld [vmem:[%s169 + $0x160] sm:$0xff]
      %v222 = vld [vmem:[%s169 + $0x168] sm:$0xff]
      %v223 = vld [vmem:[%s169 + $0x170] sm:$0xff]
      %v224 = vld [vmem:[%s169 + $0x178] sm:$0xff]
      %v225 = vld [vmem:[%s169 + $0x180] sm:$0xff]
      %v226 = vld [vmem:[%s169 + $0x188] sm:$0xff]
      %v227 = vld [vmem:[%s169 + $0x190] sm:$0xff]
      %v228 = vld [vmem:[%s169 + $0x198] sm:$0xff]
      %v229 = vld [vmem:[%s169 + $0x1a0] sm:$0xff]
      %v230 = vld [vmem:[%s169 + $0x1a8] sm:$0xff]
      %v231 = vld [vmem:[%s169 + $0x1b0] sm:$0xff]
      %v232 = vld [vmem:[%s169 + $0x1b8] sm:$0xff]
      %v233 = vld [vmem:[%s169 + $0x1c0] sm:$0xff]
      %v234 = vld [vmem:[%s169 + $0x1c8] sm:$0xff]
      %v235 = vld [vmem:[%s169 + $0x1d0] sm:$0xff]
      %v236 = vld [vmem:[%s169 + $0x1d8] sm:$0xff]
      %v237 = vld [vmem:[%s169 + $0x1e0] sm:$0xff]
      %v238 = vld [vmem:[%s169 + $0x1e8] sm:$0xff]
      %v239 = vld [vmem:[%s169 + $0x1f0] sm:$0xff]
      %v240 = vld [vmem:[%s169 + $0x1f8] sm:$0xff]
      %v241 = vld [vmem:[%s169 + $0x200] sm:$0xff]
      %v242 = vld [vmem:[%s169 + $0x208] sm:$0xff]
      %v243 = vld [vmem:[%s169 + $0x210] sm:$0xff]
      %v244 = vld [vmem:[%s169 + $0x218] sm:$0xff]
      %v245 = vld [vmem:[%s169 + $0x220] sm:$0xff]
      %v246 = vld [vmem:[%s169 + $0x228] sm:$0xff]
      %v247 = vld [vmem:[%s169 + $0x230] sm:$0xff]
      %v248 = vld [vmem:[%s169 + $0x238] sm:$0xff]
      %v249 = vld [vmem:[%s169 + $0x240] sm:$0xff]
      %v250 = vld [vmem:[%s169 + $0x248] sm:$0xff]
      %v251 = vld [vmem:[%s169 + $0x250] sm:$0xff]
      %v252 = vld [vmem:[%s169 + $0x258] sm:$0xff]
      %v253 = vld [vmem:[%s169 + $0x260] sm:$0xff]
      %v254 = vld [vmem:[%s169 + $0x268] sm:$0xff]
      %v255 = vld [vmem:[%s169 + $0x270] sm:$0xff]
      %v256 = vld [vmem:[%s169 + $0x278] sm:$0xff]
      %v257 = vld [vmem:[%s169 + $0x280] sm:$0xff]
      %v258 = vld [vmem:[%s169 + $0x288] sm:$0xff]
      %v259 = vld [vmem:[%s169 + $0x290] sm:$0xff]
      %v260 = vld [vmem:[%s169 + $0x298] sm:$0xff]
      %v261 = vld [vmem:[%s169 + $0x2a0] sm:$0xff]
      %v262 = vld [vmem:[%s169 + $0x2a8] sm:$0xff]
      %v263 = vld [vmem:[%s169 + $0x2b0] sm:$0xff]
      %v264 = vld [vmem:[%s169 + $0x2b8] sm:$0xff]
      %v265 = vld [vmem:[%s169 + $0x2c0] sm:$0xff]
      %v266 = vld [vmem:[%s169 + $0x2c8] sm:$0xff]
      %v267 = vld [vmem:[%s169 + $0x2d0] sm:$0xff]
      %v268 = vld [vmem:[%s169 + $0x2d8] sm:$0xff]
      %v269 = vld [vmem:[%s169 + $0x2e0] sm:$0xff]
      %v270 = vld [vmem:[%s169 + $0x2e8] sm:$0xff]
      %v271 = vld [vmem:[%s169 + $0x2f0] sm:$0xff]
      %v272 = vld [vmem:[%s169 + $0x2f8] sm:$0xff]
      %v273 = vld [vmem:[%s169 + $0x300] sm:$0xff]
      %v274 = vld [vmem:[%s169 + $0x308] sm:$0xff]
      %v275 = vld [vmem:[%s169 + $0x310] sm:$0xff]
      %v276 = vld [vmem:[%s169 + $0x318] sm:$0xff]
      %v277 = vld [vmem:[%s169 + $0x320] sm:$0xff]
      %v278 = vld [vmem:[%s169 + $0x328] sm:$0xff]
      %v279 = vld [vmem:[%s169 + $0x330] sm:$0xff]
      %v280 = vld [vmem:[%s169 + $0x338] sm:$0xff]
      %v281 = vld [vmem:[%s169 + $0x340] sm:$0xff]
      %v282 = vld [vmem:[%s169 + $0x348] sm:$0xff]
      %v283 = vld [vmem:[%s169 + $0x350] sm:$0xff]
      %v284 = vld [vmem:[%s169 + $0x358] sm:$0xff]
      %v285 = vld [vmem:[%s169 + $0x360] sm:$0xff]
      %v286 = vld [vmem:[%s169 + $0x368] sm:$0xff]
      %v287 = vld [vmem:[%s169 + $0x370] sm:$0xff]
      %v288 = vld [vmem:[%s169 + $0x378] sm:$0xff]
      %v289 = vld [vmem:[%s169 + $0x380] sm:$0xff]
      %v290 = vld [vmem:[%s169 + $0x388] sm:$0xff]
      %v291 = vld [vmem:[%s169 + $0x390] sm:$0xff]
      %v292 = vld [vmem:[%s169 + $0x398] sm:$0xff]
      %v293 = vld [vmem:[%s169 + $0x3a0] sm:$0xff]
      %v294 = vld [vmem:[%s169 + $0x3a8] sm:$0xff]
      %v295 = vld [vmem:[%s169 + $0x3b0] sm:$0xff]
      %v296 = vld [vmem:[%s169 + $0x3b8] sm:$0xff]
      %v297 = vld [vmem:[%s169 + $0x3c0] sm:$0xff]
      %v298 = vld [vmem:[%s169 + $0x3c8] sm:$0xff]
      %v299 = vld [vmem:[%s169 + $0x3d0] sm:$0xff]
      %v300 = vld [vmem:[%s169 + $0x3d8] sm:$0xff]
      %v301 = vld [vmem:[%s169 + $0x3e0] sm:$0xff]
      %v302 = vld [vmem:[%s169 + $0x3e8] sm:$0xff]
      %v303 = vld [vmem:[%s169 + $0x3f0] sm:$0xff]
      %v304 = vld [vmem:[%s169 + $0x3f8] sm:$0xff]
      %v305 = vld [vmem:[%s1] sm:$0xff]
      %v306 = vld [vmem:[%s1 + $0x8] sm:$0xff]
      %v307 = vld [vmem:[%s1 + $0x10] sm:$0xff]
      %v308 = vld [vmem:[%s1 + $0x18] sm:$0xff]
      %v309 = vld [vmem:[%s1 + $0x20] sm:$0xff]
      %v310 = vld [vmem:[%s1 + $0x28] sm:$0xff]
      %v311 = vld [vmem:[%s1 + $0x30] sm:$0xff]
      %v312 = vld [vmem:[%s1 + $0x38] sm:$0xff]
      %v313 = vld [vmem:[%s1 + $0x40] sm:$0xff]
      %v314 = vld [vmem:[%s1 + $0x48] sm:$0xff]
      %v315 = vld [vmem:[%s1 + $0x50] sm:$0xff]
      %v316 = vld [vmem:[%s1 + $0x58] sm:$0xff]
      %v317 = vld [vmem:[%s1 + $0x60] sm:$0xff]
      %v318 = vld [vmem:[%s1 + $0x68] sm:$0xff]
      %v319 = vld [vmem:[%s1 + $0x70] sm:$0xff]
      %v320 = vld [vmem:[%s1 + $0x78] sm:$0xff]
      %v321 = vld [vmem:[%s1 + $0x80] sm:$0xff]
      %v322 = vld [vmem:[%s1 + $0x88] sm:$0xff]
      %v323 = vld [vmem:[%s1 + $0x90] sm:$0xff]
      %v324 = vld [vmem:[%s1 + $0x98] sm:$0xff]
      %v325 = vld [vmem:[%s1 + $0xa0] sm:$0xff]
      %v326 = vld [vmem:[%s1 + $0xa8] sm:$0xff]
      %v327 = vld [vmem:[%s1 + $0xb0] sm:$0xff]
      %v328 = vld [vmem:[%s1 + $0xb8] sm:$0xff]
      %v329 = vld [vmem:[%s1 + $0xc0] sm:$0xff]
      %v330 = vld [vmem:[%s1 + $0xc8] sm:$0xff]
      %v331 = vld [vmem:[%s1 + $0xd0] sm:$0xff]
      %v332 = vld [vmem:[%s1 + $0xd8] sm:$0xff]
      %v333 = vld [vmem:[%s1 + $0xe0] sm:$0xff]
      %v334 = vld [vmem:[%s1 + $0xe8] sm:$0xff]
      %v335 = vld [vmem:[%s1 + $0xf0] sm:$0xff]
      %v336 = vld [vmem:[%s1 + $0xf8] sm:$0xff]
      %v337 = vld [vmem:[%s1 + $0x100] sm:$0xff]
      %v338 = vld [vmem:[%s1 + $0x108] sm:$0xff]
      %v339 = vld [vmem:[%s1 + $0x110] sm:$0xff]
      %v340 = vld [vmem:[%s1 + $0x118] sm:$0xff]
      %v341 = vld [vmem:[%s1 + $0x120] sm:$0xff]
      %v342 = vld [vmem:[%s1 + $0x128] sm:$0xff]
      %v343 = vld [vmem:[%s1 + $0x130] sm:$0xff]
      %v344 = vld [vmem:[%s1 + $0x138] sm:$0xff]
      %v345 = vld [vmem:[%s1 + $0x140] sm:$0xff]
      %v346 = vld [vmem:[%s1 + $0x148] sm:$0xff]
      %v347 = vld [vmem:[%s1 + $0x150] sm:$0xff]
      %v348 = vld [vmem:[%s1 + $0x158] sm:$0xff]
      %v349 = vld [vmem:[%s1 + $0x160] sm:$0xff]
      %v350 = vld [vmem:[%s1 + $0x168] sm:$0xff]
      %v351 = vld [vmem:[%s1 + $0x170] sm:$0xff]
      %v352 = vld [vmem:[%s1 + $0x178] sm:$0xff]
      %v353 = vld [vmem:[%s1 + $0x180] sm:$0xff]
      %v354 = vld [vmem:[%s2] sm:$0x1]
      %v356 = vlaneseq
      %v357 = vshrl.u32 %v356, 7
      %v358 = vsub.s32 0, %v357
      %v359 = vrot.slane %v354, %v358
      %vm361 = vcmask 64512
      %v363 = vsel %vm361, %v180, 0
      %v366 = vsel %vm361, %v184, 0
      %v369 = vsel %vm361, %v188, 0
      %v372 = vsel %vm361, %v192, 0
      %v375 = vsel %vm361, %v196, 0
      %v378 = vsel %vm361, %v200, 0
      %v381 = vsel %vm361, %v204, 0
      %v384 = vsel %vm361, %v208, 0
      %v387 = vsel %vm361, %v212, 0
      %v390 = vsel %vm361, %v216, 0
      %v393 = vsel %vm361, %v220, 0
      %v396 = vsel %vm361, %v224, 0
      %v399 = vsel %vm361, %v228, 0
      %v402 = vsel %vm361, %v232, 0
      %v405 = vsel %vm361, %v236, 0
      %v408 = vsel %vm361, %v240, 0
      %v411 = vsel %vm361, %v244, 0
      %v414 = vsel %vm361, %v248, 0
      %v417 = vsel %vm361, %v252, 0
      %v420 = vsel %vm361, %v256, 0
      %v423 = vsel %vm361, %v260, 0
      %v426 = vsel %vm361, %v264, 0
      %v429 = vsel %vm361, %v268, 0
      %v432 = vsel %vm361, %v272, 0
      %v435 = vsel %vm361, %v276, 0
      %v438 = vsel %vm361, %v280, 0
      %v441 = vsel %vm361, %v284, 0
      %v444 = vsel %vm361, %v288, 0
      %v447 = vsel %vm361, %v292, 0
      %v450 = vsel %vm361, %v296, 0
      %v453 = vsel %vm361, %v300, 0
      %v456 = vsel %vm361, %v304, 0
      %458 = vmatprep.subr.mxu0 0.0
      %459 = vmatpush1.msra.mxu0 %v320
      %460 = vmatprep.subr.mxu0 0.0
      %461 = vmatpush1.msra.mxu0 %v319
      %462 = vmatprep.subr.mxu0 0.0
      %463 = vmatpush1.msra.mxu0 %v318
      %464 = vmatprep.subr.mxu0 0.0
      %465 = vmatpush1.msra.mxu0 %v317
      %466 = vmatprep.subr.mxu0 0.0
      %467 = vmatpush1.msra.mxu0 %v316
      %468 = vmatprep.subr.mxu0 0.0
      %469 = vmatpush1.msra.mxu0 %v315
      %470 = vmatprep.subr.mxu0 0.0
      %471 = vmatpush1.msra.mxu0 %v314
      %472 = vmatprep.subr.mxu0 0.0
      %473 = vmatpush1.msra.mxu0 %v313
      %474 = vmatprep.subr.mxu0 0.0
      %475 = vmatpush1.msra.mxu0 %v312
      %476 = vmatprep.subr.mxu0 0.0
      %477 = vmatpush1.msra.mxu0 %v311
      %478 = vmatprep.subr.mxu0 0.0
      %479 = vmatpush1.msra.mxu0 %v310
      %480 = vmatprep.subr.mxu0 0.0
      %481 = vmatpush1.msra.mxu0 %v309
      %482 = vmatprep.subr.mxu0 0.0
      %483 = vmatpush1.msra.mxu0 %v308
      %484 = vmatprep.subr.mxu0 0.0
      %485 = vmatpush1.msra.mxu0 %v307
      %486 = vmatprep.subr.mxu0 0.0
      %487 = vmatpush1.msra.mxu0 %v306
      %488 = vmatprep.subr.mxu0 0.0
      %489 = vmatpush1.msra.mxu0 %v305
      %490 = vmatprep.subr.mxu0 0.0
      %491 = vmatpush2.msra.mxu0 %v336
      %492 = vmatprep.subr.mxu0 0.0
      %493 = vmatpush2.msra.mxu0 %v335
      %494 = vmatprep.subr.mxu0 0.0
      %495 = vmatpush2.msra.mxu0 %v334
      %496 = vmatprep.subr.mxu0 0.0
      %497 = vmatpush2.msra.mxu0 %v333
      %498 = vmatprep.subr.mxu0 0.0
      %499 = vmatpush2.msra.mxu0 %v332
      %500 = vmatprep.subr.mxu0 0.0
      %501 = vmatpush2.msra.mxu0 %v331
      %502 = vmatprep.subr.mxu0 0.0
      %503 = vmatpush2.msra.mxu0 %v330
      %504 = vmatprep.subr.mxu0 0.0
      %505 = vmatpush2.msra.mxu0 %v329
      %506 = vmatprep.subr.mxu0 0.0
      %507 = vmatpush2.msra.mxu0 %v328
      %508 = vmatprep.subr.mxu0 0.0
      %509 = vmatpush2.msra.mxu0 %v327
      %510 = vmatprep.subr.mxu0 0.0
      %511 = vmatpush2.msra.mxu0 %v326
      %512 = vmatprep.subr.mxu0 0.0
      %513 = vmatpush2.msra.mxu0 %v325
      %514 = vmatprep.subr.mxu0 0.0
      %515 = vmatpush2.msra.mxu0 %v324
      %516 = vmatprep.subr.mxu0 0.0
      %517 = vmatpush2.msra.mxu0 %v323
      %518 = vmatprep.subr.mxu0 0.0
      %519 = vmatpush2.msra.mxu0 %v322
      %520 = vmatprep.subr.mxu0 0.0
      %521 = vmatpush2.msra.mxu0 %v321
      %522 = vmatprep.mubr.f32.mxu0 %v178
      %523 = vmatmul.mubr.f32.gmra.mxu0 %v177
      %v524 = vpop.f32.mrf.mxu0
      %v525 = vadd.f32 %v359, %v524
      %v526 = vpop.f32.mrf.mxu0
      %527 = vmatprep.mubr.f32.mxu0 %v182
      %528 = vmatmul.mubr.f32.gmra.mxu0 %v181
      %v529 = vpop.f32.mrf.mxu0
      %v530 = vadd.f32 %v359, %v529
      %v531 = vpop.f32.mrf.mxu0
      %532 = vmatprep.mubr.f32.mxu0 %v186
      %533 = vmatmul.mubr.f32.gmra.mxu0 %v185
      %v534 = vpop.f32.mrf.mxu0
      %v535 = vadd.f32 %v359, %v534
      %v536 = vpop.f32.mrf.mxu0
      %537 = vmatprep.mubr.f32.mxu0 %v190
      %538 = vmatmul.mubr.f32.gmra.mxu0 %v189
      %v539 = vpop.f32.mrf.mxu0
      %v540 = vadd.f32 %v359, %v539
      %v541 = vpop.f32.mrf.mxu0
      %542 = vmatprep.mubr.f32.mxu0 %v194
      %543 = vmatmul.mubr.f32.gmra.mxu0 %v193
      %v544 = vpop.f32.mrf.mxu0
      %v545 = vadd.f32 %v359, %v544
      %v546 = vpop.f32.mrf.mxu0
      %547 = vmatprep.mubr.f32.mxu0 %v198
      %548 = vmatmul.mubr.f32.gmra.mxu0 %v197
      %v549 = vpop.f32.mrf.mxu0
      %v550 = vadd.f32 %v359, %v549
      %v551 = vpop.f32.mrf.mxu0
      %552 = vmatprep.mubr.f32.mxu0 %v202
      %553 = vmatmul.mubr.f32.gmra.mxu0 %v201
      %v554 = vpop.f32.mrf.mxu0
      %v555 = vadd.f32 %v359, %v554
      %v556 = vpop.f32.mrf.mxu0
      %557 = vmatprep.mubr.f32.mxu0 %v206
      %558 = vmatmul.mubr.f32.gmra.mxu0 %v205
      %v559 = vpop.f32.mrf.mxu0
      %v560 = vadd.f32 %v359, %v559
      %v561 = vpop.f32.mrf.mxu0
      %562 = vmatprep.mubr.f32.mxu0 %v210
      %563 = vmatmul.mubr.f32.gmra.mxu0 %v209
      %v564 = vpop.f32.mrf.mxu0
      %v565 = vadd.f32 %v359, %v564
      %v566 = vpop.f32.mrf.mxu0
      %567 = vmatprep.mubr.f32.mxu0 %v214
      %568 = vmatmul.mubr.f32.gmra.mxu0 %v213
      %v569 = vpop.f32.mrf.mxu0
      %v570 = vadd.f32 %v359, %v569
      %v571 = vpop.f32.mrf.mxu0
      %572 = vmatprep.mubr.f32.mxu0 %v218
      %573 = vmatmul.mubr.f32.gmra.mxu0 %v217
      %v574 = vpop.f32.mrf.mxu0
      %v575 = vadd.f32 %v359, %v574
      %v576 = vpop.f32.mrf.mxu0
      %577 = vmatprep.mubr.f32.mxu0 %v222
      %578 = vmatmul.mubr.f32.gmra.mxu0 %v221
      %v579 = vpop.f32.mrf.mxu0
      %v580 = vadd.f32 %v359, %v579
      %v581 = vpop.f32.mrf.mxu0
      %582 = vmatprep.mubr.f32.mxu0 %v226
      %583 = vmatmul.mubr.f32.gmra.mxu0 %v225
      %v584 = vpop.f32.mrf.mxu0
      %v585 = vadd.f32 %v359, %v584
      %v586 = vpop.f32.mrf.mxu0
      %587 = vmatprep.mubr.f32.mxu0 %v230
      %588 = vmatmul.mubr.f32.gmra.mxu0 %v229
      %v589 = vpop.f32.mrf.mxu0
      %v590 = vadd.f32 %v359, %v589
      %v591 = vpop.f32.mrf.mxu0
      %592 = vmatprep.mubr.f32.mxu0 %v234
      %593 = vmatmul.mubr.f32.gmra.mxu0 %v233
      %v594 = vpop.f32.mrf.mxu0
      %v595 = vadd.f32 %v359, %v594
      %v596 = vpop.f32.mrf.mxu0
      %597 = vmatprep.mubr.f32.mxu0 %v238
      %598 = vmatmul.mubr.f32.gmra.mxu0 %v237
      %v599 = vpop.f32.mrf.mxu0
      %v600 = vadd.f32 %v359, %v599
      %v601 = vpop.f32.mrf.mxu0
      %602 = vmatprep.mubr.f32.mxu0 %v242
      %603 = vmatmul.mubr.f32.gmra.mxu0 %v241
      %v604 = vpop.f32.mrf.mxu0
      %v605 = vadd.f32 %v359, %v604
      %v606 = vpop.f32.mrf.mxu0
      %607 = vmatprep.mubr.f32.mxu0 %v246
      %608 = vmatmul.mubr.f32.gmra.mxu0 %v245
      %v609 = vpop.f32.mrf.mxu0
      %v610 = vadd.f32 %v359, %v609
      %v611 = vpop.f32.mrf.mxu0
      %612 = vmatprep.mubr.f32.mxu0 %v250
      %613 = vmatmul.mubr.f32.gmra.mxu0 %v249
      %v614 = vpop.f32.mrf.mxu0
      %v615 = vadd.f32 %v359, %v614
      %v616 = vpop.f32.mrf.mxu0
      %617 = vmatprep.mubr.f32.mxu0 %v254
      %618 = vmatmul.mubr.f32.gmra.mxu0 %v253
      %v619 = vpop.f32.mrf.mxu0
      %v620 = vadd.f32 %v359, %v619
      %v621 = vpop.f32.mrf.mxu0
      %622 = vmatprep.mubr.f32.mxu0 %v258
      %623 = vmatmul.mubr.f32.gmra.mxu0 %v257
      %v624 = vpop.f32.mrf.mxu0
      %v625 = vadd.f32 %v359, %v624
      %v626 = vpop.f32.mrf.mxu0
      %627 = vmatprep.mubr.f32.mxu0 %v262
      %628 = vmatmul.mubr.f32.gmra.mxu0 %v261
      %v629 = vpop.f32.mrf.mxu0
      %v630 = vadd.f32 %v359, %v629
      %v631 = vpop.f32.mrf.mxu0
      %632 = vmatprep.mubr.f32.mxu0 %v266
      %633 = vmatmul.mubr.f32.gmra.mxu0 %v265
      %v634 = vpop.f32.mrf.mxu0
      %v635 = vadd.f32 %v359, %v634
      %v636 = vpop.f32.mrf.mxu0
      %637 = vmatprep.mubr.f32.mxu0 %v270
      %638 = vmatmul.mubr.f32.gmra.mxu0 %v269
      %v639 = vpop.f32.mrf.mxu0
      %v640 = vadd.f32 %v359, %v639
      %v641 = vpop.f32.mrf.mxu0
      %642 = vmatprep.mubr.f32.mxu0 %v274
      %643 = vmatmul.mubr.f32.gmra.mxu0 %v273
      %v644 = vpop.f32.mrf.mxu0
      %v645 = vadd.f32 %v359, %v644
      %v646 = vpop.f32.mrf.mxu0
      %647 = vmatprep.mubr.f32.mxu0 %v278
      %648 = vmatmul.mubr.f32.gmra.mxu0 %v277
      %v649 = vpop.f32.mrf.mxu0
      %v650 = vadd.f32 %v359, %v649
      %v651 = vpop.f32.mrf.mxu0
      %652 = vmatprep.mubr.f32.mxu0 %v282
      %653 = vmatmul.mubr.f32.gmra.mxu0 %v281
      %v654 = vpop.f32.mrf.mxu0
      %v655 = vadd.f32 %v359, %v654
      %v656 = vpop.f32.mrf.mxu0
      %657 = vmatprep.mubr.f32.mxu0 %v286
      %658 = vmatmul.mubr.f32.gmra.mxu0 %v285
      %v659 = vpop.f32.mrf.mxu0
      %v660 = vadd.f32 %v359, %v659
      %v661 = vpop.f32.mrf.mxu0
      %662 = vmatprep.mubr.f32.mxu0 %v290
      %663 = vmatmul.mubr.f32.gmra.mxu0 %v289
      %v664 = vpop.f32.mrf.mxu0
      %v665 = vadd.f32 %v359, %v664
      %v666 = vpop.f32.mrf.mxu0
      %667 = vmatprep.mubr.f32.mxu0 %v294
      %668 = vmatmul.mubr.f32.gmra.mxu0 %v293
      %v669 = vpop.f32.mrf.mxu0
      %v670 = vadd.f32 %v359, %v669
      %v671 = vpop.f32.mrf.mxu0
      %672 = vmatprep.mubr.f32.mxu0 %v298
      %673 = vmatmul.mubr.f32.gmra.mxu0 %v297
      %v674 = vpop.f32.mrf.mxu0
      %v675 = vadd.f32 %v359, %v674
      %v676 = vpop.f32.mrf.mxu0
      %677 = vmatprep.mubr.f32.mxu0 %v302
      %678 = vmatmul.mubr.f32.gmra.mxu0 %v301
      %v679 = vpop.f32.mrf.mxu0
      %v680 = vadd.f32 %v359, %v679
      %v681 = vpop.f32.mrf.mxu0
      %682 = vdwg.mxu0
      %683 = vmatprep.subr.mxu0 0.0
      %684 = vmatpush1.msra.mxu0 %v352
      %685 = vmatprep.subr.mxu0 0.0
      %686 = vmatpush1.msra.mxu0 %v351
      %687 = vmatprep.subr.mxu0 0.0
      %688 = vmatpush1.msra.mxu0 %v350
      %689 = vmatprep.subr.mxu0 0.0
      %690 = vmatpush1.msra.mxu0 %v349
      %691 = vmatprep.subr.mxu0 0.0
      %692 = vmatpush1.msra.mxu0 %v348
      %693 = vmatprep.subr.mxu0 0.0
      %694 = vmatpush1.msra.mxu0 %v347
      %695 = vmatprep.subr.mxu0 0.0
      %696 = vmatpush1.msra.mxu0 %v346
      %697 = vmatprep.subr.mxu0 0.0
      %698 = vmatpush1.msra.mxu0 %v345
      %699 = vmatprep.subr.mxu0 0.0
      %700 = vmatpush1.msra.mxu0 %v344
      %701 = vmatprep.subr.mxu0 0.0
      %702 = vmatpush1.msra.mxu0 %v343
      %703 = vmatprep.subr.mxu0 0.0
      %704 = vmatpush1.msra.mxu0 %v342
      %705 = vmatprep.subr.mxu0 0.0
      %706 = vmatpush1.msra.mxu0 %v341
      %707 = vmatprep.subr.mxu0 0.0
      %708 = vmatpush1.msra.mxu0 %v340
      %709 = vmatprep.subr.mxu0 0.0
      %710 = vmatpush1.msra.mxu0 %v339
      %711 = vmatprep.subr.mxu0 0.0
      %712 = vmatpush1.msra.mxu0 %v338
      %713 = vmatprep.subr.mxu0 0.0
      %714 = vmatpush1.msra.mxu0 %v337
      %715 = vmatprep.subr.mxu0 0.0
      %716 = vmatpush2.msra.mxu0 0.0
      %717 = vmatprep.subr.mxu0 0.0
      %718 = vmatpush2.msra.mxu0 0.0
      %719 = vmatprep.subr.mxu0 0.0
      %720 = vmatpush2.msra.mxu0 0.0
      %721 = vmatprep.subr.mxu0 0.0
      %722 = vmatpush2.msra.mxu0 0.0
      %723 = vmatprep.subr.mxu0 0.0
      %724 = vmatpush2.msra.mxu0 0.0
      %725 = vmatprep.subr.mxu0 0.0
      %726 = vmatpush2.msra.mxu0 0.0
      %727 = vmatprep.subr.mxu0 0.0
      %728 = vmatpush2.msra.mxu0 0.0
      %729 = vmatprep.subr.mxu0 0.0
      %730 = vmatpush2.msra.mxu0 0.0
      %731 = vmatprep.subr.mxu0 0.0
      %732 = vmatpush2.msra.mxu0 0.0
      %733 = vmatprep.subr.mxu0 0.0
      %734 = vmatpush2.msra.mxu0 0.0
      %735 = vmatprep.subr.mxu0 0.0
      %736 = vmatpush2.msra.mxu0 0.0
      %737 = vmatprep.subr.mxu0 0.0
      %738 = vmatpush2.msra.mxu0 0.0
      %739 = vmatprep.subr.mxu0 0.0
      %740 = vmatpush2.msra.mxu0 0.0
      %741 = vmatprep.subr.mxu0 0.0
      %742 = vmatpush2.msra.mxu0 0.0
      %743 = vmatprep.subr.mxu0 0.0
      %744 = vmatpush2.msra.mxu0 0.0
      %745 = vmatprep.subr.mxu0 0.0
      %746 = vmatpush2.msra.mxu0 %v353
      %747 = vmatprep.mubr.f32.mxu0 %v363
      %748 = vmatmul.mubr.f32.gmra.mxu0 %v179
      %v749 = vpop.f32.mrf.mxu0
      %v750 = vadd.f32 %v525, %v749
      %v751 = vpop.f32.mrf.mxu0
      %752 = vmatprep.mubr.f32.mxu0 %v366
      %753 = vmatmul.mubr.f32.gmra.mxu0 %v183
      %v754 = vpop.f32.mrf.mxu0
      %v755 = vadd.f32 %v530, %v754
      %v756 = vpop.f32.mrf.mxu0
      %757 = vmatprep.mubr.f32.mxu0 %v369
      %758 = vmatmul.mubr.f32.gmra.mxu0 %v187
      %v759 = vpop.f32.mrf.mxu0
      %v760 = vadd.f32 %v535, %v759
      %v761 = vpop.f32.mrf.mxu0
      %762 = vmatprep.mubr.f32.mxu0 %v372
      %763 = vmatmul.mubr.f32.gmra.mxu0 %v191
      %v764 = vpop.f32.mrf.mxu0
      %v765 = vadd.f32 %v540, %v764
      %v766 = vpop.f32.mrf.mxu0
      %767 = vmatprep.mubr.f32.mxu0 %v375
      %768 = vmatmul.mubr.f32.gmra.mxu0 %v195
      %v769 = vpop.f32.mrf.mxu0
      %v770 = vadd.f32 %v545, %v769
      %v771 = vpop.f32.mrf.mxu0
      %772 = vmatprep.mubr.f32.mxu0 %v378
      %773 = vmatmul.mubr.f32.gmra.mxu0 %v199
      %v774 = vpop.f32.mrf.mxu0
      %v775 = vadd.f32 %v550, %v774
      %v776 = vpop.f32.mrf.mxu0
      %777 = vmatprep.mubr.f32.mxu0 %v381
      %778 = vmatmul.mubr.f32.gmra.mxu0 %v203
      %v779 = vpop.f32.mrf.mxu0
      %v780 = vadd.f32 %v555, %v779
      %v781 = vpop.f32.mrf.mxu0
      %782 = vmatprep.mubr.f32.mxu0 %v384
      %783 = vmatmul.mubr.f32.gmra.mxu0 %v207
      %v784 = vpop.f32.mrf.mxu0
      %v785 = vadd.f32 %v560, %v784
      %v786 = vpop.f32.mrf.mxu0
      %787 = vmatprep.mubr.f32.mxu0 %v387
      %788 = vmatmul.mubr.f32.gmra.mxu0 %v211
      %v789 = vpop.f32.mrf.mxu0
      %v790 = vadd.f32 %v565, %v789
      %v791 = vpop.f32.mrf.mxu0
      %792 = vmatprep.mubr.f32.mxu0 %v390
      %793 = vmatmul.mubr.f32.gmra.mxu0 %v215
      %v794 = vpop.f32.mrf.mxu0
      %v795 = vadd.f32 %v570, %v794
      %v796 = vpop.f32.mrf.mxu0
      %797 = vmatprep.mubr.f32.mxu0 %v393
      %798 = vmatmul.mubr.f32.gmra.mxu0 %v219
      %v799 = vpop.f32.mrf.mxu0
      %v800 = vadd.f32 %v575, %v799
      %v801 = vpop.f32.mrf.mxu0
      %802 = vmatprep.mubr.f32.mxu0 %v396
      %803 = vmatmul.mubr.f32.gmra.mxu0 %v223
      %v804 = vpop.f32.mrf.mxu0
      %v805 = vadd.f32 %v580, %v804
      %v806 = vpop.f32.mrf.mxu0
      %807 = vmatprep.mubr.f32.mxu0 %v399
      %808 = vmatmul.mubr.f32.gmra.mxu0 %v227
      %v809 = vpop.f32.mrf.mxu0
      %v810 = vadd.f32 %v585, %v809
      %v811 = vpop.f32.mrf.mxu0
      %812 = vmatprep.mubr.f32.mxu0 %v402
      %813 = vmatmul.mubr.f32.gmra.mxu0 %v231
      %v814 = vpop.f32.mrf.mxu0
      %v815 = vadd.f32 %v590, %v814
      %v816 = vpop.f32.mrf.mxu0
      %817 = vmatprep.mubr.f32.mxu0 %v405
      %818 = vmatmul.mubr.f32.gmra.mxu0 %v235
      %v819 = vpop.f32.mrf.mxu0
      %v820 = vadd.f32 %v595, %v819
      %v821 = vpop.f32.mrf.mxu0
      %822 = vmatprep.mubr.f32.mxu0 %v408
      %823 = vmatmul.mubr.f32.gmra.mxu0 %v239
      %v824 = vpop.f32.mrf.mxu0
      %v825 = vadd.f32 %v600, %v824
      %v826 = vpop.f32.mrf.mxu0
      %827 = vmatprep.mubr.f32.mxu0 %v411
      %828 = vmatmul.mubr.f32.gmra.mxu0 %v243
      %v829 = vpop.f32.mrf.mxu0
      %v830 = vadd.f32 %v605, %v829
      %v831 = vpop.f32.mrf.mxu0
      %832 = vmatprep.mubr.f32.mxu0 %v414
      %833 = vmatmul.mubr.f32.gmra.mxu0 %v247
      %v834 = vpop.f32.mrf.mxu0
      %v835 = vadd.f32 %v610, %v834
      %v836 = vpop.f32.mrf.mxu0
      %837 = vmatprep.mubr.f32.mxu0 %v417
      %838 = vmatmul.mubr.f32.gmra.mxu0 %v251
      %v839 = vpop.f32.mrf.mxu0
      %v840 = vadd.f32 %v615, %v839
      %v841 = vpop.f32.mrf.mxu0
      %842 = vmatprep.mubr.f32.mxu0 %v420
      %843 = vmatmul.mubr.f32.gmra.mxu0 %v255
      %v844 = vpop.f32.mrf.mxu0
      %v845 = vadd.f32 %v620, %v844
      %v846 = vpop.f32.mrf.mxu0
      %847 = vmatprep.mubr.f32.mxu0 %v423
      %848 = vmatmul.mubr.f32.gmra.mxu0 %v259
      %v849 = vpop.f32.mrf.mxu0
      %v850 = vadd.f32 %v625, %v849
      %v851 = vpop.f32.mrf.mxu0
      %852 = vmatprep.mubr.f32.mxu0 %v426
      %853 = vmatmul.mubr.f32.gmra.mxu0 %v263
      %v854 = vpop.f32.mrf.mxu0
      %v855 = vadd.f32 %v630, %v854
      %v856 = vpop.f32.mrf.mxu0
      %857 = vmatprep.mubr.f32.mxu0 %v429
      %858 = vmatmul.mubr.f32.gmra.mxu0 %v267
      %v859 = vpop.f32.mrf.mxu0
      %v860 = vadd.f32 %v635, %v859
      %v861 = vpop.f32.mrf.mxu0
      %862 = vmatprep.mubr.f32.mxu0 %v432
      %863 = vmatmul.mubr.f32.gmra.mxu0 %v271
      %v864 = vpop.f32.mrf.mxu0
      %v865 = vadd.f32 %v640, %v864
      %v866 = vpop.f32.mrf.mxu0
      %867 = vmatprep.mubr.f32.mxu0 %v435
      %868 = vmatmul.mubr.f32.gmra.mxu0 %v275
      %v869 = vpop.f32.mrf.mxu0
      %v870 = vadd.f32 %v645, %v869
      %v871 = vpop.f32.mrf.mxu0
      %872 = vmatprep.mubr.f32.mxu0 %v438
      %873 = vmatmul.mubr.f32.gmra.mxu0 %v279
      %v874 = vpop.f32.mrf.mxu0
      %v875 = vadd.f32 %v650, %v874
      %v876 = vpop.f32.mrf.mxu0
      %877 = vmatprep.mubr.f32.mxu0 %v441
      %878 = vmatmul.mubr.f32.gmra.mxu0 %v283
      %v879 = vpop.f32.mrf.mxu0
      %v880 = vadd.f32 %v655, %v879
      %v881 = vpop.f32.mrf.mxu0
      %882 = vmatprep.mubr.f32.mxu0 %v444
      %883 = vmatmul.mubr.f32.gmra.mxu0 %v287
      %v884 = vpop.f32.mrf.mxu0
      %v885 = vadd.f32 %v660, %v884
      %v886 = vpop.f32.mrf.mxu0
      %887 = vmatprep.mubr.f32.mxu0 %v447
      %888 = vmatmul.mubr.f32.gmra.mxu0 %v291
      %v889 = vpop.f32.mrf.mxu0
      %v890 = vadd.f32 %v665, %v889
      %v891 = vpop.f32.mrf.mxu0
      %892 = vmatprep.mubr.f32.mxu0 %v450
      %893 = vmatmul.mubr.f32.gmra.mxu0 %v295
      %v894 = vpop.f32.mrf.mxu0
      %v895 = vadd.f32 %v670, %v894
      %v896 = vpop.f32.mrf.mxu0
      %897 = vmatprep.mubr.f32.mxu0 %v453
      %898 = vmatmul.mubr.f32.gmra.mxu0 %v299
      %v899 = vpop.f32.mrf.mxu0
      %v900 = vadd.f32 %v675, %v899
      %v901 = vpop.f32.mrf.mxu0
      %902 = vmatprep.mubr.f32.mxu0 %v456
      %903 = vmatmul.mubr.f32.gmra.mxu0 %v303
      %v904 = vpop.f32.mrf.mxu0
      %v905 = vadd.f32 %v680, %v904
      %v906 = vpop.f32.mrf.mxu0
      %907 = vdwg.mxu0
      %v908 = vtanh.pop %v750
      %v909 = vtanh.pop %v755
      %v910 = vtanh.pop %v760
      %v911 = vtanh.pop %v765
      %v912 = vtanh.pop %v770
      %v913 = vtanh.pop %v775
      %v914 = vtanh.pop %v780
      %v915 = vtanh.pop %v785
      %v916 = vtanh.pop %v790
      %v917 = vtanh.pop %v795
      %v918 = vtanh.pop %v800
      %v919 = vtanh.pop %v805
      %v920 = vtanh.pop %v810
      %v921 = vtanh.pop %v815
      %v922 = vtanh.pop %v820
      %v923 = vtanh.pop %v825
      %v924 = vtanh.pop %v830
      %v925 = vtanh.pop %v835
      %v926 = vtanh.pop %v840
      %v927 = vtanh.pop %v845
      %v928 = vtanh.pop %v850
      %v929 = vtanh.pop %v855
      %v930 = vtanh.pop %v860
      %v931 = vtanh.pop %v865
      %v932 = vtanh.pop %v870
      %v933 = vtanh.pop %v875
      %v934 = vtanh.pop %v880
      %v935 = vtanh.pop %v885
      %v936 = vtanh.pop %v890
      %v937 = vtanh.pop %v895
      %v938 = vtanh.pop %v900
      %v939 = vtanh.pop %v905
      %vm940 = vcmask 23552
      %941 = vst.msk [vmem:[%s175] sm:$0xff] %vm940, %v908
      %942 = vst.msk [vmem:[%s175 + $0x8] sm:$0xff] %vm940, %v909
      %943 = vst.msk [vmem:[%s175 + $0x10] sm:$0xff] %vm940, %v910
      %944 = vst.msk [vmem:[%s175 + $0x18] sm:$0xff] %vm940, %v911
      %945 = vst.msk [vmem:[%s175 + $0x20] sm:$0xff] %vm940, %v912
      %946 = vst.msk [vmem:[%s175 + $0x28] sm:$0xff] %vm940, %v913
      %947 = vst.msk [vmem:[%s175 + $0x30] sm:$0xff] %vm940, %v914
      %948 = vst.msk [vmem:[%s175 + $0x38] sm:$0xff] %vm940, %v915
      %949 = vst.msk [vmem:[%s175 + $0x40] sm:$0xff] %vm940, %v916
      %950 = vst.msk [vmem:[%s175 + $0x48] sm:$0xff] %vm940, %v917
      %951 = vst.msk [vmem:[%s175 + $0x50] sm:$0xff] %vm940, %v918
      %952 = vst.msk [vmem:[%s175 + $0x58] sm:$0xff] %vm940, %v919
      %953 = vst.msk [vmem:[%s175 + $0x60] sm:$0xff] %vm940, %v920
      %954 = vst.msk [vmem:[%s175 + $0x68] sm:$0xff] %vm940, %v921
      %955 = vst.msk [vmem:[%s175 + $0x70] sm:$0xff] %vm940, %v922
      %956 = vst.msk [vmem:[%s175 + $0x78] sm:$0xff] %vm940, %v923
      %957 = vst.msk [vmem:[%s175 + $0x80] sm:$0xff] %vm940, %v924
      %958 = vst.msk [vmem:[%s175 + $0x88] sm:$0xff] %vm940, %v925
      %959 = vst.msk [vmem:[%s175 + $0x90] sm:$0xff] %vm940, %v926
      %960 = vst.msk [vmem:[%s175 + $0x98] sm:$0xff] %vm940, %v927
      %961 = vst.msk [vmem:[%s175 + $0xa0] sm:$0xff] %vm940, %v928
      %962 = vst.msk [vmem:[%s175 + $0xa8] sm:$0xff] %vm940, %v929
      %963 = vst.msk [vmem:[%s175 + $0xb0] sm:$0xff] %vm940, %v930
      %964 = vst.msk [vmem:[%s175 + $0xb8] sm:$0xff] %vm940, %v931
      %965 = vst.msk [vmem:[%s175 + $0xc0] sm:$0xff] %vm940, %v932
      %966 = vst.msk [vmem:[%s175 + $0xc8] sm:$0xff] %vm940, %v933
      %967 = vst.msk [vmem:[%s175 + $0xd0] sm:$0xff] %vm940, %v934
      %968 = vst.msk [vmem:[%s175 + $0xd8] sm:$0xff] %vm940, %v935
      %969 = vst.msk [vmem:[%s175 + $0xe0] sm:$0xff] %vm940, %v936
      %970 = vst.msk [vmem:[%s175 + $0xe8] sm:$0xff] %vm940, %v937
      %971 = vst.msk [vmem:[%s175 + $0xf0] sm:$0xff] %vm940, %v938
      %972 = vst.msk [vmem:[%s175 + $0xf8] sm:$0xff] %vm940, %v939
      %s973 = smul.u32 32, %s14
      %p974 = scmp.lt.s32.totalorder %s973, 63
      %s975 = scalar_select %p974, %s973, 63
      %s976 = smul.addr %s975, 8
      %s977 = scalar_lea.vmem %s3, %s976
      // Predicated region
      $region33: #{resnet_generator_forward.41} parent=31 // pred_check
        %p978 = pneg %p100
      $region34: #{resnet_generator_forward.41} parent=31 // pred_check_branch
        %980 = sbr.rel (%p978) target = $region36
      $region35: #{resnet_generator_forward.41} parent=31 // pred_region
        %s981 = smul.u32 32, %s14
      $region36: #{resnet_generator_forward.41} parent=31 // pred_fallthru
        _
    $region32: #{resnet_generator_forward.41} parent=5 // pred_fallthru
      _
    %p982 = scmp.le.s32.totalorder 2, %s9
    // Predicated region
    $region37: #{resnet_generator_forward.41} parent=5 // pred_check
      %p983 = pneg %p982
    $region38: #{resnet_generator_forward.41} parent=5 // pred_check_branch
      %985 = sbr.rel (%p983) target = $region40
    $region39: #{resnet_generator_forward.41} parent=5 // pred_region
      %s986 = ssub.s32 %s9, 2
      // Predicated region
      $region41: #{resnet_generator_forward.41} parent=39 // pred_check
        %p987 = pneg %p106
      $region42: #{resnet_generator_forward.41} parent=39 // pred_check_branch
        %989 = sbr.rel (%p987) target = $region44
      $region43: #{resnet_generator_forward.41} parent=39 // pred_region
        %s990 = smul.u32 32, %s15
        %p991 = scmp.lt.s32.totalorder %s990, 63
        %s992 = scalar_select %p991, %s990, 63
        %s993 = smul.addr %s992, 8
        %s994 = scalar_lea.vmem %s3, %s993
      $region44: #{resnet_generator_forward.41} parent=39 // pred_fallthru
        _
    $region40: #{resnet_generator_forward.41} parent=5 // pred_fallthru
      _
  $region6: #{resnet_generator_forward.41} parent=0 // loop_footer
    %s13 = sadd.s32 1, %s9
  $region7: #{resnet_generator_forward.41} parent=0 // loop_footer_branch
    %8 = sbr.rel target = $region3
  $region8: #{resnet_generator_forward.41} parent=0 // loop_exit
    _

</llo_original>
